<compile_context>
chip_gen: v7x
topology: tpu7x:2x2x1
jax: 0.10.0
libtpu: 0.0.40
codegen_flags: <defaults>
</compile_context>

<pallas_src>
import jax
import jax.numpy as jnp
from jax.experimental import pallas as pl
from jax.experimental.pallas import tpu as pltpu


# ----------------------------- Pallas kernel ------------------------------- #

def model_mn_kernel(p_ref, w1_ref, s1_ref,
                    g2_ref, w2_ref, s2_ref,
                    g3_ref, w3_ref, s3_ref,
                    g4_ref, w4_ref, s4_ref,
                    fcw_ref, fcb_ref, out_ref):
    """Whole model_mn forward for one sample (grid is over the batch)."""
    bf16 = jnp.bfloat16
    f32 = jnp.float32

    # ---- conv1 + BN + ReLU: im2col patches (256, 9) @ folded weight (9, 32) ----
    p = p_ref[0].astype(bf16)                                      # (256, 9)
    a = jnp.dot(p, w1_ref[...], preferred_element_type=f32)        # (256, 32)
    a = jnp.maximum(a + s1_ref[...], 0.0)

    # ---- conv2..conv4 + BN + ReLU: 9 tap-gather matmuls + 9 weight matmuls each ----
    for g_ref, w_ref, s_ref in ((g2_ref, w2_ref, s2_ref),
                                (g3_ref, w3_ref, s3_ref),
                                (g4_ref, w4_ref, s4_ref)):
        a16 = a.astype(bf16)                                       # (M_in, C_in)
        m_out = g_ref.shape[1]
        c_out = w_ref.shape[2]
        acc = jnp.zeros((m_out, c_out), f32)
        for t in range(9):                                         # unrolled 3x3 taps
            # 0/1 gather matrix -> exact row selection (zeros where padding)
            tap = jnp.dot(g_ref[t], a16,
                          preferred_element_type=f32).astype(bf16)  # (M_out, C_in)
            acc = acc + jnp.dot(tap, w_ref[t], preferred_element_type=f32)
        a = jnp.maximum(acc + s_ref[...], 0.0)                     # (M_out, C_out)

    # ---- fc (NCHW flatten order folded into fcw) + Softmax(dim=1) ----
    a16 = a.astype(bf16)                                           # (4, 256)
    logits = fcb_ref[...]                                          # (1, 10) f32
    for m in range(4):                                             # 4 spatial positions
        logits = logits + jnp.dot(a16[m:m + 1, :], fcw_ref[m],
                                  preferred_element_type=f32)
    mx = jnp.max(logits, axis=-1, keepdims=True)
    e = jnp.exp(logits - mx)
    denom = jnp.sum(e, axis=-1, keepdims=True)
    out_ref[0] = e * pl.reciprocal(denom, approx=True)             # (1, 10)


# ------------------------------- JAX glue ---------------------------------- #

def im2col_conv1(x_nhwc):
    """Layer-1 im2col on the raw 1-channel input: (N, 32, 32, 1) -> (N, 256, 9)."""
    N, H, W, _ = x_nhwc.shape
    Ho, Wo = H // 2, W // 2
    xp = jnp.pad(x_nhwc[..., 0], ((0, 0), (1, 1), (1, 1)))
    taps = [xp[:, kh:kh + 2 * Ho:2, kw:kw + 2 * Wo:2]
            for kh in range(3) for kw in range(3)]
    return jnp.stack(taps, axis=-1).reshape(N, Ho * Wo, 9)


def make_gather_taps(s_in):
    """0/1 tap-selection matrices for a 3x3, stride-2, pad-1 conv on an s_in x s_in grid.

    Returns (9, s_out*s_out, s_in*s_in) bf16 with
      G[t, i*s_out + j, r*s_in + c] = 1  iff  (r, c) == (2i + kh - 1, 2j + kw - 1)
    is inside the input (t = kh*3 + kw); out-of-range taps give all-zero rows (padding).
    """
    s_out = s_in // 2
    o = jnp.arange(s_out)
    idx = jnp.arange(s_in)
    mats = []
    for kh in range(3):
        for kw in range(3):
            r = 2 * o + kh - 1
            c = 2 * o + kw - 1
            oh_r = (r[:, None] == idx[None, :]).astype(jnp.float32)   # (s_out, s_in)
            oh_c = (c[:, None] == idx[None, :]).astype(jnp.float32)
            g = jnp.einsum('ia,jb->ijab', oh_r, oh_c)
            mats.append(g.reshape(s_out * s_out, s_in * s_in))
    return jnp.stack(mats, axis=0).astype(jnp.bfloat16)


def init_params(key):
    """Deterministic synthetic parameters for model_mn(conv_count=4), eval-mode BN folded."""
    eps = 1e-5
    chans = [(1, 32), (32, 64), (64, 128), (128, 256)]
    conv_w, shifts = [], []
    for cin, cout in chans:
        key, k1, k2, k3, k4, k5 = jax.random.split(key, 6)
        w = jax.random.normal(k1, (3, 3, cin, cout), jnp.float32) / (9 * cin) ** 0.5
        gamma = 1.0 + 0.1 * jax.random.normal(k2, (cout,), jnp.float32)
        beta = 0.1 * jax.random.normal(k3, (cout,), jnp.float32)
        mean = 0.1 * jax.random.normal(k4, (cout,), jnp.float32)
        var = jnp.abs(jax.random.normal(k5, (cout,), jnp.float32)) + 0.5
        scale = gamma / jnp.sqrt(var + eps)               # BN(eval) folded into the weight
        shift = (beta - mean * scale).reshape(1, cout)
        conv_w.append((w * scale).reshape(9, cin, cout).astype(jnp.bfloat16))
        shifts.append(shift)

    # Tap-gather matrices for conv2..conv4 (their inputs are 16x16, 8x8, 4x4).
    g2, g3, g4 = make_gather_taps(16), make_gather_taps(8), make_gather_taps(4)

    key, kf1, kf2 = jax.random.split(key, 3)
    fc_w = jax.random.normal(kf1, (10, 256 * 2 * 2), jnp.float32) / 1024.0 ** 0.5
    fc_b = (0.1 * jax.random.normal(kf2, (10,), jnp.float32)).reshape(1, 10)
    # Reorder fc weights so the kernel consumes the (h*2+w, c) activation layout directly
    # (== torch's NCHW x.view(N, -1)):  fcw[m, c, o] = fc_w[o, c*4 + m].
    fcw = jnp.transpose(fc_w.reshape(10, 256, 4), (2, 1, 0)).astype(jnp.bfloat16)

    w1 = conv_w[0][:, 0, :]                               # (9, 32): C_in == 1
    return (w1, shifts[0],
            g2, conv_w[1], shifts[1],
            g3, conv_w[2], shifts[2],
            g4, conv_w[3], shifts[3],
            fcw, fc_b)


@jax.jit
def forward(x_nchw, params):
    (w1, s1, g2, w2, s2, g3, w3, s3, g4, w4, s4, fcw, fcb) = params
    N = x_nchw.shape[0]
    x = jnp.transpose(x_nchw, (0, 2, 3, 1))               # NCHW -> NHWC
    patches = im2col_conv1(x)                             # (N, 256, 9)

    out = pl.pallas_call(
        model_mn_kernel,
        grid=(N,),
        in_specs=[
            pl.BlockSpec((1,) + patches.shape[1:], lambda n: (n, 0, 0)),  # per-sample
            pl.BlockSpec(w1.shape, lambda n: (0, 0)),
            pl.BlockSpec(s1.shape, lambda n: (0, 0)),
            pl.BlockSpec(g2.shape, lambda n: (0, 0, 0)),
            pl.BlockSpec(w2.shape, lambda n: (0, 0, 0)),
            pl.BlockSpec(s2.shape, lambda n: (0, 0)),
            pl.BlockSpec(g3.shape, lambda n: (0, 0, 0)),
            pl.BlockSpec(w3.shape, lambda n: (0, 0, 0)),
            pl.BlockSpec(s3.shape, lambda n: (0, 0)),
            pl.BlockSpec(g4.shape, lambda n: (0, 0, 0)),
            pl.BlockSpec(w4.shape, lambda n: (0, 0, 0)),
            pl.BlockSpec(s4.shape, lambda n: (0, 0)),
            pl.BlockSpec(fcw.shape, lambda n: (0, 0, 0)),
            pl.BlockSpec(fcb.shape, lambda n: (0, 0)),
        ],
        out_specs=pl.BlockSpec((1, 1, 10), lambda n: (n, 0, 0)),
        out_shape=jax.ShapeDtypeStruct((N, 1, 10), jnp.float32),
        compiler_params=pltpu.CompilerParams(
            dimension_semantics=("parallel",)),
    )(patches, w1, s1, g2, w2, s2, g3, w3, s3, g4, w4, s4, fcw, fcb)
    return out[:, 0, :]


@jax.jit
def reference_forward(x_nchw, params):
    """Pure-JAX f32 reference (same folded weights) for a sanity tolerance check."""
    (w1, s1, g2, w2, s2, g3, w3, s3, g4, w4, s4, fcw, fcb) = params
    del g2, g3, g4
    ws = [w1.astype(jnp.float32).reshape(9, 1, 32),
          w2.astype(jnp.float32), w3.astype(jnp.float32), w4.astype(jnp.float32)]
    ss = [s1, s2, s3, s4]
    x = jnp.transpose(x_nchw, (0, 2, 3, 1))
    for w, s in zip(ws, ss):
        N, H, W, C = x.shape
        Ho, Wo = H // 2, W // 2
        xp = jnp.pad(x, ((0, 0), (1, 1), (1, 1), (0, 0)))
        taps = [xp[:, kh:kh + 2 * Ho:2, kw:kw + 2 * Wo:2, :]
                for kh in range(3) for kw in range(3)]
        p = jnp.stack(taps, axis=3).reshape(N * Ho * Wo, 9 * C)
        y = jnp.maximum(p @ w.reshape(9 * C, -1) + s, 0.0)
        x = y.reshape(N, Ho, Wo, -1)
    N = x.shape[0]
    feat = jnp.transpose(x, (0, 3, 1, 2)).reshape(N, -1)           # torch x.view(N, -1)
    fc_mat = jnp.transpose(fcw.astype(jnp.float32), (1, 0, 2)).reshape(256 * 4, 10)
    logits = feat @ fc_mat + fcb
    return jax.nn.softmax(logits, axis=1)


if __name__ == "__main__":
    key = jax.random.PRNGKey(0)
    k_x, k_p = jax.random.split(key)
    # Input must be (N, 1, 32, 32): four stride-2 convs give (N, 256, 2, 2),
    # matching fc = Linear(256*2*2, 10).  Small batch of 2.
    x = jax.random.normal(k_x, (2, 1, 32, 32), jnp.float32)
    params = init_params(k_p)

    probs = forward(x, params)
    probs = jax.block_until_ready(probs)

    assert probs.shape == (2, 10)
    row_sums = jnp.sum(probs, axis=1)
    # approx reciprocal + bf16 matmuls: rows sum to 1 within ~1e-3
    assert bool(jnp.all(jnp.abs(row_sums - 1.0) < 2e-3)), row_sums
    assert bool(jnp.all(probs >= 0.0))

    ref = reference_forward(x, params)
    assert bool(jnp.all(jnp.abs(probs - ref) < 5e-2)), float(jnp.max(jnp.abs(probs - ref)))

    print("KERNEL_OK")
</pallas_src>

<mosaic_0001>
module attributes {stable_mosaic.version = 11 : i64} {
  func.func @model_mn_kernel(%arg0: i32, %arg1: memref<1x256x9xf32, #tpu.memory_space<vmem>>, %arg2: memref<9x32xbf16, #tpu.memory_space<vmem>>, %arg3: memref<1x32xf32, #tpu.memory_space<vmem>>, %arg4: memref<9x64x256xbf16, #tpu.memory_space<vmem>>, %arg5: memref<9x32x64xbf16, #tpu.memory_space<vmem>>, %arg6: memref<1x64xf32, #tpu.memory_space<vmem>>, %arg7: memref<9x16x64xbf16, #tpu.memory_space<vmem>>, %arg8: memref<9x64x128xbf16, #tpu.memory_space<vmem>>, %arg9: memref<1x128xf32, #tpu.memory_space<vmem>>, %arg10: memref<9x4x16xbf16, #tpu.memory_space<vmem>>, %arg11: memref<9x128x256xbf16, #tpu.memory_space<vmem>>, %arg12: memref<1x256xf32, #tpu.memory_space<vmem>>, %arg13: memref<4x256x10xbf16, #tpu.memory_space<vmem>>, %arg14: memref<1x10xf32, #tpu.memory_space<vmem>>, %arg15: memref<1x1x10xf32, #tpu.memory_space<vmem>>) attributes {dimension_semantics = [#tpu.dimension_semantics<parallel>], iteration_bounds = array<i64: 2>, scalar_prefetch = 0 : i64, scratch_operands = 0 : i64, tpu.core_type = #tpu.core_type<tc>, window_params = [{transform_indices = @transform_0, window_bounds = array<i64: 1, 256, 9>}, {pipeline_mode = #tpu.pipeline_mode<synchronous>, transform_indices = @transform_1, window_bounds = array<i64: 9, 32>}, {pipeline_mode = #tpu.pipeline_mode<synchronous>, transform_indices = @transform_2, window_bounds = array<i64: 1, 32>}, {pipeline_mode = #tpu.pipeline_mode<synchronous>, transform_indices = @transform_3, window_bounds = array<i64: 9, 64, 256>}, {pipeline_mode = #tpu.pipeline_mode<synchronous>, transform_indices = @transform_4, window_bounds = array<i64: 9, 32, 64>}, {pipeline_mode = #tpu.pipeline_mode<synchronous>, transform_indices = @transform_5, window_bounds = array<i64: 1, 64>}, {pipeline_mode = #tpu.pipeline_mode<synchronous>, transform_indices = @transform_6, window_bounds = array<i64: 9, 16, 64>}, {pipeline_mode = #tpu.pipeline_mode<synchronous>, transform_indices = @transform_7, window_bounds = array<i64: 9, 64, 128>}, {pipeline_mode = #tpu.pipeline_mode<synchronous>, transform_indices = @transform_8, window_bounds = array<i64: 1, 128>}, {pipeline_mode = #tpu.pipeline_mode<synchronous>, transform_indices = @transform_9, window_bounds = array<i64: 9, 4, 16>}, {pipeline_mode = #tpu.pipeline_mode<synchronous>, transform_indices = @transform_10, window_bounds = array<i64: 9, 128, 256>}, {pipeline_mode = #tpu.pipeline_mode<synchronous>, transform_indices = @transform_11, window_bounds = array<i64: 1, 256>}, {pipeline_mode = #tpu.pipeline_mode<synchronous>, transform_indices = @transform_12, window_bounds = array<i64: 4, 256, 10>}, {pipeline_mode = #tpu.pipeline_mode<synchronous>, transform_indices = @transform_13, window_bounds = array<i64: 1, 10>}, {transform_indices = @transform_14, window_bounds = array<i64: 1, 1, 10>}]} {
    %c0 = arith.constant 0 : index
    %c0_0 = arith.constant 0 : index
    %c0_1 = arith.constant 0 : index
    %0 = vector.load %arg1[%c0, %c0_0, %c0_1] : memref<1x256x9xf32, #tpu.memory_space<vmem>>, vector<1x256x9xf32>
    %1 = vector.shape_cast %0 : vector<1x256x9xf32> to vector<256x9xf32>
    %2 = arith.truncf %1 : vector<256x9xf32> to vector<256x9xbf16>
    %c0_2 = arith.constant 0 : index
    %c0_3 = arith.constant 0 : index
    %3 = vector.load %arg2[%c0_2, %c0_3] : memref<9x32xbf16, #tpu.memory_space<vmem>>, vector<9x32xbf16>
    %cst = arith.constant dense<0.000000e+00> : vector<256x32xf32>
    %4 = tpu.matmul %2, %3, %cst {dimension_numbers = #tpu.dot_dimension_numbers<[1], [0], [0], [1], [0, 0, 1, 1], [], []>} : vector<256x9xbf16>, vector<9x32xbf16>, vector<256x32xf32> -> vector<256x32xf32>
    %c0_4 = arith.constant 0 : index
    %c0_5 = arith.constant 0 : index
    %5 = vector.load %arg3[%c0_4, %c0_5] : memref<1x32xf32, #tpu.memory_space<vmem>>, vector<1x32xf32>
    %6 = vector.broadcast %5 : vector<1x32xf32> to vector<256x32xf32>
    %7 = arith.addf %4, %6 : vector<256x32xf32>
    %cst_6 = arith.constant 0.000000e+00 : f32
    %8 = vector.broadcast %cst_6 : f32 to vector<256x32xf32>
    %9 = arith.maximumf %7, %8 : vector<256x32xf32>
    %10 = arith.truncf %9 : vector<256x32xf32> to vector<256x32xbf16>
    %cst_7 = arith.constant 0.000000e+00 : f32
    %11 = vector.broadcast %cst_7 : f32 to vector<64x64xf32>
    %c0_8 = arith.constant 0 : index
    %c0_9 = arith.constant 0 : index
    %c0_10 = arith.constant 0 : index
    %12 = vector.load %arg4[%c0_8, %c0_9, %c0_10] : memref<9x64x256xbf16, #tpu.memory_space<vmem>>, vector<1x64x256xbf16>
    %13 = vector.shape_cast %12 : vector<1x64x256xbf16> to vector<64x256xbf16>
    %cst_11 = arith.constant dense<0.000000e+00> : vector<64x32xf32>
    %14 = tpu.matmul %13, %10, %cst_11 {dimension_numbers = #tpu.dot_dimension_numbers<[1], [0], [0], [1], [0, 0, 1, 1], [], []>} : vector<64x256xbf16>, vector<256x32xbf16>, vector<64x32xf32> -> vector<64x32xf32>
    %15 = arith.truncf %14 : vector<64x32xf32> to vector<64x32xbf16>
    %c0_12 = arith.constant 0 : index
    %c0_13 = arith.constant 0 : index
    %c0_14 = arith.constant 0 : index
    %16 = vector.load %arg5[%c0_12, %c0_13, %c0_14] : memref<9x32x64xbf16, #tpu.memory_space<vmem>>, vector<1x32x64xbf16>
    %17 = vector.shape_cast %16 : vector<1x32x64xbf16> to vector<32x64xbf16>
    %cst_15 = arith.constant dense<0.000000e+00> : vector<64x64xf32>
    %18 = tpu.matmul %15, %17, %cst_15 {dimension_numbers = #tpu.dot_dimension_numbers<[1], [0], [0], [1], [0, 0, 1, 1], [], []>} : vector<64x32xbf16>, vector<32x64xbf16>, vector<64x64xf32> -> vector<64x64xf32>
    %19 = arith.addf %11, %18 : vector<64x64xf32>
    %c1 = arith.constant 1 : index
    %c0_16 = arith.constant 0 : index
    %c0_17 = arith.constant 0 : index
    %20 = vector.load %arg4[%c1, %c0_16, %c0_17] : memref<9x64x256xbf16, #tpu.memory_space<vmem>>, vector<1x64x256xbf16>
    %21 = vector.shape_cast %20 : vector<1x64x256xbf16> to vector<64x256xbf16>
    %cst_18 = arith.constant dense<0.000000e+00> : vector<64x32xf32>
    %22 = tpu.matmul %21, %10, %cst_18 {dimension_numbers = #tpu.dot_dimension_numbers<[1], [0], [0], [1], [0, 0, 1, 1], [], []>} : vector<64x256xbf16>, vector<256x32xbf16>, vector<64x32xf32> -> vector<64x32xf32>
    %23 = arith.truncf %22 : vector<64x32xf32> to vector<64x32xbf16>
    %c1_19 = arith.constant 1 : index
    %c0_20 = arith.constant 0 : index
    %c0_21 = arith.constant 0 : index
    %24 = vector.load %arg5[%c1_19, %c0_20, %c0_21] : memref<9x32x64xbf16, #tpu.memory_space<vmem>>, vector<1x32x64xbf16>
    %25 = vector.shape_cast %24 : vector<1x32x64xbf16> to vector<32x64xbf16>
    %cst_22 = arith.constant dense<0.000000e+00> : vector<64x64xf32>
    %26 = tpu.matmul %23, %25, %cst_22 {dimension_numbers = #tpu.dot_dimension_numbers<[1], [0], [0], [1], [0, 0, 1, 1], [], []>} : vector<64x32xbf16>, vector<32x64xbf16>, vector<64x64xf32> -> vector<64x64xf32>
    %27 = arith.addf %19, %26 : vector<64x64xf32>
    %c2 = arith.constant 2 : index
    %c0_23 = arith.constant 0 : index
    %c0_24 = arith.constant 0 : index
    %28 = vector.load %arg4[%c2, %c0_23, %c0_24] : memref<9x64x256xbf16, #tpu.memory_space<vmem>>, vector<1x64x256xbf16>
    %29 = vector.shape_cast %28 : vector<1x64x256xbf16> to vector<64x256xbf16>
    %cst_25 = arith.constant dense<0.000000e+00> : vector<64x32xf32>
    %30 = tpu.matmul %29, %10, %cst_25 {dimension_numbers = #tpu.dot_dimension_numbers<[1], [0], [0], [1], [0, 0, 1, 1], [], []>} : vector<64x256xbf16>, vector<256x32xbf16>, vector<64x32xf32> -> vector<64x32xf32>
    %31 = arith.truncf %30 : vector<64x32xf32> to vector<64x32xbf16>
    %c2_26 = arith.constant 2 : index
    %c0_27 = arith.constant 0 : index
    %c0_28 = arith.constant 0 : index
    %32 = vector.load %arg5[%c2_26, %c0_27, %c0_28] : memref<9x32x64xbf16, #tpu.memory_space<vmem>>, vector<1x32x64xbf16>
    %33 = vector.shape_cast %32 : vector<1x32x64xbf16> to vector<32x64xbf16>
    %cst_29 = arith.constant dense<0.000000e+00> : vector<64x64xf32>
    %34 = tpu.matmul %31, %33, %cst_29 {dimension_numbers = #tpu.dot_dimension_numbers<[1], [0], [0], [1], [0, 0, 1, 1], [], []>} : vector<64x32xbf16>, vector<32x64xbf16>, vector<64x64xf32> -> vector<64x64xf32>
    %35 = arith.addf %27, %34 : vector<64x64xf32>
    %c3 = arith.constant 3 : index
    %c0_30 = arith.constant 0 : index
    %c0_31 = arith.constant 0 : index
    %36 = vector.load %arg4[%c3, %c0_30, %c0_31] : memref<9x64x256xbf16, #tpu.memory_space<vmem>>, vector<1x64x256xbf16>
    %37 = vector.shape_cast %36 : vector<1x64x256xbf16> to vector<64x256xbf16>
    %cst_32 = arith.constant dense<0.000000e+00> : vector<64x32xf32>
    %38 = tpu.matmul %37, %10, %cst_32 {dimension_numbers = #tpu.dot_dimension_numbers<[1], [0], [0], [1], [0, 0, 1, 1], [], []>} : vector<64x256xbf16>, vector<256x32xbf16>, vector<64x32xf32> -> vector<64x32xf32>
    %39 = arith.truncf %38 : vector<64x32xf32> to vector<64x32xbf16>
    %c3_33 = arith.constant 3 : index
    %c0_34 = arith.constant 0 : index
    %c0_35 = arith.constant 0 : index
    %40 = vector.load %arg5[%c3_33, %c0_34, %c0_35] : memref<9x32x64xbf16, #tpu.memory_space<vmem>>, vector<1x32x64xbf16>
    %41 = vector.shape_cast %40 : vector<1x32x64xbf16> to vector<32x64xbf16>
    %cst_36 = arith.constant dense<0.000000e+00> : vector<64x64xf32>
    %42 = tpu.matmul %39, %41, %cst_36 {dimension_numbers = #tpu.dot_dimension_numbers<[1], [0], [0], [1], [0, 0, 1, 1], [], []>} : vector<64x32xbf16>, vector<32x64xbf16>, vector<64x64xf32> -> vector<64x64xf32>
    %43 = arith.addf %35, %42 : vector<64x64xf32>
    %c4 = arith.constant 4 : index
    %c0_37 = arith.constant 0 : index
    %c0_38 = arith.constant 0 : index
    %44 = vector.load %arg4[%c4, %c0_37, %c0_38] : memref<9x64x256xbf16, #tpu.memory_space<vmem>>, vector<1x64x256xbf16>
    %45 = vector.shape_cast %44 : vector<1x64x256xbf16> to vector<64x256xbf16>
    %cst_39 = arith.constant dense<0.000000e+00> : vector<64x32xf32>
    %46 = tpu.matmul %45, %10, %cst_39 {dimension_numbers = #tpu.dot_dimension_numbers<[1], [0], [0], [1], [0, 0, 1, 1], [], []>} : vector<64x256xbf16>, vector<256x32xbf16>, vector<64x32xf32> -> vector<64x32xf32>
    %47 = arith.truncf %46 : vector<64x32xf32> to vector<64x32xbf16>
    %c4_40 = arith.constant 4 : index
    %c0_41 = arith.constant 0 : index
    %c0_42 = arith.constant 0 : index
    %48 = vector.load %arg5[%c4_40, %c0_41, %c0_42] : memref<9x32x64xbf16, #tpu.memory_space<vmem>>, vector<1x32x64xbf16>
    %49 = vector.shape_cast %48 : vector<1x32x64xbf16> to vector<32x64xbf16>
    %cst_43 = arith.constant dense<0.000000e+00> : vector<64x64xf32>
    %50 = tpu.matmul %47, %49, %cst_43 {dimension_numbers = #tpu.dot_dimension_numbers<[1], [0], [0], [1], [0, 0, 1, 1], [], []>} : vector<64x32xbf16>, vector<32x64xbf16>, vector<64x64xf32> -> vector<64x64xf32>
    %51 = arith.addf %43, %50 : vector<64x64xf32>
    %c5 = arith.constant 5 : index
    %c0_44 = arith.constant 0 : index
    %c0_45 = arith.constant 0 : index
    %52 = vector.load %arg4[%c5, %c0_44, %c0_45] : memref<9x64x256xbf16, #tpu.memory_space<vmem>>, vector<1x64x256xbf16>
    %53 = vector.shape_cast %52 : vector<1x64x256xbf16> to vector<64x256xbf16>
    %cst_46 = arith.constant dense<0.000000e+00> : vector<64x32xf32>
    %54 = tpu.matmul %53, %10, %cst_46 {dimension_numbers = #tpu.dot_dimension_numbers<[1], [0], [0], [1], [0, 0, 1, 1], [], []>} : vector<64x256xbf16>, vector<256x32xbf16>, vector<64x32xf32> -> vector<64x32xf32>
    %55 = arith.truncf %54 : vector<64x32xf32> to vector<64x32xbf16>
    %c5_47 = arith.constant 5 : index
    %c0_48 = arith.constant 0 : index
    %c0_49 = arith.constant 0 : index
    %56 = vector.load %arg5[%c5_47, %c0_48, %c0_49] : memref<9x32x64xbf16, #tpu.memory_space<vmem>>, vector<1x32x64xbf16>
    %57 = vector.shape_cast %56 : vector<1x32x64xbf16> to vector<32x64xbf16>
    %cst_50 = arith.constant dense<0.000000e+00> : vector<64x64xf32>
    %58 = tpu.matmul %55, %57, %cst_50 {dimension_numbers = #tpu.dot_dimension_numbers<[1], [0], [0], [1], [0, 0, 1, 1], [], []>} : vector<64x32xbf16>, vector<32x64xbf16>, vector<64x64xf32> -> vector<64x64xf32>
    %59 = arith.addf %51, %58 : vector<64x64xf32>
    %c6 = arith.constant 6 : index
    %c0_51 = arith.constant 0 : index
    %c0_52 = arith.constant 0 : index
    %60 = vector.load %arg4[%c6, %c0_51, %c0_52] : memref<9x64x256xbf16, #tpu.memory_space<vmem>>, vector<1x64x256xbf16>
    %61 = vector.shape_cast %60 : vector<1x64x256xbf16> to vector<64x256xbf16>
    %cst_53 = arith.constant dense<0.000000e+00> : vector<64x32xf32>
    %62 = tpu.matmul %61, %10, %cst_53 {dimension_numbers = #tpu.dot_dimension_numbers<[1], [0], [0], [1], [0, 0, 1, 1], [], []>} : vector<64x256xbf16>, vector<256x32xbf16>, vector<64x32xf32> -> vector<64x32xf32>
    %63 = arith.truncf %62 : vector<64x32xf32> to vector<64x32xbf16>
    %c6_54 = arith.constant 6 : index
    %c0_55 = arith.constant 0 : index
    %c0_56 = arith.constant 0 : index
    %64 = vector.load %arg5[%c6_54, %c0_55, %c0_56] : memref<9x32x64xbf16, #tpu.memory_space<vmem>>, vector<1x32x64xbf16>
    %65 = vector.shape_cast %64 : vector<1x32x64xbf16> to vector<32x64xbf16>
    %cst_57 = arith.constant dense<0.000000e+00> : vector<64x64xf32>
    %66 = tpu.matmul %63, %65, %cst_57 {dimension_numbers = #tpu.dot_dimension_numbers<[1], [0], [0], [1], [0, 0, 1, 1], [], []>} : vector<64x32xbf16>, vector<32x64xbf16>, vector<64x64xf32> -> vector<64x64xf32>
    %67 = arith.addf %59, %66 : vector<64x64xf32>
    %c7 = arith.constant 7 : index
    %c0_58 = arith.constant 0 : index
    %c0_59 = arith.constant 0 : index
    %68 = vector.load %arg4[%c7, %c0_58, %c0_59] : memref<9x64x256xbf16, #tpu.memory_space<vmem>>, vector<1x64x256xbf16>
    %69 = vector.shape_cast %68 : vector<1x64x256xbf16> to vector<64x256xbf16>
    %cst_60 = arith.constant dense<0.000000e+00> : vector<64x32xf32>
    %70 = tpu.matmul %69, %10, %cst_60 {dimension_numbers = #tpu.dot_dimension_numbers<[1], [0], [0], [1], [0, 0, 1, 1], [], []>} : vector<64x256xbf16>, vector<256x32xbf16>, vector<64x32xf32> -> vector<64x32xf32>
    %71 = arith.truncf %70 : vector<64x32xf32> to vector<64x32xbf16>
    %c7_61 = arith.constant 7 : index
    %c0_62 = arith.constant 0 : index
    %c0_63 = arith.constant 0 : index
    %72 = vector.load %arg5[%c7_61, %c0_62, %c0_63] : memref<9x32x64xbf16, #tpu.memory_space<vmem>>, vector<1x32x64xbf16>
    %73 = vector.shape_cast %72 : vector<1x32x64xbf16> to vector<32x64xbf16>
    %cst_64 = arith.constant dense<0.000000e+00> : vector<64x64xf32>
    %74 = tpu.matmul %71, %73, %cst_64 {dimension_numbers = #tpu.dot_dimension_numbers<[1], [0], [0], [1], [0, 0, 1, 1], [], []>} : vector<64x32xbf16>, vector<32x64xbf16>, vector<64x64xf32> -> vector<64x64xf32>
    %75 = arith.addf %67, %74 : vector<64x64xf32>
    %c8 = arith.constant 8 : index
    %c0_65 = arith.constant 0 : index
    %c0_66 = arith.constant 0 : index
    %76 = vector.load %arg4[%c8, %c0_65, %c0_66] : memref<9x64x256xbf16, #tpu.memory_space<vmem>>, vector<1x64x256xbf16>
    %77 = vector.shape_cast %76 : vector<1x64x256xbf16> to vector<64x256xbf16>
    %cst_67 = arith.constant dense<0.000000e+00> : vector<64x32xf32>
    %78 = tpu.matmul %77, %10, %cst_67 {dimension_numbers = #tpu.dot_dimension_numbers<[1], [0], [0], [1], [0, 0, 1, 1], [], []>} : vector<64x256xbf16>, vector<256x32xbf16>, vector<64x32xf32> -> vector<64x32xf32>
    %79 = arith.truncf %78 : vector<64x32xf32> to vector<64x32xbf16>
    %c8_68 = arith.constant 8 : index
    %c0_69 = arith.constant 0 : index
    %c0_70 = arith.constant 0 : index
    %80 = vector.load %arg5[%c8_68, %c0_69, %c0_70] : memref<9x32x64xbf16, #tpu.memory_space<vmem>>, vector<1x32x64xbf16>
    %81 = vector.shape_cast %80 : vector<1x32x64xbf16> to vector<32x64xbf16>
    %cst_71 = arith.constant dense<0.000000e+00> : vector<64x64xf32>
    %82 = tpu.matmul %79, %81, %cst_71 {dimension_numbers = #tpu.dot_dimension_numbers<[1], [0], [0], [1], [0, 0, 1, 1], [], []>} : vector<64x32xbf16>, vector<32x64xbf16>, vector<64x64xf32> -> vector<64x64xf32>
    %83 = arith.addf %75, %82 : vector<64x64xf32>
    %c0_72 = arith.constant 0 : index
    %c0_73 = arith.constant 0 : index
    %84 = vector.load %arg6[%c0_72, %c0_73] : memref<1x64xf32, #tpu.memory_space<vmem>>, vector<1x64xf32>
    %85 = vector.broadcast %84 : vector<1x64xf32> to vector<64x64xf32>
    %86 = arith.addf %83, %85 : vector<64x64xf32>
    %cst_74 = arith.constant 0.000000e+00 : f32
    %87 = vector.broadcast %cst_74 : f32 to vector<64x64xf32>
    %88 = arith.maximumf %86, %87 : vector<64x64xf32>
    %89 = arith.truncf %88 : vector<64x64xf32> to vector<64x64xbf16>
    %cst_75 = arith.constant 0.000000e+00 : f32
    %90 = vector.broadcast %cst_75 : f32 to vector<16x128xf32>
    %c0_76 = arith.constant 0 : index
    %c0_77 = arith.constant 0 : index
    %c0_78 = arith.constant 0 : index
    %91 = vector.load %arg7[%c0_76, %c0_77, %c0_78] : memref<9x16x64xbf16, #tpu.memory_space<vmem>>, vector<1x16x64xbf16>
    %92 = vector.shape_cast %91 : vector<1x16x64xbf16> to vector<16x64xbf16>
    %cst_79 = arith.constant dense<0.000000e+00> : vector<16x64xf32>
    %93 = tpu.matmul %92, %89, %cst_79 {dimension_numbers = #tpu.dot_dimension_numbers<[1], [0], [0], [1], [0, 0, 1, 1], [], []>} : vector<16x64xbf16>, vector<64x64xbf16>, vector<16x64xf32> -> vector<16x64xf32>
    %94 = arith.truncf %93 : vector<16x64xf32> to vector<16x64xbf16>
    %c0_80 = arith.constant 0 : index
    %c0_81 = arith.constant 0 : index
    %c0_82 = arith.constant 0 : index
    %95 = vector.load %arg8[%c0_80, %c0_81, %c0_82] : memref<9x64x128xbf16, #tpu.memory_space<vmem>>, vector<1x64x128xbf16>
    %96 = vector.shape_cast %95 : vector<1x64x128xbf16> to vector<64x128xbf16>
    %cst_83 = arith.constant dense<0.000000e+00> : vector<16x128xf32>
    %97 = tpu.matmul %94, %96, %cst_83 {dimension_numbers = #tpu.dot_dimension_numbers<[1], [0], [0], [1], [0, 0, 1, 1], [], []>} : vector<16x64xbf16>, vector<64x128xbf16>, vector<16x128xf32> -> vector<16x128xf32>
    %98 = arith.addf %90, %97 : vector<16x128xf32>
    %c1_84 = arith.constant 1 : index
    %c0_85 = arith.constant 0 : index
    %c0_86 = arith.constant 0 : index
    %99 = vector.load %arg7[%c1_84, %c0_85, %c0_86] : memref<9x16x64xbf16, #tpu.memory_space<vmem>>, vector<1x16x64xbf16>
    %100 = vector.shape_cast %99 : vector<1x16x64xbf16> to vector<16x64xbf16>
    %cst_87 = arith.constant dense<0.000000e+00> : vector<16x64xf32>
    %101 = tpu.matmul %100, %89, %cst_87 {dimension_numbers = #tpu.dot_dimension_numbers<[1], [0], [0], [1], [0, 0, 1, 1], [], []>} : vector<16x64xbf16>, vector<64x64xbf16>, vector<16x64xf32> -> vector<16x64xf32>
    %102 = arith.truncf %101 : vector<16x64xf32> to vector<16x64xbf16>
    %c1_88 = arith.constant 1 : index
    %c0_89 = arith.constant 0 : index
    %c0_90 = arith.constant 0 : index
    %103 = vector.load %arg8[%c1_88, %c0_89, %c0_90] : memref<9x64x128xbf16, #tpu.memory_space<vmem>>, vector<1x64x128xbf16>
    %104 = vector.shape_cast %103 : vector<1x64x128xbf16> to vector<64x128xbf16>
    %cst_91 = arith.constant dense<0.000000e+00> : vector<16x128xf32>
    %105 = tpu.matmul %102, %104, %cst_91 {dimension_numbers = #tpu.dot_dimension_numbers<[1], [0], [0], [1], [0, 0, 1, 1], [], []>} : vector<16x64xbf16>, vector<64x128xbf16>, vector<16x128xf32> -> vector<16x128xf32>
    %106 = arith.addf %98, %105 : vector<16x128xf32>
    %c2_92 = arith.constant 2 : index
    %c0_93 = arith.constant 0 : index
    %c0_94 = arith.constant 0 : index
    %107 = vector.load %arg7[%c2_92, %c0_93, %c0_94] : memref<9x16x64xbf16, #tpu.memory_space<vmem>>, vector<1x16x64xbf16>
    %108 = vector.shape_cast %107 : vector<1x16x64xbf16> to vector<16x64xbf16>
    %cst_95 = arith.constant dense<0.000000e+00> : vector<16x64xf32>
    %109 = tpu.matmul %108, %89, %cst_95 {dimension_numbers = #tpu.dot_dimension_numbers<[1], [0], [0], [1], [0, 0, 1, 1], [], []>} : vector<16x64xbf16>, vector<64x64xbf16>, vector<16x64xf32> -> vector<16x64xf32>
    %110 = arith.truncf %109 : vector<16x64xf32> to vector<16x64xbf16>
    %c2_96 = arith.constant 2 : index
    %c0_97 = arith.constant 0 : index
    %c0_98 = arith.constant 0 : index
    %111 = vector.load %arg8[%c2_96, %c0_97, %c0_98] : memref<9x64x128xbf16, #tpu.memory_space<vmem>>, vector<1x64x128xbf16>
    %112 = vector.shape_cast %111 : vector<1x64x128xbf16> to vector<64x128xbf16>
    %cst_99 = arith.constant dense<0.000000e+00> : vector<16x128xf32>
    %113 = tpu.matmul %110, %112, %cst_99 {dimension_numbers = #tpu.dot_dimension_numbers<[1], [0], [0], [1], [0, 0, 1, 1], [], []>} : vector<16x64xbf16>, vector<64x128xbf16>, vector<16x128xf32> -> vector<16x128xf32>
    %114 = arith.addf %106, %113 : vector<16x128xf32>
    %c3_100 = arith.constant 3 : index
    %c0_101 = arith.constant 0 : index
    %c0_102 = arith.constant 0 : index
    %115 = vector.load %arg7[%c3_100, %c0_101, %c0_102] : memref<9x16x64xbf16, #tpu.memory_space<vmem>>, vector<1x16x64xbf16>
    %116 = vector.shape_cast %115 : vector<1x16x64xbf16> to vector<16x64xbf16>
    %cst_103 = arith.constant dense<0.000000e+00> : vector<16x64xf32>
    %117 = tpu.matmul %116, %89, %cst_103 {dimension_numbers = #tpu.dot_dimension_numbers<[1], [0], [0], [1], [0, 0, 1, 1], [], []>} : vector<16x64xbf16>, vector<64x64xbf16>, vector<16x64xf32> -> vector<16x64xf32>
    %118 = arith.truncf %117 : vector<16x64xf32> to vector<16x64xbf16>
    %c3_104 = arith.constant 3 : index
    %c0_105 = arith.constant 0 : index
    %c0_106 = arith.constant 0 : index
    %119 = vector.load %arg8[%c3_104, %c0_105, %c0_106] : memref<9x64x128xbf16, #tpu.memory_space<vmem>>, vector<1x64x128xbf16>
    %120 = vector.shape_cast %119 : vector<1x64x128xbf16> to vector<64x128xbf16>
    %cst_107 = arith.constant dense<0.000000e+00> : vector<16x128xf32>
    %121 = tpu.matmul %118, %120, %cst_107 {dimension_numbers = #tpu.dot_dimension_numbers<[1], [0], [0], [1], [0, 0, 1, 1], [], []>} : vector<16x64xbf16>, vector<64x128xbf16>, vector<16x128xf32> -> vector<16x128xf32>
    %122 = arith.addf %114, %121 : vector<16x128xf32>
    %c4_108 = arith.constant 4 : index
    %c0_109 = arith.constant 0 : index
    %c0_110 = arith.constant 0 : index
    %123 = vector.load %arg7[%c4_108, %c0_109, %c0_110] : memref<9x16x64xbf16, #tpu.memory_space<vmem>>, vector<1x16x64xbf16>
    %124 = vector.shape_cast %123 : vector<1x16x64xbf16> to vector<16x64xbf16>
    %cst_111 = arith.constant dense<0.000000e+00> : vector<16x64xf32>
    %125 = tpu.matmul %124, %89, %cst_111 {dimension_numbers = #tpu.dot_dimension_numbers<[1], [0], [0], [1], [0, 0, 1, 1], [], []>} : vector<16x64xbf16>, vector<64x64xbf16>, vector<16x64xf32> -> vector<16x64xf32>
    %126 = arith.truncf %125 : vector<16x64xf32> to vector<16x64xbf16>
    %c4_112 = arith.constant 4 : index
    %c0_113 = arith.constant 0 : index
    %c0_114 = arith.constant 0 : index
    %127 = vector.load %arg8[%c4_112, %c0_113, %c0_114] : memref<9x64x128xbf16, #tpu.memory_space<vmem>>, vector<1x64x128xbf16>
    %128 = vector.shape_cast %127 : vector<1x64x128xbf16> to vector<64x128xbf16>
    %cst_115 = arith.constant dense<0.000000e+00> : vector<16x128xf32>
    %129 = tpu.matmul %126, %128, %cst_115 {dimension_numbers = #tpu.dot_dimension_numbers<[1], [0], [0], [1], [0, 0, 1, 1], [], []>} : vector<16x64xbf16>, vector<64x128xbf16>, vector<16x128xf32> -> vector<16x128xf32>
    %130 = arith.addf %122, %129 : vector<16x128xf32>
    %c5_116 = arith.constant 5 : index
    %c0_117 = arith.constant 0 : index
    %c0_118 = arith.constant 0 : index
    %131 = vector.load %arg7[%c5_116, %c0_117, %c0_118] : memref<9x16x64xbf16, #tpu.memory_space<vmem>>, vector<1x16x64xbf16>
    %132 = vector.shape_cast %131 : vector<1x16x64xbf16> to vector<16x64xbf16>
    %cst_119 = arith.constant dense<0.000000e+00> : vector<16x64xf32>
    %133 = tpu.matmul %132, %89, %cst_119 {dimension_numbers = #tpu.dot_dimension_numbers<[1], [0], [0], [1], [0, 0, 1, 1], [], []>} : vector<16x64xbf16>, vector<64x64xbf16>, vector<16x64xf32> -> vector<16x64xf32>
    %134 = arith.truncf %133 : vector<16x64xf32> to vector<16x64xbf16>
    %c5_120 = arith.constant 5 : index
    %c0_121 = arith.constant 0 : index
    %c0_122 = arith.constant 0 : index
    %135 = vector.load %arg8[%c5_120, %c0_121, %c0_122] : memref<9x64x128xbf16, #tpu.memory_space<vmem>>, vector<1x64x128xbf16>
    %136 = vector.shape_cast %135 : vector<1x64x128xbf16> to vector<64x128xbf16>
    %cst_123 = arith.constant dense<0.000000e+00> : vector<16x128xf32>
    %137 = tpu.matmul %134, %136, %cst_123 {dimension_numbers = #tpu.dot_dimension_numbers<[1], [0], [0], [1], [0, 0, 1, 1], [], []>} : vector<16x64xbf16>, vector<64x128xbf16>, vector<16x128xf32> -> vector<16x128xf32>
    %138 = arith.addf %130, %137 : vector<16x128xf32>
    %c6_124 = arith.constant 6 : index
    %c0_125 = arith.constant 0 : index
    %c0_126 = arith.constant 0 : index
    %139 = vector.load %arg7[%c6_124, %c0_125, %c0_126] : memref<9x16x64xbf16, #tpu.memory_space<vmem>>, vector<1x16x64xbf16>
    %140 = vector.shape_cast %139 : vector<1x16x64xbf16> to vector<16x64xbf16>
    %cst_127 = arith.constant dense<0.000000e+00> : vector<16x64xf32>
    %141 = tpu.matmul %140, %89, %cst_127 {dimension_numbers = #tpu.dot_dimension_numbers<[1], [0], [0], [1], [0, 0, 1, 1], [], []>} : vector<16x64xbf16>, vector<64x64xbf16>, vector<16x64xf32> -> vector<16x64xf32>
    %142 = arith.truncf %141 : vector<16x64xf32> to vector<16x64xbf16>
    %c6_128 = arith.constant 6 : index
    %c0_129 = arith.constant 0 : index
    %c0_130 = arith.constant 0 : index
    %143 = vector.load %arg8[%c6_128, %c0_129, %c0_130] : memref<9x64x128xbf16, #tpu.memory_space<vmem>>, vector<1x64x128xbf16>
    %144 = vector.shape_cast %143 : vector<1x64x128xbf16> to vector<64x128xbf16>
    %cst_131 = arith.constant dense<0.000000e+00> : vector<16x128xf32>
    %145 = tpu.matmul %142, %144, %cst_131 {dimension_numbers = #tpu.dot_dimension_numbers<[1], [0], [0], [1], [0, 0, 1, 1], [], []>} : vector<16x64xbf16>, vector<64x128xbf16>, vector<16x128xf32> -> vector<16x128xf32>
    %146 = arith.addf %138, %145 : vector<16x128xf32>
    %c7_132 = arith.constant 7 : index
    %c0_133 = arith.constant 0 : index
    %c0_134 = arith.constant 0 : index
    %147 = vector.load %arg7[%c7_132, %c0_133, %c0_134] : memref<9x16x64xbf16, #tpu.memory_space<vmem>>, vector<1x16x64xbf16>
    %148 = vector.shape_cast %147 : vector<1x16x64xbf16> to vector<16x64xbf16>
    %cst_135 = arith.constant dense<0.000000e+00> : vector<16x64xf32>
    %149 = tpu.matmul %148, %89, %cst_135 {dimension_numbers = #tpu.dot_dimension_numbers<[1], [0], [0], [1], [0, 0, 1, 1], [], []>} : vector<16x64xbf16>, vector<64x64xbf16>, vector<16x64xf32> -> vector<16x64xf32>
    %150 = arith.truncf %149 : vector<16x64xf32> to vector<16x64xbf16>
    %c7_136 = arith.constant 7 : index
    %c0_137 = arith.constant 0 : index
    %c0_138 = arith.constant 0 : index
    %151 = vector.load %arg8[%c7_136, %c0_137, %c0_138] : memref<9x64x128xbf16, #tpu.memory_space<vmem>>, vector<1x64x128xbf16>
    %152 = vector.shape_cast %151 : vector<1x64x128xbf16> to vector<64x128xbf16>
    %cst_139 = arith.constant dense<0.000000e+00> : vector<16x128xf32>
    %153 = tpu.matmul %150, %152, %cst_139 {dimension_numbers = #tpu.dot_dimension_numbers<[1], [0], [0], [1], [0, 0, 1, 1], [], []>} : vector<16x64xbf16>, vector<64x128xbf16>, vector<16x128xf32> -> vector<16x128xf32>
    %154 = arith.addf %146, %153 : vector<16x128xf32>
    %c8_140 = arith.constant 8 : index
    %c0_141 = arith.constant 0 : index
    %c0_142 = arith.constant 0 : index
    %155 = vector.load %arg7[%c8_140, %c0_141, %c0_142] : memref<9x16x64xbf16, #tpu.memory_space<vmem>>, vector<1x16x64xbf16>
    %156 = vector.shape_cast %155 : vector<1x16x64xbf16> to vector<16x64xbf16>
    %cst_143 = arith.constant dense<0.000000e+00> : vector<16x64xf32>
    %157 = tpu.matmul %156, %89, %cst_143 {dimension_numbers = #tpu.dot_dimension_numbers<[1], [0], [0], [1], [0, 0, 1, 1], [], []>} : vector<16x64xbf16>, vector<64x64xbf16>, vector<16x64xf32> -> vector<16x64xf32>
    %158 = arith.truncf %157 : vector<16x64xf32> to vector<16x64xbf16>
    %c8_144 = arith.constant 8 : index
    %c0_145 = arith.constant 0 : index
    %c0_146 = arith.constant 0 : index
    %159 = vector.load %arg8[%c8_144, %c0_145, %c0_146] : memref<9x64x128xbf16, #tpu.memory_space<vmem>>, vector<1x64x128xbf16>
    %160 = vector.shape_cast %159 : vector<1x64x128xbf16> to vector<64x128xbf16>
    %cst_147 = arith.constant dense<0.000000e+00> : vector<16x128xf32>
    %161 = tpu.matmul %158, %160, %cst_147 {dimension_numbers = #tpu.dot_dimension_numbers<[1], [0], [0], [1], [0, 0, 1, 1], [], []>} : vector<16x64xbf16>, vector<64x128xbf16>, vector<16x128xf32> -> vector<16x128xf32>
    %162 = arith.addf %154, %161 : vector<16x128xf32>
    %c0_148 = arith.constant 0 : index
    %c0_149 = arith.constant 0 : index
    %163 = vector.load %arg9[%c0_148, %c0_149] : memref<1x128xf32, #tpu.memory_space<vmem>>, vector<1x128xf32>
    %164 = vector.broadcast %163 : vector<1x128xf32> to vector<16x128xf32>
    %165 = arith.addf %162, %164 : vector<16x128xf32>
    %cst_150 = arith.constant 0.000000e+00 : f32
    %166 = vector.broadcast %cst_150 : f32 to vector<16x128xf32>
    %167 = arith.maximumf %165, %166 : vector<16x128xf32>
    %168 = arith.truncf %167 : vector<16x128xf32> to vector<16x128xbf16>
    %cst_151 = arith.constant 0.000000e+00 : f32
    %169 = vector.broadcast %cst_151 : f32 to vector<4x256xf32>
    %c0_152 = arith.constant 0 : index
    %c0_153 = arith.constant 0 : index
    %c0_154 = arith.constant 0 : index
    %170 = vector.load %arg10[%c0_152, %c0_153, %c0_154] : memref<9x4x16xbf16, #tpu.memory_space<vmem>>, vector<1x4x16xbf16>
    %171 = vector.shape_cast %170 : vector<1x4x16xbf16> to vector<4x16xbf16>
    %cst_155 = arith.constant dense<0.000000e+00> : vector<4x128xf32>
    %172 = tpu.matmul %171, %168, %cst_155 {dimension_numbers = #tpu.dot_dimension_numbers<[1], [0], [0], [1], [0, 0, 1, 1], [], []>} : vector<4x16xbf16>, vector<16x128xbf16>, vector<4x128xf32> -> vector<4x128xf32>
    %173 = arith.truncf %172 : vector<4x128xf32> to vector<4x128xbf16>
    %c0_156 = arith.constant 0 : index
    %c0_157 = arith.constant 0 : index
    %c0_158 = arith.constant 0 : index
    %174 = vector.load %arg11[%c0_156, %c0_157, %c0_158] : memref<9x128x256xbf16, #tpu.memory_space<vmem>>, vector<1x128x256xbf16>
    %175 = vector.shape_cast %174 : vector<1x128x256xbf16> to vector<128x256xbf16>
    %cst_159 = arith.constant dense<0.000000e+00> : vector<4x256xf32>
    %176 = tpu.matmul %173, %175, %cst_159 {dimension_numbers = #tpu.dot_dimension_numbers<[1], [0], [0], [1], [0, 0, 1, 1], [], []>} : vector<4x128xbf16>, vector<128x256xbf16>, vector<4x256xf32> -> vector<4x256xf32>
    %177 = arith.addf %169, %176 : vector<4x256xf32>
    %c1_160 = arith.constant 1 : index
    %c0_161 = arith.constant 0 : index
    %c0_162 = arith.constant 0 : index
    %178 = vector.load %arg10[%c1_160, %c0_161, %c0_162] : memref<9x4x16xbf16, #tpu.memory_space<vmem>>, vector<1x4x16xbf16>
    %179 = vector.shape_cast %178 : vector<1x4x16xbf16> to vector<4x16xbf16>
    %cst_163 = arith.constant dense<0.000000e+00> : vector<4x128xf32>
    %180 = tpu.matmul %179, %168, %cst_163 {dimension_numbers = #tpu.dot_dimension_numbers<[1], [0], [0], [1], [0, 0, 1, 1], [], []>} : vector<4x16xbf16>, vector<16x128xbf16>, vector<4x128xf32> -> vector<4x128xf32>
    %181 = arith.truncf %180 : vector<4x128xf32> to vector<4x128xbf16>
    %c1_164 = arith.constant 1 : index
    %c0_165 = arith.constant 0 : index
    %c0_166 = arith.constant 0 : index
    %182 = vector.load %arg11[%c1_164, %c0_165, %c0_166] : memref<9x128x256xbf16, #tpu.memory_space<vmem>>, vector<1x128x256xbf16>
    %183 = vector.shape_cast %182 : vector<1x128x256xbf16> to vector<128x256xbf16>
    %cst_167 = arith.constant dense<0.000000e+00> : vector<4x256xf32>
    %184 = tpu.matmul %181, %183, %cst_167 {dimension_numbers = #tpu.dot_dimension_numbers<[1], [0], [0], [1], [0, 0, 1, 1], [], []>} : vector<4x128xbf16>, vector<128x256xbf16>, vector<4x256xf32> -> vector<4x256xf32>
    %185 = arith.addf %177, %184 : vector<4x256xf32>
    %c2_168 = arith.constant 2 : index
    %c0_169 = arith.constant 0 : index
    %c0_170 = arith.constant 0 : index
    %186 = vector.load %arg10[%c2_168, %c0_169, %c0_170] : memref<9x4x16xbf16, #tpu.memory_space<vmem>>, vector<1x4x16xbf16>
    %187 = vector.shape_cast %186 : vector<1x4x16xbf16> to vector<4x16xbf16>
    %cst_171 = arith.constant dense<0.000000e+00> : vector<4x128xf32>
    %188 = tpu.matmul %187, %168, %cst_171 {dimension_numbers = #tpu.dot_dimension_numbers<[1], [0], [0], [1], [0, 0, 1, 1], [], []>} : vector<4x16xbf16>, vector<16x128xbf16>, vector<4x128xf32> -> vector<4x128xf32>
    %189 = arith.truncf %188 : vector<4x128xf32> to vector<4x128xbf16>
    %c2_172 = arith.constant 2 : index
    %c0_173 = arith.constant 0 : index
    %c0_174 = arith.constant 0 : index
    %190 = vector.load %arg11[%c2_172, %c0_173, %c0_174] : memref<9x128x256xbf16, #tpu.memory_space<vmem>>, vector<1x128x256xbf16>
    %191 = vector.shape_cast %190 : vector<1x128x256xbf16> to vector<128x256xbf16>
    %cst_175 = arith.constant dense<0.000000e+00> : vector<4x256xf32>
    %192 = tpu.matmul %189, %191, %cst_175 {dimension_numbers = #tpu.dot_dimension_numbers<[1], [0], [0], [1], [0, 0, 1, 1], [], []>} : vector<4x128xbf16>, vector<128x256xbf16>, vector<4x256xf32> -> vector<4x256xf32>
    %193 = arith.addf %185, %192 : vector<4x256xf32>
    %c3_176 = arith.constant 3 : index
    %c0_177 = arith.constant 0 : index
    %c0_178 = arith.constant 0 : index
    %194 = vector.load %arg10[%c3_176, %c0_177, %c0_178] : memref<9x4x16xbf16, #tpu.memory_space<vmem>>, vector<1x4x16xbf16>
    %195 = vector.shape_cast %194 : vector<1x4x16xbf16> to vector<4x16xbf16>
    %cst_179 = arith.constant dense<0.000000e+00> : vector<4x128xf32>
    %196 = tpu.matmul %195, %168, %cst_179 {dimension_numbers = #tpu.dot_dimension_numbers<[1], [0], [0], [1], [0, 0, 1, 1], [], []>} : vector<4x16xbf16>, vector<16x128xbf16>, vector<4x128xf32> -> vector<4x128xf32>
    %197 = arith.truncf %196 : vector<4x128xf32> to vector<4x128xbf16>
    %c3_180 = arith.constant 3 : index
    %c0_181 = arith.constant 0 : index
    %c0_182 = arith.constant 0 : index
    %198 = vector.load %arg11[%c3_180, %c0_181, %c0_182] : memref<9x128x256xbf16, #tpu.memory_space<vmem>>, vector<1x128x256xbf16>
    %199 = vector.shape_cast %198 : vector<1x128x256xbf16> to vector<128x256xbf16>
    %cst_183 = arith.constant dense<0.000000e+00> : vector<4x256xf32>
    %200 = tpu.matmul %197, %199, %cst_183 {dimension_numbers = #tpu.dot_dimension_numbers<[1], [0], [0], [1], [0, 0, 1, 1], [], []>} : vector<4x128xbf16>, vector<128x256xbf16>, vector<4x256xf32> -> vector<4x256xf32>
    %201 = arith.addf %193, %200 : vector<4x256xf32>
    %c4_184 = arith.constant 4 : index
    %c0_185 = arith.constant 0 : index
    %c0_186 = arith.constant 0 : index
    %202 = vector.load %arg10[%c4_184, %c0_185, %c0_186] : memref<9x4x16xbf16, #tpu.memory_space<vmem>>, vector<1x4x16xbf16>
    %203 = vector.shape_cast %202 : vector<1x4x16xbf16> to vector<4x16xbf16>
    %cst_187 = arith.constant dense<0.000000e+00> : vector<4x128xf32>
    %204 = tpu.matmul %203, %168, %cst_187 {dimension_numbers = #tpu.dot_dimension_numbers<[1], [0], [0], [1], [0, 0, 1, 1], [], []>} : vector<4x16xbf16>, vector<16x128xbf16>, vector<4x128xf32> -> vector<4x128xf32>
    %205 = arith.truncf %204 : vector<4x128xf32> to vector<4x128xbf16>
    %c4_188 = arith.constant 4 : index
    %c0_189 = arith.constant 0 : index
    %c0_190 = arith.constant 0 : index
    %206 = vector.load %arg11[%c4_188, %c0_189, %c0_190] : memref<9x128x256xbf16, #tpu.memory_space<vmem>>, vector<1x128x256xbf16>
    %207 = vector.shape_cast %206 : vector<1x128x256xbf16> to vector<128x256xbf16>
    %cst_191 = arith.constant dense<0.000000e+00> : vector<4x256xf32>
    %208 = tpu.matmul %205, %207, %cst_191 {dimension_numbers = #tpu.dot_dimension_numbers<[1], [0], [0], [1], [0, 0, 1, 1], [], []>} : vector<4x128xbf16>, vector<128x256xbf16>, vector<4x256xf32> -> vector<4x256xf32>
    %209 = arith.addf %201, %208 : vector<4x256xf32>
    %c5_192 = arith.constant 5 : index
    %c0_193 = arith.constant 0 : index
    %c0_194 = arith.constant 0 : index
    %210 = vector.load %arg10[%c5_192, %c0_193, %c0_194] : memref<9x4x16xbf16, #tpu.memory_space<vmem>>, vector<1x4x16xbf16>
    %211 = vector.shape_cast %210 : vector<1x4x16xbf16> to vector<4x16xbf16>
    %cst_195 = arith.constant dense<0.000000e+00> : vector<4x128xf32>
    %212 = tpu.matmul %211, %168, %cst_195 {dimension_numbers = #tpu.dot_dimension_numbers<[1], [0], [0], [1], [0, 0, 1, 1], [], []>} : vector<4x16xbf16>, vector<16x128xbf16>, vector<4x128xf32> -> vector<4x128xf32>
    %213 = arith.truncf %212 : vector<4x128xf32> to vector<4x128xbf16>
    %c5_196 = arith.constant 5 : index
    %c0_197 = arith.constant 0 : index
    %c0_198 = arith.constant 0 : index
    %214 = vector.load %arg11[%c5_196, %c0_197, %c0_198] : memref<9x128x256xbf16, #tpu.memory_space<vmem>>, vector<1x128x256xbf16>
    %215 = vector.shape_cast %214 : vector<1x128x256xbf16> to vector<128x256xbf16>
    %cst_199 = arith.constant dense<0.000000e+00> : vector<4x256xf32>
    %216 = tpu.matmul %213, %215, %cst_199 {dimension_numbers = #tpu.dot_dimension_numbers<[1], [0], [0], [1], [0, 0, 1, 1], [], []>} : vector<4x128xbf16>, vector<128x256xbf16>, vector<4x256xf32> -> vector<4x256xf32>
    %217 = arith.addf %209, %216 : vector<4x256xf32>
    %c6_200 = arith.constant 6 : index
    %c0_201 = arith.constant 0 : index
    %c0_202 = arith.constant 0 : index
    %218 = vector.load %arg10[%c6_200, %c0_201, %c0_202] : memref<9x4x16xbf16, #tpu.memory_space<vmem>>, vector<1x4x16xbf16>
    %219 = vector.shape_cast %218 : vector<1x4x16xbf16> to vector<4x16xbf16>
    %cst_203 = arith.constant dense<0.000000e+00> : vector<4x128xf32>
    %220 = tpu.matmul %219, %168, %cst_203 {dimension_numbers = #tpu.dot_dimension_numbers<[1], [0], [0], [1], [0, 0, 1, 1], [], []>} : vector<4x16xbf16>, vector<16x128xbf16>, vector<4x128xf32> -> vector<4x128xf32>
    %221 = arith.truncf %220 : vector<4x128xf32> to vector<4x128xbf16>
    %c6_204 = arith.constant 6 : index
    %c0_205 = arith.constant 0 : index
    %c0_206 = arith.constant 0 : index
    %222 = vector.load %arg11[%c6_204, %c0_205, %c0_206] : memref<9x128x256xbf16, #tpu.memory_space<vmem>>, vector<1x128x256xbf16>
    %223 = vector.shape_cast %222 : vector<1x128x256xbf16> to vector<128x256xbf16>
    %cst_207 = arith.constant dense<0.000000e+00> : vector<4x256xf32>
    %224 = tpu.matmul %221, %223, %cst_207 {dimension_numbers = #tpu.dot_dimension_numbers<[1], [0], [0], [1], [0, 0, 1, 1], [], []>} : vector<4x128xbf16>, vector<128x256xbf16>, vector<4x256xf32> -> vector<4x256xf32>
    %225 = arith.addf %217, %224 : vector<4x256xf32>
    %c7_208 = arith.constant 7 : index
    %c0_209 = arith.constant 0 : index
    %c0_210 = arith.constant 0 : index
    %226 = vector.load %arg10[%c7_208, %c0_209, %c0_210] : memref<9x4x16xbf16, #tpu.memory_space<vmem>>, vector<1x4x16xbf16>
    %227 = vector.shape_cast %226 : vector<1x4x16xbf16> to vector<4x16xbf16>
    %cst_211 = arith.constant dense<0.000000e+00> : vector<4x128xf32>
    %228 = tpu.matmul %227, %168, %cst_211 {dimension_numbers = #tpu.dot_dimension_numbers<[1], [0], [0], [1], [0, 0, 1, 1], [], []>} : vector<4x16xbf16>, vector<16x128xbf16>, vector<4x128xf32> -> vector<4x128xf32>
    %229 = arith.truncf %228 : vector<4x128xf32> to vector<4x128xbf16>
    %c7_212 = arith.constant 7 : index
    %c0_213 = arith.constant 0 : index
    %c0_214 = arith.constant 0 : index
    %230 = vector.load %arg11[%c7_212, %c0_213, %c0_214] : memref<9x128x256xbf16, #tpu.memory_space<vmem>>, vector<1x128x256xbf16>
    %231 = vector.shape_cast %230 : vector<1x128x256xbf16> to vector<128x256xbf16>
    %cst_215 = arith.constant dense<0.000000e+00> : vector<4x256xf32>
    %232 = tpu.matmul %229, %231, %cst_215 {dimension_numbers = #tpu.dot_dimension_numbers<[1], [0], [0], [1], [0, 0, 1, 1], [], []>} : vector<4x128xbf16>, vector<128x256xbf16>, vector<4x256xf32> -> vector<4x256xf32>
    %233 = arith.addf %225, %232 : vector<4x256xf32>
    %c8_216 = arith.constant 8 : index
    %c0_217 = arith.constant 0 : index
    %c0_218 = arith.constant 0 : index
    %234 = vector.load %arg10[%c8_216, %c0_217, %c0_218] : memref<9x4x16xbf16, #tpu.memory_space<vmem>>, vector<1x4x16xbf16>
    %235 = vector.shape_cast %234 : vector<1x4x16xbf16> to vector<4x16xbf16>
    %cst_219 = arith.constant dense<0.000000e+00> : vector<4x128xf32>
    %236 = tpu.matmul %235, %168, %cst_219 {dimension_numbers = #tpu.dot_dimension_numbers<[1], [0], [0], [1], [0, 0, 1, 1], [], []>} : vector<4x16xbf16>, vector<16x128xbf16>, vector<4x128xf32> -> vector<4x128xf32>
    %237 = arith.truncf %236 : vector<4x128xf32> to vector<4x128xbf16>
    %c8_220 = arith.constant 8 : index
    %c0_221 = arith.constant 0 : index
    %c0_222 = arith.constant 0 : index
    %238 = vector.load %arg11[%c8_220, %c0_221, %c0_222] : memref<9x128x256xbf16, #tpu.memory_space<vmem>>, vector<1x128x256xbf16>
    %239 = vector.shape_cast %238 : vector<1x128x256xbf16> to vector<128x256xbf16>
    %cst_223 = arith.constant dense<0.000000e+00> : vector<4x256xf32>
    %240 = tpu.matmul %237, %239, %cst_223 {dimension_numbers = #tpu.dot_dimension_numbers<[1], [0], [0], [1], [0, 0, 1, 1], [], []>} : vector<4x128xbf16>, vector<128x256xbf16>, vector<4x256xf32> -> vector<4x256xf32>
    %241 = arith.addf %233, %240 : vector<4x256xf32>
    %c0_224 = arith.constant 0 : index
    %c0_225 = arith.constant 0 : index
    %242 = vector.load %arg12[%c0_224, %c0_225] : memref<1x256xf32, #tpu.memory_space<vmem>>, vector<1x256xf32>
    %243 = vector.broadcast %242 : vector<1x256xf32> to vector<4x256xf32>
    %244 = arith.addf %241, %243 : vector<4x256xf32>
    %cst_226 = arith.constant 0.000000e+00 : f32
    %245 = vector.broadcast %cst_226 : f32 to vector<4x256xf32>
    %246 = arith.maximumf %244, %245 : vector<4x256xf32>
    %247 = arith.truncf %246 : vector<4x256xf32> to vector<4x256xbf16>
    %c0_227 = arith.constant 0 : index
    %c0_228 = arith.constant 0 : index
    %248 = vector.load %arg14[%c0_227, %c0_228] : memref<1x10xf32, #tpu.memory_space<vmem>>, vector<1x10xf32>
    %249 = vector.extract_strided_slice %247 {offsets = [0, 0], sizes = [1, 256], strides = [1, 1]} : vector<4x256xbf16> to vector<1x256xbf16>
    %c0_229 = arith.constant 0 : index
    %c0_230 = arith.constant 0 : index
    %c0_231 = arith.constant 0 : index
    %250 = vector.load %arg13[%c0_229, %c0_230, %c0_231] : memref<4x256x10xbf16, #tpu.memory_space<vmem>>, vector<1x256x10xbf16>
    %251 = vector.shape_cast %250 : vector<1x256x10xbf16> to vector<256x10xbf16>
    %cst_232 = arith.constant dense<0.000000e+00> : vector<1x10xf32>
    %252 = tpu.matmul %249, %251, %cst_232 {dimension_numbers = #tpu.dot_dimension_numbers<[1], [0], [0], [1], [0, 0, 1, 1], [], []>} : vector<1x256xbf16>, vector<256x10xbf16>, vector<1x10xf32> -> vector<1x10xf32>
    %253 = arith.addf %248, %252 : vector<1x10xf32>
    %254 = vector.extract_strided_slice %247 {offsets = [1, 0], sizes = [1, 256], strides = [1, 1]} : vector<4x256xbf16> to vector<1x256xbf16>
    %c1_233 = arith.constant 1 : index
    %c0_234 = arith.constant 0 : index
    %c0_235 = arith.constant 0 : index
    %255 = vector.load %arg13[%c1_233, %c0_234, %c0_235] : memref<4x256x10xbf16, #tpu.memory_space<vmem>>, vector<1x256x10xbf16>
    %256 = vector.shape_cast %255 : vector<1x256x10xbf16> to vector<256x10xbf16>
    %cst_236 = arith.constant dense<0.000000e+00> : vector<1x10xf32>
    %257 = tpu.matmul %254, %256, %cst_236 {dimension_numbers = #tpu.dot_dimension_numbers<[1], [0], [0], [1], [0, 0, 1, 1], [], []>} : vector<1x256xbf16>, vector<256x10xbf16>, vector<1x10xf32> -> vector<1x10xf32>
    %258 = arith.addf %253, %257 : vector<1x10xf32>
    %259 = vector.extract_strided_slice %247 {offsets = [2, 0], sizes = [1, 256], strides = [1, 1]} : vector<4x256xbf16> to vector<1x256xbf16>
    %c2_237 = arith.constant 2 : index
    %c0_238 = arith.constant 0 : index
    %c0_239 = arith.constant 0 : index
    %260 = vector.load %arg13[%c2_237, %c0_238, %c0_239] : memref<4x256x10xbf16, #tpu.memory_space<vmem>>, vector<1x256x10xbf16>
    %261 = vector.shape_cast %260 : vector<1x256x10xbf16> to vector<256x10xbf16>
    %cst_240 = arith.constant dense<0.000000e+00> : vector<1x10xf32>
    %262 = tpu.matmul %259, %261, %cst_240 {dimension_numbers = #tpu.dot_dimension_numbers<[1], [0], [0], [1], [0, 0, 1, 1], [], []>} : vector<1x256xbf16>, vector<256x10xbf16>, vector<1x10xf32> -> vector<1x10xf32>
    %263 = arith.addf %258, %262 : vector<1x10xf32>
    %264 = vector.extract_strided_slice %247 {offsets = [3, 0], sizes = [1, 256], strides = [1, 1]} : vector<4x256xbf16> to vector<1x256xbf16>
    %c3_241 = arith.constant 3 : index
    %c0_242 = arith.constant 0 : index
    %c0_243 = arith.constant 0 : index
    %265 = vector.load %arg13[%c3_241, %c0_242, %c0_243] : memref<4x256x10xbf16, #tpu.memory_space<vmem>>, vector<1x256x10xbf16>
    %266 = vector.shape_cast %265 : vector<1x256x10xbf16> to vector<256x10xbf16>
    %cst_244 = arith.constant dense<0.000000e+00> : vector<1x10xf32>
    %267 = tpu.matmul %264, %266, %cst_244 {dimension_numbers = #tpu.dot_dimension_numbers<[1], [0], [0], [1], [0, 0, 1, 1], [], []>} : vector<1x256xbf16>, vector<256x10xbf16>, vector<1x10xf32> -> vector<1x10xf32>
    %268 = arith.addf %263, %267 : vector<1x10xf32>
    %cst_245 = arith.constant dense<0xFF800000> : vector<1xf32>
    %269 = vector.multi_reduction <maximumf>, %268, %cst_245 [1] : vector<1x10xf32> to vector<1xf32>
    %270 = vector.shape_cast %269 : vector<1xf32> to vector<1x1xf32>
    %271 = vector.broadcast %270 : vector<1x1xf32> to vector<1x10xf32>
    %272 = arith.subf %268, %271 : vector<1x10xf32>
    %273 = math.exp %272 : vector<1x10xf32>
    %cst_246 = arith.constant dense<0.000000e+00> : vector<1xf32>
    %274 = vector.multi_reduction <add>, %273, %cst_246 [1] : vector<1x10xf32> to vector<1xf32>
    %275 = vector.shape_cast %274 : vector<1xf32> to vector<1x1xf32>
    %276 = tpu.reciprocal %275 {approx = true} : vector<1x1xf32> -> vector<1x1xf32>
    %277 = vector.broadcast %276 : vector<1x1xf32> to vector<1x10xf32>
    %278 = arith.mulf %273, %277 : vector<1x10xf32>
    %c0_247 = arith.constant 0 : index
    %c0_248 = arith.constant 0 : index
    %c0_249 = arith.constant 0 : index
    %279 = vector.load %arg15[%c0_247, %c0_248, %c0_249] : memref<1x1x10xf32, #tpu.memory_space<vmem>>, vector<1x1x10xf32>
    %280 = vector.shape_cast %279 : vector<1x1x10xf32> to vector<1x10xf32>
    %281 = vector.shape_cast %278 : vector<1x10xf32> to vector<1x1x10xf32>
    tpu.vector_store %arg15[%c0_247, %c0_248, %c0_249], %281 {strides = array<i32>} : memref<1x1x10xf32, #tpu.memory_space<vmem>>, vector<1x1x10xf32>,
    return
  }
  func.func @transform_0(%arg0: i32) -> (i32, i32, i32) {
    %c0_i32 = arith.constant 0 : i32
    %c0_i32_0 = arith.constant 0 : i32
    %c0_i32_1 = arith.constant 0 : i32
    return %arg0, %c0_i32, %c0_i32_0 : i32, i32, i32
  }
  func.func @transform_1(%arg0: i32) -> (i32, i32) {
    %c0_i32 = arith.constant 0 : i32
    %c0_i32_0 = arith.constant 0 : i32
    %c0_i32_1 = arith.constant 0 : i32
    return %c0_i32, %c0_i32_0 : i32, i32
  }
  func.func @transform_2(%arg0: i32) -> (i32, i32) {
    %c0_i32 = arith.constant 0 : i32
    %c0_i32_0 = arith.constant 0 : i32
    %c0_i32_1 = arith.constant 0 : i32
    return %c0_i32, %c0_i32_0 : i32, i32
  }
  func.func @transform_3(%arg0: i32) -> (i32, i32, i32) {
    %c0_i32 = arith.constant 0 : i32
    %c0_i32_0 = arith.constant 0 : i32
    %c0_i32_1 = arith.constant 0 : i32
    %c0_i32_2 = arith.constant 0 : i32
    return %c0_i32, %c0_i32_0, %c0_i32_1 : i32, i32, i32
  }
  func.func @transform_4(%arg0: i32) -> (i32, i32, i32) {
    %c0_i32 = arith.constant 0 : i32
    %c0_i32_0 = arith.constant 0 : i32
    %c0_i32_1 = arith.constant 0 : i32
    %c0_i32_2 = arith.constant 0 : i32
    return %c0_i32, %c0_i32_0, %c0_i32_1 : i32, i32, i32
  }
  func.func @transform_5(%arg0: i32) -> (i32, i32) {
    %c0_i32 = arith.constant 0 : i32
    %c0_i32_0 = arith.constant 0 : i32
    %c0_i32_1 = arith.constant 0 : i32
    return %c0_i32, %c0_i32_0 : i32, i32
  }
  func.func @transform_6(%arg0: i32) -> (i32, i32, i32) {
    %c0_i32 = arith.constant 0 : i32
    %c0_i32_0 = arith.constant 0 : i32
    %c0_i32_1 = arith.constant 0 : i32
    %c0_i32_2 = arith.constant 0 : i32
    return %c0_i32, %c0_i32_0, %c0_i32_1 : i32, i32, i32
  }
  func.func @transform_7(%arg0: i32) -> (i32, i32, i32) {
    %c0_i32 = arith.constant 0 : i32
    %c0_i32_0 = arith.constant 0 : i32
    %c0_i32_1 = arith.constant 0 : i32
    %c0_i32_2 = arith.constant 0 : i32
    return %c0_i32, %c0_i32_0, %c0_i32_1 : i32, i32, i32
  }
  func.func @transform_8(%arg0: i32) -> (i32, i32) {
    %c0_i32 = arith.constant 0 : i32
    %c0_i32_0 = arith.constant 0 : i32
    %c0_i32_1 = arith.constant 0 : i32
    return %c0_i32, %c0_i32_0 : i32, i32
  }
  func.func @transform_9(%arg0: i32) -> (i32, i32, i32) {
    %c0_i32 = arith.constant 0 : i32
    %c0_i32_0 = arith.constant 0 : i32
    %c0_i32_1 = arith.constant 0 : i32
    %c0_i32_2 = arith.constant 0 : i32
    return %c0_i32, %c0_i32_0, %c0_i32_1 : i32, i32, i32
  }
  func.func @transform_10(%arg0: i32) -> (i32, i32, i32) {
    %c0_i32 = arith.constant 0 : i32
    %c0_i32_0 = arith.constant 0 : i32
    %c0_i32_1 = arith.constant 0 : i32
    %c0_i32_2 = arith.constant 0 : i32
    return %c0_i32, %c0_i32_0, %c0_i32_1 : i32, i32, i32
  }
  func.func @transform_11(%arg0: i32) -> (i32, i32) {
    %c0_i32 = arith.constant 0 : i32
    %c0_i32_0 = arith.constant 0 : i32
    %c0_i32_1 = arith.constant 0 : i32
    return %c0_i32, %c0_i32_0 : i32, i32
  }
  func.func @transform_12(%arg0: i32) -> (i32, i32, i32) {
    %c0_i32 = arith.constant 0 : i32
    %c0_i32_0 = arith.constant 0 : i32
    %c0_i32_1 = arith.constant 0 : i32
    %c0_i32_2 = arith.constant 0 : i32
    return %c0_i32, %c0_i32_0, %c0_i32_1 : i32, i32, i32
  }
  func.func @transform_13(%arg0: i32) -> (i32, i32) {
    %c0_i32 = arith.constant 0 : i32
    %c0_i32_0 = arith.constant 0 : i32
    %c0_i32_1 = arith.constant 0 : i32
    return %c0_i32, %c0_i32_0 : i32, i32
  }
  func.func @transform_14(%arg0: i32) -> (i32, i32, i32) {
    %c0_i32 = arith.constant 0 : i32
    %c0_i32_0 = arith.constant 0 : i32
    %c0_i32_1 = arith.constant 0 : i32
    return %arg0, %c0_i32, %c0_i32_0 : i32, i32, i32
  }
}

</mosaic_0001>

<llo_original>
// kernel: forward.1
$region0: #{forward.1}
  #allocation0 [shape = 'u32[]', space=smem, size = 0x4, offset = 0x4, fixed_abs, tag = 'smem constant byte address 0x4 - core index']
  #allocation1 [shape = 'u32[144,128]{1,0:T(1,128)}', space=vmem, size = 0x12000, scoped, tag = 'internal scratch']
  %s0 = inlined_call_operand.vmem [shape: f32[2,256,9], index: 0, kind: input, shape index: {}]
  %s1 = inlined_call_operand.vmem [shape: bf16[9,32], index: 1, kind: input, shape index: {}]
  %s2 = inlined_call_operand.hbm [shape: f32[1,32], index: 2, kind: input, shape index: {}]
  %s3 = inlined_call_operand.vmem [shape: bf16[9,64,256], index: 3, kind: input, shape index: {}]
  %s4 = inlined_call_operand.vmem [shape: bf16[9,32,64], index: 4, kind: input, shape index: {}]
  %s5 = inlined_call_operand.hbm [shape: f32[1,64], index: 5, kind: input, shape index: {}]
  %s6 = inlined_call_operand.vmem [shape: bf16[9,16,64], index: 6, kind: input, shape index: {}]
  %s7 = inlined_call_operand.vmem [shape: bf16[9,64,128], index: 7, kind: input, shape index: {}]
  %s8 = inlined_call_operand.hbm [shape: f32[1,128], index: 8, kind: input, shape index: {}]
  %s9 = inlined_call_operand.vmem [shape: bf16[9,4,16], index: 9, kind: input, shape index: {}]
  %s10 = inlined_call_operand.vmem [shape: bf16[9,128,256], index: 10, kind: input, shape index: {}]
  %s11 = inlined_call_operand.vmem [shape: f32[1,256], index: 11, kind: input, shape index: {}]
  %s12 = inlined_call_operand.vmem [shape: bf16[4,256,10], index: 12, kind: input, shape index: {}]
  %s13 = inlined_call_operand.vmem [shape: f32[1,10], index: 13, kind: input, shape index: {}]
  %s14 = inlined_call_operand.hbm [shape: f32[2,1,10], index: 14, kind: output, shape index: {}]
  %s15 = sld [smem:[#allocation0]]
  $region101: #{forward.1} parent=0
    _
  %s17 = ssub.s32 1, %s15
  %s18 = scalar_select 0, %s17, %s15
  $region1: #{forward.1} parent=0
    #allocation2 [shape = 'u8[512]{0}', space=vmem, size = 0x400, scoped, tag = 'input window, operand 2, single buffered']
    #allocation3 [shape = 's32[2]{0}', space=sflag, size = 0x8, scoped, tag = 'scoped memory for forward.1']
    #allocation4 [shape = 's32[2]{0}', space=sflag, size = 0x8, scoped, tag = 'scoped memory for forward.1']
    #allocation5 [shape = 'u8[512]{0}', space=vmem, size = 0x400, scoped, tag = 'input window, operand 5, single buffered']
    #allocation6 [shape = 's32[1]{0}', space=sflag, size = 0x4, scoped, tag = 'scoped memory for forward.1']
    #allocation7 [shape = 'u8[512]{0}', space=vmem, size = 0x400, scoped, tag = 'input window, operand 8, single buffered']
    #allocation8 [shape = 'u8[1024]{0}', space=vmem, size = 0x400, scoped, tag = 'output window, operand 0']
    %19 = vsyncpa [#allocation3], 0
    %20 = vsyncpa [#allocation6], 0
    %21 = vsyncpa [#allocation4], 0
    %s22 = scalar_lea.sflag [#allocation4], 1
    %23 = vsyncpa %s22, 0
    loop: start=0, step=1, limit=4
    $region2: #{forward.1} parent=1 // loop_pre_header
      _
    $region3: #{forward.1} parent=1 // loop_header
      %s25 = sphi 0, %s29
      %p26 = scmp.ge.s32.totalorder %s25, 4
      %s35 = sphi 0, %s37
      %s38 = sphi 0, %s35
      %s39 = sphi 0, %s38
      %s55 = sphi 0, %s39
      %s59 = sphi 0, %s59
      %s61 = sphi 0, %s59
      %s62 = sphi 0, %s61
      %s76 = sphi 0, %s62
      %s80 = sphi 0, %s80
      %s82 = sphi 0, %s80
      %s83 = sphi 0, %s82
      %s97 = sphi 0, %s83
      %s101 = sphi 0, %s101
      %s103 = sphi 0, %s101
      %s104 = sphi 0, %s103
      %s118 = sphi 0, %s104
      %s122 = sphi 0, %s122
      %s124 = sphi 0, %s122
      %s125 = sphi 0, %s124
      %s139 = sphi 0, %s125
      %s143 = sphi 0, %s143
      %s145 = sphi 0, %s143
      %s146 = sphi 0, %s145
      %s160 = sphi 0, %s146
      %s164 = sphi 0, %s164
      %s166 = sphi 0, %s164
      %s167 = sphi 0, %s166
      %s181 = sphi 0, %s167
      %s185 = sphi 0, %s185
      %s187 = sphi 0, %s185
      %s188 = sphi 0, %s187
      %s202 = sphi 0, %s188
      %s206 = sphi 0, %s206
      %s208 = sphi 0, %s206
      %s209 = sphi 0, %s208
      %s223 = sphi 0, %s209
      %s227 = sphi 0, %s227
      %s229 = sphi 0, %s227
      %s230 = sphi 0, %s229
      %s244 = sphi 0, %s230
      %s248 = sphi 0, %s248
      %s250 = sphi 0, %s248
      %s251 = sphi 0, %s250
      %s265 = sphi 0, %s251
      %s269 = sphi 0, %s269
      %s271 = sphi 0, %s269
      %s272 = sphi 0, %s271
      %s286 = sphi 0, %s272
      %s290 = sphi 0, %s290
      %s292 = sphi 0, %s290
      %s293 = sphi 0, %s292
      %s307 = sphi 0, %s293
      %s311 = sphi 0, %s311
      %s313 = sphi 0, %s311
      %s314 = sphi 0, %s313
      %s328 = sphi 0, %s314
      %s334 = sphi 0, %s336
      %s337 = sphi 0, %s334
      %s338 = sphi 0, %s337
      %s354 = sphi 0, %s338
    $region4: #{forward.1} parent=1 // loop_header_branch
      %28 = sbr.rel (%p26) target = $region8
    $region5: #{forward.1} parent=1 // loop_body
      %s30 = ssub.s32 %s25, 1
      %s31 = ssub.s32 %s25, 2
      %s32 = sadd.s32 %s25, 1
      %s33 = ssub.s32 %s25, %s32
      %p34 = scmp.eq.s32.totalorder %s33, 0
      %s36 = sadd.s32 %s35, 1
      %s37 = scalar_select %p34, %s35, %s36
      %p40 = pneg %p34
      %p41 = scmp.eq.s32.totalorder %s25, 1
      %p42 = por %p40, %p41
      %p43 = scmp.ne.s32.totalorder %s35, %s38
      %p44 = scmp.eq.s32.totalorder %s25, 0
      %p45 = por %p43, %p44
      %p46 = scmp.ne.s32.totalorder %s35, %s38
      %p47 = scmp.eq.s32.totalorder %s30, 1
      %p48 = por %p46, %p47
      %p49 = scmp.ne.s32.totalorder %s38, %s39
      %p50 = scmp.eq.s32.totalorder %s30, 0
      %p51 = por %p49, %p50
      %p52 = scmp.ne.s32.totalorder %s38, %s39
      %p53 = scmp.eq.s32.totalorder %s31, 1
      %p54 = por %p52, %p53
      %p56 = scmp.ne.s32.totalorder %s39, %s55
      %p57 = scmp.eq.s32.totalorder %s31, 0
      %p58 = por %p56, %p57
      %s60 = sadd.s32 %s59, 1
      %p63 = scmp.eq.s32.totalorder %s25, 1
      %p64 = scmp.ne.s32.totalorder %s59, %s61
      %p65 = scmp.eq.s32.totalorder %s25, 0
      %p66 = por %p64, %p65
      %p67 = scmp.ne.s32.totalorder %s59, %s61
      %p68 = scmp.eq.s32.totalorder %s30, 1
      %p69 = por %p67, %p68
      %p70 = scmp.ne.s32.totalorder %s61, %s62
      %p71 = scmp.eq.s32.totalorder %s30, 0
      %p72 = por %p70, %p71
      %p73 = scmp.ne.s32.totalorder %s61, %s62
      %p74 = scmp.eq.s32.totalorder %s31, 1
      %p75 = por %p73, %p74
      %p77 = scmp.ne.s32.totalorder %s62, %s76
      %p78 = scmp.eq.s32.totalorder %s31, 0
      %p79 = por %p77, %p78
      %s81 = sadd.s32 %s80, 1
      %p84 = scmp.eq.s32.totalorder %s25, 1
      %p85 = scmp.ne.s32.totalorder %s80, %s82
      %p86 = scmp.eq.s32.totalorder %s25, 0
      %p87 = por %p85, %p86
      %p88 = scmp.ne.s32.totalorder %s80, %s82
      %p89 = scmp.eq.s32.totalorder %s30, 1
      %p90 = por %p88, %p89
      %p91 = scmp.ne.s32.totalorder %s82, %s83
      %p92 = scmp.eq.s32.totalorder %s30, 0
      %p93 = por %p91, %p92
      %p94 = scmp.ne.s32.totalorder %s82, %s83
      %p95 = scmp.eq.s32.totalorder %s31, 1
      %p96 = por %p94, %p95
      %p98 = scmp.ne.s32.totalorder %s83, %s97
      %p99 = scmp.eq.s32.totalorder %s31, 0
      %p100 = por %p98, %p99
      %s102 = sadd.s32 %s101, 1
      %p105 = scmp.eq.s32.totalorder %s25, 1
      %p106 = scmp.ne.s32.totalorder %s101, %s103
      %p107 = scmp.eq.s32.totalorder %s25, 0
      %p108 = por %p106, %p107
      %p109 = scmp.ne.s32.totalorder %s101, %s103
      %p110 = scmp.eq.s32.totalorder %s30, 1
      %p111 = por %p109, %p110
      %p112 = scmp.ne.s32.totalorder %s103, %s104
      %p113 = scmp.eq.s32.totalorder %s30, 0
      %p114 = por %p112, %p113
      %p115 = scmp.ne.s32.totalorder %s103, %s104
      %p116 = scmp.eq.s32.totalorder %s31, 1
      %p117 = por %p115, %p116
      %p119 = scmp.ne.s32.totalorder %s104, %s118
      %p120 = scmp.eq.s32.totalorder %s31, 0
      %p121 = por %p119, %p120
      %s123 = sadd.s32 %s122, 1
      %p126 = scmp.eq.s32.totalorder %s25, 1
      %p127 = scmp.ne.s32.totalorder %s122, %s124
      %p128 = scmp.eq.s32.totalorder %s25, 0
      %p129 = por %p127, %p128
      %p130 = scmp.ne.s32.totalorder %s122, %s124
      %p131 = scmp.eq.s32.totalorder %s30, 1
      %p132 = por %p130, %p131
      %p133 = scmp.ne.s32.totalorder %s124, %s125
      %p134 = scmp.eq.s32.totalorder %s30, 0
      %p135 = por %p133, %p134
      %p136 = scmp.ne.s32.totalorder %s124, %s125
      %p137 = scmp.eq.s32.totalorder %s31, 1
      %p138 = por %p136, %p137
      %p140 = scmp.ne.s32.totalorder %s125, %s139
      %p141 = scmp.eq.s32.totalorder %s31, 0
      %p142 = por %p140, %p141
      %s144 = sadd.s32 %s143, 1
      %p147 = scmp.eq.s32.totalorder %s25, 1
      %p148 = scmp.ne.s32.totalorder %s143, %s145
      %p149 = scmp.eq.s32.totalorder %s25, 0
      %p150 = por %p148, %p149
      %p151 = scmp.ne.s32.totalorder %s143, %s145
      %p152 = scmp.eq.s32.totalorder %s30, 1
      %p153 = por %p151, %p152
      %p154 = scmp.ne.s32.totalorder %s145, %s146
      %p155 = scmp.eq.s32.totalorder %s30, 0
      %p156 = por %p154, %p155
      %p157 = scmp.ne.s32.totalorder %s145, %s146
      %p158 = scmp.eq.s32.totalorder %s31, 1
      %p159 = por %p157, %p158
      %p161 = scmp.ne.s32.totalorder %s146, %s160
      %p162 = scmp.eq.s32.totalorder %s31, 0
      %p163 = por %p161, %p162
      %s165 = sadd.s32 %s164, 1
      %p168 = scmp.eq.s32.totalorder %s25, 1
      %p169 = scmp.ne.s32.totalorder %s164, %s166
      %p170 = scmp.eq.s32.totalorder %s25, 0
      %p171 = por %p169, %p170
      %p172 = scmp.ne.s32.totalorder %s164, %s166
      %p173 = scmp.eq.s32.totalorder %s30, 1
      %p174 = por %p172, %p173
      %p175 = scmp.ne.s32.totalorder %s166, %s167
      %p176 = scmp.eq.s32.totalorder %s30, 0
      %p177 = por %p175, %p176
      %p178 = scmp.ne.s32.totalorder %s166, %s167
      %p179 = scmp.eq.s32.totalorder %s31, 1
      %p180 = por %p178, %p179
      %p182 = scmp.ne.s32.totalorder %s167, %s181
      %p183 = scmp.eq.s32.totalorder %s31, 0
      %p184 = por %p182, %p183
      %s186 = sadd.s32 %s185, 1
      %p189 = scmp.eq.s32.totalorder %s25, 1
      %p190 = scmp.ne.s32.totalorder %s185, %s187
      %p191 = scmp.eq.s32.totalorder %s25, 0
      %p192 = por %p190, %p191
      %p193 = scmp.ne.s32.totalorder %s185, %s187
      %p194 = scmp.eq.s32.totalorder %s30, 1
      %p195 = por %p193, %p194
      %p196 = scmp.ne.s32.totalorder %s187, %s188
      %p197 = scmp.eq.s32.totalorder %s30, 0
      %p198 = por %p196, %p197
      %p199 = scmp.ne.s32.totalorder %s187, %s188
      %p200 = scmp.eq.s32.totalorder %s31, 1
      %p201 = por %p199, %p200
      %p203 = scmp.ne.s32.totalorder %s188, %s202
      %p204 = scmp.eq.s32.totalorder %s31, 0
      %p205 = por %p203, %p204
      %s207 = sadd.s32 %s206, 1
      %p210 = scmp.eq.s32.totalorder %s25, 1
      %p211 = scmp.ne.s32.totalorder %s206, %s208
      %p212 = scmp.eq.s32.totalorder %s25, 0
      %p213 = por %p211, %p212
      %p214 = scmp.ne.s32.totalorder %s206, %s208
      %p215 = scmp.eq.s32.totalorder %s30, 1
      %p216 = por %p214, %p215
      %p217 = scmp.ne.s32.totalorder %s208, %s209
      %p218 = scmp.eq.s32.totalorder %s30, 0
      %p219 = por %p217, %p218
      %p220 = scmp.ne.s32.totalorder %s208, %s209
      %p221 = scmp.eq.s32.totalorder %s31, 1
      %p222 = por %p220, %p221
      %p224 = scmp.ne.s32.totalorder %s209, %s223
      %p225 = scmp.eq.s32.totalorder %s31, 0
      %p226 = por %p224, %p225
      %s228 = sadd.s32 %s227, 1
      %p231 = scmp.eq.s32.totalorder %s25, 1
      %p232 = scmp.ne.s32.totalorder %s227, %s229
      %p233 = scmp.eq.s32.totalorder %s25, 0
      %p234 = por %p232, %p233
      %p235 = scmp.ne.s32.totalorder %s227, %s229
      %p236 = scmp.eq.s32.totalorder %s30, 1
      %p237 = por %p235, %p236
      %p238 = scmp.ne.s32.totalorder %s229, %s230
      %p239 = scmp.eq.s32.totalorder %s30, 0
      %p240 = por %p238, %p239
      %p241 = scmp.ne.s32.totalorder %s229, %s230
      %p242 = scmp.eq.s32.totalorder %s31, 1
      %p243 = por %p241, %p242
      %p245 = scmp.ne.s32.totalorder %s230, %s244
      %p246 = scmp.eq.s32.totalorder %s31, 0
      %p247 = por %p245, %p246
      %s249 = sadd.s32 %s248, 1
      %p252 = scmp.eq.s32.totalorder %s25, 1
      %p253 = scmp.ne.s32.totalorder %s248, %s250
      %p254 = scmp.eq.s32.totalorder %s25, 0
      %p255 = por %p253, %p254
      %p256 = scmp.ne.s32.totalorder %s248, %s250
      %p257 = scmp.eq.s32.totalorder %s30, 1
      %p258 = por %p256, %p257
      %p259 = scmp.ne.s32.totalorder %s250, %s251
      %p260 = scmp.eq.s32.totalorder %s30, 0
      %p261 = por %p259, %p260
      %p262 = scmp.ne.s32.totalorder %s250, %s251
      %p263 = scmp.eq.s32.totalorder %s31, 1
      %p264 = por %p262, %p263
      %p266 = scmp.ne.s32.totalorder %s251, %s265
      %p267 = scmp.eq.s32.totalorder %s31, 0
      %p268 = por %p266, %p267
      %s270 = sadd.s32 %s269, 1
      %p273 = scmp.eq.s32.totalorder %s25, 1
      %p274 = scmp.ne.s32.totalorder %s269, %s271
      %p275 = scmp.eq.s32.totalorder %s25, 0
      %p276 = por %p274, %p275
      %p277 = scmp.ne.s32.totalorder %s269, %s271
      %p278 = scmp.eq.s32.totalorder %s30, 1
      %p279 = por %p277, %p278
      %p280 = scmp.ne.s32.totalorder %s271, %s272
      %p281 = scmp.eq.s32.totalorder %s30, 0
      %p282 = por %p280, %p281
      %p283 = scmp.ne.s32.totalorder %s271, %s272
      %p284 = scmp.eq.s32.totalorder %s31, 1
      %p285 = por %p283, %p284
      %p287 = scmp.ne.s32.totalorder %s272, %s286
      %p288 = scmp.eq.s32.totalorder %s31, 0
      %p289 = por %p287, %p288
      %s291 = sadd.s32 %s290, 1
      %p294 = scmp.eq.s32.totalorder %s25, 1
      %p295 = scmp.ne.s32.totalorder %s290, %s292
      %p296 = scmp.eq.s32.totalorder %s25, 0
      %p297 = por %p295, %p296
      %p298 = scmp.ne.s32.totalorder %s290, %s292
      %p299 = scmp.eq.s32.totalorder %s30, 1
      %p300 = por %p298, %p299
      %p301 = scmp.ne.s32.totalorder %s292, %s293
      %p302 = scmp.eq.s32.totalorder %s30, 0
      %p303 = por %p301, %p302
      %p304 = scmp.ne.s32.totalorder %s292, %s293
      %p305 = scmp.eq.s32.totalorder %s31, 1
      %p306 = por %p304, %p305
      %p308 = scmp.ne.s32.totalorder %s293, %s307
      %p309 = scmp.eq.s32.totalorder %s31, 0
      %p310 = por %p308, %p309
      %s312 = sadd.s32 %s311, 1
      %p315 = scmp.eq.s32.totalorder %s25, 1
      %p316 = scmp.ne.s32.totalorder %s311, %s313
      %p317 = scmp.eq.s32.totalorder %s25, 0
      %p318 = por %p316, %p317
      %p319 = scmp.ne.s32.totalorder %s311, %s313
      %p320 = scmp.eq.s32.totalorder %s30, 1
      %p321 = por %p319, %p320
      %p322 = scmp.ne.s32.totalorder %s313, %s314
      %p323 = scmp.eq.s32.totalorder %s30, 0
      %p324 = por %p322, %p323
      %p325 = scmp.ne.s32.totalorder %s313, %s314
      %p326 = scmp.eq.s32.totalorder %s31, 1
      %p327 = por %p325, %p326
      %p329 = scmp.ne.s32.totalorder %s314, %s328
      %p330 = scmp.eq.s32.totalorder %s31, 0
      %p331 = por %p329, %p330
      %s332 = ssub.s32 %s25, %s32
      %p333 = scmp.eq.s32.totalorder %s332, 0
      %s335 = sadd.s32 %s334, 1
      %s336 = scalar_select %p333, %s334, %s335
      %p339 = pneg %p333
      %p340 = scmp.eq.s32.totalorder %s25, 1
      %p341 = por %p339, %p340
      %p342 = scmp.ne.s32.totalorder %s334, %s337
      %p343 = scmp.eq.s32.totalorder %s25, 0
      %p344 = por %p342, %p343
      %p345 = scmp.ne.s32.totalorder %s334, %s337
      %p346 = scmp.eq.s32.totalorder %s30, 1
      %p347 = por %p345, %p346
      %p348 = scmp.ne.s32.totalorder %s337, %s338
      %p349 = scmp.eq.s32.totalorder %s30, 0
      %p350 = por %p348, %p349
      %p351 = scmp.ne.s32.totalorder %s337, %s338
      %p352 = scmp.eq.s32.totalorder %s31, 1
      %p353 = por %p351, %p352
      %p355 = scmp.ne.s32.totalorder %s338, %s354
      %p356 = scmp.eq.s32.totalorder %s31, 0
      %p357 = por %p355, %p356
      %p358 = scmp.le.s32.totalorder 1, %s25
      %p359 = scmp.lt.s32.totalorder %s25, 3
      %p360 = pnand %p358, %p359
      %p361 = pneg %p360
      // Predicated region
      $region9: #{forward.1} parent=5 // pred_check
        _
      $region10: #{forward.1} parent=5 // pred_check_branch
        %363 = sbr.rel (%p360) target = $region12
      $region11: #{forward.1} parent=5 // pred_region
        %s364 = ssub.s32 %s25, 1
        // Predicated region
        $region13: #{forward.1} parent=11 // pred_check
          %p365 = pneg %p72
        $region14: #{forward.1} parent=11 // pred_check_branch
          %367 = sbr.rel (%p365) target = $region16
        $region15: #{forward.1} parent=11 // pred_region
          _
        $region16: #{forward.1} parent=11 // pred_fallthru
          _
        // Predicated region
        $region17: #{forward.1} parent=11 // pred_check
          %p368 = pneg %p93
        $region18: #{forward.1} parent=11 // pred_check_branch
          %370 = sbr.rel (%p368) target = $region20
        $region19: #{forward.1} parent=11 // pred_region
          %s372 = ssub.s32 16, 16
          %373 = vsyncadd [#allocation3], %s372
          %s375 = sshll.u32 [#allocation2], 4
          %s376 = int_to_ptr.vmem [resolvable:$true] %s375
          %378 = dma.hbm_to_vmem [thread:$0]  %s2, 16, %s376, [#allocation3]
        $region20: #{forward.1} parent=11 // pred_fallthru
          _
        // Predicated region
        $region21: #{forward.1} parent=11 // pred_check
          %p379 = pneg %p114
        $region22: #{forward.1} parent=11 // pred_check_branch
          %381 = sbr.rel (%p379) target = $region24
        $region23: #{forward.1} parent=11 // pred_region
          _
        $region24: #{forward.1} parent=11 // pred_fallthru
          _
        // Predicated region
        $region25: #{forward.1} parent=11 // pred_check
          %p382 = pneg %p135
        $region26: #{forward.1} parent=11 // pred_check_branch
          %384 = sbr.rel (%p382) target = $region28
        $region27: #{forward.1} parent=11 // pred_region
          _
        $region28: #{forward.1} parent=11 // pred_fallthru
          _
        // Predicated region
        $region29: #{forward.1} parent=11 // pred_check
          %p385 = pneg %p156
        $region30: #{forward.1} parent=11 // pred_check_branch
          %387 = sbr.rel (%p385) target = $region32
        $region31: #{forward.1} parent=11 // pred_region
          %s389 = ssub.s32 16, 16
          %390 = vsyncadd [#allocation6], %s389
          %s392 = sshll.u32 [#allocation5], 4
          %s393 = int_to_ptr.vmem [resolvable:$true] %s392
          %395 = dma.hbm_to_vmem [thread:$0]  %s5, 16, %s393, [#allocation6]
        $region32: #{forward.1} parent=11 // pred_fallthru
          _
        // Predicated region
        $region33: #{forward.1} parent=11 // pred_check
          %p396 = pneg %p177
        $region34: #{forward.1} parent=11 // pred_check_branch
          %398 = sbr.rel (%p396) target = $region36
        $region35: #{forward.1} parent=11 // pred_region
          _
        $region36: #{forward.1} parent=11 // pred_fallthru
          _
        // Predicated region
        $region37: #{forward.1} parent=11 // pred_check
          %p399 = pneg %p198
        $region38: #{forward.1} parent=11 // pred_check_branch
          %401 = sbr.rel (%p399) target = $region40
        $region39: #{forward.1} parent=11 // pred_region
          _
        $region40: #{forward.1} parent=11 // pred_fallthru
          _
        // Predicated region
        $region41: #{forward.1} parent=11 // pred_check
          %p402 = pneg %p219
        $region42: #{forward.1} parent=11 // pred_check_branch
          %404 = sbr.rel (%p402) target = $region44
        $region43: #{forward.1} parent=11 // pred_region
          %s406 = ssub.s32 16, 16
          %407 = vsyncadd [#allocation6], %s406
          %s409 = sshll.u32 [#allocation7], 4
          %s410 = int_to_ptr.vmem [resolvable:$true] %s409
          %412 = dma.hbm_to_vmem [thread:$0]  %s8, 16, %s410, [#allocation6]
        $region44: #{forward.1} parent=11 // pred_fallthru
          _
        // Predicated region
        $region45: #{forward.1} parent=11 // pred_check
          %p413 = pneg %p240
        $region46: #{forward.1} parent=11 // pred_check_branch
          %415 = sbr.rel (%p413) target = $region48
        $region47: #{forward.1} parent=11 // pred_region
          _
        $region48: #{forward.1} parent=11 // pred_fallthru
          _
        // Predicated region
        $region49: #{forward.1} parent=11 // pred_check
          %p416 = pneg %p261
        $region50: #{forward.1} parent=11 // pred_check_branch
          %418 = sbr.rel (%p416) target = $region52
        $region51: #{forward.1} parent=11 // pred_region
          _
        $region52: #{forward.1} parent=11 // pred_fallthru
          _
        // Predicated region
        $region53: #{forward.1} parent=11 // pred_check
          %p419 = pneg %p282
        $region54: #{forward.1} parent=11 // pred_check_branch
          %421 = sbr.rel (%p419) target = $region56
        $region55: #{forward.1} parent=11 // pred_region
          _
        $region56: #{forward.1} parent=11 // pred_fallthru
          _
        // Predicated region
        $region57: #{forward.1} parent=11 // pred_check
          %p422 = pneg %p303
        $region58: #{forward.1} parent=11 // pred_check_branch
          %424 = sbr.rel (%p422) target = $region60
        $region59: #{forward.1} parent=11 // pred_region
          _
        $region60: #{forward.1} parent=11 // pred_fallthru
          _
        // Predicated region
        $region61: #{forward.1} parent=11 // pred_check
          %p425 = pneg %p324
        $region62: #{forward.1} parent=11 // pred_check_branch
          %427 = sbr.rel (%p425) target = $region64
        $region63: #{forward.1} parent=11 // pred_region
          _
        $region64: #{forward.1} parent=11 // pred_fallthru
          _
      $region12: #{forward.1} parent=5 // pred_fallthru
        _
      %p428 = scmp.lt.s32.totalorder %s25, 2
      // Predicated region
      $region65: #{forward.1} parent=5 // pred_check
        %p429 = pneg %p428
      $region66: #{forward.1} parent=5 // pred_check_branch
        %431 = sbr.rel (%p429) target = $region68
      $region67: #{forward.1} parent=5 // pred_region
        // Predicated region
        $region69: #{forward.1} parent=67 // pred_check
          %p432 = pneg %p45
        $region70: #{forward.1} parent=67 // pred_check_branch
          %434 = sbr.rel (%p432) target = $region72
        $region71: #{forward.1} parent=67 // pred_region
          %p435 = scmp.lt.s32.totalorder %s25, 1
          %s436 = scalar_select %p435, %s25, 1
          %s437 = smul.addr %s436, 32
          %s438 = smul.addr %s437, 8
          %s439 = scalar_lea.vmem %s0, %s438
        $region72: #{forward.1} parent=67 // pred_fallthru
          _
      $region68: #{forward.1} parent=5 // pred_fallthru
        _
      %p440 = scmp.le.s32.totalorder 1, %s25
      %p441 = scmp.lt.s32.totalorder %s25, 3
      %p442 = pnand %p440, %p441
      %p443 = pneg %p442
      // Predicated region
      $region73: #{forward.1} parent=5 // pred_check
        _
      $region74: #{forward.1} parent=5 // pred_check_branch
        %445 = sbr.rel (%p442) target = $region76
      $region75: #{forward.1} parent=5 // pred_region
        %s446 = ssub.s32 %s25, 1
        // Predicated region
        $region77: #{forward.1} parent=75 // pred_check
          %p447 = pneg %p93
        $region78: #{forward.1} parent=75 // pred_check_branch
          %449 = sbr.rel (%p447) target = $region80
        $region79: #{forward.1} parent=75 // pred_region
          %450 = dma.done [#allocation3], 16
        $region80: #{forward.1} parent=75 // pred_fallthru
          _
        // Predicated region
        $region81: #{forward.1} parent=75 // pred_check
          %p451 = pneg %p156
        $region82: #{forward.1} parent=75 // pred_check_branch
          %453 = sbr.rel (%p451) target = $region84
        $region83: #{forward.1} parent=75 // pred_region
          %454 = dma.done [#allocation6], 16
        $region84: #{forward.1} parent=75 // pred_fallthru
          _
        // Predicated region
        $region85: #{forward.1} parent=75 // pred_check
          %p455 = pneg %p219
        $region86: #{forward.1} parent=75 // pred_check_branch
          %457 = sbr.rel (%p455) target = $region88
        $region87: #{forward.1} parent=75 // pred_region
          %458 = dma.done [#allocation6], 16
        $region88: #{forward.1} parent=75 // pred_fallthru
          _
        %p459 = scmp.lt.s32.totalorder %s30, 1
        %s460 = scalar_select %p459, %s30, 1
        %s461 = smul.addr %s460, 32
        %s462 = smul.addr %s461, 8
        %s463 = scalar_lea.vmem %s0, %s462
        %p464 = pneg %p51
        %p465 = pneg %p48
        %p466 = pneg %p72
        %p467 = pneg %p69
        %p468 = pneg %p93
        %p469 = pneg %p90
        %p470 = pneg %p114
        %p471 = pneg %p111
        %p472 = pneg %p135
        %p473 = pneg %p132
        %p474 = pneg %p156
        %p475 = pneg %p153
        %p476 = pneg %p177
        %p477 = pneg %p174
        %p478 = pneg %p198
        %p479 = pneg %p195
        %p480 = pneg %p219
        %p481 = pneg %p216
        %p482 = pneg %p240
        %p483 = pneg %p237
        %p484 = pneg %p261
        %p485 = pneg %p258
        %p486 = pneg %p282
        %p487 = pneg %p279
        %p488 = pneg %p303
        %p489 = pneg %p300
        %p490 = pneg %p324
        %p491 = pneg %p321
        %p492 = pneg %p350
        %p493 = pneg %p347
        %s494 = sand.u32 %s337, 1
        %s495 = scalar_lea.sflag [#allocation4], %s494
        %s496 = sand.u32 %s337, 1
        %s497 = scalar_lea.vmem [#allocation8], %s496
        %p498 = scmp.lt.s32.totalorder %s30, 1
        %s499 = scalar_select %p498, %s30, 1
        %s500 = smul.addr %s499, 32
        %s501 = smul.addr %s500, 8
        %s502 = scalar_lea.vmem %s0, %s501
        %v504 = vld [vmem:[%s502] sm:$0xff]
        %v505 = vld [vmem:[%s502 + $0x8] sm:$0xff]
        %v506 = vld [vmem:[%s502 + $0x10] sm:$0xff]
        %v507 = vld [vmem:[%s502 + $0x18] sm:$0xff]
        %v508 = vld [vmem:[%s502 + $0x20] sm:$0xff]
        %v509 = vld [vmem:[%s502 + $0x28] sm:$0xff]
        %v510 = vld [vmem:[%s502 + $0x30] sm:$0xff]
        %v511 = vld [vmem:[%s502 + $0x38] sm:$0xff]
        %v512 = vld [vmem:[%s502 + $0x40] sm:$0xff]
        %v513 = vld [vmem:[%s502 + $0x48] sm:$0xff]
        %v514 = vld [vmem:[%s502 + $0x50] sm:$0xff]
        %v515 = vld [vmem:[%s502 + $0x58] sm:$0xff]
        %v516 = vld [vmem:[%s502 + $0x60] sm:$0xff]
        %v517 = vld [vmem:[%s502 + $0x68] sm:$0xff]
        %v518 = vld [vmem:[%s502 + $0x70] sm:$0xff]
        %v519 = vld [vmem:[%s502 + $0x78] sm:$0xff]
        %v520 = vld [vmem:[%s502 + $0x80] sm:$0xff]
        %v521 = vld [vmem:[%s502 + $0x88] sm:$0xff]
        %v522 = vld [vmem:[%s502 + $0x90] sm:$0xff]
        %v523 = vld [vmem:[%s502 + $0x98] sm:$0xff]
        %v524 = vld [vmem:[%s502 + $0xa0] sm:$0xff]
        %v525 = vld [vmem:[%s502 + $0xa8] sm:$0xff]
        %v526 = vld [vmem:[%s502 + $0xb0] sm:$0xff]
        %v527 = vld [vmem:[%s502 + $0xb8] sm:$0xff]
        %v528 = vld [vmem:[%s502 + $0xc0] sm:$0xff]
        %v529 = vld [vmem:[%s502 + $0xc8] sm:$0xff]
        %v530 = vld [vmem:[%s502 + $0xd0] sm:$0xff]
        %v531 = vld [vmem:[%s502 + $0xd8] sm:$0xff]
        %v532 = vld [vmem:[%s502 + $0xe0] sm:$0xff]
        %v533 = vld [vmem:[%s502 + $0xe8] sm:$0xff]
        %v534 = vld [vmem:[%s502 + $0xf0] sm:$0xff]
        %v535 = vld [vmem:[%s502 + $0xf8] sm:$0xff]
        %v536 = vpack.c.bf16 %v505, %v504
        %v537 = vpack.c.bf16 %v507, %v506
        %v538 = vpack.c.bf16 %v509, %v508
        %v539 = vpack.c.bf16 %v511, %v510
        %v540 = vpack.c.bf16 %v513, %v512
        %v541 = vpack.c.bf16 %v515, %v514
        %v542 = vpack.c.bf16 %v517, %v516
        %v543 = vpack.c.bf16 %v519, %v518
        %v544 = vpack.c.bf16 %v521, %v520
        %v545 = vpack.c.bf16 %v523, %v522
        %v546 = vpack.c.bf16 %v525, %v524
        %v547 = vpack.c.bf16 %v527, %v526
        %v548 = vpack.c.bf16 %v529, %v528
        %v549 = vpack.c.bf16 %v531, %v530
        %v550 = vpack.c.bf16 %v533, %v532
        %v551 = vpack.c.bf16 %v535, %v534
        %v552 = vld [vmem:[%s1] sm:$0xf]
        %v553 = vld [vmem:[%s1 + $0x4] sm:$0x1]
        %v554 = vld [vmem:[#allocation2] sm:$0x1]
        %v556 = vlaneseq
        %v557 = vshrl.u32 %v556, 7
        %v558 = vsub.s32 0, %v557
        %v559 = vrot.slane %v554, %v558
        %v563 = vunpack.c.l.b16 %v552
        %v564 = vunpack.c.l.b16 %v553
        %v565 = vpack.c.b16 %v564, %v563
        %vm566 = vcmask 72704
        %v568 = vsel %vm566, %v536, 0
        %v571 = vsel %vm566, %v537, 0
        %v574 = vsel %vm566, %v538, 0
        %v577 = vsel %vm566, %v539, 0
        %v580 = vsel %vm566, %v540, 0
        %v583 = vsel %vm566, %v541, 0
        %v586 = vsel %vm566, %v542, 0
        %v589 = vsel %vm566, %v543, 0
        %v592 = vsel %vm566, %v544, 0
        %v595 = vsel %vm566, %v545, 0
        %v598 = vsel %vm566, %v546, 0
        %v601 = vsel %vm566, %v547, 0
        %v604 = vsel %vm566, %v548, 0
        %v607 = vsel %vm566, %v549, 0
        %v610 = vsel %vm566, %v550, 0
        %v613 = vsel %vm566, %v551, 0
        %vm615 = vcmask 1043456
        %vm616 = vcmask 1044480
        %v617 = vsel %vm615, 4294967295, 65535
        %v618 = vsel %vm616, %v617, 0
        %v620 = vand.u32 %v565, %v618
        %622 = vmatprep.subr.bf16.mxu0 0
        %623 = vmatpush1.bf16.msra.mxu0 %v620
        %624 = vmatprep.subr.bf16.mxu0 0
        %625 = vmatpush1.bf16.msra.mxu0 0
        %626 = vmatprep.subr.bf16.mxu0 0
        %627 = vmatpush1.bf16.msra.mxu0 0
        %628 = vmatprep.subr.bf16.mxu0 0
        %629 = vmatpush1.bf16.msra.mxu0 0
        %630 = vmatprep.subr.bf16.mxu0 0
        %631 = vmatpush1.bf16.msra.mxu0 0
        %632 = vmatprep.subr.bf16.mxu0 0
        %633 = vmatpush1.bf16.msra.mxu0 0
        %634 = vmatprep.subr.bf16.mxu0 0
        %635 = vmatpush1.bf16.msra.mxu0 0
        %636 = vmatprep.subr.bf16.mxu0 0
        %637 = vmatpush1.bf16.msra.mxu0 0
        %638 = vmatprep.subr.bf16.mxu0 0
        %639 = vmatpush1.bf16.msra.mxu0 0
        %640 = vmatprep.subr.bf16.mxu0 0
        %641 = vmatpush1.bf16.msra.mxu0 0
        %642 = vmatprep.subr.bf16.mxu0 0
        %643 = vmatpush1.bf16.msra.mxu0 0
        %644 = vmatprep.subr.bf16.mxu0 0
        %645 = vmatpush1.bf16.msra.mxu0 0
        %646 = vmatprep.subr.bf16.mxu0 0
        %647 = vmatpush1.bf16.msra.mxu0 0
        %648 = vmatprep.subr.bf16.mxu0 0
        %649 = vmatpush1.bf16.msra.mxu0 0
        %650 = vmatprep.subr.bf16.mxu0 0
        %651 = vmatpush1.bf16.msra.mxu0 0
        %652 = vmatprep.subr.bf16.mxu0 0
        %653 = vmatpush1.bf16.msra.mxu0 0
        %654 = vmatprep.mubr.bf16.mxu0 0
        %655 = vmatmul.mubr.bf16.gmra.mrb[0].mxu0 %v568
        %v656 = vpop.f32.mrb[0].mxu0
        %v657 = vadd.f32 %v559, %v656
        %v658 = vpop.f32.mrb[0].mxu0
        %v659 = vpop.f32.mrb[0].mxu0
        %v660 = vadd.f32 %v559, %v659
        %v661 = vpop.f32.mrb[0].mxu0
        %662 = vmatprep.mubr.bf16.mxu0 0
        %663 = vmatmul.mubr.bf16.gmra.mrb[0].mxu0 %v571
        %v664 = vpop.f32.mrb[0].mxu0
        %v665 = vadd.f32 %v559, %v664
        %v666 = vpop.f32.mrb[0].mxu0
        %v667 = vpop.f32.mrb[0].mxu0
        %v668 = vadd.f32 %v559, %v667
        %v669 = vpop.f32.mrb[0].mxu0
        %670 = vmatprep.mubr.bf16.mxu0 0
        %671 = vmatmul.mubr.bf16.gmra.mrb[0].mxu0 %v574
        %v672 = vpop.f32.mrb[0].mxu0
        %v673 = vadd.f32 %v559, %v672
        %v674 = vpop.f32.mrb[0].mxu0
        %v675 = vpop.f32.mrb[0].mxu0
        %v676 = vadd.f32 %v559, %v675
        %v677 = vpop.f32.mrb[0].mxu0
        %678 = vmatprep.mubr.bf16.mxu0 0
        %679 = vmatmul.mubr.bf16.gmra.mrb[0].mxu0 %v577
        %v680 = vpop.f32.mrb[0].mxu0
        %v681 = vadd.f32 %v559, %v680
        %v682 = vpop.f32.mrb[0].mxu0
        %v683 = vpop.f32.mrb[0].mxu0
        %v684 = vadd.f32 %v559, %v683
        %v685 = vpop.f32.mrb[0].mxu0
        %686 = vmatprep.mubr.bf16.mxu0 0
        %687 = vmatmul.mubr.bf16.gmra.mrb[0].mxu0 %v580
        %v688 = vpop.f32.mrb[0].mxu0
        %v689 = vadd.f32 %v559, %v688
        %v690 = vpop.f32.mrb[0].mxu0
        %v691 = vpop.f32.mrb[0].mxu0
        %v692 = vadd.f32 %v559, %v691
        %v693 = vpop.f32.mrb[0].mxu0
        %694 = vmatprep.mubr.bf16.mxu0 0
        %695 = vmatmul.mubr.bf16.gmra.mrb[0].mxu0 %v583
        %v696 = vpop.f32.mrb[0].mxu0
        %v697 = vadd.f32 %v559, %v696
        %v698 = vpop.f32.mrb[0].mxu0
        %v699 = vpop.f32.mrb[0].mxu0
        %v700 = vadd.f32 %v559, %v699
        %v701 = vpop.f32.mrb[0].mxu0
        %702 = vmatprep.mubr.bf16.mxu0 0
        %703 = vmatmul.mubr.bf16.gmra.mrb[0].mxu0 %v586
        %v704 = vpop.f32.mrb[0].mxu0
        %v705 = vadd.f32 %v559, %v704
        %v706 = vpop.f32.mrb[0].mxu0
        %v707 = vpop.f32.mrb[0].mxu0
        %v708 = vadd.f32 %v559, %v707
        %v709 = vpop.f32.mrb[0].mxu0
        %710 = vmatprep.mubr.bf16.mxu0 0
        %711 = vmatmul.mubr.bf16.gmra.mrb[0].mxu0 %v589
        %v712 = vpop.f32.mrb[0].mxu0
        %v713 = vadd.f32 %v559, %v712
        %v714 = vpop.f32.mrb[0].mxu0
        %v715 = vpop.f32.mrb[0].mxu0
        %v716 = vadd.f32 %v559, %v715
        %v717 = vpop.f32.mrb[0].mxu0
        %718 = vmatprep.mubr.bf16.mxu0 0
        %719 = vmatmul.mubr.bf16.gmra.mrb[0].mxu0 %v592
        %v720 = vpop.f32.mrb[0].mxu0
        %v721 = vadd.f32 %v559, %v720
        %v722 = vpop.f32.mrb[0].mxu0
        %v723 = vpop.f32.mrb[0].mxu0
        %v724 = vadd.f32 %v559, %v723
        %v725 = vpop.f32.mrb[0].mxu0
        %726 = vmatprep.mubr.bf16.mxu0 0
        %727 = vmatmul.mubr.bf16.gmra.mrb[0].mxu0 %v595
        %v728 = vpop.f32.mrb[0].mxu0
        %v729 = vadd.f32 %v559, %v728
        %v730 = vpop.f32.mrb[0].mxu0
        %v731 = vpop.f32.mrb[0].mxu0
        %v732 = vadd.f32 %v559, %v731
        %v733 = vpop.f32.mrb[0].mxu0
        %734 = vmatprep.mubr.bf16.mxu0 0
        %735 = vmatmul.mubr.bf16.gmra.mrb[0].mxu0 %v598
        %v736 = vpop.f32.mrb[0].mxu0
        %v737 = vadd.f32 %v559, %v736
        %v738 = vpop.f32.mrb[0].mxu0
        %v739 = vpop.f32.mrb[0].mxu0
        %v740 = vadd.f32 %v559, %v739
        %v741 = vpop.f32.mrb[0].mxu0
        %742 = vmatprep.mubr.bf16.mxu0 0
        %743 = vmatmul.mubr.bf16.gmra.mrb[0].mxu0 %v601
        %v744 = vpop.f32.mrb[0].mxu0
        %v745 = vadd.f32 %v559, %v744
        %v746 = vpop.f32.mrb[0].mxu0
        %v747 = vpop.f32.mrb[0].mxu0
        %v748 = vadd.f32 %v559, %v747
        %v749 = vpop.f32.mrb[0].mxu0
        %750 = vmatprep.mubr.bf16.mxu0 0
        %751 = vmatmul.mubr.bf16.gmra.mrb[0].mxu0 %v604
        %v752 = vpop.f32.mrb[0].mxu0
        %v753 = vadd.f32 %v559, %v752
        %v754 = vpop.f32.mrb[0].mxu0
        %v755 = vpop.f32.mrb[0].mxu0
        %v756 = vadd.f32 %v559, %v755
        %v757 = vpop.f32.mrb[0].mxu0
        %758 = vmatprep.mubr.bf16.mxu0 0
        %759 = vmatmul.mubr.bf16.gmra.mrb[0].mxu0 %v607
        %v760 = vpop.f32.mrb[0].mxu0
        %v761 = vadd.f32 %v559, %v760
        %v762 = vpop.f32.mrb[0].mxu0
        %v763 = vpop.f32.mrb[0].mxu0
        %v764 = vadd.f32 %v559, %v763
        %v765 = vpop.f32.mrb[0].mxu0
        %766 = vmatprep.mubr.bf16.mxu0 0
        %767 = vmatmul.mubr.bf16.gmra.mrb[0].mxu0 %v610
        %v768 = vpop.f32.mrb[0].mxu0
        %v769 = vadd.f32 %v559, %v768
        %v770 = vpop.f32.mrb[0].mxu0
        %v771 = vpop.f32.mrb[0].mxu0
        %v772 = vadd.f32 %v559, %v771
        %v773 = vpop.f32.mrb[0].mxu0
        %774 = vmatprep.mubr.bf16.mxu0 0
        %775 = vmatmul.mubr.bf16.gmra.mrb[0].mxu0 %v613
        %v776 = vpop.f32.mrb[0].mxu0
        %v777 = vadd.f32 %v559, %v776
        %v778 = vpop.f32.mrb[0].mxu0
        %v779 = vpop.f32.mrb[0].mxu0
        %v780 = vadd.f32 %v559, %v779
        %v781 = vpop.f32.mrb[0].mxu0
        %782 = vdwg.mxu0
        %v783 = vmax.f32 %v657, 0.0
        %v784 = vmax.f32 %v660, 0.0
        %v785 = vmax.f32 %v665, 0.0
        %v786 = vmax.f32 %v668, 0.0
        %v787 = vmax.f32 %v673, 0.0
        %v788 = vmax.f32 %v676, 0.0
        %v789 = vmax.f32 %v681, 0.0
        %v790 = vmax.f32 %v684, 0.0
        %v791 = vmax.f32 %v689, 0.0
        %v792 = vmax.f32 %v692, 0.0
        %v793 = vmax.f32 %v697, 0.0
        %v794 = vmax.f32 %v700, 0.0
        %v795 = vmax.f32 %v705, 0.0
        %v796 = vmax.f32 %v708, 0.0
        %v797 = vmax.f32 %v713, 0.0
        %v798 = vmax.f32 %v716, 0.0
        %v799 = vmax.f32 %v721, 0.0
        %v800 = vmax.f32 %v724, 0.0
        %v801 = vmax.f32 %v729, 0.0
        %v802 = vmax.f32 %v732, 0.0
        %v803 = vmax.f32 %v737, 0.0
        %v804 = vmax.f32 %v740, 0.0
        %v805 = vmax.f32 %v745, 0.0
        %v806 = vmax.f32 %v748, 0.0
        %v807 = vmax.f32 %v753, 0.0
        %v808 = vmax.f32 %v756, 0.0
        %v809 = vmax.f32 %v761, 0.0
        %v810 = vmax.f32 %v764, 0.0
        %v811 = vmax.f32 %v769, 0.0
        %v812 = vmax.f32 %v772, 0.0
        %v813 = vmax.f32 %v777, 0.0
        %v814 = vmax.f32 %v780, 0.0
        %v815 = vpack.c.bf16 %v784, %v783
        %v816 = vpack.c.bf16 %v786, %v785
        %v817 = vpack.c.bf16 %v788, %v787
        %v818 = vpack.c.bf16 %v790, %v789
        %v819 = vpack.c.bf16 %v792, %v791
        %v820 = vpack.c.bf16 %v794, %v793
        %v821 = vpack.c.bf16 %v796, %v795
        %v822 = vpack.c.bf16 %v798, %v797
        %v823 = vpack.c.bf16 %v800, %v799
        %v824 = vpack.c.bf16 %v802, %v801
        %v825 = vpack.c.bf16 %v804, %v803
        %v826 = vpack.c.bf16 %v806, %v805
        %v827 = vpack.c.bf16 %v808, %v807
        %v828 = vpack.c.bf16 %v810, %v809
        %v829 = vpack.c.bf16 %v812, %v811
        %v830 = vpack.c.bf16 %v814, %v813
        %v831 = vld [vmem:[%s3] sm:$0xff]
        %v832 = vld [vmem:[%s3 + $0x8] sm:$0xff]
        %v833 = vld [vmem:[%s3 + $0x10] sm:$0xff]
        %v834 = vld [vmem:[%s3 + $0x18] sm:$0xff]
        %v835 = vld [vmem:[%s3 + $0x20] sm:$0xff]
        %v836 = vld [vmem:[%s3 + $0x28] sm:$0xff]
        %v837 = vld [vmem:[%s3 + $0x30] sm:$0xff]
        %v838 = vld [vmem:[%s3 + $0x38] sm:$0xff]
        %v847 = vunpack.c.l.b16 %v831
        %v848 = vunpack.c.h.b16 %v831
        %v849 = vunpack.c.l.b16 %v832
        %v850 = vunpack.c.h.b16 %v832
        %v851 = vunpack.c.l.b16 %v833
        %v852 = vunpack.c.h.b16 %v833
        %v853 = vunpack.c.l.b16 %v834
        %v854 = vunpack.c.h.b16 %v834
        %v855 = vunpack.c.l.b16 %v835
        %v856 = vunpack.c.h.b16 %v835
        %v857 = vunpack.c.l.b16 %v836
        %v858 = vunpack.c.h.b16 %v836
        %v859 = vunpack.c.l.b16 %v837
        %v860 = vunpack.c.h.b16 %v837
        %v861 = vunpack.c.l.b16 %v838
        %v862 = vunpack.c.h.b16 %v838
        %v863 = vpack.c.b16 %v849, %v847
        %v864 = vpack.c.b16 %v850, %v848
        %v865 = vpack.c.b16 %v853, %v851
        %v866 = vpack.c.b16 %v854, %v852
        %v867 = vpack.c.b16 %v857, %v855
        %v868 = vpack.c.b16 %v858, %v856
        %v869 = vpack.c.b16 %v861, %v859
        %v870 = vpack.c.b16 %v862, %v860
        %879 = vmatprep.subr.bf16.mxu0 0
        %880 = vmatpush1.bf16.msra.mxu0 %v815
        %881 = vmatprep.subr.bf16.mxu0 0
        %882 = vmatpush1.bf16.msra.mxu0 %v816
        %883 = vmatprep.subr.bf16.mxu0 0
        %884 = vmatpush1.bf16.msra.mxu0 %v817
        %885 = vmatprep.subr.bf16.mxu0 0
        %886 = vmatpush1.bf16.msra.mxu0 %v818
        %887 = vmatprep.subr.bf16.mxu0 0
        %888 = vmatpush1.bf16.msra.mxu0 %v819
        %889 = vmatprep.subr.bf16.mxu0 0
        %890 = vmatpush1.bf16.msra.mxu0 %v820
        %891 = vmatprep.subr.bf16.mxu0 0
        %892 = vmatpush1.bf16.msra.mxu0 %v821
        %893 = vmatprep.subr.bf16.mxu0 0
        %894 = vmatpush1.bf16.msra.mxu0 %v822
        %895 = vmatprep.subr.bf16.mxu0 0
        %896 = vmatpush1.bf16.msra.mxu0 %v823
        %897 = vmatprep.subr.bf16.mxu0 0
        %898 = vmatpush1.bf16.msra.mxu0 %v824
        %899 = vmatprep.subr.bf16.mxu0 0
        %900 = vmatpush1.bf16.msra.mxu0 %v825
        %901 = vmatprep.subr.bf16.mxu0 0
        %902 = vmatpush1.bf16.msra.mxu0 %v826
        %903 = vmatprep.subr.bf16.mxu0 0
        %904 = vmatpush1.bf16.msra.mxu0 %v827
        %905 = vmatprep.subr.bf16.mxu0 0
        %906 = vmatpush1.bf16.msra.mxu0 %v828
        %907 = vmatprep.subr.bf16.mxu0 0
        %908 = vmatpush1.bf16.msra.mxu0 %v829
        %909 = vmatprep.subr.bf16.mxu0 0
        %910 = vmatpush1.bf16.msra.mxu0 %v830
        %911 = vmatprep.mubr.bf16.mxu0 %v864
        %912 = vmatmul.mubr.bf16.gmra.mrb[0].mxu0 %v863
        %v913 = vpop.f32.mrb[0].mxu0
        %v914 = vadd.f32 0.0, %v913
        %v915 = vpop.f32.mrb[0].mxu0
        %v916 = vpop.f32.mrb[0].mxu0
        %v917 = vadd.f32 0.0, %v916
        %v918 = vpop.f32.mrb[0].mxu0
        %919 = vmatprep.mubr.bf16.mxu0 %v866
        %920 = vmatmul.mubr.bf16.gmra.mrb[0].mxu0 %v865
        %v921 = vpop.f32.mrb[0].mxu0
        %v922 = vadd.f32 0.0, %v921
        %v923 = vpop.f32.mrb[0].mxu0
        %v924 = vpop.f32.mrb[0].mxu0
        %v925 = vadd.f32 0.0, %v924
        %v926 = vpop.f32.mrb[0].mxu0
        %927 = vmatprep.mubr.bf16.mxu0 %v868
        %928 = vmatmul.mubr.bf16.gmra.mrb[0].mxu0 %v867
        %v929 = vpop.f32.mrb[0].mxu0
        %v930 = vadd.f32 0.0, %v929
        %v931 = vpop.f32.mrb[0].mxu0
        %v932 = vpop.f32.mrb[0].mxu0
        %v933 = vadd.f32 0.0, %v932
        %v934 = vpop.f32.mrb[0].mxu0
        %935 = vmatprep.mubr.bf16.mxu0 %v870
        %936 = vmatmul.mubr.bf16.gmra.mrb[0].mxu0 %v869
        %v937 = vpop.f32.mrb[0].mxu0
        %v938 = vadd.f32 0.0, %v937
        %v939 = vpop.f32.mrb[0].mxu0
        %v940 = vpop.f32.mrb[0].mxu0
        %v941 = vadd.f32 0.0, %v940
        %v942 = vpop.f32.mrb[0].mxu0
        %943 = vdwg.mxu0
        %v944 = vpack.c.bf16 %v917, %v914
        %v945 = vpack.c.bf16 %v925, %v922
        %v946 = vpack.c.bf16 %v933, %v930
        %v947 = vpack.c.bf16 %v941, %v938
        %v948 = vld [vmem:[%s4] sm:$0xf]
        %v949 = vld [vmem:[%s4 + $0x4] sm:$0xf]
        %v950 = vld [vmem:[%s4 + $0x8] sm:$0xf]
        %v951 = vld [vmem:[%s4 + $0xc] sm:$0xf]
        %s952 = scalar_lea.vmem %s3, 64
        %v953 = vld [vmem:[%s952] sm:$0xff]
        %v954 = vld [vmem:[%s952 + $0x8] sm:$0xff]
        %v955 = vld [vmem:[%s952 + $0x10] sm:$0xff]
        %v956 = vld [vmem:[%s952 + $0x18] sm:$0xff]
        %v957 = vld [vmem:[%s952 + $0x20] sm:$0xff]
        %v958 = vld [vmem:[%s952 + $0x28] sm:$0xff]
        %v959 = vld [vmem:[%s952 + $0x30] sm:$0xff]
        %v960 = vld [vmem:[%s952 + $0x38] sm:$0xff]
        %v969 = vunpack.c.l.b16 %v953
        %v970 = vunpack.c.h.b16 %v953
        %v971 = vunpack.c.l.b16 %v954
        %v972 = vunpack.c.h.b16 %v954
        %v973 = vunpack.c.l.b16 %v955
        %v974 = vunpack.c.h.b16 %v955
        %v975 = vunpack.c.l.b16 %v956
        %v976 = vunpack.c.h.b16 %v956
        %v977 = vunpack.c.l.b16 %v957
        %v978 = vunpack.c.h.b16 %v957
        %v979 = vunpack.c.l.b16 %v958
        %v980 = vunpack.c.h.b16 %v958
        %v981 = vunpack.c.l.b16 %v959
        %v982 = vunpack.c.h.b16 %v959
        %v983 = vunpack.c.l.b16 %v960
        %v984 = vunpack.c.h.b16 %v960
        %v985 = vpack.c.b16 %v971, %v969
        %v986 = vpack.c.b16 %v972, %v970
        %v987 = vpack.c.b16 %v975, %v973
        %v988 = vpack.c.b16 %v976, %v974
        %v989 = vpack.c.b16 %v979, %v977
        %v990 = vpack.c.b16 %v980, %v978
        %v991 = vpack.c.b16 %v983, %v981
        %v992 = vpack.c.b16 %v984, %v982
        %1001 = vmatprep.subr.bf16.mxu0 0
        %1002 = vmatpush1.bf16.msra.mxu0 %v815
        %1003 = vmatprep.subr.bf16.mxu0 0
        %1004 = vmatpush1.bf16.msra.mxu0 %v816
        %1005 = vmatprep.subr.bf16.mxu0 0
        %1006 = vmatpush1.bf16.msra.mxu0 %v817
        %1007 = vmatprep.subr.bf16.mxu0 0
        %1008 = vmatpush1.bf16.msra.mxu0 %v818
        %1009 = vmatprep.subr.bf16.mxu0 0
        %1010 = vmatpush1.bf16.msra.mxu0 %v819
        %1011 = vmatprep.subr.bf16.mxu0 0
        %1012 = vmatpush1.bf16.msra.mxu0 %v820
        %1013 = vmatprep.subr.bf16.mxu0 0
        %1014 = vmatpush1.bf16.msra.mxu0 %v821
        %1015 = vmatprep.subr.bf16.mxu0 0
        %1016 = vmatpush1.bf16.msra.mxu0 %v822
        %1017 = vmatprep.subr.bf16.mxu0 0
        %1018 = vmatpush1.bf16.msra.mxu0 %v823
        %1019 = vmatprep.subr.bf16.mxu0 0
        %1020 = vmatpush1.bf16.msra.mxu0 %v824
        %1021 = vmatprep.subr.bf16.mxu0 0
        %1022 = vmatpush1.bf16.msra.mxu0 %v825
        %1023 = vmatprep.subr.bf16.mxu0 0
        %1024 = vmatpush1.bf16.msra.mxu0 %v826
        %1025 = vmatprep.subr.bf16.mxu0 0
        %1026 = vmatpush1.bf16.msra.mxu0 %v827
        %1027 = vmatprep.subr.bf16.mxu0 0
        %1028 = vmatpush1.bf16.msra.mxu0 %v828
        %1029 = vmatprep.subr.bf16.mxu0 0
        %1030 = vmatpush1.bf16.msra.mxu0 %v829
        %1031 = vmatprep.subr.bf16.mxu0 0
        %1032 = vmatpush1.bf16.msra.mxu0 %v830
        %1033 = vmatprep.mubr.bf16.mxu0 %v986
        %1034 = vmatmul.mubr.bf16.gmra.mrb[0].mxu0 %v985
        %v1035 = vpop.f32.mrb[0].mxu0
        %v1036 = vadd.f32 0.0, %v1035
        %v1037 = vpop.f32.mrb[0].mxu0
        %v1038 = vpop.f32.mrb[0].mxu0
        %v1039 = vadd.f32 0.0, %v1038
        %v1040 = vpop.f32.mrb[0].mxu0
        %1041 = vmatprep.mubr.bf16.mxu0 %v988
        %1042 = vmatmul.mubr.bf16.gmra.mrb[0].mxu0 %v987
        %v1043 = vpop.f32.mrb[0].mxu0
        %v1044 = vadd.f32 0.0, %v1043
        %v1045 = vpop.f32.mrb[0].mxu0
        %v1046 = vpop.f32.mrb[0].mxu0
        %v1047 = vadd.f32 0.0, %v1046
        %v1048 = vpop.f32.mrb[0].mxu0
        %1049 = vmatprep.mubr.bf16.mxu0 %v990
        %1050 = vmatmul.mubr.bf16.gmra.mrb[0].mxu0 %v989
        %v1051 = vpop.f32.mrb[0].mxu0
        %v1052 = vadd.f32 0.0, %v1051
        %v1053 = vpop.f32.mrb[0].mxu0
        %v1054 = vpop.f32.mrb[0].mxu0
        %v1055 = vadd.f32 0.0, %v1054
        %v1056 = vpop.f32.mrb[0].mxu0
        %1057 = vmatprep.mubr.bf16.mxu0 %v992
        %1058 = vmatmul.mubr.bf16.gmra.mrb[0].mxu0 %v991
        %v1059 = vpop.f32.mrb[0].mxu0
        %v1060 = vadd.f32 0.0, %v1059
        %v1061 = vpop.f32.mrb[0].mxu0
        %v1062 = vpop.f32.mrb[0].mxu0
        %v1063 = vadd.f32 0.0, %v1062
        %v1064 = vpop.f32.mrb[0].mxu0
        %1065 = vdwg.mxu0
        %v1066 = vpack.c.bf16 %v1039, %v1036
        %v1067 = vpack.c.bf16 %v1047, %v1044
        %v1068 = vpack.c.bf16 %v1055, %v1052
        %v1069 = vpack.c.bf16 %v1063, %v1060
        %s1070 = scalar_lea.vmem %s4, 16
        %v1071 = vld [vmem:[%s1070] sm:$0xf]
        %v1072 = vld [vmem:[%s1070 + $0x4] sm:$0xf]
        %v1073 = vld [vmem:[%s1070 + $0x8] sm:$0xf]
        %v1074 = vld [vmem:[%s1070 + $0xc] sm:$0xf]
        %v1079 = vunpack.c.l.b16 %v1071
        %v1080 = vunpack.c.l.b16 %v1072
        %v1081 = vunpack.c.l.b16 %v1073
        %v1082 = vunpack.c.l.b16 %v1074
        %v1083 = vpack.c.b16 %v1080, %v1079
        %v1084 = vpack.c.b16 %v1082, %v1081
        %vm1087 = vcmask 261120
        %v1089 = vsel %vm1087, %v1066, 0
        %v1092 = vsel %vm1087, %v1067, 0
        %v1095 = vsel %vm1087, %v1068, 0
        %v1098 = vsel %vm1087, %v1069, 0
        %1100 = vmatprep.subr.bf16.mxu0 0
        %1101 = vmatpush1.bf16.msra.mxu0 %v1083
        %1102 = vmatprep.subr.bf16.mxu0 0
        %1103 = vmatpush1.bf16.msra.mxu0 %v1084
        %1104 = vmatprep.subr.bf16.mxu0 0
        %1105 = vmatpush1.bf16.msra.mxu0 0
        %1106 = vmatprep.subr.bf16.mxu0 0
        %1107 = vmatpush1.bf16.msra.mxu0 0
        %1108 = vmatprep.subr.bf16.mxu0 0
        %1109 = vmatpush1.bf16.msra.mxu0 0
        %1110 = vmatprep.subr.bf16.mxu0 0
        %1111 = vmatpush1.bf16.msra.mxu0 0
        %1112 = vmatprep.subr.bf16.mxu0 0
        %1113 = vmatpush1.bf16.msra.mxu0 0
        %1114 = vmatprep.subr.bf16.mxu0 0
        %1115 = vmatpush1.bf16.msra.mxu0 0
        %1116 = vmatprep.subr.bf16.mxu0 0
        %1117 = vmatpush1.bf16.msra.mxu0 0
        %1118 = vmatprep.subr.bf16.mxu0 0
        %1119 = vmatpush1.bf16.msra.mxu0 0
        %1120 = vmatprep.subr.bf16.mxu0 0
        %1121 = vmatpush1.bf16.msra.mxu0 0
        %1122 = vmatprep.subr.bf16.mxu0 0
        %1123 = vmatpush1.bf16.msra.mxu0 0
        %1124 = vmatprep.subr.bf16.mxu0 0
        %1125 = vmatpush1.bf16.msra.mxu0 0
        %1126 = vmatprep.subr.bf16.mxu0 0
        %1127 = vmatpush1.bf16.msra.mxu0 0
        %1128 = vmatprep.subr.bf16.mxu0 0
        %1129 = vmatpush1.bf16.msra.mxu0 0
        %1130 = vmatprep.subr.bf16.mxu0 0
        %1131 = vmatpush1.bf16.msra.mxu0 0
        %1132 = vmatprep.mubr.bf16.mxu0 0
        %1133 = vmatmul.mubr.bf16.gmra.mrb[0].mxu0 %v1089
        %v1134 = vpop.f32.mrb[0].mxu0
        %v1135 = vadd.f32 0.0, %v1134
        %v1136 = vpop.f32.mrb[0].mxu0
        %v1137 = vpop.f32.mrb[0].mxu0
        %v1138 = vadd.f32 0.0, %v1137
        %v1139 = vpop.f32.mrb[0].mxu0
        %1140 = vmatprep.mubr.bf16.mxu0 0
        %1141 = vmatmul.mubr.bf16.gmra.mrb[0].mxu0 %v1092
        %v1142 = vpop.f32.mrb[0].mxu0
        %v1143 = vadd.f32 0.0, %v1142
        %v1144 = vpop.f32.mrb[0].mxu0
        %v1145 = vpop.f32.mrb[0].mxu0
        %v1146 = vadd.f32 0.0, %v1145
        %v1147 = vpop.f32.mrb[0].mxu0
        %1148 = vmatprep.mubr.bf16.mxu0 0
        %1149 = vmatmul.mubr.bf16.gmra.mrb[0].mxu0 %v1095
        %v1150 = vpop.f32.mrb[0].mxu0
        %v1151 = vadd.f32 0.0, %v1150
        %v1152 = vpop.f32.mrb[0].mxu0
        %v1153 = vpop.f32.mrb[0].mxu0
        %v1154 = vadd.f32 0.0, %v1153
        %v1155 = vpop.f32.mrb[0].mxu0
        %1156 = vmatprep.mubr.bf16.mxu0 0
        %1157 = vmatmul.mubr.bf16.gmra.mrb[0].mxu0 %v1098
        %v1158 = vpop.f32.mrb[0].mxu0
        %v1159 = vadd.f32 0.0, %v1158
        %v1160 = vpop.f32.mrb[0].mxu0
        %v1161 = vpop.f32.mrb[0].mxu0
        %v1162 = vadd.f32 0.0, %v1161
        %v1163 = vpop.f32.mrb[0].mxu0
        %1164 = vdwg.mxu0
        %v1169 = vunpack.c.l.b16 %v948
        %v1170 = vunpack.c.l.b16 %v949
        %v1171 = vunpack.c.l.b16 %v950
        %v1172 = vunpack.c.l.b16 %v951
        %v1173 = vpack.c.b16 %v1170, %v1169
        %v1174 = vpack.c.b16 %v1172, %v1171
        %v1178 = vsel %vm1087, %v944, 0
        %v1181 = vsel %vm1087, %v945, 0
        %v1184 = vsel %vm1087, %v946, 0
        %v1187 = vsel %vm1087, %v947, 0
        %1189 = vmatprep.subr.bf16.mxu0 0
        %1190 = vmatpush1.bf16.msra.mxu0 %v1173
        %1191 = vmatprep.subr.bf16.mxu0 0
        %1192 = vmatpush1.bf16.msra.mxu0 %v1174
        %1193 = vmatprep.subr.bf16.mxu0 0
        %1194 = vmatpush1.bf16.msra.mxu0 0
        %1195 = vmatprep.subr.bf16.mxu0 0
        %1196 = vmatpush1.bf16.msra.mxu0 0
        %1197 = vmatprep.subr.bf16.mxu0 0
        %1198 = vmatpush1.bf16.msra.mxu0 0
        %1199 = vmatprep.subr.bf16.mxu0 0
        %1200 = vmatpush1.bf16.msra.mxu0 0
        %1201 = vmatprep.subr.bf16.mxu0 0
        %1202 = vmatpush1.bf16.msra.mxu0 0
        %1203 = vmatprep.subr.bf16.mxu0 0
        %1204 = vmatpush1.bf16.msra.mxu0 0
        %1205 = vmatprep.subr.bf16.mxu0 0
        %1206 = vmatpush1.bf16.msra.mxu0 0
        %1207 = vmatprep.subr.bf16.mxu0 0
        %1208 = vmatpush1.bf16.msra.mxu0 0
        %1209 = vmatprep.subr.bf16.mxu0 0
        %1210 = vmatpush1.bf16.msra.mxu0 0
        %1211 = vmatprep.subr.bf16.mxu0 0
        %1212 = vmatpush1.bf16.msra.mxu0 0
        %1213 = vmatprep.subr.bf16.mxu0 0
        %1214 = vmatpush1.bf16.msra.mxu0 0
        %1215 = vmatprep.subr.bf16.mxu0 0
        %1216 = vmatpush1.bf16.msra.mxu0 0
        %1217 = vmatprep.subr.bf16.mxu0 0
        %1218 = vmatpush1.bf16.msra.mxu0 0
        %1219 = vmatprep.subr.bf16.mxu0 0
        %1220 = vmatpush1.bf16.msra.mxu0 0
        %1221 = vmatprep.mubr.bf16.mxu0 0
        %1222 = vmatmul.mubr.bf16.gmra.mrb[0].mxu0 %v1178
        %v1223 = vpop.f32.mrb[0].mxu0
        %v1224 = vadd.f32 %v1135, %v1223
        %v1225 = vpop.f32.mrb[0].mxu0
        %v1226 = vpop.f32.mrb[0].mxu0
        %v1227 = vadd.f32 %v1138, %v1226
        %v1228 = vpop.f32.mrb[0].mxu0
        %1229 = vmatprep.mubr.bf16.mxu0 0
        %1230 = vmatmul.mubr.bf16.gmra.mrb[0].mxu0 %v1181
        %v1231 = vpop.f32.mrb[0].mxu0
        %v1232 = vadd.f32 %v1143, %v1231
        %v1233 = vpop.f32.mrb[0].mxu0
        %v1234 = vpop.f32.mrb[0].mxu0
        %v1235 = vadd.f32 %v1146, %v1234
        %v1236 = vpop.f32.mrb[0].mxu0
        %1237 = vmatprep.mubr.bf16.mxu0 0
        %1238 = vmatmul.mubr.bf16.gmra.mrb[0].mxu0 %v1184
        %v1239 = vpop.f32.mrb[0].mxu0
        %v1240 = vadd.f32 %v1151, %v1239
        %v1241 = vpop.f32.mrb[0].mxu0
        %v1242 = vpop.f32.mrb[0].mxu0
        %v1243 = vadd.f32 %v1154, %v1242
        %v1244 = vpop.f32.mrb[0].mxu0
        %1245 = vmatprep.mubr.bf16.mxu0 0
        %1246 = vmatmul.mubr.bf16.gmra.mrb[0].mxu0 %v1187
        %v1247 = vpop.f32.mrb[0].mxu0
        %v1248 = vadd.f32 %v1159, %v1247
        %v1249 = vpop.f32.mrb[0].mxu0
        %v1250 = vpop.f32.mrb[0].mxu0
        %v1251 = vadd.f32 %v1162, %v1250
        %v1252 = vpop.f32.mrb[0].mxu0
        %1253 = vdwg.mxu0
        %s1254 = scalar_lea.vmem %s3, 128
        %v1255 = vld [vmem:[%s1254] sm:$0xff]
        %v1256 = vld [vmem:[%s1254 + $0x8] sm:$0xff]
        %v1257 = vld [vmem:[%s1254 + $0x10] sm:$0xff]
        %v1258 = vld [vmem:[%s1254 + $0x18] sm:$0xff]
        %v1259 = vld [vmem:[%s1254 + $0x20] sm:$0xff]
        %v1260 = vld [vmem:[%s1254 + $0x28] sm:$0xff]
        %v1261 = vld [vmem:[%s1254 + $0x30] sm:$0xff]
        %v1262 = vld [vmem:[%s1254 + $0x38] sm:$0xff]
        %v1271 = vunpack.c.l.b16 %v1255
        %v1272 = vunpack.c.h.b16 %v1255
        %v1273 = vunpack.c.l.b16 %v1256
        %v1274 = vunpack.c.h.b16 %v1256
        %v1275 = vunpack.c.l.b16 %v1257
        %v1276 = vunpack.c.h.b16 %v1257
        %v1277 = vunpack.c.l.b16 %v1258
        %v1278 = vunpack.c.h.b16 %v1258
        %v1279 = vunpack.c.l.b16 %v1259
        %v1280 = vunpack.c.h.b16 %v1259
        %v1281 = vunpack.c.l.b16 %v1260
        %v1282 = vunpack.c.h.b16 %v1260
        %v1283 = vunpack.c.l.b16 %v1261
        %v1284 = vunpack.c.h.b16 %v1261
        %v1285 = vunpack.c.l.b16 %v1262
        %v1286 = vunpack.c.h.b16 %v1262
        %v1287 = vpack.c.b16 %v1273, %v1271
        %v1288 = vpack.c.b16 %v1274, %v1272
        %v1289 = vpack.c.b16 %v1277, %v1275
        %v1290 = vpack.c.b16 %v1278, %v1276
        %v1291 = vpack.c.b16 %v1281, %v1279
        %v1292 = vpack.c.b16 %v1282, %v1280
        %v1293 = vpack.c.b16 %v1285, %v1283
        %v1294 = vpack.c.b16 %v1286, %v1284
        %1303 = vmatprep.subr.bf16.mxu0 0
        %1304 = vmatpush1.bf16.msra.mxu0 %v815
        %1305 = vmatprep.subr.bf16.mxu0 0
        %1306 = vmatpush1.bf16.msra.mxu0 %v816
        %1307 = vmatprep.subr.bf16.mxu0 0
        %1308 = vmatpush1.bf16.msra.mxu0 %v817
        %1309 = vmatprep.subr.bf16.mxu0 0
        %1310 = vmatpush1.bf16.msra.mxu0 %v818
        %1311 = vmatprep.subr.bf16.mxu0 0
        %1312 = vmatpush1.bf16.msra.mxu0 %v819
        %1313 = vmatprep.subr.bf16.mxu0 0
        %1314 = vmatpush1.bf16.msra.mxu0 %v820
        %1315 = vmatprep.subr.bf16.mxu0 0
        %1316 = vmatpush1.bf16.msra.mxu0 %v821
        %1317 = vmatprep.subr.bf16.mxu0 0
        %1318 = vmatpush1.bf16.msra.mxu0 %v822
        %1319 = vmatprep.subr.bf16.mxu0 0
        %1320 = vmatpush1.bf16.msra.mxu0 %v823
        %1321 = vmatprep.subr.bf16.mxu0 0
        %1322 = vmatpush1.bf16.msra.mxu0 %v824
        %1323 = vmatprep.subr.bf16.mxu0 0
        %1324 = vmatpush1.bf16.msra.mxu0 %v825
        %1325 = vmatprep.subr.bf16.mxu0 0
        %1326 = vmatpush1.bf16.msra.mxu0 %v826
        %1327 = vmatprep.subr.bf16.mxu0 0
        %1328 = vmatpush1.bf16.msra.mxu0 %v827
        %1329 = vmatprep.subr.bf16.mxu0 0
        %1330 = vmatpush1.bf16.msra.mxu0 %v828
        %1331 = vmatprep.subr.bf16.mxu0 0
        %1332 = vmatpush1.bf16.msra.mxu0 %v829
        %1333 = vmatprep.subr.bf16.mxu0 0
        %1334 = vmatpush1.bf16.msra.mxu0 %v830
        %1335 = vmatprep.mubr.bf16.mxu0 %v1288
        %1336 = vmatmul.mubr.bf16.gmra.mrb[0].mxu0 %v1287
        %v1337 = vpop.f32.mrb[0].mxu0
        %v1338 = vadd.f32 0.0, %v1337
        %v1339 = vpop.f32.mrb[0].mxu0
        %v1340 = vpop.f32.mrb[0].mxu0
        %v1341 = vadd.f32 0.0, %v1340
        %v1342 = vpop.f32.mrb[0].mxu0
        %1343 = vmatprep.mubr.bf16.mxu0 %v1290
        %1344 = vmatmul.mubr.bf16.gmra.mrb[0].mxu0 %v1289
        %v1345 = vpop.f32.mrb[0].mxu0
        %v1346 = vadd.f32 0.0, %v1345
        %v1347 = vpop.f32.mrb[0].mxu0
        %v1348 = vpop.f32.mrb[0].mxu0
        %v1349 = vadd.f32 0.0, %v1348
        %v1350 = vpop.f32.mrb[0].mxu0
        %1351 = vmatprep.mubr.bf16.mxu0 %v1292
        %1352 = vmatmul.mubr.bf16.gmra.mrb[0].mxu0 %v1291
        %v1353 = vpop.f32.mrb[0].mxu0
        %v1354 = vadd.f32 0.0, %v1353
        %v1355 = vpop.f32.mrb[0].mxu0
        %v1356 = vpop.f32.mrb[0].mxu0
        %v1357 = vadd.f32 0.0, %v1356
        %v1358 = vpop.f32.mrb[0].mxu0
        %1359 = vmatprep.mubr.bf16.mxu0 %v1294
        %1360 = vmatmul.mubr.bf16.gmra.mrb[0].mxu0 %v1293
        %v1361 = vpop.f32.mrb[0].mxu0
        %v1362 = vadd.f32 0.0, %v1361
        %v1363 = vpop.f32.mrb[0].mxu0
        %v1364 = vpop.f32.mrb[0].mxu0
        %v1365 = vadd.f32 0.0, %v1364
        %v1366 = vpop.f32.mrb[0].mxu0
        %1367 = vdwg.mxu0
        %v1368 = vpack.c.bf16 %v1341, %v1338
        %v1369 = vpack.c.bf16 %v1349, %v1346
        %v1370 = vpack.c.bf16 %v1357, %v1354
        %v1371 = vpack.c.bf16 %v1365, %v1362
        %s1372 = scalar_lea.vmem %s4, 32
        %v1373 = vld [vmem:[%s1372] sm:$0xf]
        %v1374 = vld [vmem:[%s1372 + $0x4] sm:$0xf]
        %v1375 = vld [vmem:[%s1372 + $0x8] sm:$0xf]
        %v1376 = vld [vmem:[%s1372 + $0xc] sm:$0xf]
        %v1381 = vunpack.c.l.b16 %v1373
        %v1382 = vunpack.c.l.b16 %v1374
        %v1383 = vunpack.c.l.b16 %v1375
        %v1384 = vunpack.c.l.b16 %v1376
        %v1385 = vpack.c.b16 %v1382, %v1381
        %v1386 = vpack.c.b16 %v1384, %v1383
        %v1390 = vsel %vm1087, %v1368, 0
        %v1393 = vsel %vm1087, %v1369, 0
        %v1396 = vsel %vm1087, %v1370, 0
        %v1399 = vsel %vm1087, %v1371, 0
        %1401 = vmatprep.subr.bf16.mxu0 0
        %1402 = vmatpush1.bf16.msra.mxu0 %v1385
        %1403 = vmatprep.subr.bf16.mxu0 0
        %1404 = vmatpush1.bf16.msra.mxu0 %v1386
        %1405 = vmatprep.subr.bf16.mxu0 0
        %1406 = vmatpush1.bf16.msra.mxu0 0
        %1407 = vmatprep.subr.bf16.mxu0 0
        %1408 = vmatpush1.bf16.msra.mxu0 0
        %1409 = vmatprep.subr.bf16.mxu0 0
        %1410 = vmatpush1.bf16.msra.mxu0 0
        %1411 = vmatprep.subr.bf16.mxu0 0
        %1412 = vmatpush1.bf16.msra.mxu0 0
        %1413 = vmatprep.subr.bf16.mxu0 0
        %1414 = vmatpush1.bf16.msra.mxu0 0
        %1415 = vmatprep.subr.bf16.mxu0 0
        %1416 = vmatpush1.bf16.msra.mxu0 0
        %1417 = vmatprep.subr.bf16.mxu0 0
        %1418 = vmatpush1.bf16.msra.mxu0 0
        %1419 = vmatprep.subr.bf16.mxu0 0
        %1420 = vmatpush1.bf16.msra.mxu0 0
        %1421 = vmatprep.subr.bf16.mxu0 0
        %1422 = vmatpush1.bf16.msra.mxu0 0
        %1423 = vmatprep.subr.bf16.mxu0 0
        %1424 = vmatpush1.bf16.msra.mxu0 0
        %1425 = vmatprep.subr.bf16.mxu0 0
        %1426 = vmatpush1.bf16.msra.mxu0 0
        %1427 = vmatprep.subr.bf16.mxu0 0
        %1428 = vmatpush1.bf16.msra.mxu0 0
        %1429 = vmatprep.subr.bf16.mxu0 0
        %1430 = vmatpush1.bf16.msra.mxu0 0
        %1431 = vmatprep.subr.bf16.mxu0 0
        %1432 = vmatpush1.bf16.msra.mxu0 0
        %1433 = vmatprep.mubr.bf16.mxu0 0
        %1434 = vmatmul.mubr.bf16.gmra.mrb[0].mxu0 %v1390
        %v1435 = vpop.f32.mrb[0].mxu0
        %v1436 = vadd.f32 0.0, %v1435
        %v1437 = vpop.f32.mrb[0].mxu0
        %v1438 = vpop.f32.mrb[0].mxu0
        %v1439 = vadd.f32 0.0, %v1438
        %v1440 = vpop.f32.mrb[0].mxu0
        %1441 = vmatprep.mubr.bf16.mxu0 0
        %1442 = vmatmul.mubr.bf16.gmra.mrb[0].mxu0 %v1393
        %v1443 = vpop.f32.mrb[0].mxu0
        %v1444 = vadd.f32 0.0, %v1443
        %v1445 = vpop.f32.mrb[0].mxu0
        %v1446 = vpop.f32.mrb[0].mxu0
        %v1447 = vadd.f32 0.0, %v1446
        %v1448 = vpop.f32.mrb[0].mxu0
        %1449 = vmatprep.mubr.bf16.mxu0 0
        %1450 = vmatmul.mubr.bf16.gmra.mrb[0].mxu0 %v1396
        %v1451 = vpop.f32.mrb[0].mxu0
        %v1452 = vadd.f32 0.0, %v1451
        %v1453 = vpop.f32.mrb[0].mxu0
        %v1454 = vpop.f32.mrb[0].mxu0
        %v1455 = vadd.f32 0.0, %v1454
        %v1456 = vpop.f32.mrb[0].mxu0
        %1457 = vmatprep.mubr.bf16.mxu0 0
        %1458 = vmatmul.mubr.bf16.gmra.mrb[0].mxu0 %v1399
        %v1459 = vpop.f32.mrb[0].mxu0
        %v1460 = vadd.f32 0.0, %v1459
        %v1461 = vpop.f32.mrb[0].mxu0
        %v1462 = vpop.f32.mrb[0].mxu0
        %v1463 = vadd.f32 0.0, %v1462
        %v1464 = vpop.f32.mrb[0].mxu0
        %1465 = vdwg.mxu0
        %v1466 = vadd.f32 %v1224, %v1436
        %v1467 = vadd.f32 %v1227, %v1439
        %v1468 = vadd.f32 %v1232, %v1444
        %v1469 = vadd.f32 %v1235, %v1447
        %v1470 = vadd.f32 %v1240, %v1452
        %v1471 = vadd.f32 %v1243, %v1455
        %v1472 = vadd.f32 %v1248, %v1460
        %v1473 = vadd.f32 %v1251, %v1463
        %s1474 = scalar_lea.vmem %s3, 192
        %v1475 = vld [vmem:[%s1474] sm:$0xff]
        %v1476 = vld [vmem:[%s1474 + $0x8] sm:$0xff]
        %v1477 = vld [vmem:[%s1474 + $0x10] sm:$0xff]
        %v1478 = vld [vmem:[%s1474 + $0x18] sm:$0xff]
        %v1479 = vld [vmem:[%s1474 + $0x20] sm:$0xff]
        %v1480 = vld [vmem:[%s1474 + $0x28] sm:$0xff]
        %v1481 = vld [vmem:[%s1474 + $0x30] sm:$0xff]
        %v1482 = vld [vmem:[%s1474 + $0x38] sm:$0xff]
        %v1491 = vunpack.c.l.b16 %v1475
        %v1492 = vunpack.c.h.b16 %v1475
        %v1493 = vunpack.c.l.b16 %v1476
        %v1494 = vunpack.c.h.b16 %v1476
        %v1495 = vunpack.c.l.b16 %v1477
        %v1496 = vunpack.c.h.b16 %v1477
        %v1497 = vunpack.c.l.b16 %v1478
        %v1498 = vunpack.c.h.b16 %v1478
        %v1499 = vunpack.c.l.b16 %v1479
        %v1500 = vunpack.c.h.b16 %v1479
        %v1501 = vunpack.c.l.b16 %v1480
        %v1502 = vunpack.c.h.b16 %v1480
        %v1503 = vunpack.c.l.b16 %v1481
        %v1504 = vunpack.c.h.b16 %v1481
        %v1505 = vunpack.c.l.b16 %v1482
        %v1506 = vunpack.c.h.b16 %v1482
        %v1507 = vpack.c.b16 %v1493, %v1491
        %v1508 = vpack.c.b16 %v1494, %v1492
        %v1509 = vpack.c.b16 %v1497, %v1495
        %v1510 = vpack.c.b16 %v1498, %v1496
        %v1511 = vpack.c.b16 %v1501, %v1499
        %v1512 = vpack.c.b16 %v1502, %v1500
        %v1513 = vpack.c.b16 %v1505, %v1503
        %v1514 = vpack.c.b16 %v1506, %v1504
        %1523 = vmatprep.subr.bf16.mxu0 0
        %1524 = vmatpush1.bf16.msra.mxu0 %v815
        %1525 = vmatprep.subr.bf16.mxu0 0
        %1526 = vmatpush1.bf16.msra.mxu0 %v816
        %1527 = vmatprep.subr.bf16.mxu0 0
        %1528 = vmatpush1.bf16.msra.mxu0 %v817
        %1529 = vmatprep.subr.bf16.mxu0 0
        %1530 = vmatpush1.bf16.msra.mxu0 %v818
        %1531 = vmatprep.subr.bf16.mxu0 0
        %1532 = vmatpush1.bf16.msra.mxu0 %v819
        %1533 = vmatprep.subr.bf16.mxu0 0
        %1534 = vmatpush1.bf16.msra.mxu0 %v820
        %1535 = vmatprep.subr.bf16.mxu0 0
        %1536 = vmatpush1.bf16.msra.mxu0 %v821
        %1537 = vmatprep.subr.bf16.mxu0 0
        %1538 = vmatpush1.bf16.msra.mxu0 %v822
        %1539 = vmatprep.subr.bf16.mxu0 0
        %1540 = vmatpush1.bf16.msra.mxu0 %v823
        %1541 = vmatprep.subr.bf16.mxu0 0
        %1542 = vmatpush1.bf16.msra.mxu0 %v824
        %1543 = vmatprep.subr.bf16.mxu0 0
        %1544 = vmatpush1.bf16.msra.mxu0 %v825
        %1545 = vmatprep.subr.bf16.mxu0 0
        %1546 = vmatpush1.bf16.msra.mxu0 %v826
        %1547 = vmatprep.subr.bf16.mxu0 0
        %1548 = vmatpush1.bf16.msra.mxu0 %v827
        %1549 = vmatprep.subr.bf16.mxu0 0
        %1550 = vmatpush1.bf16.msra.mxu0 %v828
        %1551 = vmatprep.subr.bf16.mxu0 0
        %1552 = vmatpush1.bf16.msra.mxu0 %v829
        %1553 = vmatprep.subr.bf16.mxu0 0
        %1554 = vmatpush1.bf16.msra.mxu0 %v830
        %1555 = vmatprep.mubr.bf16.mxu0 %v1508
        %1556 = vmatmul.mubr.bf16.gmra.mrb[0].mxu0 %v1507
        %v1557 = vpop.f32.mrb[0].mxu0
        %v1558 = vadd.f32 0.0, %v1557
        %v1559 = vpop.f32.mrb[0].mxu0
        %v1560 = vpop.f32.mrb[0].mxu0
        %v1561 = vadd.f32 0.0, %v1560
        %v1562 = vpop.f32.mrb[0].mxu0
        %1563 = vmatprep.mubr.bf16.mxu0 %v1510
        %1564 = vmatmul.mubr.bf16.gmra.mrb[0].mxu0 %v1509
        %v1565 = vpop.f32.mrb[0].mxu0
        %v1566 = vadd.f32 0.0, %v1565
        %v1567 = vpop.f32.mrb[0].mxu0
        %v1568 = vpop.f32.mrb[0].mxu0
        %v1569 = vadd.f32 0.0, %v1568
        %v1570 = vpop.f32.mrb[0].mxu0
        %1571 = vmatprep.mubr.bf16.mxu0 %v1512
        %1572 = vmatmul.mubr.bf16.gmra.mrb[0].mxu0 %v1511
        %v1573 = vpop.f32.mrb[0].mxu0
        %v1574 = vadd.f32 0.0, %v1573
        %v1575 = vpop.f32.mrb[0].mxu0
        %v1576 = vpop.f32.mrb[0].mxu0
        %v1577 = vadd.f32 0.0, %v1576
        %v1578 = vpop.f32.mrb[0].mxu0
        %1579 = vmatprep.mubr.bf16.mxu0 %v1514
        %1580 = vmatmul.mubr.bf16.gmra.mrb[0].mxu0 %v1513
        %v1581 = vpop.f32.mrb[0].mxu0
        %v1582 = vadd.f32 0.0, %v1581
        %v1583 = vpop.f32.mrb[0].mxu0
        %v1584 = vpop.f32.mrb[0].mxu0
        %v1585 = vadd.f32 0.0, %v1584
        %v1586 = vpop.f32.mrb[0].mxu0
        %1587 = vdwg.mxu0
        %v1588 = vpack.c.bf16 %v1561, %v1558
        %v1589 = vpack.c.bf16 %v1569, %v1566
        %v1590 = vpack.c.bf16 %v1577, %v1574
        %v1591 = vpack.c.bf16 %v1585, %v1582
        %s1592 = scalar_lea.vmem %s4, 48
        %v1593 = vld [vmem:[%s1592] sm:$0xf]
        %v1594 = vld [vmem:[%s1592 + $0x4] sm:$0xf]
        %v1595 = vld [vmem:[%s1592 + $0x8] sm:$0xf]
        %v1596 = vld [vmem:[%s1592 + $0xc] sm:$0xf]
        %v1601 = vunpack.c.l.b16 %v1593
        %v1602 = vunpack.c.l.b16 %v1594
        %v1603 = vunpack.c.l.b16 %v1595
        %v1604 = vunpack.c.l.b16 %v1596
        %v1605 = vpack.c.b16 %v1602, %v1601
        %v1606 = vpack.c.b16 %v1604, %v1603
        %v1610 = vsel %vm1087, %v1588, 0
        %v1613 = vsel %vm1087, %v1589, 0
        %v1616 = vsel %vm1087, %v1590, 0
        %v1619 = vsel %vm1087, %v1591, 0
        %1621 = vmatprep.subr.bf16.mxu0 0
        %1622 = vmatpush1.bf16.msra.mxu0 %v1605
        %1623 = vmatprep.subr.bf16.mxu0 0
        %1624 = vmatpush1.bf16.msra.mxu0 %v1606
        %1625 = vmatprep.subr.bf16.mxu0 0
        %1626 = vmatpush1.bf16.msra.mxu0 0
        %1627 = vmatprep.subr.bf16.mxu0 0
        %1628 = vmatpush1.bf16.msra.mxu0 0
        %1629 = vmatprep.subr.bf16.mxu0 0
        %1630 = vmatpush1.bf16.msra.mxu0 0
        %1631 = vmatprep.subr.bf16.mxu0 0
        %1632 = vmatpush1.bf16.msra.mxu0 0
        %1633 = vmatprep.subr.bf16.mxu0 0
        %1634 = vmatpush1.bf16.msra.mxu0 0
        %1635 = vmatprep.subr.bf16.mxu0 0
        %1636 = vmatpush1.bf16.msra.mxu0 0
        %1637 = vmatprep.subr.bf16.mxu0 0
        %1638 = vmatpush1.bf16.msra.mxu0 0
        %1639 = vmatprep.subr.bf16.mxu0 0
        %1640 = vmatpush1.bf16.msra.mxu0 0
        %1641 = vmatprep.subr.bf16.mxu0 0
        %1642 = vmatpush1.bf16.msra.mxu0 0
        %1643 = vmatprep.subr.bf16.mxu0 0
        %1644 = vmatpush1.bf16.msra.mxu0 0
        %1645 = vmatprep.subr.bf16.mxu0 0
        %1646 = vmatpush1.bf16.msra.mxu0 0
        %1647 = vmatprep.subr.bf16.mxu0 0
        %1648 = vmatpush1.bf16.msra.mxu0 0
        %1649 = vmatprep.subr.bf16.mxu0 0
        %1650 = vmatpush1.bf16.msra.mxu0 0
        %1651 = vmatprep.subr.bf16.mxu0 0
        %1652 = vmatpush1.bf16.msra.mxu0 0
        %1653 = vmatprep.mubr.bf16.mxu0 0
        %1654 = vmatmul.mubr.bf16.gmra.mrb[0].mxu0 %v1610
        %v1655 = vpop.f32.mrb[0].mxu0
        %v1656 = vadd.f32 0.0, %v1655
        %v1657 = vpop.f32.mrb[0].mxu0
        %v1658 = vpop.f32.mrb[0].mxu0
        %v1659 = vadd.f32 0.0, %v1658
        %v1660 = vpop.f32.mrb[0].mxu0
        %1661 = vmatprep.mubr.bf16.mxu0 0
        %1662 = vmatmul.mubr.bf16.gmra.mrb[0].mxu0 %v1613
        %v1663 = vpop.f32.mrb[0].mxu0
        %v1664 = vadd.f32 0.0, %v1663
        %v1665 = vpop.f32.mrb[0].mxu0
        %v1666 = vpop.f32.mrb[0].mxu0
        %v1667 = vadd.f32 0.0, %v1666
        %v1668 = vpop.f32.mrb[0].mxu0
        %1669 = vmatprep.mubr.bf16.mxu0 0
        %1670 = vmatmul.mubr.bf16.gmra.mrb[0].mxu0 %v1616
        %v1671 = vpop.f32.mrb[0].mxu0
        %v1672 = vadd.f32 0.0, %v1671
        %v1673 = vpop.f32.mrb[0].mxu0
        %v1674 = vpop.f32.mrb[0].mxu0
        %v1675 = vadd.f32 0.0, %v1674
        %v1676 = vpop.f32.mrb[0].mxu0
        %1677 = vmatprep.mubr.bf16.mxu0 0
        %1678 = vmatmul.mubr.bf16.gmra.mrb[0].mxu0 %v1619
        %v1679 = vpop.f32.mrb[0].mxu0
        %v1680 = vadd.f32 0.0, %v1679
        %v1681 = vpop.f32.mrb[0].mxu0
        %v1682 = vpop.f32.mrb[0].mxu0
        %v1683 = vadd.f32 0.0, %v1682
        %v1684 = vpop.f32.mrb[0].mxu0
        %1685 = vdwg.mxu0
        %v1686 = vadd.f32 %v1466, %v1656
        %v1687 = vadd.f32 %v1467, %v1659
        %v1688 = vadd.f32 %v1468, %v1664
        %v1689 = vadd.f32 %v1469, %v1667
        %v1690 = vadd.f32 %v1470, %v1672
        %v1691 = vadd.f32 %v1471, %v1675
        %v1692 = vadd.f32 %v1472, %v1680
        %v1693 = vadd.f32 %v1473, %v1683
        %s1694 = scalar_lea.vmem %s3, 256
        %v1695 = vld [vmem:[%s1694] sm:$0xff]
        %v1696 = vld [vmem:[%s1694 + $0x8] sm:$0xff]
        %v1697 = vld [vmem:[%s1694 + $0x10] sm:$0xff]
        %v1698 = vld [vmem:[%s1694 + $0x18] sm:$0xff]
        %v1699 = vld [vmem:[%s1694 + $0x20] sm:$0xff]
        %v1700 = vld [vmem:[%s1694 + $0x28] sm:$0xff]
        %v1701 = vld [vmem:[%s1694 + $0x30] sm:$0xff]
        %v1702 = vld [vmem:[%s1694 + $0x38] sm:$0xff]
        %v1711 = vunpack.c.l.b16 %v1695
        %v1712 = vunpack.c.h.b16 %v1695
        %v1713 = vunpack.c.l.b16 %v1696
        %v1714 = vunpack.c.h.b16 %v1696
        %v1715 = vunpack.c.l.b16 %v1697
        %v1716 = vunpack.c.h.b16 %v1697
        %v1717 = vunpack.c.l.b16 %v1698
        %v1718 = vunpack.c.h.b16 %v1698
        %v1719 = vunpack.c.l.b16 %v1699
        %v1720 = vunpack.c.h.b16 %v1699
        %v1721 = vunpack.c.l.b16 %v1700
        %v1722 = vunpack.c.h.b16 %v1700
        %v1723 = vunpack.c.l.b16 %v1701
        %v1724 = vunpack.c.h.b16 %v1701
        %v1725 = vunpack.c.l.b16 %v1702
        %v1726 = vunpack.c.h.b16 %v1702
        %v1727 = vpack.c.b16 %v1713, %v1711
        %v1728 = vpack.c.b16 %v1714, %v1712
        %v1729 = vpack.c.b16 %v1717, %v1715
        %v1730 = vpack.c.b16 %v1718, %v1716
        %v1731 = vpack.c.b16 %v1721, %v1719
        %v1732 = vpack.c.b16 %v1722, %v1720
        %v1733 = vpack.c.b16 %v1725, %v1723
        %v1734 = vpack.c.b16 %v1726, %v1724
        %1743 = vmatprep.subr.bf16.mxu0 0
        %1744 = vmatpush1.bf16.msra.mxu0 %v815
        %1745 = vmatprep.subr.bf16.mxu0 0
        %1746 = vmatpush1.bf16.msra.mxu0 %v816
        %1747 = vmatprep.subr.bf16.mxu0 0
        %1748 = vmatpush1.bf16.msra.mxu0 %v817
        %1749 = vmatprep.subr.bf16.mxu0 0
        %1750 = vmatpush1.bf16.msra.mxu0 %v818
        %1751 = vmatprep.subr.bf16.mxu0 0
        %1752 = vmatpush1.bf16.msra.mxu0 %v819
        %1753 = vmatprep.subr.bf16.mxu0 0
        %1754 = vmatpush1.bf16.msra.mxu0 %v820
        %1755 = vmatprep.subr.bf16.mxu0 0
        %1756 = vmatpush1.bf16.msra.mxu0 %v821
        %1757 = vmatprep.subr.bf16.mxu0 0
        %1758 = vmatpush1.bf16.msra.mxu0 %v822
        %1759 = vmatprep.subr.bf16.mxu0 0
        %1760 = vmatpush1.bf16.msra.mxu0 %v823
        %1761 = vmatprep.subr.bf16.mxu0 0
        %1762 = vmatpush1.bf16.msra.mxu0 %v824
        %1763 = vmatprep.subr.bf16.mxu0 0
        %1764 = vmatpush1.bf16.msra.mxu0 %v825
        %1765 = vmatprep.subr.bf16.mxu0 0
        %1766 = vmatpush1.bf16.msra.mxu0 %v826
        %1767 = vmatprep.subr.bf16.mxu0 0
        %1768 = vmatpush1.bf16.msra.mxu0 %v827
        %1769 = vmatprep.subr.bf16.mxu0 0
        %1770 = vmatpush1.bf16.msra.mxu0 %v828
        %1771 = vmatprep.subr.bf16.mxu0 0
        %1772 = vmatpush1.bf16.msra.mxu0 %v829
        %1773 = vmatprep.subr.bf16.mxu0 0
        %1774 = vmatpush1.bf16.msra.mxu0 %v830
        %1775 = vmatprep.mubr.bf16.mxu0 %v1728
        %1776 = vmatmul.mubr.bf16.gmra.mrb[0].mxu0 %v1727
        %v1777 = vpop.f32.mrb[0].mxu0
        %v1778 = vadd.f32 0.0, %v1777
        %v1779 = vpop.f32.mrb[0].mxu0
        %v1780 = vpop.f32.mrb[0].mxu0
        %v1781 = vadd.f32 0.0, %v1780
        %v1782 = vpop.f32.mrb[0].mxu0
        %1783 = vmatprep.mubr.bf16.mxu0 %v1730
        %1784 = vmatmul.mubr.bf16.gmra.mrb[0].mxu0 %v1729
        %v1785 = vpop.f32.mrb[0].mxu0
        %v1786 = vadd.f32 0.0, %v1785
        %v1787 = vpop.f32.mrb[0].mxu0
        %v1788 = vpop.f32.mrb[0].mxu0
        %v1789 = vadd.f32 0.0, %v1788
        %v1790 = vpop.f32.mrb[0].mxu0
        %1791 = vmatprep.mubr.bf16.mxu0 %v1732
        %1792 = vmatmul.mubr.bf16.gmra.mrb[0].mxu0 %v1731
        %v1793 = vpop.f32.mrb[0].mxu0
        %v1794 = vadd.f32 0.0, %v1793
        %v1795 = vpop.f32.mrb[0].mxu0
        %v1796 = vpop.f32.mrb[0].mxu0
        %v1797 = vadd.f32 0.0, %v1796
        %v1798 = vpop.f32.mrb[0].mxu0
        %1799 = vmatprep.mubr.bf16.mxu0 %v1734
        %1800 = vmatmul.mubr.bf16.gmra.mrb[0].mxu0 %v1733
        %v1801 = vpop.f32.mrb[0].mxu0
        %v1802 = vadd.f32 0.0, %v1801
        %v1803 = vpop.f32.mrb[0].mxu0
        %v1804 = vpop.f32.mrb[0].mxu0
        %v1805 = vadd.f32 0.0, %v1804
        %v1806 = vpop.f32.mrb[0].mxu0
        %1807 = vdwg.mxu0
        %v1808 = vpack.c.bf16 %v1781, %v1778
        %v1809 = vpack.c.bf16 %v1789, %v1786
        %v1810 = vpack.c.bf16 %v1797, %v1794
        %v1811 = vpack.c.bf16 %v1805, %v1802
        %s1812 = scalar_lea.vmem %s4, 64
        %v1813 = vld [vmem:[%s1812] sm:$0xf]
        %v1814 = vld [vmem:[%s1812 + $0x4] sm:$0xf]
        %v1815 = vld [vmem:[%s1812 + $0x8] sm:$0xf]
        %v1816 = vld [vmem:[%s1812 + $0xc] sm:$0xf]
        %v1821 = vunpack.c.l.b16 %v1813
        %v1822 = vunpack.c.l.b16 %v1814
        %v1823 = vunpack.c.l.b16 %v1815
        %v1824 = vunpack.c.l.b16 %v1816
        %v1825 = vpack.c.b16 %v1822, %v1821
        %v1826 = vpack.c.b16 %v1824, %v1823
        %v1830 = vsel %vm1087, %v1808, 0
        %v1833 = vsel %vm1087, %v1809, 0
        %v1836 = vsel %vm1087, %v1810, 0
        %v1839 = vsel %vm1087, %v1811, 0
        %1841 = vmatprep.subr.bf16.mxu0 0
        %1842 = vmatpush1.bf16.msra.mxu0 %v1825
        %1843 = vmatprep.subr.bf16.mxu0 0
        %1844 = vmatpush1.bf16.msra.mxu0 %v1826
        %1845 = vmatprep.subr.bf16.mxu0 0
        %1846 = vmatpush1.bf16.msra.mxu0 0
        %1847 = vmatprep.subr.bf16.mxu0 0
        %1848 = vmatpush1.bf16.msra.mxu0 0
        %1849 = vmatprep.subr.bf16.mxu0 0
        %1850 = vmatpush1.bf16.msra.mxu0 0
        %1851 = vmatprep.subr.bf16.mxu0 0
        %1852 = vmatpush1.bf16.msra.mxu0 0
        %1853 = vmatprep.subr.bf16.mxu0 0
        %1854 = vmatpush1.bf16.msra.mxu0 0
        %1855 = vmatprep.subr.bf16.mxu0 0
        %1856 = vmatpush1.bf16.msra.mxu0 0
        %1857 = vmatprep.subr.bf16.mxu0 0
        %1858 = vmatpush1.bf16.msra.mxu0 0
        %1859 = vmatprep.subr.bf16.mxu0 0
        %1860 = vmatpush1.bf16.msra.mxu0 0
        %1861 = vmatprep.subr.bf16.mxu0 0
        %1862 = vmatpush1.bf16.msra.mxu0 0
        %1863 = vmatprep.subr.bf16.mxu0 0
        %1864 = vmatpush1.bf16.msra.mxu0 0
        %1865 = vmatprep.subr.bf16.mxu0 0
        %1866 = vmatpush1.bf16.msra.mxu0 0
        %1867 = vmatprep.subr.bf16.mxu0 0
        %1868 = vmatpush1.bf16.msra.mxu0 0
        %1869 = vmatprep.subr.bf16.mxu0 0
        %1870 = vmatpush1.bf16.msra.mxu0 0
        %1871 = vmatprep.subr.bf16.mxu0 0
        %1872 = vmatpush1.bf16.msra.mxu0 0
        %1873 = vmatprep.mubr.bf16.mxu0 0
        %1874 = vmatmul.mubr.bf16.gmra.mrb[0].mxu0 %v1830
        %v1875 = vpop.f32.mrb[0].mxu0
        %v1876 = vadd.f32 0.0, %v1875
        %v1877 = vpop.f32.mrb[0].mxu0
        %v1878 = vpop.f32.mrb[0].mxu0
        %v1879 = vadd.f32 0.0, %v1878
        %v1880 = vpop.f32.mrb[0].mxu0
        %1881 = vmatprep.mubr.bf16.mxu0 0
        %1882 = vmatmul.mubr.bf16.gmra.mrb[0].mxu0 %v1833
        %v1883 = vpop.f32.mrb[0].mxu0
        %v1884 = vadd.f32 0.0, %v1883
        %v1885 = vpop.f32.mrb[0].mxu0
        %v1886 = vpop.f32.mrb[0].mxu0
        %v1887 = vadd.f32 0.0, %v1886
        %v1888 = vpop.f32.mrb[0].mxu0
        %1889 = vmatprep.mubr.bf16.mxu0 0
        %1890 = vmatmul.mubr.bf16.gmra.mrb[0].mxu0 %v1836
        %v1891 = vpop.f32.mrb[0].mxu0
        %v1892 = vadd.f32 0.0, %v1891
        %v1893 = vpop.f32.mrb[0].mxu0
        %v1894 = vpop.f32.mrb[0].mxu0
        %v1895 = vadd.f32 0.0, %v1894
        %v1896 = vpop.f32.mrb[0].mxu0
        %1897 = vmatprep.mubr.bf16.mxu0 0
        %1898 = vmatmul.mubr.bf16.gmra.mrb[0].mxu0 %v1839
        %v1899 = vpop.f32.mrb[0].mxu0
        %v1900 = vadd.f32 0.0, %v1899
        %v1901 = vpop.f32.mrb[0].mxu0
        %v1902 = vpop.f32.mrb[0].mxu0
        %v1903 = vadd.f32 0.0, %v1902
        %v1904 = vpop.f32.mrb[0].mxu0
        %1905 = vdwg.mxu0
        %v1906 = vadd.f32 %v1686, %v1876
        %v1907 = vadd.f32 %v1687, %v1879
        %v1908 = vadd.f32 %v1688, %v1884
        %v1909 = vadd.f32 %v1689, %v1887
        %v1910 = vadd.f32 %v1690, %v1892
        %v1911 = vadd.f32 %v1691, %v1895
        %v1912 = vadd.f32 %v1692, %v1900
        %v1913 = vadd.f32 %v1693, %v1903
        %s1914 = scalar_lea.vmem %s3, 320
        %v1915 = vld [vmem:[%s1914] sm:$0xff]
        %v1916 = vld [vmem:[%s1914 + $0x8] sm:$0xff]
        %v1917 = vld [vmem:[%s1914 + $0x10] sm:$0xff]
        %v1918 = vld [vmem:[%s1914 + $0x18] sm:$0xff]
        %v1919 = vld [vmem:[%s1914 + $0x20] sm:$0xff]
        %v1920 = vld [vmem:[%s1914 + $0x28] sm:$0xff]
        %v1921 = vld [vmem:[%s1914 + $0x30] sm:$0xff]
        %v1922 = vld [vmem:[%s1914 + $0x38] sm:$0xff]
        %v1931 = vunpack.c.l.b16 %v1915
        %v1932 = vunpack.c.h.b16 %v1915
        %v1933 = vunpack.c.l.b16 %v1916
        %v1934 = vunpack.c.h.b16 %v1916
        %v1935 = vunpack.c.l.b16 %v1917
        %v1936 = vunpack.c.h.b16 %v1917
        %v1937 = vunpack.c.l.b16 %v1918
        %v1938 = vunpack.c.h.b16 %v1918
        %v1939 = vunpack.c.l.b16 %v1919
        %v1940 = vunpack.c.h.b16 %v1919
        %v1941 = vunpack.c.l.b16 %v1920
        %v1942 = vunpack.c.h.b16 %v1920
        %v1943 = vunpack.c.l.b16 %v1921
        %v1944 = vunpack.c.h.b16 %v1921
        %v1945 = vunpack.c.l.b16 %v1922
        %v1946 = vunpack.c.h.b16 %v1922
        %v1947 = vpack.c.b16 %v1933, %v1931
        %v1948 = vpack.c.b16 %v1934, %v1932
        %v1949 = vpack.c.b16 %v1937, %v1935
        %v1950 = vpack.c.b16 %v1938, %v1936
        %v1951 = vpack.c.b16 %v1941, %v1939
        %v1952 = vpack.c.b16 %v1942, %v1940
        %v1953 = vpack.c.b16 %v1945, %v1943
        %v1954 = vpack.c.b16 %v1946, %v1944
        %1963 = vmatprep.subr.bf16.mxu0 0
        %1964 = vmatpush1.bf16.msra.mxu0 %v815
        %1965 = vmatprep.subr.bf16.mxu0 0
        %1966 = vmatpush1.bf16.msra.mxu0 %v816
        %1967 = vmatprep.subr.bf16.mxu0 0
        %1968 = vmatpush1.bf16.msra.mxu0 %v817
        %1969 = vmatprep.subr.bf16.mxu0 0
        %1970 = vmatpush1.bf16.msra.mxu0 %v818
        %1971 = vmatprep.subr.bf16.mxu0 0
        %1972 = vmatpush1.bf16.msra.mxu0 %v819
        %1973 = vmatprep.subr.bf16.mxu0 0
        %1974 = vmatpush1.bf16.msra.mxu0 %v820
        %1975 = vmatprep.subr.bf16.mxu0 0
        %1976 = vmatpush1.bf16.msra.mxu0 %v821
        %1977 = vmatprep.subr.bf16.mxu0 0
        %1978 = vmatpush1.bf16.msra.mxu0 %v822
        %1979 = vmatprep.subr.bf16.mxu0 0
        %1980 = vmatpush1.bf16.msra.mxu0 %v823
        %1981 = vmatprep.subr.bf16.mxu0 0
        %1982 = vmatpush1.bf16.msra.mxu0 %v824
        %1983 = vmatprep.subr.bf16.mxu0 0
        %1984 = vmatpush1.bf16.msra.mxu0 %v825
        %1985 = vmatprep.subr.bf16.mxu0 0
        %1986 = vmatpush1.bf16.msra.mxu0 %v826
        %1987 = vmatprep.subr.bf16.mxu0 0
        %1988 = vmatpush1.bf16.msra.mxu0 %v827
        %1989 = vmatprep.subr.bf16.mxu0 0
        %1990 = vmatpush1.bf16.msra.mxu0 %v828
        %1991 = vmatprep.subr.bf16.mxu0 0
        %1992 = vmatpush1.bf16.msra.mxu0 %v829
        %1993 = vmatprep.subr.bf16.mxu0 0
        %1994 = vmatpush1.bf16.msra.mxu0 %v830
        %1995 = vmatprep.mubr.bf16.mxu0 %v1948
        %1996 = vmatmul.mubr.bf16.gmra.mrb[0].mxu0 %v1947
        %v1997 = vpop.f32.mrb[0].mxu0
        %v1998 = vadd.f32 0.0, %v1997
        %v1999 = vpop.f32.mrb[0].mxu0
        %v2000 = vpop.f32.mrb[0].mxu0
        %v2001 = vadd.f32 0.0, %v2000
        %v2002 = vpop.f32.mrb[0].mxu0
        %2003 = vmatprep.mubr.bf16.mxu0 %v1950
        %2004 = vmatmul.mubr.bf16.gmra.mrb[0].mxu0 %v1949
        %v2005 = vpop.f32.mrb[0].mxu0
        %v2006 = vadd.f32 0.0, %v2005
        %v2007 = vpop.f32.mrb[0].mxu0
        %v2008 = vpop.f32.mrb[0].mxu0
        %v2009 = vadd.f32 0.0, %v2008
        %v2010 = vpop.f32.mrb[0].mxu0
        %2011 = vmatprep.mubr.bf16.mxu0 %v1952
        %2012 = vmatmul.mubr.bf16.gmra.mrb[0].mxu0 %v1951
        %v2013 = vpop.f32.mrb[0].mxu0
        %v2014 = vadd.f32 0.0, %v2013
        %v2015 = vpop.f32.mrb[0].mxu0
        %v2016 = vpop.f32.mrb[0].mxu0
        %v2017 = vadd.f32 0.0, %v2016
        %v2018 = vpop.f32.mrb[0].mxu0
        %2019 = vmatprep.mubr.bf16.mxu0 %v1954
        %2020 = vmatmul.mubr.bf16.gmra.mrb[0].mxu0 %v1953
        %v2021 = vpop.f32.mrb[0].mxu0
        %v2022 = vadd.f32 0.0, %v2021
        %v2023 = vpop.f32.mrb[0].mxu0
        %v2024 = vpop.f32.mrb[0].mxu0
        %v2025 = vadd.f32 0.0, %v2024
        %v2026 = vpop.f32.mrb[0].mxu0
        %2027 = vdwg.mxu0
        %v2028 = vpack.c.bf16 %v2001, %v1998
        %v2029 = vpack.c.bf16 %v2009, %v2006
        %v2030 = vpack.c.bf16 %v2017, %v2014
        %v2031 = vpack.c.bf16 %v2025, %v2022
        %s2032 = scalar_lea.vmem %s4, 80
        %v2033 = vld [vmem:[%s2032] sm:$0xf]
        %v2034 = vld [vmem:[%s2032 + $0x4] sm:$0xf]
        %v2035 = vld [vmem:[%s2032 + $0x8] sm:$0xf]
        %v2036 = vld [vmem:[%s2032 + $0xc] sm:$0xf]
        %v2041 = vunpack.c.l.b16 %v2033
        %v2042 = vunpack.c.l.b16 %v2034
        %v2043 = vunpack.c.l.b16 %v2035
        %v2044 = vunpack.c.l.b16 %v2036
        %v2045 = vpack.c.b16 %v2042, %v2041
        %v2046 = vpack.c.b16 %v2044, %v2043
        %v2050 = vsel %vm1087, %v2028, 0
        %v2053 = vsel %vm1087, %v2029, 0
        %v2056 = vsel %vm1087, %v2030, 0
        %v2059 = vsel %vm1087, %v2031, 0
        %2061 = vmatprep.subr.bf16.mxu0 0
        %2062 = vmatpush1.bf16.msra.mxu0 %v2045
        %2063 = vmatprep.subr.bf16.mxu0 0
        %2064 = vmatpush1.bf16.msra.mxu0 %v2046
        %2065 = vmatprep.subr.bf16.mxu0 0
        %2066 = vmatpush1.bf16.msra.mxu0 0
        %2067 = vmatprep.subr.bf16.mxu0 0
        %2068 = vmatpush1.bf16.msra.mxu0 0
        %2069 = vmatprep.subr.bf16.mxu0 0
        %2070 = vmatpush1.bf16.msra.mxu0 0
        %2071 = vmatprep.subr.bf16.mxu0 0
        %2072 = vmatpush1.bf16.msra.mxu0 0
        %2073 = vmatprep.subr.bf16.mxu0 0
        %2074 = vmatpush1.bf16.msra.mxu0 0
        %2075 = vmatprep.subr.bf16.mxu0 0
        %2076 = vmatpush1.bf16.msra.mxu0 0
        %2077 = vmatprep.subr.bf16.mxu0 0
        %2078 = vmatpush1.bf16.msra.mxu0 0
        %2079 = vmatprep.subr.bf16.mxu0 0
        %2080 = vmatpush1.bf16.msra.mxu0 0
        %2081 = vmatprep.subr.bf16.mxu0 0
        %2082 = vmatpush1.bf16.msra.mxu0 0
        %2083 = vmatprep.subr.bf16.mxu0 0
        %2084 = vmatpush1.bf16.msra.mxu0 0
        %2085 = vmatprep.subr.bf16.mxu0 0
        %2086 = vmatpush1.bf16.msra.mxu0 0
        %2087 = vmatprep.subr.bf16.mxu0 0
        %2088 = vmatpush1.bf16.msra.mxu0 0
        %2089 = vmatprep.subr.bf16.mxu0 0
        %2090 = vmatpush1.bf16.msra.mxu0 0
        %2091 = vmatprep.subr.bf16.mxu0 0
        %2092 = vmatpush1.bf16.msra.mxu0 0
        %2093 = vmatprep.mubr.bf16.mxu0 0
        %2094 = vmatmul.mubr.bf16.gmra.mrb[0].mxu0 %v2050
        %v2095 = vpop.f32.mrb[0].mxu0
        %v2096 = vadd.f32 0.0, %v2095
        %v2097 = vpop.f32.mrb[0].mxu0
        %v2098 = vpop.f32.mrb[0].mxu0
        %v2099 = vadd.f32 0.0, %v2098
        %v2100 = vpop.f32.mrb[0].mxu0
        %2101 = vmatprep.mubr.bf16.mxu0 0
        %2102 = vmatmul.mubr.bf16.gmra.mrb[0].mxu0 %v2053
        %v2103 = vpop.f32.mrb[0].mxu0
        %v2104 = vadd.f32 0.0, %v2103
        %v2105 = vpop.f32.mrb[0].mxu0
        %v2106 = vpop.f32.mrb[0].mxu0
        %v2107 = vadd.f32 0.0, %v2106
        %v2108 = vpop.f32.mrb[0].mxu0
        %2109 = vmatprep.mubr.bf16.mxu0 0
        %2110 = vmatmul.mubr.bf16.gmra.mrb[0].mxu0 %v2056
        %v2111 = vpop.f32.mrb[0].mxu0
        %v2112 = vadd.f32 0.0, %v2111
        %v2113 = vpop.f32.mrb[0].mxu0
        %v2114 = vpop.f32.mrb[0].mxu0
        %v2115 = vadd.f32 0.0, %v2114
        %v2116 = vpop.f32.mrb[0].mxu0
        %2117 = vmatprep.mubr.bf16.mxu0 0
        %2118 = vmatmul.mubr.bf16.gmra.mrb[0].mxu0 %v2059
        %v2119 = vpop.f32.mrb[0].mxu0
        %v2120 = vadd.f32 0.0, %v2119
        %v2121 = vpop.f32.mrb[0].mxu0
        %v2122 = vpop.f32.mrb[0].mxu0
        %v2123 = vadd.f32 0.0, %v2122
        %v2124 = vpop.f32.mrb[0].mxu0
        %2125 = vdwg.mxu0
        %v2126 = vadd.f32 %v1906, %v2096
        %v2127 = vadd.f32 %v1907, %v2099
        %v2128 = vadd.f32 %v1908, %v2104
        %v2129 = vadd.f32 %v1909, %v2107
        %v2130 = vadd.f32 %v1910, %v2112
        %v2131 = vadd.f32 %v1911, %v2115
        %v2132 = vadd.f32 %v1912, %v2120
        %v2133 = vadd.f32 %v1913, %v2123
        %s2134 = scalar_lea.vmem %s3, 384
        %v2135 = vld [vmem:[%s2134] sm:$0xff]
        %v2136 = vld [vmem:[%s2134 + $0x8] sm:$0xff]
        %v2137 = vld [vmem:[%s2134 + $0x10] sm:$0xff]
        %v2138 = vld [vmem:[%s2134 + $0x18] sm:$0xff]
        %v2139 = vld [vmem:[%s2134 + $0x20] sm:$0xff]
        %v2140 = vld [vmem:[%s2134 + $0x28] sm:$0xff]
        %v2141 = vld [vmem:[%s2134 + $0x30] sm:$0xff]
        %v2142 = vld [vmem:[%s2134 + $0x38] sm:$0xff]
        %v2151 = vunpack.c.l.b16 %v2135
        %v2152 = vunpack.c.h.b16 %v2135
        %v2153 = vunpack.c.l.b16 %v2136
        %v2154 = vunpack.c.h.b16 %v2136
        %v2155 = vunpack.c.l.b16 %v2137
        %v2156 = vunpack.c.h.b16 %v2137
        %v2157 = vunpack.c.l.b16 %v2138
        %v2158 = vunpack.c.h.b16 %v2138
        %v2159 = vunpack.c.l.b16 %v2139
        %v2160 = vunpack.c.h.b16 %v2139
        %v2161 = vunpack.c.l.b16 %v2140
        %v2162 = vunpack.c.h.b16 %v2140
        %v2163 = vunpack.c.l.b16 %v2141
        %v2164 = vunpack.c.h.b16 %v2141
        %v2165 = vunpack.c.l.b16 %v2142
        %v2166 = vunpack.c.h.b16 %v2142
        %v2167 = vpack.c.b16 %v2153, %v2151
        %v2168 = vpack.c.b16 %v2154, %v2152
        %v2169 = vpack.c.b16 %v2157, %v2155
        %v2170 = vpack.c.b16 %v2158, %v2156
        %v2171 = vpack.c.b16 %v2161, %v2159
        %v2172 = vpack.c.b16 %v2162, %v2160
        %v2173 = vpack.c.b16 %v2165, %v2163
        %v2174 = vpack.c.b16 %v2166, %v2164
        %2183 = vmatprep.subr.bf16.mxu0 0
        %2184 = vmatpush1.bf16.msra.mxu0 %v815
        %2185 = vmatprep.subr.bf16.mxu0 0
        %2186 = vmatpush1.bf16.msra.mxu0 %v816
        %2187 = vmatprep.subr.bf16.mxu0 0
        %2188 = vmatpush1.bf16.msra.mxu0 %v817
        %2189 = vmatprep.subr.bf16.mxu0 0
        %2190 = vmatpush1.bf16.msra.mxu0 %v818
        %2191 = vmatprep.subr.bf16.mxu0 0
        %2192 = vmatpush1.bf16.msra.mxu0 %v819
        %2193 = vmatprep.subr.bf16.mxu0 0
        %2194 = vmatpush1.bf16.msra.mxu0 %v820
        %2195 = vmatprep.subr.bf16.mxu0 0
        %2196 = vmatpush1.bf16.msra.mxu0 %v821
        %2197 = vmatprep.subr.bf16.mxu0 0
        %2198 = vmatpush1.bf16.msra.mxu0 %v822
        %2199 = vmatprep.subr.bf16.mxu0 0
        %2200 = vmatpush1.bf16.msra.mxu0 %v823
        %2201 = vmatprep.subr.bf16.mxu0 0
        %2202 = vmatpush1.bf16.msra.mxu0 %v824
        %2203 = vmatprep.subr.bf16.mxu0 0
        %2204 = vmatpush1.bf16.msra.mxu0 %v825
        %2205 = vmatprep.subr.bf16.mxu0 0
        %2206 = vmatpush1.bf16.msra.mxu0 %v826
        %2207 = vmatprep.subr.bf16.mxu0 0
        %2208 = vmatpush1.bf16.msra.mxu0 %v827
        %2209 = vmatprep.subr.bf16.mxu0 0
        %2210 = vmatpush1.bf16.msra.mxu0 %v828
        %2211 = vmatprep.subr.bf16.mxu0 0
        %2212 = vmatpush1.bf16.msra.mxu0 %v829
        %2213 = vmatprep.subr.bf16.mxu0 0
        %2214 = vmatpush1.bf16.msra.mxu0 %v830
        %2215 = vmatprep.mubr.bf16.mxu0 %v2168
        %2216 = vmatmul.mubr.bf16.gmra.mrb[0].mxu0 %v2167
        %v2217 = vpop.f32.mrb[0].mxu0
        %v2218 = vadd.f32 0.0, %v2217
        %v2219 = vpop.f32.mrb[0].mxu0
        %v2220 = vpop.f32.mrb[0].mxu0
        %v2221 = vadd.f32 0.0, %v2220
        %v2222 = vpop.f32.mrb[0].mxu0
        %2223 = vmatprep.mubr.bf16.mxu0 %v2170
        %2224 = vmatmul.mubr.bf16.gmra.mrb[0].mxu0 %v2169
        %v2225 = vpop.f32.mrb[0].mxu0
        %v2226 = vadd.f32 0.0, %v2225
        %v2227 = vpop.f32.mrb[0].mxu0
        %v2228 = vpop.f32.mrb[0].mxu0
        %v2229 = vadd.f32 0.0, %v2228
        %v2230 = vpop.f32.mrb[0].mxu0
        %2231 = vmatprep.mubr.bf16.mxu0 %v2172
        %2232 = vmatmul.mubr.bf16.gmra.mrb[0].mxu0 %v2171
        %v2233 = vpop.f32.mrb[0].mxu0
        %v2234 = vadd.f32 0.0, %v2233
        %v2235 = vpop.f32.mrb[0].mxu0
        %v2236 = vpop.f32.mrb[0].mxu0
        %v2237 = vadd.f32 0.0, %v2236
        %v2238 = vpop.f32.mrb[0].mxu0
        %2239 = vmatprep.mubr.bf16.mxu0 %v2174
        %2240 = vmatmul.mubr.bf16.gmra.mrb[0].mxu0 %v2173
        %v2241 = vpop.f32.mrb[0].mxu0
        %v2242 = vadd.f32 0.0, %v2241
        %v2243 = vpop.f32.mrb[0].mxu0
        %v2244 = vpop.f32.mrb[0].mxu0
        %v2245 = vadd.f32 0.0, %v2244
        %v2246 = vpop.f32.mrb[0].mxu0
        %2247 = vdwg.mxu0
        %v2248 = vpack.c.bf16 %v2221, %v2218
        %v2249 = vpack.c.bf16 %v2229, %v2226
        %v2250 = vpack.c.bf16 %v2237, %v2234
        %v2251 = vpack.c.bf16 %v2245, %v2242
        %s2252 = scalar_lea.vmem %s4, 96
        %v2253 = vld [vmem:[%s2252] sm:$0xf]
        %v2254 = vld [vmem:[%s2252 + $0x4] sm:$0xf]
        %v2255 = vld [vmem:[%s2252 + $0x8] sm:$0xf]
        %v2256 = vld [vmem:[%s2252 + $0xc] sm:$0xf]
        %v2261 = vunpack.c.l.b16 %v2253
        %v2262 = vunpack.c.l.b16 %v2254
        %v2263 = vunpack.c.l.b16 %v2255
        %v2264 = vunpack.c.l.b16 %v2256
        %v2265 = vpack.c.b16 %v2262, %v2261
        %v2266 = vpack.c.b16 %v2264, %v2263
        %v2270 = vsel %vm1087, %v2248, 0
        %v2273 = vsel %vm1087, %v2249, 0
        %v2276 = vsel %vm1087, %v2250, 0
        %v2279 = vsel %vm1087, %v2251, 0
        %2281 = vmatprep.subr.bf16.mxu0 0
        %2282 = vmatpush1.bf16.msra.mxu0 %v2265
        %2283 = vmatprep.subr.bf16.mxu0 0
        %2284 = vmatpush1.bf16.msra.mxu0 %v2266
        %2285 = vmatprep.subr.bf16.mxu0 0
        %2286 = vmatpush1.bf16.msra.mxu0 0
        %2287 = vmatprep.subr.bf16.mxu0 0
        %2288 = vmatpush1.bf16.msra.mxu0 0
        %2289 = vmatprep.subr.bf16.mxu0 0
        %2290 = vmatpush1.bf16.msra.mxu0 0
        %2291 = vmatprep.subr.bf16.mxu0 0
        %2292 = vmatpush1.bf16.msra.mxu0 0
        %2293 = vmatprep.subr.bf16.mxu0 0
        %2294 = vmatpush1.bf16.msra.mxu0 0
        %2295 = vmatprep.subr.bf16.mxu0 0
        %2296 = vmatpush1.bf16.msra.mxu0 0
        %2297 = vmatprep.subr.bf16.mxu0 0
        %2298 = vmatpush1.bf16.msra.mxu0 0
        %2299 = vmatprep.subr.bf16.mxu0 0
        %2300 = vmatpush1.bf16.msra.mxu0 0
        %2301 = vmatprep.subr.bf16.mxu0 0
        %2302 = vmatpush1.bf16.msra.mxu0 0
        %2303 = vmatprep.subr.bf16.mxu0 0
        %2304 = vmatpush1.bf16.msra.mxu0 0
        %2305 = vmatprep.subr.bf16.mxu0 0
        %2306 = vmatpush1.bf16.msra.mxu0 0
        %2307 = vmatprep.subr.bf16.mxu0 0
        %2308 = vmatpush1.bf16.msra.mxu0 0
        %2309 = vmatprep.subr.bf16.mxu0 0
        %2310 = vmatpush1.bf16.msra.mxu0 0
        %2311 = vmatprep.subr.bf16.mxu0 0
        %2312 = vmatpush1.bf16.msra.mxu0 0
        %2313 = vmatprep.mubr.bf16.mxu0 0
        %2314 = vmatmul.mubr.bf16.gmra.mrb[0].mxu0 %v2270
        %v2315 = vpop.f32.mrb[0].mxu0
        %v2316 = vadd.f32 0.0, %v2315
        %v2317 = vpop.f32.mrb[0].mxu0
        %v2318 = vpop.f32.mrb[0].mxu0
        %v2319 = vadd.f32 0.0, %v2318
        %v2320 = vpop.f32.mrb[0].mxu0
        %2321 = vmatprep.mubr.bf16.mxu0 0
        %2322 = vmatmul.mubr.bf16.gmra.mrb[0].mxu0 %v2273
        %v2323 = vpop.f32.mrb[0].mxu0
        %v2324 = vadd.f32 0.0, %v2323
        %v2325 = vpop.f32.mrb[0].mxu0
        %v2326 = vpop.f32.mrb[0].mxu0
        %v2327 = vadd.f32 0.0, %v2326
        %v2328 = vpop.f32.mrb[0].mxu0
        %2329 = vmatprep.mubr.bf16.mxu0 0
        %2330 = vmatmul.mubr.bf16.gmra.mrb[0].mxu0 %v2276
        %v2331 = vpop.f32.mrb[0].mxu0
        %v2332 = vadd.f32 0.0, %v2331
        %v2333 = vpop.f32.mrb[0].mxu0
        %v2334 = vpop.f32.mrb[0].mxu0
        %v2335 = vadd.f32 0.0, %v2334
        %v2336 = vpop.f32.mrb[0].mxu0
        %2337 = vmatprep.mubr.bf16.mxu0 0
        %2338 = vmatmul.mubr.bf16.gmra.mrb[0].mxu0 %v2279
        %v2339 = vpop.f32.mrb[0].mxu0
        %v2340 = vadd.f32 0.0, %v2339
        %v2341 = vpop.f32.mrb[0].mxu0
        %v2342 = vpop.f32.mrb[0].mxu0
        %v2343 = vadd.f32 0.0, %v2342
        %v2344 = vpop.f32.mrb[0].mxu0
        %2345 = vdwg.mxu0
        %v2346 = vadd.f32 %v2126, %v2316
        %v2347 = vadd.f32 %v2127, %v2319
        %v2348 = vadd.f32 %v2128, %v2324
        %v2349 = vadd.f32 %v2129, %v2327
        %v2350 = vadd.f32 %v2130, %v2332
        %v2351 = vadd.f32 %v2131, %v2335
        %v2352 = vadd.f32 %v2132, %v2340
        %v2353 = vadd.f32 %v2133, %v2343
        %s2354 = scalar_lea.vmem %s3, 448
        %v2355 = vld [vmem:[%s2354] sm:$0xff]
        %v2356 = vld [vmem:[%s2354 + $0x8] sm:$0xff]
        %v2357 = vld [vmem:[%s2354 + $0x10] sm:$0xff]
        %v2358 = vld [vmem:[%s2354 + $0x18] sm:$0xff]
        %v2359 = vld [vmem:[%s2354 + $0x20] sm:$0xff]
        %v2360 = vld [vmem:[%s2354 + $0x28] sm:$0xff]
        %v2361 = vld [vmem:[%s2354 + $0x30] sm:$0xff]
        %v2362 = vld [vmem:[%s2354 + $0x38] sm:$0xff]
        %v2371 = vunpack.c.l.b16 %v2355
        %v2372 = vunpack.c.h.b16 %v2355
        %v2373 = vunpack.c.l.b16 %v2356
        %v2374 = vunpack.c.h.b16 %v2356
        %v2375 = vunpack.c.l.b16 %v2357
        %v2376 = vunpack.c.h.b16 %v2357
        %v2377 = vunpack.c.l.b16 %v2358
        %v2378 = vunpack.c.h.b16 %v2358
        %v2379 = vunpack.c.l.b16 %v2359
        %v2380 = vunpack.c.h.b16 %v2359
        %v2381 = vunpack.c.l.b16 %v2360
        %v2382 = vunpack.c.h.b16 %v2360
        %v2383 = vunpack.c.l.b16 %v2361
        %v2384 = vunpack.c.h.b16 %v2361
        %v2385 = vunpack.c.l.b16 %v2362
        %v2386 = vunpack.c.h.b16 %v2362
        %v2387 = vpack.c.b16 %v2373, %v2371
        %v2388 = vpack.c.b16 %v2374, %v2372
        %v2389 = vpack.c.b16 %v2377, %v2375
        %v2390 = vpack.c.b16 %v2378, %v2376
        %v2391 = vpack.c.b16 %v2381, %v2379
        %v2392 = vpack.c.b16 %v2382, %v2380
        %v2393 = vpack.c.b16 %v2385, %v2383
        %v2394 = vpack.c.b16 %v2386, %v2384
        %2403 = vmatprep.subr.bf16.mxu0 0
        %2404 = vmatpush1.bf16.msra.mxu0 %v815
        %2405 = vmatprep.subr.bf16.mxu0 0
        %2406 = vmatpush1.bf16.msra.mxu0 %v816
        %2407 = vmatprep.subr.bf16.mxu0 0
        %2408 = vmatpush1.bf16.msra.mxu0 %v817
        %2409 = vmatprep.subr.bf16.mxu0 0
        %2410 = vmatpush1.bf16.msra.mxu0 %v818
        %2411 = vmatprep.subr.bf16.mxu0 0
        %2412 = vmatpush1.bf16.msra.mxu0 %v819
        %2413 = vmatprep.subr.bf16.mxu0 0
        %2414 = vmatpush1.bf16.msra.mxu0 %v820
        %2415 = vmatprep.subr.bf16.mxu0 0
        %2416 = vmatpush1.bf16.msra.mxu0 %v821
        %2417 = vmatprep.subr.bf16.mxu0 0
        %2418 = vmatpush1.bf16.msra.mxu0 %v822
        %2419 = vmatprep.subr.bf16.mxu0 0
        %2420 = vmatpush1.bf16.msra.mxu0 %v823
        %2421 = vmatprep.subr.bf16.mxu0 0
        %2422 = vmatpush1.bf16.msra.mxu0 %v824
        %2423 = vmatprep.subr.bf16.mxu0 0
        %2424 = vmatpush1.bf16.msra.mxu0 %v825
        %2425 = vmatprep.subr.bf16.mxu0 0
        %2426 = vmatpush1.bf16.msra.mxu0 %v826
        %2427 = vmatprep.subr.bf16.mxu0 0
        %2428 = vmatpush1.bf16.msra.mxu0 %v827
        %2429 = vmatprep.subr.bf16.mxu0 0
        %2430 = vmatpush1.bf16.msra.mxu0 %v828
        %2431 = vmatprep.subr.bf16.mxu0 0
        %2432 = vmatpush1.bf16.msra.mxu0 %v829
        %2433 = vmatprep.subr.bf16.mxu0 0
        %2434 = vmatpush1.bf16.msra.mxu0 %v830
        %2435 = vmatprep.mubr.bf16.mxu0 %v2388
        %2436 = vmatmul.mubr.bf16.gmra.mrb[0].mxu0 %v2387
        %v2437 = vpop.f32.mrb[0].mxu0
        %v2438 = vadd.f32 0.0, %v2437
        %v2439 = vpop.f32.mrb[0].mxu0
        %v2440 = vpop.f32.mrb[0].mxu0
        %v2441 = vadd.f32 0.0, %v2440
        %v2442 = vpop.f32.mrb[0].mxu0
        %2443 = vmatprep.mubr.bf16.mxu0 %v2390
        %2444 = vmatmul.mubr.bf16.gmra.mrb[0].mxu0 %v2389
        %v2445 = vpop.f32.mrb[0].mxu0
        %v2446 = vadd.f32 0.0, %v2445
        %v2447 = vpop.f32.mrb[0].mxu0
        %v2448 = vpop.f32.mrb[0].mxu0
        %v2449 = vadd.f32 0.0, %v2448
        %v2450 = vpop.f32.mrb[0].mxu0
        %2451 = vmatprep.mubr.bf16.mxu0 %v2392
        %2452 = vmatmul.mubr.bf16.gmra.mrb[0].mxu0 %v2391
        %v2453 = vpop.f32.mrb[0].mxu0
        %v2454 = vadd.f32 0.0, %v2453
        %v2455 = vpop.f32.mrb[0].mxu0
        %v2456 = vpop.f32.mrb[0].mxu0
        %v2457 = vadd.f32 0.0, %v2456
        %v2458 = vpop.f32.mrb[0].mxu0
        %2459 = vmatprep.mubr.bf16.mxu0 %v2394
        %2460 = vmatmul.mubr.bf16.gmra.mrb[0].mxu0 %v2393
        %v2461 = vpop.f32.mrb[0].mxu0
        %v2462 = vadd.f32 0.0, %v2461
        %v2463 = vpop.f32.mrb[0].mxu0
        %v2464 = vpop.f32.mrb[0].mxu0
        %v2465 = vadd.f32 0.0, %v2464
        %v2466 = vpop.f32.mrb[0].mxu0
        %2467 = vdwg.mxu0
        %v2468 = vpack.c.bf16 %v2441, %v2438
        %v2469 = vpack.c.bf16 %v2449, %v2446
        %v2470 = vpack.c.bf16 %v2457, %v2454
        %v2471 = vpack.c.bf16 %v2465, %v2462
        %s2472 = scalar_lea.vmem %s4, 112
        %v2473 = vld [vmem:[%s2472] sm:$0xf]
        %v2474 = vld [vmem:[%s2472 + $0x4] sm:$0xf]
        %v2475 = vld [vmem:[%s2472 + $0x8] sm:$0xf]
        %v2476 = vld [vmem:[%s2472 + $0xc] sm:$0xf]
        %v2481 = vunpack.c.l.b16 %v2473
        %v2482 = vunpack.c.l.b16 %v2474
        %v2483 = vunpack.c.l.b16 %v2475
        %v2484 = vunpack.c.l.b16 %v2476
        %v2485 = vpack.c.b16 %v2482, %v2481
        %v2486 = vpack.c.b16 %v2484, %v2483
        %v2490 = vsel %vm1087, %v2468, 0
        %v2493 = vsel %vm1087, %v2469, 0
        %v2496 = vsel %vm1087, %v2470, 0
        %v2499 = vsel %vm1087, %v2471, 0
        %2501 = vmatprep.subr.bf16.mxu0 0
        %2502 = vmatpush1.bf16.msra.mxu0 %v2485
        %2503 = vmatprep.subr.bf16.mxu0 0
        %2504 = vmatpush1.bf16.msra.mxu0 %v2486
        %2505 = vmatprep.subr.bf16.mxu0 0
        %2506 = vmatpush1.bf16.msra.mxu0 0
        %2507 = vmatprep.subr.bf16.mxu0 0
        %2508 = vmatpush1.bf16.msra.mxu0 0
        %2509 = vmatprep.subr.bf16.mxu0 0
        %2510 = vmatpush1.bf16.msra.mxu0 0
        %2511 = vmatprep.subr.bf16.mxu0 0
        %2512 = vmatpush1.bf16.msra.mxu0 0
        %2513 = vmatprep.subr.bf16.mxu0 0
        %2514 = vmatpush1.bf16.msra.mxu0 0
        %2515 = vmatprep.subr.bf16.mxu0 0
        %2516 = vmatpush1.bf16.msra.mxu0 0
        %2517 = vmatprep.subr.bf16.mxu0 0
        %2518 = vmatpush1.bf16.msra.mxu0 0
        %2519 = vmatprep.subr.bf16.mxu0 0
        %2520 = vmatpush1.bf16.msra.mxu0 0
        %2521 = vmatprep.subr.bf16.mxu0 0
        %2522 = vmatpush1.bf16.msra.mxu0 0
        %2523 = vmatprep.subr.bf16.mxu0 0
        %2524 = vmatpush1.bf16.msra.mxu0 0
        %2525 = vmatprep.subr.bf16.mxu0 0
        %2526 = vmatpush1.bf16.msra.mxu0 0
        %2527 = vmatprep.subr.bf16.mxu0 0
        %2528 = vmatpush1.bf16.msra.mxu0 0
        %2529 = vmatprep.subr.bf16.mxu0 0
        %2530 = vmatpush1.bf16.msra.mxu0 0
        %2531 = vmatprep.subr.bf16.mxu0 0
        %2532 = vmatpush1.bf16.msra.mxu0 0
        %2533 = vmatprep.mubr.bf16.mxu0 0
        %2534 = vmatmul.mubr.bf16.gmra.mrb[0].mxu0 %v2490
        %v2535 = vpop.f32.mrb[0].mxu0
        %v2536 = vadd.f32 0.0, %v2535
        %v2537 = vpop.f32.mrb[0].mxu0
        %v2538 = vpop.f32.mrb[0].mxu0
        %v2539 = vadd.f32 0.0, %v2538
        %v2540 = vpop.f32.mrb[0].mxu0
        %2541 = vmatprep.mubr.bf16.mxu0 0
        %2542 = vmatmul.mubr.bf16.gmra.mrb[0].mxu0 %v2493
        %v2543 = vpop.f32.mrb[0].mxu0
        %v2544 = vadd.f32 0.0, %v2543
        %v2545 = vpop.f32.mrb[0].mxu0
        %v2546 = vpop.f32.mrb[0].mxu0
        %v2547 = vadd.f32 0.0, %v2546
        %v2548 = vpop.f32.mrb[0].mxu0
        %2549 = vmatprep.mubr.bf16.mxu0 0
        %2550 = vmatmul.mubr.bf16.gmra.mrb[0].mxu0 %v2496
        %v2551 = vpop.f32.mrb[0].mxu0
        %v2552 = vadd.f32 0.0, %v2551
        %v2553 = vpop.f32.mrb[0].mxu0
        %v2554 = vpop.f32.mrb[0].mxu0
        %v2555 = vadd.f32 0.0, %v2554
        %v2556 = vpop.f32.mrb[0].mxu0
        %2557 = vmatprep.mubr.bf16.mxu0 0
        %2558 = vmatmul.mubr.bf16.gmra.mrb[0].mxu0 %v2499
        %v2559 = vpop.f32.mrb[0].mxu0
        %v2560 = vadd.f32 0.0, %v2559
        %v2561 = vpop.f32.mrb[0].mxu0
        %v2562 = vpop.f32.mrb[0].mxu0
        %v2563 = vadd.f32 0.0, %v2562
        %v2564 = vpop.f32.mrb[0].mxu0
        %2565 = vdwg.mxu0
        %v2566 = vadd.f32 %v2346, %v2536
        %v2567 = vadd.f32 %v2347, %v2539
        %v2568 = vadd.f32 %v2348, %v2544
        %v2569 = vadd.f32 %v2349, %v2547
        %v2570 = vadd.f32 %v2350, %v2552
        %v2571 = vadd.f32 %v2351, %v2555
        %v2572 = vadd.f32 %v2352, %v2560
        %v2573 = vadd.f32 %v2353, %v2563
        %s2574 = scalar_lea.vmem %s3, 512
        %v2575 = vld [vmem:[%s2574] sm:$0xff]
        %v2576 = vld [vmem:[%s2574 + $0x8] sm:$0xff]
        %v2577 = vld [vmem:[%s2574 + $0x10] sm:$0xff]
        %v2578 = vld [vmem:[%s2574 + $0x18] sm:$0xff]
        %v2579 = vld [vmem:[%s2574 + $0x20] sm:$0xff]
        %v2580 = vld [vmem:[%s2574 + $0x28] sm:$0xff]
        %v2581 = vld [vmem:[%s2574 + $0x30] sm:$0xff]
        %v2582 = vld [vmem:[%s2574 + $0x38] sm:$0xff]
        %v2591 = vunpack.c.l.b16 %v2575
        %v2592 = vunpack.c.h.b16 %v2575
        %v2593 = vunpack.c.l.b16 %v2576
        %v2594 = vunpack.c.h.b16 %v2576
        %v2595 = vunpack.c.l.b16 %v2577
        %v2596 = vunpack.c.h.b16 %v2577
        %v2597 = vunpack.c.l.b16 %v2578
        %v2598 = vunpack.c.h.b16 %v2578
        %v2599 = vunpack.c.l.b16 %v2579
        %v2600 = vunpack.c.h.b16 %v2579
        %v2601 = vunpack.c.l.b16 %v2580
        %v2602 = vunpack.c.h.b16 %v2580
        %v2603 = vunpack.c.l.b16 %v2581
        %v2604 = vunpack.c.h.b16 %v2581
        %v2605 = vunpack.c.l.b16 %v2582
        %v2606 = vunpack.c.h.b16 %v2582
        %v2607 = vpack.c.b16 %v2593, %v2591
        %v2608 = vpack.c.b16 %v2594, %v2592
        %v2609 = vpack.c.b16 %v2597, %v2595
        %v2610 = vpack.c.b16 %v2598, %v2596
        %v2611 = vpack.c.b16 %v2601, %v2599
        %v2612 = vpack.c.b16 %v2602, %v2600
        %v2613 = vpack.c.b16 %v2605, %v2603
        %v2614 = vpack.c.b16 %v2606, %v2604
        %2623 = vmatprep.subr.bf16.mxu0 0
        %2624 = vmatpush1.bf16.msra.mxu0 %v815
        %2625 = vmatprep.subr.bf16.mxu0 0
        %2626 = vmatpush1.bf16.msra.mxu0 %v816
        %2627 = vmatprep.subr.bf16.mxu0 0
        %2628 = vmatpush1.bf16.msra.mxu0 %v817
        %2629 = vmatprep.subr.bf16.mxu0 0
        %2630 = vmatpush1.bf16.msra.mxu0 %v818
        %2631 = vmatprep.subr.bf16.mxu0 0
        %2632 = vmatpush1.bf16.msra.mxu0 %v819
        %2633 = vmatprep.subr.bf16.mxu0 0
        %2634 = vmatpush1.bf16.msra.mxu0 %v820
        %2635 = vmatprep.subr.bf16.mxu0 0
        %2636 = vmatpush1.bf16.msra.mxu0 %v821
        %2637 = vmatprep.subr.bf16.mxu0 0
        %2638 = vmatpush1.bf16.msra.mxu0 %v822
        %2639 = vmatprep.subr.bf16.mxu0 0
        %2640 = vmatpush1.bf16.msra.mxu0 %v823
        %2641 = vmatprep.subr.bf16.mxu0 0
        %2642 = vmatpush1.bf16.msra.mxu0 %v824
        %2643 = vmatprep.subr.bf16.mxu0 0
        %2644 = vmatpush1.bf16.msra.mxu0 %v825
        %2645 = vmatprep.subr.bf16.mxu0 0
        %2646 = vmatpush1.bf16.msra.mxu0 %v826
        %2647 = vmatprep.subr.bf16.mxu0 0
        %2648 = vmatpush1.bf16.msra.mxu0 %v827
        %2649 = vmatprep.subr.bf16.mxu0 0
        %2650 = vmatpush1.bf16.msra.mxu0 %v828
        %2651 = vmatprep.subr.bf16.mxu0 0
        %2652 = vmatpush1.bf16.msra.mxu0 %v829
        %2653 = vmatprep.subr.bf16.mxu0 0
        %2654 = vmatpush1.bf16.msra.mxu0 %v830
        %2655 = vmatprep.mubr.bf16.mxu0 %v2608
        %2656 = vmatmul.mubr.bf16.gmra.mrb[0].mxu0 %v2607
        %v2657 = vpop.f32.mrb[0].mxu0
        %v2658 = vadd.f32 0.0, %v2657
        %v2659 = vpop.f32.mrb[0].mxu0
        %v2660 = vpop.f32.mrb[0].mxu0
        %v2661 = vadd.f32 0.0, %v2660
        %v2662 = vpop.f32.mrb[0].mxu0
        %2663 = vmatprep.mubr.bf16.mxu0 %v2610
        %2664 = vmatmul.mubr.bf16.gmra.mrb[0].mxu0 %v2609
        %v2665 = vpop.f32.mrb[0].mxu0
        %v2666 = vadd.f32 0.0, %v2665
        %v2667 = vpop.f32.mrb[0].mxu0
        %v2668 = vpop.f32.mrb[0].mxu0
        %v2669 = vadd.f32 0.0, %v2668
        %v2670 = vpop.f32.mrb[0].mxu0
        %2671 = vmatprep.mubr.bf16.mxu0 %v2612
        %2672 = vmatmul.mubr.bf16.gmra.mrb[0].mxu0 %v2611
        %v2673 = vpop.f32.mrb[0].mxu0
        %v2674 = vadd.f32 0.0, %v2673
        %v2675 = vpop.f32.mrb[0].mxu0
        %v2676 = vpop.f32.mrb[0].mxu0
        %v2677 = vadd.f32 0.0, %v2676
        %v2678 = vpop.f32.mrb[0].mxu0
        %2679 = vmatprep.mubr.bf16.mxu0 %v2614
        %2680 = vmatmul.mubr.bf16.gmra.mrb[0].mxu0 %v2613
        %v2681 = vpop.f32.mrb[0].mxu0
        %v2682 = vadd.f32 0.0, %v2681
        %v2683 = vpop.f32.mrb[0].mxu0
        %v2684 = vpop.f32.mrb[0].mxu0
        %v2685 = vadd.f32 0.0, %v2684
        %v2686 = vpop.f32.mrb[0].mxu0
        %2687 = vdwg.mxu0
        %v2688 = vpack.c.bf16 %v2661, %v2658
        %v2689 = vpack.c.bf16 %v2669, %v2666
        %v2690 = vpack.c.bf16 %v2677, %v2674
        %v2691 = vpack.c.bf16 %v2685, %v2682
        %s2692 = scalar_lea.vmem %s4, 128
        %v2693 = vld [vmem:[%s2692] sm:$0xf]
        %v2694 = vld [vmem:[%s2692 + $0x4] sm:$0xf]
        %v2695 = vld [vmem:[%s2692 + $0x8] sm:$0xf]
        %v2696 = vld [vmem:[%s2692 + $0xc] sm:$0xf]
        %v2701 = vunpack.c.l.b16 %v2693
        %v2702 = vunpack.c.l.b16 %v2694
        %v2703 = vunpack.c.l.b16 %v2695
        %v2704 = vunpack.c.l.b16 %v2696
        %v2705 = vpack.c.b16 %v2702, %v2701
        %v2706 = vpack.c.b16 %v2704, %v2703
        %v2710 = vsel %vm1087, %v2688, 0
        %v2713 = vsel %vm1087, %v2689, 0
        %v2716 = vsel %vm1087, %v2690, 0
        %v2719 = vsel %vm1087, %v2691, 0
        %2721 = vmatprep.subr.bf16.mxu0 0
        %2722 = vmatpush1.bf16.msra.mxu0 %v2705
        %2723 = vmatprep.subr.bf16.mxu0 0
        %2724 = vmatpush1.bf16.msra.mxu0 %v2706
        %2725 = vmatprep.subr.bf16.mxu0 0
        %2726 = vmatpush1.bf16.msra.mxu0 0
        %2727 = vmatprep.subr.bf16.mxu0 0
        %2728 = vmatpush1.bf16.msra.mxu0 0
        %2729 = vmatprep.subr.bf16.mxu0 0
        %2730 = vmatpush1.bf16.msra.mxu0 0
        %2731 = vmatprep.subr.bf16.mxu0 0
        %2732 = vmatpush1.bf16.msra.mxu0 0
        %2733 = vmatprep.subr.bf16.mxu0 0
        %2734 = vmatpush1.bf16.msra.mxu0 0
        %2735 = vmatprep.subr.bf16.mxu0 0
        %2736 = vmatpush1.bf16.msra.mxu0 0
        %2737 = vmatprep.subr.bf16.mxu0 0
        %2738 = vmatpush1.bf16.msra.mxu0 0
        %2739 = vmatprep.subr.bf16.mxu0 0
        %2740 = vmatpush1.bf16.msra.mxu0 0
        %2741 = vmatprep.subr.bf16.mxu0 0
        %2742 = vmatpush1.bf16.msra.mxu0 0
        %2743 = vmatprep.subr.bf16.mxu0 0
        %2744 = vmatpush1.bf16.msra.mxu0 0
        %2745 = vmatprep.subr.bf16.mxu0 0
        %2746 = vmatpush1.bf16.msra.mxu0 0
        %2747 = vmatprep.subr.bf16.mxu0 0
        %2748 = vmatpush1.bf16.msra.mxu0 0
        %2749 = vmatprep.subr.bf16.mxu0 0
        %2750 = vmatpush1.bf16.msra.mxu0 0
        %2751 = vmatprep.subr.bf16.mxu0 0
        %2752 = vmatpush1.bf16.msra.mxu0 0
        %2753 = vmatprep.mubr.bf16.mxu0 0
        %2754 = vmatmul.mubr.bf16.gmra.mrb[0].mxu0 %v2710
        %v2755 = vpop.f32.mrb[0].mxu0
        %v2756 = vadd.f32 0.0, %v2755
        %v2757 = vpop.f32.mrb[0].mxu0
        %v2758 = vpop.f32.mrb[0].mxu0
        %v2759 = vadd.f32 0.0, %v2758
        %v2760 = vpop.f32.mrb[0].mxu0
        %2761 = vmatprep.mubr.bf16.mxu0 0
        %2762 = vmatmul.mubr.bf16.gmra.mrb[0].mxu0 %v2713
        %v2763 = vpop.f32.mrb[0].mxu0
        %v2764 = vadd.f32 0.0, %v2763
        %v2765 = vpop.f32.mrb[0].mxu0
        %v2766 = vpop.f32.mrb[0].mxu0
        %v2767 = vadd.f32 0.0, %v2766
        %v2768 = vpop.f32.mrb[0].mxu0
        %2769 = vmatprep.mubr.bf16.mxu0 0
        %2770 = vmatmul.mubr.bf16.gmra.mrb[0].mxu0 %v2716
        %v2771 = vpop.f32.mrb[0].mxu0
        %v2772 = vadd.f32 0.0, %v2771
        %v2773 = vpop.f32.mrb[0].mxu0
        %v2774 = vpop.f32.mrb[0].mxu0
        %v2775 = vadd.f32 0.0, %v2774
        %v2776 = vpop.f32.mrb[0].mxu0
        %2777 = vmatprep.mubr.bf16.mxu0 0
        %2778 = vmatmul.mubr.bf16.gmra.mrb[0].mxu0 %v2719
        %v2779 = vpop.f32.mrb[0].mxu0
        %v2780 = vadd.f32 0.0, %v2779
        %v2781 = vpop.f32.mrb[0].mxu0
        %v2782 = vpop.f32.mrb[0].mxu0
        %v2783 = vadd.f32 0.0, %v2782
        %v2784 = vpop.f32.mrb[0].mxu0
        %2785 = vdwg.mxu0
        %v2786 = vadd.f32 %v2566, %v2756
        %v2787 = vadd.f32 %v2567, %v2759
        %v2788 = vadd.f32 %v2568, %v2764
        %v2789 = vadd.f32 %v2569, %v2767
        %v2790 = vadd.f32 %v2570, %v2772
        %v2791 = vadd.f32 %v2571, %v2775
        %v2792 = vadd.f32 %v2572, %v2780
        %v2793 = vadd.f32 %v2573, %v2783
        %v2794 = vld [vmem:[#allocation5] sm:$0x1]
        %v2796 = vlaneseq
        %v2797 = vshrl.u32 %v2796, 7
        %v2798 = vsub.s32 0, %v2797
        %v2799 = vrot.slane %v2794, %v2798
        %v2801 = vadd.f32 %v2786, %v2799
        %v2802 = vadd.f32 %v2787, %v2799
        %v2803 = vadd.f32 %v2788, %v2799
        %v2804 = vadd.f32 %v2789, %v2799
        %v2805 = vadd.f32 %v2790, %v2799
        %v2806 = vadd.f32 %v2791, %v2799
        %v2807 = vadd.f32 %v2792, %v2799
        %v2808 = vadd.f32 %v2793, %v2799
        %v2809 = vmax.f32 %v2801, 0.0
        %v2810 = vmax.f32 %v2802, 0.0
        %v2811 = vmax.f32 %v2803, 0.0
        %v2812 = vmax.f32 %v2804, 0.0
        %v2813 = vmax.f32 %v2805, 0.0
        %v2814 = vmax.f32 %v2806, 0.0
        %v2815 = vmax.f32 %v2807, 0.0
        %v2816 = vmax.f32 %v2808, 0.0
        %v2817 = vpack.c.bf16 %v2810, %v2809
        %v2818 = vpack.c.bf16 %v2812, %v2811
        %v2819 = vpack.c.bf16 %v2814, %v2813
        %v2820 = vpack.c.bf16 %v2816, %v2815
        %v2821 = vld [vmem:[%s6] sm:$0xf]
        %v2822 = vld [vmem:[%s6 + $0x4] sm:$0xf]
        %v2825 = vunpack.c.l.b16 %v2821
        %v2826 = vunpack.c.l.b16 %v2822
        %v2827 = vpack.c.b16 %v2826, %v2825
        %vm2828 = vcmask 523264
        %v2830 = vsel %vm2828, %v2827, 0
        %2832 = vmatprep.subr.bf16.mxu0 0
        %2833 = vmatpush1.bf16.msra.mxu0 %v2817
        %2834 = vmatprep.subr.bf16.mxu0 0
        %2835 = vmatpush1.bf16.msra.mxu0 %v2818
        %2836 = vmatprep.subr.bf16.mxu0 0
        %2837 = vmatpush1.bf16.msra.mxu0 %v2819
        %2838 = vmatprep.subr.bf16.mxu0 0
        %2839 = vmatpush1.bf16.msra.mxu0 %v2820
        %2840 = vmatprep.subr.bf16.mxu0 0
        %2841 = vmatpush1.bf16.msra.mxu0 0
        %2842 = vmatprep.subr.bf16.mxu0 0
        %2843 = vmatpush1.bf16.msra.mxu0 0
        %2844 = vmatprep.subr.bf16.mxu0 0
        %2845 = vmatpush1.bf16.msra.mxu0 0
        %2846 = vmatprep.subr.bf16.mxu0 0
        %2847 = vmatpush1.bf16.msra.mxu0 0
        %2848 = vmatprep.subr.bf16.mxu0 0
        %2849 = vmatpush1.bf16.msra.mxu0 0
        %2850 = vmatprep.subr.bf16.mxu0 0
        %2851 = vmatpush1.bf16.msra.mxu0 0
        %2852 = vmatprep.subr.bf16.mxu0 0
        %2853 = vmatpush1.bf16.msra.mxu0 0
        %2854 = vmatprep.subr.bf16.mxu0 0
        %2855 = vmatpush1.bf16.msra.mxu0 0
        %2856 = vmatprep.subr.bf16.mxu0 0
        %2857 = vmatpush1.bf16.msra.mxu0 0
        %2858 = vmatprep.subr.bf16.mxu0 0
        %2859 = vmatpush1.bf16.msra.mxu0 0
        %2860 = vmatprep.subr.bf16.mxu0 0
        %2861 = vmatpush1.bf16.msra.mxu0 0
        %2862 = vmatprep.subr.bf16.mxu0 0
        %2863 = vmatpush1.bf16.msra.mxu0 0
        %2864 = vmatprep.mubr.bf16.mxu0 0
        %2865 = vmatmul.mubr.bf16.gmra.mrb[0].mxu0 %v2830
        %v2866 = vpop.f32.mrb[0].mxu0
        %v2867 = vadd.f32 0.0, %v2866
        %v2868 = vpop.f32.mrb[0].mxu0
        %v2869 = vpop.f32.mrb[0].mxu0
        %v2870 = vadd.f32 0.0, %v2869
        %v2871 = vpop.f32.mrb[0].mxu0
        %2872 = vdwg.mxu0
        %v2873 = vpack.c.bf16 %v2870, %v2867
        %v2874 = vld [vmem:[%s7] sm:$0xf]
        %v2875 = vld [vmem:[%s7 + $0x4] sm:$0xf]
        %v2876 = vld [vmem:[%s7 + $0x8] sm:$0xf]
        %v2877 = vld [vmem:[%s7 + $0xc] sm:$0xf]
        %v2878 = vld [vmem:[%s7 + $0x10] sm:$0xf]
        %v2879 = vld [vmem:[%s7 + $0x14] sm:$0xf]
        %v2880 = vld [vmem:[%s7 + $0x18] sm:$0xf]
        %v2881 = vld [vmem:[%s7 + $0x1c] sm:$0xf]
        %s2882 = scalar_lea.vmem %s6, 8
        %v2883 = vld [vmem:[%s2882] sm:$0xf]
        %v2884 = vld [vmem:[%s2882 + $0x4] sm:$0xf]
        %v2887 = vunpack.c.l.b16 %v2883
        %v2888 = vunpack.c.l.b16 %v2884
        %v2889 = vpack.c.b16 %v2888, %v2887
        %v2891 = vsel %vm2828, %v2889, 0
        %2893 = vmatprep.subr.bf16.mxu0 0
        %2894 = vmatpush1.bf16.msra.mxu0 %v2817
        %2895 = vmatprep.subr.bf16.mxu0 0
        %2896 = vmatpush1.bf16.msra.mxu0 %v2818
        %2897 = vmatprep.subr.bf16.mxu0 0
        %2898 = vmatpush1.bf16.msra.mxu0 %v2819
        %2899 = vmatprep.subr.bf16.mxu0 0
        %2900 = vmatpush1.bf16.msra.mxu0 %v2820
        %2901 = vmatprep.subr.bf16.mxu0 0
        %2902 = vmatpush1.bf16.msra.mxu0 0
        %2903 = vmatprep.subr.bf16.mxu0 0
        %2904 = vmatpush1.bf16.msra.mxu0 0
        %2905 = vmatprep.subr.bf16.mxu0 0
        %2906 = vmatpush1.bf16.msra.mxu0 0
        %2907 = vmatprep.subr.bf16.mxu0 0
        %2908 = vmatpush1.bf16.msra.mxu0 0
        %2909 = vmatprep.subr.bf16.mxu0 0
        %2910 = vmatpush1.bf16.msra.mxu0 0
        %2911 = vmatprep.subr.bf16.mxu0 0
        %2912 = vmatpush1.bf16.msra.mxu0 0
        %2913 = vmatprep.subr.bf16.mxu0 0
        %2914 = vmatpush1.bf16.msra.mxu0 0
        %2915 = vmatprep.subr.bf16.mxu0 0
        %2916 = vmatpush1.bf16.msra.mxu0 0
        %2917 = vmatprep.subr.bf16.mxu0 0
        %2918 = vmatpush1.bf16.msra.mxu0 0
        %2919 = vmatprep.subr.bf16.mxu0 0
        %2920 = vmatpush1.bf16.msra.mxu0 0
        %2921 = vmatprep.subr.bf16.mxu0 0
        %2922 = vmatpush1.bf16.msra.mxu0 0
        %2923 = vmatprep.subr.bf16.mxu0 0
        %2924 = vmatpush1.bf16.msra.mxu0 0
        %2925 = vmatprep.mubr.bf16.mxu0 0
        %2926 = vmatmul.mubr.bf16.gmra.mrb[0].mxu0 %v2891
        %v2927 = vpop.f32.mrb[0].mxu0
        %v2928 = vadd.f32 0.0, %v2927
        %v2929 = vpop.f32.mrb[0].mxu0
        %v2930 = vpop.f32.mrb[0].mxu0
        %v2931 = vadd.f32 0.0, %v2930
        %v2932 = vpop.f32.mrb[0].mxu0
        %2933 = vdwg.mxu0
        %v2934 = vpack.c.bf16 %v2931, %v2928
        %s2935 = scalar_lea.vmem %s7, 32
        %v2936 = vld [vmem:[%s2935] sm:$0xf]
        %v2937 = vld [vmem:[%s2935 + $0x4] sm:$0xf]
        %v2938 = vld [vmem:[%s2935 + $0x8] sm:$0xf]
        %v2939 = vld [vmem:[%s2935 + $0xc] sm:$0xf]
        %v2940 = vld [vmem:[%s2935 + $0x10] sm:$0xf]
        %v2941 = vld [vmem:[%s2935 + $0x14] sm:$0xf]
        %v2942 = vld [vmem:[%s2935 + $0x18] sm:$0xf]
        %v2943 = vld [vmem:[%s2935 + $0x1c] sm:$0xf]
        %v2952 = vunpack.c.l.b16 %v2936
        %v2953 = vunpack.c.l.b16 %v2937
        %v2954 = vunpack.c.l.b16 %v2938
        %v2955 = vunpack.c.l.b16 %v2939
        %v2956 = vunpack.c.l.b16 %v2940
        %v2957 = vunpack.c.l.b16 %v2941
        %v2958 = vunpack.c.l.b16 %v2942
        %v2959 = vunpack.c.l.b16 %v2943
        %v2960 = vpack.c.b16 %v2953, %v2952
        %v2961 = vpack.c.b16 %v2955, %v2954
        %v2962 = vpack.c.b16 %v2957, %v2956
        %v2963 = vpack.c.b16 %v2959, %v2958
        %v2969 = vsel %vm2828, %v2934, 0
        %2971 = vmatprep.subr.bf16.mxu0 0
        %2972 = vmatpush1.bf16.msra.mxu0 %v2960
        %2973 = vmatprep.subr.bf16.mxu0 0
        %2974 = vmatpush1.bf16.msra.mxu0 %v2961
        %2975 = vmatprep.subr.bf16.mxu0 0
        %2976 = vmatpush1.bf16.msra.mxu0 %v2962
        %2977 = vmatprep.subr.bf16.mxu0 0
        %2978 = vmatpush1.bf16.msra.mxu0 %v2963
        %2979 = vmatprep.subr.bf16.mxu0 0
        %2980 = vmatpush1.bf16.msra.mxu0 0
        %2981 = vmatprep.subr.bf16.mxu0 0
        %2982 = vmatpush1.bf16.msra.mxu0 0
        %2983 = vmatprep.subr.bf16.mxu0 0
        %2984 = vmatpush1.bf16.msra.mxu0 0
        %2985 = vmatprep.subr.bf16.mxu0 0
        %2986 = vmatpush1.bf16.msra.mxu0 0
        %2987 = vmatprep.subr.bf16.mxu0 0
        %2988 = vmatpush1.bf16.msra.mxu0 0
        %2989 = vmatprep.subr.bf16.mxu0 0
        %2990 = vmatpush1.bf16.msra.mxu0 0
        %2991 = vmatprep.subr.bf16.mxu0 0
        %2992 = vmatpush1.bf16.msra.mxu0 0
        %2993 = vmatprep.subr.bf16.mxu0 0
        %2994 = vmatpush1.bf16.msra.mxu0 0
        %2995 = vmatprep.subr.bf16.mxu0 0
        %2996 = vmatpush1.bf16.msra.mxu0 0
        %2997 = vmatprep.subr.bf16.mxu0 0
        %2998 = vmatpush1.bf16.msra.mxu0 0
        %2999 = vmatprep.subr.bf16.mxu0 0
        %3000 = vmatpush1.bf16.msra.mxu0 0
        %3001 = vmatprep.subr.bf16.mxu0 0
        %3002 = vmatpush1.bf16.msra.mxu0 0
        %3003 = vmatprep.mubr.bf16.mxu0 0
        %3004 = vmatmul.mubr.bf16.gmra.mrb[0].mxu0 %v2969
        %v3005 = vpop.f32.mrb[0].mxu0
        %v3006 = vadd.f32 0.0, %v3005
        %v3007 = vpop.f32.mrb[0].mxu0
        %v3008 = vpop.f32.mrb[0].mxu0
        %v3009 = vadd.f32 0.0, %v3008
        %v3010 = vpop.f32.mrb[0].mxu0
        %3011 = vdwg.mxu0
        %v3020 = vunpack.c.l.b16 %v2874
        %v3021 = vunpack.c.l.b16 %v2875
        %v3022 = vunpack.c.l.b16 %v2876
        %v3023 = vunpack.c.l.b16 %v2877
        %v3024 = vunpack.c.l.b16 %v2878
        %v3025 = vunpack.c.l.b16 %v2879
        %v3026 = vunpack.c.l.b16 %v2880
        %v3027 = vunpack.c.l.b16 %v2881
        %v3028 = vpack.c.b16 %v3021, %v3020
        %v3029 = vpack.c.b16 %v3023, %v3022
        %v3030 = vpack.c.b16 %v3025, %v3024
        %v3031 = vpack.c.b16 %v3027, %v3026
        %v3037 = vsel %vm2828, %v2873, 0
        %3039 = vmatprep.subr.bf16.mxu0 0
        %3040 = vmatpush1.bf16.msra.mxu0 %v3028
        %3041 = vmatprep.subr.bf16.mxu0 0
        %3042 = vmatpush1.bf16.msra.mxu0 %v3029
        %3043 = vmatprep.subr.bf16.mxu0 0
        %3044 = vmatpush1.bf16.msra.mxu0 %v3030
        %3045 = vmatprep.subr.bf16.mxu0 0
        %3046 = vmatpush1.bf16.msra.mxu0 %v3031
        %3047 = vmatprep.subr.bf16.mxu0 0
        %3048 = vmatpush1.bf16.msra.mxu0 0
        %3049 = vmatprep.subr.bf16.mxu0 0
        %3050 = vmatpush1.bf16.msra.mxu0 0
        %3051 = vmatprep.subr.bf16.mxu0 0
        %3052 = vmatpush1.bf16.msra.mxu0 0
        %3053 = vmatprep.subr.bf16.mxu0 0
        %3054 = vmatpush1.bf16.msra.mxu0 0
        %3055 = vmatprep.subr.bf16.mxu0 0
        %3056 = vmatpush1.bf16.msra.mxu0 0
        %3057 = vmatprep.subr.bf16.mxu0 0
        %3058 = vmatpush1.bf16.msra.mxu0 0
        %3059 = vmatprep.subr.bf16.mxu0 0
        %3060 = vmatpush1.bf16.msra.mxu0 0
        %3061 = vmatprep.subr.bf16.mxu0 0
        %3062 = vmatpush1.bf16.msra.mxu0 0
        %3063 = vmatprep.subr.bf16.mxu0 0
        %3064 = vmatpush1.bf16.msra.mxu0 0
        %3065 = vmatprep.subr.bf16.mxu0 0
        %3066 = vmatpush1.bf16.msra.mxu0 0
        %3067 = vmatprep.subr.bf16.mxu0 0
        %3068 = vmatpush1.bf16.msra.mxu0 0
        %3069 = vmatprep.subr.bf16.mxu0 0
        %3070 = vmatpush1.bf16.msra.mxu0 0
        %3071 = vmatprep.mubr.bf16.mxu0 0
        %3072 = vmatmul.mubr.bf16.gmra.mrb[0].mxu0 %v3037
        %v3073 = vpop.f32.mrb[0].mxu0
        %v3074 = vadd.f32 %v3006, %v3073
        %v3075 = vpop.f32.mrb[0].mxu0
        %v3076 = vpop.f32.mrb[0].mxu0
        %v3077 = vadd.f32 %v3009, %v3076
        %v3078 = vpop.f32.mrb[0].mxu0
        %3079 = vdwg.mxu0
        %s3080 = scalar_lea.vmem %s6, 16
        %v3081 = vld [vmem:[%s3080] sm:$0xf]
        %v3082 = vld [vmem:[%s3080 + $0x4] sm:$0xf]
        %v3085 = vunpack.c.l.b16 %v3081
        %v3086 = vunpack.c.l.b16 %v3082
        %v3087 = vpack.c.b16 %v3086, %v3085
        %v3089 = vsel %vm2828, %v3087, 0
        %3091 = vmatprep.subr.bf16.mxu0 0
        %3092 = vmatpush1.bf16.msra.mxu0 %v2817
        %3093 = vmatprep.subr.bf16.mxu0 0
        %3094 = vmatpush1.bf16.msra.mxu0 %v2818
        %3095 = vmatprep.subr.bf16.mxu0 0
        %3096 = vmatpush1.bf16.msra.mxu0 %v2819
        %3097 = vmatprep.subr.bf16.mxu0 0
        %3098 = vmatpush1.bf16.msra.mxu0 %v2820
        %3099 = vmatprep.subr.bf16.mxu0 0
        %3100 = vmatpush1.bf16.msra.mxu0 0
        %3101 = vmatprep.subr.bf16.mxu0 0
        %3102 = vmatpush1.bf16.msra.mxu0 0
        %3103 = vmatprep.subr.bf16.mxu0 0
        %3104 = vmatpush1.bf16.msra.mxu0 0
        %3105 = vmatprep.subr.bf16.mxu0 0
        %3106 = vmatpush1.bf16.msra.mxu0 0
        %3107 = vmatprep.subr.bf16.mxu0 0
        %3108 = vmatpush1.bf16.msra.mxu0 0
        %3109 = vmatprep.subr.bf16.mxu0 0
        %3110 = vmatpush1.bf16.msra.mxu0 0
        %3111 = vmatprep.subr.bf16.mxu0 0
        %3112 = vmatpush1.bf16.msra.mxu0 0
        %3113 = vmatprep.subr.bf16.mxu0 0
        %3114 = vmatpush1.bf16.msra.mxu0 0
        %3115 = vmatprep.subr.bf16.mxu0 0
        %3116 = vmatpush1.bf16.msra.mxu0 0
        %3117 = vmatprep.subr.bf16.mxu0 0
        %3118 = vmatpush1.bf16.msra.mxu0 0
        %3119 = vmatprep.subr.bf16.mxu0 0
        %3120 = vmatpush1.bf16.msra.mxu0 0
        %3121 = vmatprep.subr.bf16.mxu0 0
        %3122 = vmatpush1.bf16.msra.mxu0 0
        %3123 = vmatprep.mubr.bf16.mxu0 0
        %3124 = vmatmul.mubr.bf16.gmra.mrb[0].mxu0 %v3089
        %v3125 = vpop.f32.mrb[0].mxu0
        %v3126 = vadd.f32 0.0, %v3125
        %v3127 = vpop.f32.mrb[0].mxu0
        %v3128 = vpop.f32.mrb[0].mxu0
        %v3129 = vadd.f32 0.0, %v3128
        %v3130 = vpop.f32.mrb[0].mxu0
        %3131 = vdwg.mxu0
        %v3132 = vpack.c.bf16 %v3129, %v3126
        %s3133 = scalar_lea.vmem %s7, 64
        %v3134 = vld [vmem:[%s3133] sm:$0xf]
        %v3135 = vld [vmem:[%s3133 + $0x4] sm:$0xf]
        %v3136 = vld [vmem:[%s3133 + $0x8] sm:$0xf]
        %v3137 = vld [vmem:[%s3133 + $0xc] sm:$0xf]
        %v3138 = vld [vmem:[%s3133 + $0x10] sm:$0xf]
        %v3139 = vld [vmem:[%s3133 + $0x14] sm:$0xf]
        %v3140 = vld [vmem:[%s3133 + $0x18] sm:$0xf]
        %v3141 = vld [vmem:[%s3133 + $0x1c] sm:$0xf]
        %v3150 = vunpack.c.l.b16 %v3134
        %v3151 = vunpack.c.l.b16 %v3135
        %v3152 = vunpack.c.l.b16 %v3136
        %v3153 = vunpack.c.l.b16 %v3137
        %v3154 = vunpack.c.l.b16 %v3138
        %v3155 = vunpack.c.l.b16 %v3139
        %v3156 = vunpack.c.l.b16 %v3140
        %v3157 = vunpack.c.l.b16 %v3141
        %v3158 = vpack.c.b16 %v3151, %v3150
        %v3159 = vpack.c.b16 %v3153, %v3152
        %v3160 = vpack.c.b16 %v3155, %v3154
        %v3161 = vpack.c.b16 %v3157, %v3156
        %v3167 = vsel %vm2828, %v3132, 0
        %3169 = vmatprep.subr.bf16.mxu0 0
        %3170 = vmatpush1.bf16.msra.mxu0 %v3158
        %3171 = vmatprep.subr.bf16.mxu0 0
        %3172 = vmatpush1.bf16.msra.mxu0 %v3159
        %3173 = vmatprep.subr.bf16.mxu0 0
        %3174 = vmatpush1.bf16.msra.mxu0 %v3160
        %3175 = vmatprep.subr.bf16.mxu0 0
        %3176 = vmatpush1.bf16.msra.mxu0 %v3161
        %3177 = vmatprep.subr.bf16.mxu0 0
        %3178 = vmatpush1.bf16.msra.mxu0 0
        %3179 = vmatprep.subr.bf16.mxu0 0
        %3180 = vmatpush1.bf16.msra.mxu0 0
        %3181 = vmatprep.subr.bf16.mxu0 0
        %3182 = vmatpush1.bf16.msra.mxu0 0
        %3183 = vmatprep.subr.bf16.mxu0 0
        %3184 = vmatpush1.bf16.msra.mxu0 0
        %3185 = vmatprep.subr.bf16.mxu0 0
        %3186 = vmatpush1.bf16.msra.mxu0 0
        %3187 = vmatprep.subr.bf16.mxu0 0
        %3188 = vmatpush1.bf16.msra.mxu0 0
        %3189 = vmatprep.subr.bf16.mxu0 0
        %3190 = vmatpush1.bf16.msra.mxu0 0
        %3191 = vmatprep.subr.bf16.mxu0 0
        %3192 = vmatpush1.bf16.msra.mxu0 0
        %3193 = vmatprep.subr.bf16.mxu0 0
        %3194 = vmatpush1.bf16.msra.mxu0 0
        %3195 = vmatprep.subr.bf16.mxu0 0
        %3196 = vmatpush1.bf16.msra.mxu0 0
        %3197 = vmatprep.subr.bf16.mxu0 0
        %3198 = vmatpush1.bf16.msra.mxu0 0
        %3199 = vmatprep.subr.bf16.mxu0 0
        %3200 = vmatpush1.bf16.msra.mxu0 0
        %3201 = vmatprep.mubr.bf16.mxu0 0
        %3202 = vmatmul.mubr.bf16.gmra.mrb[0].mxu0 %v3167
        %v3203 = vpop.f32.mrb[0].mxu0
        %v3204 = vadd.f32 0.0, %v3203
        %v3205 = vpop.f32.mrb[0].mxu0
        %v3206 = vpop.f32.mrb[0].mxu0
        %v3207 = vadd.f32 0.0, %v3206
        %v3208 = vpop.f32.mrb[0].mxu0
        %3209 = vdwg.mxu0
        %v3210 = vadd.f32 %v3074, %v3204
        %v3211 = vadd.f32 %v3077, %v3207
        %s3212 = scalar_lea.vmem %s6, 24
        %v3213 = vld [vmem:[%s3212] sm:$0xf]
        %v3214 = vld [vmem:[%s3212 + $0x4] sm:$0xf]
        %v3217 = vunpack.c.l.b16 %v3213
        %v3218 = vunpack.c.l.b16 %v3214
        %v3219 = vpack.c.b16 %v3218, %v3217
        %v3221 = vsel %vm2828, %v3219, 0
        %3223 = vmatprep.subr.bf16.mxu0 0
        %3224 = vmatpush1.bf16.msra.mxu0 %v2817
        %3225 = vmatprep.subr.bf16.mxu0 0
        %3226 = vmatpush1.bf16.msra.mxu0 %v2818
        %3227 = vmatprep.subr.bf16.mxu0 0
        %3228 = vmatpush1.bf16.msra.mxu0 %v2819
        %3229 = vmatprep.subr.bf16.mxu0 0
        %3230 = vmatpush1.bf16.msra.mxu0 %v2820
        %3231 = vmatprep.subr.bf16.mxu0 0
        %3232 = vmatpush1.bf16.msra.mxu0 0
        %3233 = vmatprep.subr.bf16.mxu0 0
        %3234 = vmatpush1.bf16.msra.mxu0 0
        %3235 = vmatprep.subr.bf16.mxu0 0
        %3236 = vmatpush1.bf16.msra.mxu0 0
        %3237 = vmatprep.subr.bf16.mxu0 0
        %3238 = vmatpush1.bf16.msra.mxu0 0
        %3239 = vmatprep.subr.bf16.mxu0 0
        %3240 = vmatpush1.bf16.msra.mxu0 0
        %3241 = vmatprep.subr.bf16.mxu0 0
        %3242 = vmatpush1.bf16.msra.mxu0 0
        %3243 = vmatprep.subr.bf16.mxu0 0
        %3244 = vmatpush1.bf16.msra.mxu0 0
        %3245 = vmatprep.subr.bf16.mxu0 0
        %3246 = vmatpush1.bf16.msra.mxu0 0
        %3247 = vmatprep.subr.bf16.mxu0 0
        %3248 = vmatpush1.bf16.msra.mxu0 0
        %3249 = vmatprep.subr.bf16.mxu0 0
        %3250 = vmatpush1.bf16.msra.mxu0 0
        %3251 = vmatprep.subr.bf16.mxu0 0
        %3252 = vmatpush1.bf16.msra.mxu0 0
        %3253 = vmatprep.subr.bf16.mxu0 0
        %3254 = vmatpush1.bf16.msra.mxu0 0
        %3255 = vmatprep.mubr.bf16.mxu0 0
        %3256 = vmatmul.mubr.bf16.gmra.mrb[0].mxu0 %v3221
        %v3257 = vpop.f32.mrb[0].mxu0
        %v3258 = vadd.f32 0.0, %v3257
        %v3259 = vpop.f32.mrb[0].mxu0
        %v3260 = vpop.f32.mrb[0].mxu0
        %v3261 = vadd.f32 0.0, %v3260
        %v3262 = vpop.f32.mrb[0].mxu0
        %3263 = vdwg.mxu0
        %v3264 = vpack.c.bf16 %v3261, %v3258
        %s3265 = scalar_lea.vmem %s7, 96
        %v3266 = vld [vmem:[%s3265] sm:$0xf]
        %v3267 = vld [vmem:[%s3265 + $0x4] sm:$0xf]
        %v3268 = vld [vmem:[%s3265 + $0x8] sm:$0xf]
        %v3269 = vld [vmem:[%s3265 + $0xc] sm:$0xf]
        %v3270 = vld [vmem:[%s3265 + $0x10] sm:$0xf]
        %v3271 = vld [vmem:[%s3265 + $0x14] sm:$0xf]
        %v3272 = vld [vmem:[%s3265 + $0x18] sm:$0xf]
        %v3273 = vld [vmem:[%s3265 + $0x1c] sm:$0xf]
        %v3282 = vunpack.c.l.b16 %v3266
        %v3283 = vunpack.c.l.b16 %v3267
        %v3284 = vunpack.c.l.b16 %v3268
        %v3285 = vunpack.c.l.b16 %v3269
        %v3286 = vunpack.c.l.b16 %v3270
        %v3287 = vunpack.c.l.b16 %v3271
        %v3288 = vunpack.c.l.b16 %v3272
        %v3289 = vunpack.c.l.b16 %v3273
        %v3290 = vpack.c.b16 %v3283, %v3282
        %v3291 = vpack.c.b16 %v3285, %v3284
        %v3292 = vpack.c.b16 %v3287, %v3286
        %v3293 = vpack.c.b16 %v3289, %v3288
        %v3299 = vsel %vm2828, %v3264, 0
        %3301 = vmatprep.subr.bf16.mxu0 0
        %3302 = vmatpush1.bf16.msra.mxu0 %v3290
        %3303 = vmatprep.subr.bf16.mxu0 0
        %3304 = vmatpush1.bf16.msra.mxu0 %v3291
        %3305 = vmatprep.subr.bf16.mxu0 0
        %3306 = vmatpush1.bf16.msra.mxu0 %v3292
        %3307 = vmatprep.subr.bf16.mxu0 0
        %3308 = vmatpush1.bf16.msra.mxu0 %v3293
        %3309 = vmatprep.subr.bf16.mxu0 0
        %3310 = vmatpush1.bf16.msra.mxu0 0
        %3311 = vmatprep.subr.bf16.mxu0 0
        %3312 = vmatpush1.bf16.msra.mxu0 0
        %3313 = vmatprep.subr.bf16.mxu0 0
        %3314 = vmatpush1.bf16.msra.mxu0 0
        %3315 = vmatprep.subr.bf16.mxu0 0
        %3316 = vmatpush1.bf16.msra.mxu0 0
        %3317 = vmatprep.subr.bf16.mxu0 0
        %3318 = vmatpush1.bf16.msra.mxu0 0
        %3319 = vmatprep.subr.bf16.mxu0 0
        %3320 = vmatpush1.bf16.msra.mxu0 0
        %3321 = vmatprep.subr.bf16.mxu0 0
        %3322 = vmatpush1.bf16.msra.mxu0 0
        %3323 = vmatprep.subr.bf16.mxu0 0
        %3324 = vmatpush1.bf16.msra.mxu0 0
        %3325 = vmatprep.subr.bf16.mxu0 0
        %3326 = vmatpush1.bf16.msra.mxu0 0
        %3327 = vmatprep.subr.bf16.mxu0 0
        %3328 = vmatpush1.bf16.msra.mxu0 0
        %3329 = vmatprep.subr.bf16.mxu0 0
        %3330 = vmatpush1.bf16.msra.mxu0 0
        %3331 = vmatprep.subr.bf16.mxu0 0
        %3332 = vmatpush1.bf16.msra.mxu0 0
        %3333 = vmatprep.mubr.bf16.mxu0 0
        %3334 = vmatmul.mubr.bf16.gmra.mrb[0].mxu0 %v3299
        %v3335 = vpop.f32.mrb[0].mxu0
        %v3336 = vadd.f32 0.0, %v3335
        %v3337 = vpop.f32.mrb[0].mxu0
        %v3338 = vpop.f32.mrb[0].mxu0
        %v3339 = vadd.f32 0.0, %v3338
        %v3340 = vpop.f32.mrb[0].mxu0
        %3341 = vdwg.mxu0
        %v3342 = vadd.f32 %v3210, %v3336
        %v3343 = vadd.f32 %v3211, %v3339
        %s3344 = scalar_lea.vmem %s6, 32
        %v3345 = vld [vmem:[%s3344] sm:$0xf]
        %v3346 = vld [vmem:[%s3344 + $0x4] sm:$0xf]
        %v3349 = vunpack.c.l.b16 %v3345
        %v3350 = vunpack.c.l.b16 %v3346
        %v3351 = vpack.c.b16 %v3350, %v3349
        %v3353 = vsel %vm2828, %v3351, 0
        %3355 = vmatprep.subr.bf16.mxu0 0
        %3356 = vmatpush1.bf16.msra.mxu0 %v2817
        %3357 = vmatprep.subr.bf16.mxu0 0
        %3358 = vmatpush1.bf16.msra.mxu0 %v2818
        %3359 = vmatprep.subr.bf16.mxu0 0
        %3360 = vmatpush1.bf16.msra.mxu0 %v2819
        %3361 = vmatprep.subr.bf16.mxu0 0
        %3362 = vmatpush1.bf16.msra.mxu0 %v2820
        %3363 = vmatprep.subr.bf16.mxu0 0
        %3364 = vmatpush1.bf16.msra.mxu0 0
        %3365 = vmatprep.subr.bf16.mxu0 0
        %3366 = vmatpush1.bf16.msra.mxu0 0
        %3367 = vmatprep.subr.bf16.mxu0 0
        %3368 = vmatpush1.bf16.msra.mxu0 0
        %3369 = vmatprep.subr.bf16.mxu0 0
        %3370 = vmatpush1.bf16.msra.mxu0 0
        %3371 = vmatprep.subr.bf16.mxu0 0
        %3372 = vmatpush1.bf16.msra.mxu0 0
        %3373 = vmatprep.subr.bf16.mxu0 0
        %3374 = vmatpush1.bf16.msra.mxu0 0
        %3375 = vmatprep.subr.bf16.mxu0 0
        %3376 = vmatpush1.bf16.msra.mxu0 0
        %3377 = vmatprep.subr.bf16.mxu0 0
        %3378 = vmatpush1.bf16.msra.mxu0 0
        %3379 = vmatprep.subr.bf16.mxu0 0
        %3380 = vmatpush1.bf16.msra.mxu0 0
        %3381 = vmatprep.subr.bf16.mxu0 0
        %3382 = vmatpush1.bf16.msra.mxu0 0
        %3383 = vmatprep.subr.bf16.mxu0 0
        %3384 = vmatpush1.bf16.msra.mxu0 0
        %3385 = vmatprep.subr.bf16.mxu0 0
        %3386 = vmatpush1.bf16.msra.mxu0 0
        %3387 = vmatprep.mubr.bf16.mxu0 0
        %3388 = vmatmul.mubr.bf16.gmra.mrb[0].mxu0 %v3353
        %v3389 = vpop.f32.mrb[0].mxu0
        %v3390 = vadd.f32 0.0, %v3389
        %v3391 = vpop.f32.mrb[0].mxu0
        %v3392 = vpop.f32.mrb[0].mxu0
        %v3393 = vadd.f32 0.0, %v3392
        %v3394 = vpop.f32.mrb[0].mxu0
        %3395 = vdwg.mxu0
        %v3396 = vpack.c.bf16 %v3393, %v3390
        %s3397 = scalar_lea.vmem %s7, 128
        %v3398 = vld [vmem:[%s3397] sm:$0xf]
        %v3399 = vld [vmem:[%s3397 + $0x4] sm:$0xf]
        %v3400 = vld [vmem:[%s3397 + $0x8] sm:$0xf]
        %v3401 = vld [vmem:[%s3397 + $0xc] sm:$0xf]
        %v3402 = vld [vmem:[%s3397 + $0x10] sm:$0xf]
        %v3403 = vld [vmem:[%s3397 + $0x14] sm:$0xf]
        %v3404 = vld [vmem:[%s3397 + $0x18] sm:$0xf]
        %v3405 = vld [vmem:[%s3397 + $0x1c] sm:$0xf]
        %v3414 = vunpack.c.l.b16 %v3398
        %v3415 = vunpack.c.l.b16 %v3399
        %v3416 = vunpack.c.l.b16 %v3400
        %v3417 = vunpack.c.l.b16 %v3401
        %v3418 = vunpack.c.l.b16 %v3402
        %v3419 = vunpack.c.l.b16 %v3403
        %v3420 = vunpack.c.l.b16 %v3404
        %v3421 = vunpack.c.l.b16 %v3405
        %v3422 = vpack.c.b16 %v3415, %v3414
        %v3423 = vpack.c.b16 %v3417, %v3416
        %v3424 = vpack.c.b16 %v3419, %v3418
        %v3425 = vpack.c.b16 %v3421, %v3420
        %v3431 = vsel %vm2828, %v3396, 0
        %3433 = vmatprep.subr.bf16.mxu0 0
        %3434 = vmatpush1.bf16.msra.mxu0 %v3422
        %3435 = vmatprep.subr.bf16.mxu0 0
        %3436 = vmatpush1.bf16.msra.mxu0 %v3423
        %3437 = vmatprep.subr.bf16.mxu0 0
        %3438 = vmatpush1.bf16.msra.mxu0 %v3424
        %3439 = vmatprep.subr.bf16.mxu0 0
        %3440 = vmatpush1.bf16.msra.mxu0 %v3425
        %3441 = vmatprep.subr.bf16.mxu0 0
        %3442 = vmatpush1.bf16.msra.mxu0 0
        %3443 = vmatprep.subr.bf16.mxu0 0
        %3444 = vmatpush1.bf16.msra.mxu0 0
        %3445 = vmatprep.subr.bf16.mxu0 0
        %3446 = vmatpush1.bf16.msra.mxu0 0
        %3447 = vmatprep.subr.bf16.mxu0 0
        %3448 = vmatpush1.bf16.msra.mxu0 0
        %3449 = vmatprep.subr.bf16.mxu0 0
        %3450 = vmatpush1.bf16.msra.mxu0 0
        %3451 = vmatprep.subr.bf16.mxu0 0
        %3452 = vmatpush1.bf16.msra.mxu0 0
        %3453 = vmatprep.subr.bf16.mxu0 0
        %3454 = vmatpush1.bf16.msra.mxu0 0
        %3455 = vmatprep.subr.bf16.mxu0 0
        %3456 = vmatpush1.bf16.msra.mxu0 0
        %3457 = vmatprep.subr.bf16.mxu0 0
        %3458 = vmatpush1.bf16.msra.mxu0 0
        %3459 = vmatprep.subr.bf16.mxu0 0
        %3460 = vmatpush1.bf16.msra.mxu0 0
        %3461 = vmatprep.subr.bf16.mxu0 0
        %3462 = vmatpush1.bf16.msra.mxu0 0
        %3463 = vmatprep.subr.bf16.mxu0 0
        %3464 = vmatpush1.bf16.msra.mxu0 0
        %3465 = vmatprep.mubr.bf16.mxu0 0
        %3466 = vmatmul.mubr.bf16.gmra.mrb[0].mxu0 %v3431
        %v3467 = vpop.f32.mrb[0].mxu0
        %v3468 = vadd.f32 0.0, %v3467
        %v3469 = vpop.f32.mrb[0].mxu0
        %v3470 = vpop.f32.mrb[0].mxu0
        %v3471 = vadd.f32 0.0, %v3470
        %v3472 = vpop.f32.mrb[0].mxu0
        %3473 = vdwg.mxu0
        %v3474 = vadd.f32 %v3342, %v3468
        %v3475 = vadd.f32 %v3343, %v3471
        %s3476 = scalar_lea.vmem %s6, 40
        %v3477 = vld [vmem:[%s3476] sm:$0xf]
        %v3478 = vld [vmem:[%s3476 + $0x4] sm:$0xf]
        %v3481 = vunpack.c.l.b16 %v3477
        %v3482 = vunpack.c.l.b16 %v3478
        %v3483 = vpack.c.b16 %v3482, %v3481
        %v3485 = vsel %vm2828, %v3483, 0
        %3487 = vmatprep.subr.bf16.mxu0 0
        %3488 = vmatpush1.bf16.msra.mxu0 %v2817
        %3489 = vmatprep.subr.bf16.mxu0 0
        %3490 = vmatpush1.bf16.msra.mxu0 %v2818
        %3491 = vmatprep.subr.bf16.mxu0 0
        %3492 = vmatpush1.bf16.msra.mxu0 %v2819
        %3493 = vmatprep.subr.bf16.mxu0 0
        %3494 = vmatpush1.bf16.msra.mxu0 %v2820
        %3495 = vmatprep.subr.bf16.mxu0 0
        %3496 = vmatpush1.bf16.msra.mxu0 0
        %3497 = vmatprep.subr.bf16.mxu0 0
        %3498 = vmatpush1.bf16.msra.mxu0 0
        %3499 = vmatprep.subr.bf16.mxu0 0
        %3500 = vmatpush1.bf16.msra.mxu0 0
        %3501 = vmatprep.subr.bf16.mxu0 0
        %3502 = vmatpush1.bf16.msra.mxu0 0
        %3503 = vmatprep.subr.bf16.mxu0 0
        %3504 = vmatpush1.bf16.msra.mxu0 0
        %3505 = vmatprep.subr.bf16.mxu0 0
        %3506 = vmatpush1.bf16.msra.mxu0 0
        %3507 = vmatprep.subr.bf16.mxu0 0
        %3508 = vmatpush1.bf16.msra.mxu0 0
        %3509 = vmatprep.subr.bf16.mxu0 0
        %3510 = vmatpush1.bf16.msra.mxu0 0
        %3511 = vmatprep.subr.bf16.mxu0 0
        %3512 = vmatpush1.bf16.msra.mxu0 0
        %3513 = vmatprep.subr.bf16.mxu0 0
        %3514 = vmatpush1.bf16.msra.mxu0 0
        %3515 = vmatprep.subr.bf16.mxu0 0
        %3516 = vmatpush1.bf16.msra.mxu0 0
        %3517 = vmatprep.subr.bf16.mxu0 0
        %3518 = vmatpush1.bf16.msra.mxu0 0
        %3519 = vmatprep.mubr.bf16.mxu0 0
        %3520 = vmatmul.mubr.bf16.gmra.mrb[0].mxu0 %v3485
        %v3521 = vpop.f32.mrb[0].mxu0
        %v3522 = vadd.f32 0.0, %v3521
        %v3523 = vpop.f32.mrb[0].mxu0
        %v3524 = vpop.f32.mrb[0].mxu0
        %v3525 = vadd.f32 0.0, %v3524
        %v3526 = vpop.f32.mrb[0].mxu0
        %3527 = vdwg.mxu0
        %v3528 = vpack.c.bf16 %v3525, %v3522
        %s3529 = scalar_lea.vmem %s7, 160
        %v3530 = vld [vmem:[%s3529] sm:$0xf]
        %v3531 = vld [vmem:[%s3529 + $0x4] sm:$0xf]
        %v3532 = vld [vmem:[%s3529 + $0x8] sm:$0xf]
        %v3533 = vld [vmem:[%s3529 + $0xc] sm:$0xf]
        %v3534 = vld [vmem:[%s3529 + $0x10] sm:$0xf]
        %v3535 = vld [vmem:[%s3529 + $0x14] sm:$0xf]
        %v3536 = vld [vmem:[%s3529 + $0x18] sm:$0xf]
        %v3537 = vld [vmem:[%s3529 + $0x1c] sm:$0xf]
        %v3546 = vunpack.c.l.b16 %v3530
        %v3547 = vunpack.c.l.b16 %v3531
        %v3548 = vunpack.c.l.b16 %v3532
        %v3549 = vunpack.c.l.b16 %v3533
        %v3550 = vunpack.c.l.b16 %v3534
        %v3551 = vunpack.c.l.b16 %v3535
        %v3552 = vunpack.c.l.b16 %v3536
        %v3553 = vunpack.c.l.b16 %v3537
        %v3554 = vpack.c.b16 %v3547, %v3546
        %v3555 = vpack.c.b16 %v3549, %v3548
        %v3556 = vpack.c.b16 %v3551, %v3550
        %v3557 = vpack.c.b16 %v3553, %v3552
        %v3563 = vsel %vm2828, %v3528, 0
        %3565 = vmatprep.subr.bf16.mxu0 0
        %3566 = vmatpush1.bf16.msra.mxu0 %v3554
        %3567 = vmatprep.subr.bf16.mxu0 0
        %3568 = vmatpush1.bf16.msra.mxu0 %v3555
        %3569 = vmatprep.subr.bf16.mxu0 0
        %3570 = vmatpush1.bf16.msra.mxu0 %v3556
        %3571 = vmatprep.subr.bf16.mxu0 0
        %3572 = vmatpush1.bf16.msra.mxu0 %v3557
        %3573 = vmatprep.subr.bf16.mxu0 0
        %3574 = vmatpush1.bf16.msra.mxu0 0
        %3575 = vmatprep.subr.bf16.mxu0 0
        %3576 = vmatpush1.bf16.msra.mxu0 0
        %3577 = vmatprep.subr.bf16.mxu0 0
        %3578 = vmatpush1.bf16.msra.mxu0 0
        %3579 = vmatprep.subr.bf16.mxu0 0
        %3580 = vmatpush1.bf16.msra.mxu0 0
        %3581 = vmatprep.subr.bf16.mxu0 0
        %3582 = vmatpush1.bf16.msra.mxu0 0
        %3583 = vmatprep.subr.bf16.mxu0 0
        %3584 = vmatpush1.bf16.msra.mxu0 0
        %3585 = vmatprep.subr.bf16.mxu0 0
        %3586 = vmatpush1.bf16.msra.mxu0 0
        %3587 = vmatprep.subr.bf16.mxu0 0
        %3588 = vmatpush1.bf16.msra.mxu0 0
        %3589 = vmatprep.subr.bf16.mxu0 0
        %3590 = vmatpush1.bf16.msra.mxu0 0
        %3591 = vmatprep.subr.bf16.mxu0 0
        %3592 = vmatpush1.bf16.msra.mxu0 0
        %3593 = vmatprep.subr.bf16.mxu0 0
        %3594 = vmatpush1.bf16.msra.mxu0 0
        %3595 = vmatprep.subr.bf16.mxu0 0
        %3596 = vmatpush1.bf16.msra.mxu0 0
        %3597 = vmatprep.mubr.bf16.mxu0 0
        %3598 = vmatmul.mubr.bf16.gmra.mrb[0].mxu0 %v3563
        %v3599 = vpop.f32.mrb[0].mxu0
        %v3600 = vadd.f32 0.0, %v3599
        %v3601 = vpop.f32.mrb[0].mxu0
        %v3602 = vpop.f32.mrb[0].mxu0
        %v3603 = vadd.f32 0.0, %v3602
        %v3604 = vpop.f32.mrb[0].mxu0
        %3605 = vdwg.mxu0
        %v3606 = vadd.f32 %v3474, %v3600
        %v3607 = vadd.f32 %v3475, %v3603
        %s3608 = scalar_lea.vmem %s6, 48
        %v3609 = vld [vmem:[%s3608] sm:$0xf]
        %v3610 = vld [vmem:[%s3608 + $0x4] sm:$0xf]
        %v3613 = vunpack.c.l.b16 %v3609
        %v3614 = vunpack.c.l.b16 %v3610
        %v3615 = vpack.c.b16 %v3614, %v3613
        %v3617 = vsel %vm2828, %v3615, 0
        %3619 = vmatprep.subr.bf16.mxu0 0
        %3620 = vmatpush1.bf16.msra.mxu0 %v2817
        %3621 = vmatprep.subr.bf16.mxu0 0
        %3622 = vmatpush1.bf16.msra.mxu0 %v2818
        %3623 = vmatprep.subr.bf16.mxu0 0
        %3624 = vmatpush1.bf16.msra.mxu0 %v2819
        %3625 = vmatprep.subr.bf16.mxu0 0
        %3626 = vmatpush1.bf16.msra.mxu0 %v2820
        %3627 = vmatprep.subr.bf16.mxu0 0
        %3628 = vmatpush1.bf16.msra.mxu0 0
        %3629 = vmatprep.subr.bf16.mxu0 0
        %3630 = vmatpush1.bf16.msra.mxu0 0
        %3631 = vmatprep.subr.bf16.mxu0 0
        %3632 = vmatpush1.bf16.msra.mxu0 0
        %3633 = vmatprep.subr.bf16.mxu0 0
        %3634 = vmatpush1.bf16.msra.mxu0 0
        %3635 = vmatprep.subr.bf16.mxu0 0
        %3636 = vmatpush1.bf16.msra.mxu0 0
        %3637 = vmatprep.subr.bf16.mxu0 0
        %3638 = vmatpush1.bf16.msra.mxu0 0
        %3639 = vmatprep.subr.bf16.mxu0 0
        %3640 = vmatpush1.bf16.msra.mxu0 0
        %3641 = vmatprep.subr.bf16.mxu0 0
        %3642 = vmatpush1.bf16.msra.mxu0 0
        %3643 = vmatprep.subr.bf16.mxu0 0
        %3644 = vmatpush1.bf16.msra.mxu0 0
        %3645 = vmatprep.subr.bf16.mxu0 0
        %3646 = vmatpush1.bf16.msra.mxu0 0
        %3647 = vmatprep.subr.bf16.mxu0 0
        %3648 = vmatpush1.bf16.msra.mxu0 0
        %3649 = vmatprep.subr.bf16.mxu0 0
        %3650 = vmatpush1.bf16.msra.mxu0 0
        %3651 = vmatprep.mubr.bf16.mxu0 0
        %3652 = vmatmul.mubr.bf16.gmra.mrb[0].mxu0 %v3617
        %v3653 = vpop.f32.mrb[0].mxu0
        %v3654 = vadd.f32 0.0, %v3653
        %v3655 = vpop.f32.mrb[0].mxu0
        %v3656 = vpop.f32.mrb[0].mxu0
        %v3657 = vadd.f32 0.0, %v3656
        %v3658 = vpop.f32.mrb[0].mxu0
        %3659 = vdwg.mxu0
        %v3660 = vpack.c.bf16 %v3657, %v3654
        %s3661 = scalar_lea.vmem %s7, 192
        %v3662 = vld [vmem:[%s3661] sm:$0xf]
        %v3663 = vld [vmem:[%s3661 + $0x4] sm:$0xf]
        %v3664 = vld [vmem:[%s3661 + $0x8] sm:$0xf]
        %v3665 = vld [vmem:[%s3661 + $0xc] sm:$0xf]
        %v3666 = vld [vmem:[%s3661 + $0x10] sm:$0xf]
        %v3667 = vld [vmem:[%s3661 + $0x14] sm:$0xf]
        %v3668 = vld [vmem:[%s3661 + $0x18] sm:$0xf]
        %v3669 = vld [vmem:[%s3661 + $0x1c] sm:$0xf]
        %v3678 = vunpack.c.l.b16 %v3662
        %v3679 = vunpack.c.l.b16 %v3663
        %v3680 = vunpack.c.l.b16 %v3664
        %v3681 = vunpack.c.l.b16 %v3665
        %v3682 = vunpack.c.l.b16 %v3666
        %v3683 = vunpack.c.l.b16 %v3667
        %v3684 = vunpack.c.l.b16 %v3668
        %v3685 = vunpack.c.l.b16 %v3669
        %v3686 = vpack.c.b16 %v3679, %v3678
        %v3687 = vpack.c.b16 %v3681, %v3680
        %v3688 = vpack.c.b16 %v3683, %v3682
        %v3689 = vpack.c.b16 %v3685, %v3684
        %v3695 = vsel %vm2828, %v3660, 0
        %3697 = vmatprep.subr.bf16.mxu0 0
        %3698 = vmatpush1.bf16.msra.mxu0 %v3686
        %3699 = vmatprep.subr.bf16.mxu0 0
        %3700 = vmatpush1.bf16.msra.mxu0 %v3687
        %3701 = vmatprep.subr.bf16.mxu0 0
        %3702 = vmatpush1.bf16.msra.mxu0 %v3688
        %3703 = vmatprep.subr.bf16.mxu0 0
        %3704 = vmatpush1.bf16.msra.mxu0 %v3689
        %3705 = vmatprep.subr.bf16.mxu0 0
        %3706 = vmatpush1.bf16.msra.mxu0 0
        %3707 = vmatprep.subr.bf16.mxu0 0
        %3708 = vmatpush1.bf16.msra.mxu0 0
        %3709 = vmatprep.subr.bf16.mxu0 0
        %3710 = vmatpush1.bf16.msra.mxu0 0
        %3711 = vmatprep.subr.bf16.mxu0 0
        %3712 = vmatpush1.bf16.msra.mxu0 0
        %3713 = vmatprep.subr.bf16.mxu0 0
        %3714 = vmatpush1.bf16.msra.mxu0 0
        %3715 = vmatprep.subr.bf16.mxu0 0
        %3716 = vmatpush1.bf16.msra.mxu0 0
        %3717 = vmatprep.subr.bf16.mxu0 0
        %3718 = vmatpush1.bf16.msra.mxu0 0
        %3719 = vmatprep.subr.bf16.mxu0 0
        %3720 = vmatpush1.bf16.msra.mxu0 0
        %3721 = vmatprep.subr.bf16.mxu0 0
        %3722 = vmatpush1.bf16.msra.mxu0 0
        %3723 = vmatprep.subr.bf16.mxu0 0
        %3724 = vmatpush1.bf16.msra.mxu0 0
        %3725 = vmatprep.subr.bf16.mxu0 0
        %3726 = vmatpush1.bf16.msra.mxu0 0
        %3727 = vmatprep.subr.bf16.mxu0 0
        %3728 = vmatpush1.bf16.msra.mxu0 0
        %3729 = vmatprep.mubr.bf16.mxu0 0
        %3730 = vmatmul.mubr.bf16.gmra.mrb[0].mxu0 %v3695
        %v3731 = vpop.f32.mrb[0].mxu0
        %v3732 = vadd.f32 0.0, %v3731
        %v3733 = vpop.f32.mrb[0].mxu0
        %v3734 = vpop.f32.mrb[0].mxu0
        %v3735 = vadd.f32 0.0, %v3734
        %v3736 = vpop.f32.mrb[0].mxu0
        %3737 = vdwg.mxu0
        %v3738 = vadd.f32 %v3606, %v3732
        %v3739 = vadd.f32 %v3607, %v3735
        %s3740 = scalar_lea.vmem %s6, 56
        %v3741 = vld [vmem:[%s3740] sm:$0xf]
        %v3742 = vld [vmem:[%s3740 + $0x4] sm:$0xf]
        %v3745 = vunpack.c.l.b16 %v3741
        %v3746 = vunpack.c.l.b16 %v3742
        %v3747 = vpack.c.b16 %v3746, %v3745
        %v3749 = vsel %vm2828, %v3747, 0
        %3751 = vmatprep.subr.bf16.mxu0 0
        %3752 = vmatpush1.bf16.msra.mxu0 %v2817
        %3753 = vmatprep.subr.bf16.mxu0 0
        %3754 = vmatpush1.bf16.msra.mxu0 %v2818
        %3755 = vmatprep.subr.bf16.mxu0 0
        %3756 = vmatpush1.bf16.msra.mxu0 %v2819
        %3757 = vmatprep.subr.bf16.mxu0 0
        %3758 = vmatpush1.bf16.msra.mxu0 %v2820
        %3759 = vmatprep.subr.bf16.mxu0 0
        %3760 = vmatpush1.bf16.msra.mxu0 0
        %3761 = vmatprep.subr.bf16.mxu0 0
        %3762 = vmatpush1.bf16.msra.mxu0 0
        %3763 = vmatprep.subr.bf16.mxu0 0
        %3764 = vmatpush1.bf16.msra.mxu0 0
        %3765 = vmatprep.subr.bf16.mxu0 0
        %3766 = vmatpush1.bf16.msra.mxu0 0
        %3767 = vmatprep.subr.bf16.mxu0 0
        %3768 = vmatpush1.bf16.msra.mxu0 0
        %3769 = vmatprep.subr.bf16.mxu0 0
        %3770 = vmatpush1.bf16.msra.mxu0 0
        %3771 = vmatprep.subr.bf16.mxu0 0
        %3772 = vmatpush1.bf16.msra.mxu0 0
        %3773 = vmatprep.subr.bf16.mxu0 0
        %3774 = vmatpush1.bf16.msra.mxu0 0
        %3775 = vmatprep.subr.bf16.mxu0 0
        %3776 = vmatpush1.bf16.msra.mxu0 0
        %3777 = vmatprep.subr.bf16.mxu0 0
        %3778 = vmatpush1.bf16.msra.mxu0 0
        %3779 = vmatprep.subr.bf16.mxu0 0
        %3780 = vmatpush1.bf16.msra.mxu0 0
        %3781 = vmatprep.subr.bf16.mxu0 0
        %3782 = vmatpush1.bf16.msra.mxu0 0
        %3783 = vmatprep.mubr.bf16.mxu0 0
        %3784 = vmatmul.mubr.bf16.gmra.mrb[0].mxu0 %v3749
        %v3785 = vpop.f32.mrb[0].mxu0
        %v3786 = vadd.f32 0.0, %v3785
        %v3787 = vpop.f32.mrb[0].mxu0
        %v3788 = vpop.f32.mrb[0].mxu0
        %v3789 = vadd.f32 0.0, %v3788
        %v3790 = vpop.f32.mrb[0].mxu0
        %3791 = vdwg.mxu0
        %v3792 = vpack.c.bf16 %v3789, %v3786
        %s3793 = scalar_lea.vmem %s7, 224
        %v3794 = vld [vmem:[%s3793] sm:$0xf]
        %v3795 = vld [vmem:[%s3793 + $0x4] sm:$0xf]
        %v3796 = vld [vmem:[%s3793 + $0x8] sm:$0xf]
        %v3797 = vld [vmem:[%s3793 + $0xc] sm:$0xf]
        %v3798 = vld [vmem:[%s3793 + $0x10] sm:$0xf]
        %v3799 = vld [vmem:[%s3793 + $0x14] sm:$0xf]
        %v3800 = vld [vmem:[%s3793 + $0x18] sm:$0xf]
        %v3801 = vld [vmem:[%s3793 + $0x1c] sm:$0xf]
        %v3810 = vunpack.c.l.b16 %v3794
        %v3811 = vunpack.c.l.b16 %v3795
        %v3812 = vunpack.c.l.b16 %v3796
        %v3813 = vunpack.c.l.b16 %v3797
        %v3814 = vunpack.c.l.b16 %v3798
        %v3815 = vunpack.c.l.b16 %v3799
        %v3816 = vunpack.c.l.b16 %v3800
        %v3817 = vunpack.c.l.b16 %v3801
        %v3818 = vpack.c.b16 %v3811, %v3810
        %v3819 = vpack.c.b16 %v3813, %v3812
        %v3820 = vpack.c.b16 %v3815, %v3814
        %v3821 = vpack.c.b16 %v3817, %v3816
        %v3827 = vsel %vm2828, %v3792, 0
        %3829 = vmatprep.subr.bf16.mxu0 0
        %3830 = vmatpush1.bf16.msra.mxu0 %v3818
        %3831 = vmatprep.subr.bf16.mxu0 0
        %3832 = vmatpush1.bf16.msra.mxu0 %v3819
        %3833 = vmatprep.subr.bf16.mxu0 0
        %3834 = vmatpush1.bf16.msra.mxu0 %v3820
        %3835 = vmatprep.subr.bf16.mxu0 0
        %3836 = vmatpush1.bf16.msra.mxu0 %v3821
        %3837 = vmatprep.subr.bf16.mxu0 0
        %3838 = vmatpush1.bf16.msra.mxu0 0
        %3839 = vmatprep.subr.bf16.mxu0 0
        %3840 = vmatpush1.bf16.msra.mxu0 0
        %3841 = vmatprep.subr.bf16.mxu0 0
        %3842 = vmatpush1.bf16.msra.mxu0 0
        %3843 = vmatprep.subr.bf16.mxu0 0
        %3844 = vmatpush1.bf16.msra.mxu0 0
        %3845 = vmatprep.subr.bf16.mxu0 0
        %3846 = vmatpush1.bf16.msra.mxu0 0
        %3847 = vmatprep.subr.bf16.mxu0 0
        %3848 = vmatpush1.bf16.msra.mxu0 0
        %3849 = vmatprep.subr.bf16.mxu0 0
        %3850 = vmatpush1.bf16.msra.mxu0 0
        %3851 = vmatprep.subr.bf16.mxu0 0
        %3852 = vmatpush1.bf16.msra.mxu0 0
        %3853 = vmatprep.subr.bf16.mxu0 0
        %3854 = vmatpush1.bf16.msra.mxu0 0
        %3855 = vmatprep.subr.bf16.mxu0 0
        %3856 = vmatpush1.bf16.msra.mxu0 0
        %3857 = vmatprep.subr.bf16.mxu0 0
        %3858 = vmatpush1.bf16.msra.mxu0 0
        %3859 = vmatprep.subr.bf16.mxu0 0
        %3860 = vmatpush1.bf16.msra.mxu0 0
        %3861 = vmatprep.mubr.bf16.mxu0 0
        %3862 = vmatmul.mubr.bf16.gmra.mrb[0].mxu0 %v3827
        %v3863 = vpop.f32.mrb[0].mxu0
        %v3864 = vadd.f32 0.0, %v3863
        %v3865 = vpop.f32.mrb[0].mxu0
        %v3866 = vpop.f32.mrb[0].mxu0
        %v3867 = vadd.f32 0.0, %v3866
        %v3868 = vpop.f32.mrb[0].mxu0
        %3869 = vdwg.mxu0
        %v3870 = vadd.f32 %v3738, %v3864
        %v3871 = vadd.f32 %v3739, %v3867
        %s3872 = scalar_lea.vmem %s6, 64
        %v3873 = vld [vmem:[%s3872] sm:$0xf]
        %v3874 = vld [vmem:[%s3872 + $0x4] sm:$0xf]
        %v3877 = vunpack.c.l.b16 %v3873
        %v3878 = vunpack.c.l.b16 %v3874
        %v3879 = vpack.c.b16 %v3878, %v3877
        %v3881 = vsel %vm2828, %v3879, 0
        %3883 = vmatprep.subr.bf16.mxu0 0
        %3884 = vmatpush1.bf16.msra.mxu0 %v2817
        %3885 = vmatprep.subr.bf16.mxu0 0
        %3886 = vmatpush1.bf16.msra.mxu0 %v2818
        %3887 = vmatprep.subr.bf16.mxu0 0
        %3888 = vmatpush1.bf16.msra.mxu0 %v2819
        %3889 = vmatprep.subr.bf16.mxu0 0
        %3890 = vmatpush1.bf16.msra.mxu0 %v2820
        %3891 = vmatprep.subr.bf16.mxu0 0
        %3892 = vmatpush1.bf16.msra.mxu0 0
        %3893 = vmatprep.subr.bf16.mxu0 0
        %3894 = vmatpush1.bf16.msra.mxu0 0
        %3895 = vmatprep.subr.bf16.mxu0 0
        %3896 = vmatpush1.bf16.msra.mxu0 0
        %3897 = vmatprep.subr.bf16.mxu0 0
        %3898 = vmatpush1.bf16.msra.mxu0 0
        %3899 = vmatprep.subr.bf16.mxu0 0
        %3900 = vmatpush1.bf16.msra.mxu0 0
        %3901 = vmatprep.subr.bf16.mxu0 0
        %3902 = vmatpush1.bf16.msra.mxu0 0
        %3903 = vmatprep.subr.bf16.mxu0 0
        %3904 = vmatpush1.bf16.msra.mxu0 0
        %3905 = vmatprep.subr.bf16.mxu0 0
        %3906 = vmatpush1.bf16.msra.mxu0 0
        %3907 = vmatprep.subr.bf16.mxu0 0
        %3908 = vmatpush1.bf16.msra.mxu0 0
        %3909 = vmatprep.subr.bf16.mxu0 0
        %3910 = vmatpush1.bf16.msra.mxu0 0
        %3911 = vmatprep.subr.bf16.mxu0 0
        %3912 = vmatpush1.bf16.msra.mxu0 0
        %3913 = vmatprep.subr.bf16.mxu0 0
        %3914 = vmatpush1.bf16.msra.mxu0 0
        %3915 = vmatprep.mubr.bf16.mxu0 0
        %3916 = vmatmul.mubr.bf16.gmra.mrb[0].mxu0 %v3881
        %v3917 = vpop.f32.mrb[0].mxu0
        %v3918 = vadd.f32 0.0, %v3917
        %v3919 = vpop.f32.mrb[0].mxu0
        %v3920 = vpop.f32.mrb[0].mxu0
        %v3921 = vadd.f32 0.0, %v3920
        %v3922 = vpop.f32.mrb[0].mxu0
        %3923 = vdwg.mxu0
        %v3924 = vpack.c.bf16 %v3921, %v3918
        %s3925 = scalar_lea.vmem %s7, 256
        %v3926 = vld [vmem:[%s3925] sm:$0xf]
        %v3927 = vld [vmem:[%s3925 + $0x4] sm:$0xf]
        %v3928 = vld [vmem:[%s3925 + $0x8] sm:$0xf]
        %v3929 = vld [vmem:[%s3925 + $0xc] sm:$0xf]
        %v3930 = vld [vmem:[%s3925 + $0x10] sm:$0xf]
        %v3931 = vld [vmem:[%s3925 + $0x14] sm:$0xf]
        %v3932 = vld [vmem:[%s3925 + $0x18] sm:$0xf]
        %v3933 = vld [vmem:[%s3925 + $0x1c] sm:$0xf]
        %v3942 = vunpack.c.l.b16 %v3926
        %v3943 = vunpack.c.l.b16 %v3927
        %v3944 = vunpack.c.l.b16 %v3928
        %v3945 = vunpack.c.l.b16 %v3929
        %v3946 = vunpack.c.l.b16 %v3930
        %v3947 = vunpack.c.l.b16 %v3931
        %v3948 = vunpack.c.l.b16 %v3932
        %v3949 = vunpack.c.l.b16 %v3933
        %v3950 = vpack.c.b16 %v3943, %v3942
        %v3951 = vpack.c.b16 %v3945, %v3944
        %v3952 = vpack.c.b16 %v3947, %v3946
        %v3953 = vpack.c.b16 %v3949, %v3948
        %v3959 = vsel %vm2828, %v3924, 0
        %3961 = vmatprep.subr.bf16.mxu0 0
        %3962 = vmatpush1.bf16.msra.mxu0 %v3950
        %3963 = vmatprep.subr.bf16.mxu0 0
        %3964 = vmatpush1.bf16.msra.mxu0 %v3951
        %3965 = vmatprep.subr.bf16.mxu0 0
        %3966 = vmatpush1.bf16.msra.mxu0 %v3952
        %3967 = vmatprep.subr.bf16.mxu0 0
        %3968 = vmatpush1.bf16.msra.mxu0 %v3953
        %3969 = vmatprep.subr.bf16.mxu0 0
        %3970 = vmatpush1.bf16.msra.mxu0 0
        %3971 = vmatprep.subr.bf16.mxu0 0
        %3972 = vmatpush1.bf16.msra.mxu0 0
        %3973 = vmatprep.subr.bf16.mxu0 0
        %3974 = vmatpush1.bf16.msra.mxu0 0
        %3975 = vmatprep.subr.bf16.mxu0 0
        %3976 = vmatpush1.bf16.msra.mxu0 0
        %3977 = vmatprep.subr.bf16.mxu0 0
        %3978 = vmatpush1.bf16.msra.mxu0 0
        %3979 = vmatprep.subr.bf16.mxu0 0
        %3980 = vmatpush1.bf16.msra.mxu0 0
        %3981 = vmatprep.subr.bf16.mxu0 0
        %3982 = vmatpush1.bf16.msra.mxu0 0
        %3983 = vmatprep.subr.bf16.mxu0 0
        %3984 = vmatpush1.bf16.msra.mxu0 0
        %3985 = vmatprep.subr.bf16.mxu0 0
        %3986 = vmatpush1.bf16.msra.mxu0 0
        %3987 = vmatprep.subr.bf16.mxu0 0
        %3988 = vmatpush1.bf16.msra.mxu0 0
        %3989 = vmatprep.subr.bf16.mxu0 0
        %3990 = vmatpush1.bf16.msra.mxu0 0
        %3991 = vmatprep.subr.bf16.mxu0 0
        %3992 = vmatpush1.bf16.msra.mxu0 0
        %3993 = vmatprep.mubr.bf16.mxu0 0
        %3994 = vmatmul.mubr.bf16.gmra.mrb[0].mxu0 %v3959
        %v3995 = vpop.f32.mrb[0].mxu0
        %v3996 = vadd.f32 0.0, %v3995
        %v3997 = vpop.f32.mrb[0].mxu0
        %v3998 = vpop.f32.mrb[0].mxu0
        %v3999 = vadd.f32 0.0, %v3998
        %v4000 = vpop.f32.mrb[0].mxu0
        %4001 = vdwg.mxu0
        %v4002 = vadd.f32 %v3870, %v3996
        %v4003 = vadd.f32 %v3871, %v3999
        %v4004 = vld [vmem:[#allocation7] sm:$0x1]
        %v4006 = vlaneseq
        %v4007 = vshrl.u32 %v4006, 7
        %v4008 = vsub.s32 0, %v4007
        %v4009 = vrot.slane %v4004, %v4008
        %v4011 = vadd.f32 %v4002, %v4009
        %v4012 = vadd.f32 %v4003, %v4009
        %v4013 = vmax.f32 %v4011, 0.0
        %v4014 = vmax.f32 %v4012, 0.0
        %v4015 = vpack.c.bf16 %v4014, %v4013
        %v4016 = vld [vmem:[%s9] sm:$0x3]
        %vm4017 = vcmask 130048
        %v4019 = vsel %vm4017, %v4016, 0
        %4021 = vmatprep.subr.bf16.mxu0 0
        %4022 = vmatpush1.bf16.msra.mxu0 %v4015
        %4023 = vmatprep.subr.bf16.mxu0 0
        %4024 = vmatpush1.bf16.msra.mxu0 0
        %4025 = vmatprep.subr.bf16.mxu0 0
        %4026 = vmatpush1.bf16.msra.mxu0 0
        %4027 = vmatprep.subr.bf16.mxu0 0
        %4028 = vmatpush1.bf16.msra.mxu0 0
        %4029 = vmatprep.subr.bf16.mxu0 0
        %4030 = vmatpush1.bf16.msra.mxu0 0
        %4031 = vmatprep.subr.bf16.mxu0 0
        %4032 = vmatpush1.bf16.msra.mxu0 0
        %4033 = vmatprep.subr.bf16.mxu0 0
        %4034 = vmatpush1.bf16.msra.mxu0 0
        %4035 = vmatprep.subr.bf16.mxu0 0
        %4036 = vmatpush1.bf16.msra.mxu0 0
        %4037 = vmatprep.subr.bf16.mxu0 0
        %4038 = vmatpush1.bf16.msra.mxu0 0
        %4039 = vmatprep.subr.bf16.mxu0 0
        %4040 = vmatpush1.bf16.msra.mxu0 0
        %4041 = vmatprep.subr.bf16.mxu0 0
        %4042 = vmatpush1.bf16.msra.mxu0 0
        %4043 = vmatprep.subr.bf16.mxu0 0
        %4044 = vmatpush1.bf16.msra.mxu0 0
        %4045 = vmatprep.subr.bf16.mxu0 0
        %4046 = vmatpush1.bf16.msra.mxu0 0
        %4047 = vmatprep.subr.bf16.mxu0 0
        %4048 = vmatpush1.bf16.msra.mxu0 0
        %4049 = vmatprep.subr.bf16.mxu0 0
        %4050 = vmatpush1.bf16.msra.mxu0 0
        %4051 = vmatprep.subr.bf16.mxu0 0
        %4052 = vmatpush1.bf16.msra.mxu0 0
        %4053 = vmatprep.mubr.bf16.mxu0 0
        %4054 = vmatmul.mubr.bf16.gmra.mrb[0].mxu0 %v4019
        %v4055 = vpop.f32.mrb[0].mxu0
        %v4056 = vadd.f32 0.0, %v4055
        %v4057 = vpop.f32.mrb[0].mxu0
        %v4058 = vpop.f32.mrb[0].mxu0
        %v4059 = vpop.f32.mrb[0].mxu0
        %4060 = vdwg.mxu0
        %v4061 = vpack.c.bf16 %v4056, %v4056
        %v4062 = vld [vmem:[%s10] sm:$0xff]
        %v4063 = vld [vmem:[%s10 + $0x8] sm:$0xff]
        %v4064 = vld [vmem:[%s10 + $0x10] sm:$0xff]
        %v4065 = vld [vmem:[%s10 + $0x18] sm:$0xff]
        %v4066 = vld [vmem:[%s10 + $0x20] sm:$0xff]
        %v4067 = vld [vmem:[%s10 + $0x28] sm:$0xff]
        %v4068 = vld [vmem:[%s10 + $0x30] sm:$0xff]
        %v4069 = vld [vmem:[%s10 + $0x38] sm:$0xff]
        %v4070 = vld [vmem:[%s10 + $0x40] sm:$0xff]
        %v4071 = vld [vmem:[%s10 + $0x48] sm:$0xff]
        %v4072 = vld [vmem:[%s10 + $0x50] sm:$0xff]
        %v4073 = vld [vmem:[%s10 + $0x58] sm:$0xff]
        %v4074 = vld [vmem:[%s10 + $0x60] sm:$0xff]
        %v4075 = vld [vmem:[%s10 + $0x68] sm:$0xff]
        %v4076 = vld [vmem:[%s10 + $0x70] sm:$0xff]
        %v4077 = vld [vmem:[%s10 + $0x78] sm:$0xff]
        %s4078 = scalar_lea.vmem %s9, 2
        %v4079 = vld [vmem:[%s4078] sm:$0x3]
        %v4081 = vsel %vm4017, %v4079, 0
        %4083 = vmatprep.subr.bf16.mxu0 0
        %4084 = vmatpush1.bf16.msra.mxu0 %v4015
        %4085 = vmatprep.subr.bf16.mxu0 0
        %4086 = vmatpush1.bf16.msra.mxu0 0
        %4087 = vmatprep.subr.bf16.mxu0 0
        %4088 = vmatpush1.bf16.msra.mxu0 0
        %4089 = vmatprep.subr.bf16.mxu0 0
        %4090 = vmatpush1.bf16.msra.mxu0 0
        %4091 = vmatprep.subr.bf16.mxu0 0
        %4092 = vmatpush1.bf16.msra.mxu0 0
        %4093 = vmatprep.subr.bf16.mxu0 0
        %4094 = vmatpush1.bf16.msra.mxu0 0
        %4095 = vmatprep.subr.bf16.mxu0 0
        %4096 = vmatpush1.bf16.msra.mxu0 0
        %4097 = vmatprep.subr.bf16.mxu0 0
        %4098 = vmatpush1.bf16.msra.mxu0 0
        %4099 = vmatprep.subr.bf16.mxu0 0
        %4100 = vmatpush1.bf16.msra.mxu0 0
        %4101 = vmatprep.subr.bf16.mxu0 0
        %4102 = vmatpush1.bf16.msra.mxu0 0
        %4103 = vmatprep.subr.bf16.mxu0 0
        %4104 = vmatpush1.bf16.msra.mxu0 0
        %4105 = vmatprep.subr.bf16.mxu0 0
        %4106 = vmatpush1.bf16.msra.mxu0 0
        %4107 = vmatprep.subr.bf16.mxu0 0
        %4108 = vmatpush1.bf16.msra.mxu0 0
        %4109 = vmatprep.subr.bf16.mxu0 0
        %4110 = vmatpush1.bf16.msra.mxu0 0
        %4111 = vmatprep.subr.bf16.mxu0 0
        %4112 = vmatpush1.bf16.msra.mxu0 0
        %4113 = vmatprep.subr.bf16.mxu0 0
        %4114 = vmatpush1.bf16.msra.mxu0 0
        %4115 = vmatprep.mubr.bf16.mxu0 0
        %4116 = vmatmul.mubr.bf16.gmra.mrb[0].mxu0 %v4081
        %v4117 = vpop.f32.mrb[0].mxu0
        %v4118 = vadd.f32 0.0, %v4117
        %v4119 = vpop.f32.mrb[0].mxu0
        %v4120 = vpop.f32.mrb[0].mxu0
        %v4121 = vpop.f32.mrb[0].mxu0
        %4122 = vdwg.mxu0
        %v4123 = vpack.c.bf16 %v4118, %v4118
        %s4124 = scalar_lea.vmem %s10, 128
        %v4125 = vld [vmem:[%s4124] sm:$0xff]
        %v4126 = vld [vmem:[%s4124 + $0x8] sm:$0xff]
        %v4127 = vld [vmem:[%s4124 + $0x10] sm:$0xff]
        %v4128 = vld [vmem:[%s4124 + $0x18] sm:$0xff]
        %v4129 = vld [vmem:[%s4124 + $0x20] sm:$0xff]
        %v4130 = vld [vmem:[%s4124 + $0x28] sm:$0xff]
        %v4131 = vld [vmem:[%s4124 + $0x30] sm:$0xff]
        %v4132 = vld [vmem:[%s4124 + $0x38] sm:$0xff]
        %v4133 = vld [vmem:[%s4124 + $0x40] sm:$0xff]
        %v4134 = vld [vmem:[%s4124 + $0x48] sm:$0xff]
        %v4135 = vld [vmem:[%s4124 + $0x50] sm:$0xff]
        %v4136 = vld [vmem:[%s4124 + $0x58] sm:$0xff]
        %v4137 = vld [vmem:[%s4124 + $0x60] sm:$0xff]
        %v4138 = vld [vmem:[%s4124 + $0x68] sm:$0xff]
        %v4139 = vld [vmem:[%s4124 + $0x70] sm:$0xff]
        %v4140 = vld [vmem:[%s4124 + $0x78] sm:$0xff]
        %v4157 = vunpack.c.l.b16 %v4125
        %v4158 = vunpack.c.h.b16 %v4125
        %v4159 = vunpack.c.l.b16 %v4126
        %v4160 = vunpack.c.h.b16 %v4126
        %v4161 = vunpack.c.l.b16 %v4127
        %v4162 = vunpack.c.h.b16 %v4127
        %v4163 = vunpack.c.l.b16 %v4128
        %v4164 = vunpack.c.h.b16 %v4128
        %v4165 = vunpack.c.l.b16 %v4129
        %v4166 = vunpack.c.h.b16 %v4129
        %v4167 = vunpack.c.l.b16 %v4130
        %v4168 = vunpack.c.h.b16 %v4130
        %v4169 = vunpack.c.l.b16 %v4131
        %v4170 = vunpack.c.h.b16 %v4131
        %v4171 = vunpack.c.l.b16 %v4132
        %v4172 = vunpack.c.h.b16 %v4132
        %v4173 = vunpack.c.l.b16 %v4133
        %v4174 = vunpack.c.h.b16 %v4133
        %v4175 = vunpack.c.l.b16 %v4134
        %v4176 = vunpack.c.h.b16 %v4134
        %v4177 = vunpack.c.l.b16 %v4135
        %v4178 = vunpack.c.h.b16 %v4135
        %v4179 = vunpack.c.l.b16 %v4136
        %v4180 = vunpack.c.h.b16 %v4136
        %v4181 = vunpack.c.l.b16 %v4137
        %v4182 = vunpack.c.h.b16 %v4137
        %v4183 = vunpack.c.l.b16 %v4138
        %v4184 = vunpack.c.h.b16 %v4138
        %v4185 = vunpack.c.l.b16 %v4139
        %v4186 = vunpack.c.h.b16 %v4139
        %v4187 = vunpack.c.l.b16 %v4140
        %v4188 = vunpack.c.h.b16 %v4140
        %v4189 = vpack.c.b16 %v4159, %v4157
        %v4190 = vpack.c.b16 %v4160, %v4158
        %v4191 = vpack.c.b16 %v4163, %v4161
        %v4192 = vpack.c.b16 %v4164, %v4162
        %v4193 = vpack.c.b16 %v4167, %v4165
        %v4194 = vpack.c.b16 %v4168, %v4166
        %v4195 = vpack.c.b16 %v4171, %v4169
        %v4196 = vpack.c.b16 %v4172, %v4170
        %v4197 = vpack.c.b16 %v4175, %v4173
        %v4198 = vpack.c.b16 %v4176, %v4174
        %v4199 = vpack.c.b16 %v4179, %v4177
        %v4200 = vpack.c.b16 %v4180, %v4178
        %v4201 = vpack.c.b16 %v4183, %v4181
        %v4202 = vpack.c.b16 %v4184, %v4182
        %v4203 = vpack.c.b16 %v4187, %v4185
        %v4204 = vpack.c.b16 %v4188, %v4186
        %4221 = vmatprep.subr.bf16.mxu0 %v4190
        %4222 = vmatpush1.bf16.msra.mxu0 %v4189
        %4223 = vmatprep.subr.bf16.mxu0 %v4192
        %4224 = vmatpush1.bf16.msra.mxu0 %v4191
        %4225 = vmatprep.subr.bf16.mxu0 %v4194
        %4226 = vmatpush1.bf16.msra.mxu0 %v4193
        %4227 = vmatprep.subr.bf16.mxu0 %v4196
        %4228 = vmatpush1.bf16.msra.mxu0 %v4195
        %4229 = vmatprep.subr.bf16.mxu0 %v4198
        %4230 = vmatpush1.bf16.msra.mxu0 %v4197
        %4231 = vmatprep.subr.bf16.mxu0 %v4200
        %4232 = vmatpush1.bf16.msra.mxu0 %v4199
        %4233 = vmatprep.subr.bf16.mxu0 %v4202
        %4234 = vmatpush1.bf16.msra.mxu0 %v4201
        %4235 = vmatprep.subr.bf16.mxu0 %v4204
        %4236 = vmatpush1.bf16.msra.mxu0 %v4203
        %4237 = vmatprep.subr.bf16.mxu0 0
        %4238 = vmatpush1.bf16.msra.mxu0 0
        %4239 = vmatprep.subr.bf16.mxu0 0
        %4240 = vmatpush1.bf16.msra.mxu0 0
        %4241 = vmatprep.subr.bf16.mxu0 0
        %4242 = vmatpush1.bf16.msra.mxu0 0
        %4243 = vmatprep.subr.bf16.mxu0 0
        %4244 = vmatpush1.bf16.msra.mxu0 0
        %4245 = vmatprep.subr.bf16.mxu0 0
        %4246 = vmatpush1.bf16.msra.mxu0 0
        %4247 = vmatprep.subr.bf16.mxu0 0
        %4248 = vmatpush1.bf16.msra.mxu0 0
        %4249 = vmatprep.subr.bf16.mxu0 0
        %4250 = vmatpush1.bf16.msra.mxu0 0
        %4251 = vmatprep.subr.bf16.mxu0 0
        %4252 = vmatpush1.bf16.msra.mxu0 0
        %4253 = vmatprep.mubr.bf16.mxu0 0
        %4254 = vmatmul.mubr.bf16.gmra.mrb[0].mxu0 %v4123
        %v4255 = vpop.f32.mrb[0].mxu0
        %v4256 = vadd.f32 0.0, %v4255
        %v4257 = vpop.f32.mrb[0].mxu0
        %v4258 = vadd.f32 0.0, %v4257
        %v4259 = vpop.f32.mrb[0].mxu0
        %v4260 = vpop.f32.mrb[0].mxu0
        %4261 = vdwg.mxu0
        %v4278 = vunpack.c.l.b16 %v4062
        %v4279 = vunpack.c.h.b16 %v4062
        %v4280 = vunpack.c.l.b16 %v4063
        %v4281 = vunpack.c.h.b16 %v4063
        %v4282 = vunpack.c.l.b16 %v4064
        %v4283 = vunpack.c.h.b16 %v4064
        %v4284 = vunpack.c.l.b16 %v4065
        %v4285 = vunpack.c.h.b16 %v4065
        %v4286 = vunpack.c.l.b16 %v4066
        %v4287 = vunpack.c.h.b16 %v4066
        %v4288 = vunpack.c.l.b16 %v4067
        %v4289 = vunpack.c.h.b16 %v4067
        %v4290 = vunpack.c.l.b16 %v4068
        %v4291 = vunpack.c.h.b16 %v4068
        %v4292 = vunpack.c.l.b16 %v4069
        %v4293 = vunpack.c.h.b16 %v4069
        %v4294 = vunpack.c.l.b16 %v4070
        %v4295 = vunpack.c.h.b16 %v4070
        %v4296 = vunpack.c.l.b16 %v4071
        %v4297 = vunpack.c.h.b16 %v4071
        %v4298 = vunpack.c.l.b16 %v4072
        %v4299 = vunpack.c.h.b16 %v4072
        %v4300 = vunpack.c.l.b16 %v4073
        %v4301 = vunpack.c.h.b16 %v4073
        %v4302 = vunpack.c.l.b16 %v4074
        %v4303 = vunpack.c.h.b16 %v4074
        %v4304 = vunpack.c.l.b16 %v4075
        %v4305 = vunpack.c.h.b16 %v4075
        %v4306 = vunpack.c.l.b16 %v4076
        %v4307 = vunpack.c.h.b16 %v4076
        %v4308 = vunpack.c.l.b16 %v4077
        %v4309 = vunpack.c.h.b16 %v4077
        %v4310 = vpack.c.b16 %v4280, %v4278
        %v4311 = vpack.c.b16 %v4281, %v4279
        %v4312 = vpack.c.b16 %v4284, %v4282
        %v4313 = vpack.c.b16 %v4285, %v4283
        %v4314 = vpack.c.b16 %v4288, %v4286
        %v4315 = vpack.c.b16 %v4289, %v4287
        %v4316 = vpack.c.b16 %v4292, %v4290
        %v4317 = vpack.c.b16 %v4293, %v4291
        %v4318 = vpack.c.b16 %v4296, %v4294
        %v4319 = vpack.c.b16 %v4297, %v4295
        %v4320 = vpack.c.b16 %v4300, %v4298
        %v4321 = vpack.c.b16 %v4301, %v4299
        %v4322 = vpack.c.b16 %v4304, %v4302
        %v4323 = vpack.c.b16 %v4305, %v4303
        %v4324 = vpack.c.b16 %v4308, %v4306
        %v4325 = vpack.c.b16 %v4309, %v4307
        %4342 = vmatprep.subr.bf16.mxu0 %v4311
        %4343 = vmatpush1.bf16.msra.mxu0 %v4310
        %4344 = vmatprep.subr.bf16.mxu0 %v4313
        %4345 = vmatpush1.bf16.msra.mxu0 %v4312
        %4346 = vmatprep.subr.bf16.mxu0 %v4315
        %4347 = vmatpush1.bf16.msra.mxu0 %v4314
        %4348 = vmatprep.subr.bf16.mxu0 %v4317
        %4349 = vmatpush1.bf16.msra.mxu0 %v4316
        %4350 = vmatprep.subr.bf16.mxu0 %v4319
        %4351 = vmatpush1.bf16.msra.mxu0 %v4318
        %4352 = vmatprep.subr.bf16.mxu0 %v4321
        %4353 = vmatpush1.bf16.msra.mxu0 %v4320
        %4354 = vmatprep.subr.bf16.mxu0 %v4323
        %4355 = vmatpush1.bf16.msra.mxu0 %v4322
        %4356 = vmatprep.subr.bf16.mxu0 %v4325
        %4357 = vmatpush1.bf16.msra.mxu0 %v4324
        %4358 = vmatprep.subr.bf16.mxu0 0
        %4359 = vmatpush1.bf16.msra.mxu0 0
        %4360 = vmatprep.subr.bf16.mxu0 0
        %4361 = vmatpush1.bf16.msra.mxu0 0
        %4362 = vmatprep.subr.bf16.mxu0 0
        %4363 = vmatpush1.bf16.msra.mxu0 0
        %4364 = vmatprep.subr.bf16.mxu0 0
        %4365 = vmatpush1.bf16.msra.mxu0 0
        %4366 = vmatprep.subr.bf16.mxu0 0
        %4367 = vmatpush1.bf16.msra.mxu0 0
        %4368 = vmatprep.subr.bf16.mxu0 0
        %4369 = vmatpush1.bf16.msra.mxu0 0
        %4370 = vmatprep.subr.bf16.mxu0 0
        %4371 = vmatpush1.bf16.msra.mxu0 0
        %4372 = vmatprep.subr.bf16.mxu0 0
        %4373 = vmatpush1.bf16.msra.mxu0 0
        %4374 = vmatprep.mubr.bf16.mxu0 0
        %4375 = vmatmul.mubr.bf16.gmra.mrb[0].mxu0 %v4061
        %v4376 = vpop.f32.mrb[0].mxu0
        %v4377 = vadd.f32 %v4256, %v4376
        %v4378 = vpop.f32.mrb[0].mxu0
        %v4379 = vadd.f32 %v4258, %v4378
        %v4380 = vpop.f32.mrb[0].mxu0
        %v4381 = vpop.f32.mrb[0].mxu0
        %4382 = vdwg.mxu0
        %s4383 = scalar_lea.vmem %s9, 4
        %v4384 = vld [vmem:[%s4383] sm:$0x3]
        %v4386 = vsel %vm4017, %v4384, 0
        %4388 = vmatprep.subr.bf16.mxu0 0
        %4389 = vmatpush1.bf16.msra.mxu0 %v4015
        %4390 = vmatprep.subr.bf16.mxu0 0
        %4391 = vmatpush1.bf16.msra.mxu0 0
        %4392 = vmatprep.subr.bf16.mxu0 0
        %4393 = vmatpush1.bf16.msra.mxu0 0
        %4394 = vmatprep.subr.bf16.mxu0 0
        %4395 = vmatpush1.bf16.msra.mxu0 0
        %4396 = vmatprep.subr.bf16.mxu0 0
        %4397 = vmatpush1.bf16.msra.mxu0 0
        %4398 = vmatprep.subr.bf16.mxu0 0
        %4399 = vmatpush1.bf16.msra.mxu0 0
        %4400 = vmatprep.subr.bf16.mxu0 0
        %4401 = vmatpush1.bf16.msra.mxu0 0
        %4402 = vmatprep.subr.bf16.mxu0 0
        %4403 = vmatpush1.bf16.msra.mxu0 0
        %4404 = vmatprep.subr.bf16.mxu0 0
        %4405 = vmatpush1.bf16.msra.mxu0 0
        %4406 = vmatprep.subr.bf16.mxu0 0
        %4407 = vmatpush1.bf16.msra.mxu0 0
        %4408 = vmatprep.subr.bf16.mxu0 0
        %4409 = vmatpush1.bf16.msra.mxu0 0
        %4410 = vmatprep.subr.bf16.mxu0 0
        %4411 = vmatpush1.bf16.msra.mxu0 0
        %4412 = vmatprep.subr.bf16.mxu0 0
        %4413 = vmatpush1.bf16.msra.mxu0 0
        %4414 = vmatprep.subr.bf16.mxu0 0
        %4415 = vmatpush1.bf16.msra.mxu0 0
        %4416 = vmatprep.subr.bf16.mxu0 0
        %4417 = vmatpush1.bf16.msra.mxu0 0
        %4418 = vmatprep.subr.bf16.mxu0 0
        %4419 = vmatpush1.bf16.msra.mxu0 0
        %4420 = vmatprep.mubr.bf16.mxu0 0
        %4421 = vmatmul.mubr.bf16.gmra.mrb[0].mxu0 %v4386
        %v4422 = vpop.f32.mrb[0].mxu0
        %v4423 = vadd.f32 0.0, %v4422
        %v4424 = vpop.f32.mrb[0].mxu0
        %v4425 = vpop.f32.mrb[0].mxu0
        %v4426 = vpop.f32.mrb[0].mxu0
        %4427 = vdwg.mxu0
        %v4428 = vpack.c.bf16 %v4423, %v4423
        %s4429 = scalar_lea.vmem %s10, 256
        %v4430 = vld [vmem:[%s4429] sm:$0xff]
        %v4431 = vld [vmem:[%s4429 + $0x8] sm:$0xff]
        %v4432 = vld [vmem:[%s4429 + $0x10] sm:$0xff]
        %v4433 = vld [vmem:[%s4429 + $0x18] sm:$0xff]
        %v4434 = vld [vmem:[%s4429 + $0x20] sm:$0xff]
        %v4435 = vld [vmem:[%s4429 + $0x28] sm:$0xff]
        %v4436 = vld [vmem:[%s4429 + $0x30] sm:$0xff]
        %v4437 = vld [vmem:[%s4429 + $0x38] sm:$0xff]
        %v4438 = vld [vmem:[%s4429 + $0x40] sm:$0xff]
        %v4439 = vld [vmem:[%s4429 + $0x48] sm:$0xff]
        %v4440 = vld [vmem:[%s4429 + $0x50] sm:$0xff]
        %v4441 = vld [vmem:[%s4429 + $0x58] sm:$0xff]
        %v4442 = vld [vmem:[%s4429 + $0x60] sm:$0xff]
        %v4443 = vld [vmem:[%s4429 + $0x68] sm:$0xff]
        %v4444 = vld [vmem:[%s4429 + $0x70] sm:$0xff]
        %v4445 = vld [vmem:[%s4429 + $0x78] sm:$0xff]
        %v4462 = vunpack.c.l.b16 %v4430
        %v4463 = vunpack.c.h.b16 %v4430
        %v4464 = vunpack.c.l.b16 %v4431
        %v4465 = vunpack.c.h.b16 %v4431
        %v4466 = vunpack.c.l.b16 %v4432
        %v4467 = vunpack.c.h.b16 %v4432
        %v4468 = vunpack.c.l.b16 %v4433
        %v4469 = vunpack.c.h.b16 %v4433
        %v4470 = vunpack.c.l.b16 %v4434
        %v4471 = vunpack.c.h.b16 %v4434
        %v4472 = vunpack.c.l.b16 %v4435
        %v4473 = vunpack.c.h.b16 %v4435
        %v4474 = vunpack.c.l.b16 %v4436
        %v4475 = vunpack.c.h.b16 %v4436
        %v4476 = vunpack.c.l.b16 %v4437
        %v4477 = vunpack.c.h.b16 %v4437
        %v4478 = vunpack.c.l.b16 %v4438
        %v4479 = vunpack.c.h.b16 %v4438
        %v4480 = vunpack.c.l.b16 %v4439
        %v4481 = vunpack.c.h.b16 %v4439
        %v4482 = vunpack.c.l.b16 %v4440
        %v4483 = vunpack.c.h.b16 %v4440
        %v4484 = vunpack.c.l.b16 %v4441
        %v4485 = vunpack.c.h.b16 %v4441
        %v4486 = vunpack.c.l.b16 %v4442
        %v4487 = vunpack.c.h.b16 %v4442
        %v4488 = vunpack.c.l.b16 %v4443
        %v4489 = vunpack.c.h.b16 %v4443
        %v4490 = vunpack.c.l.b16 %v4444
        %v4491 = vunpack.c.h.b16 %v4444
        %v4492 = vunpack.c.l.b16 %v4445
        %v4493 = vunpack.c.h.b16 %v4445
        %v4494 = vpack.c.b16 %v4464, %v4462
        %v4495 = vpack.c.b16 %v4465, %v4463
        %v4496 = vpack.c.b16 %v4468, %v4466
        %v4497 = vpack.c.b16 %v4469, %v4467
        %v4498 = vpack.c.b16 %v4472, %v4470
        %v4499 = vpack.c.b16 %v4473, %v4471
        %v4500 = vpack.c.b16 %v4476, %v4474
        %v4501 = vpack.c.b16 %v4477, %v4475
        %v4502 = vpack.c.b16 %v4480, %v4478
        %v4503 = vpack.c.b16 %v4481, %v4479
        %v4504 = vpack.c.b16 %v4484, %v4482
        %v4505 = vpack.c.b16 %v4485, %v4483
        %v4506 = vpack.c.b16 %v4488, %v4486
        %v4507 = vpack.c.b16 %v4489, %v4487
        %v4508 = vpack.c.b16 %v4492, %v4490
        %v4509 = vpack.c.b16 %v4493, %v4491
        %4526 = vmatprep.subr.bf16.mxu0 %v4495
        %4527 = vmatpush1.bf16.msra.mxu0 %v4494
        %4528 = vmatprep.subr.bf16.mxu0 %v4497
        %4529 = vmatpush1.bf16.msra.mxu0 %v4496
        %4530 = vmatprep.subr.bf16.mxu0 %v4499
        %4531 = vmatpush1.bf16.msra.mxu0 %v4498
        %4532 = vmatprep.subr.bf16.mxu0 %v4501
        %4533 = vmatpush1.bf16.msra.mxu0 %v4500
        %4534 = vmatprep.subr.bf16.mxu0 %v4503
        %4535 = vmatpush1.bf16.msra.mxu0 %v4502
        %4536 = vmatprep.subr.bf16.mxu0 %v4505
        %4537 = vmatpush1.bf16.msra.mxu0 %v4504
        %4538 = vmatprep.subr.bf16.mxu0 %v4507
        %4539 = vmatpush1.bf16.msra.mxu0 %v4506
        %4540 = vmatprep.subr.bf16.mxu0 %v4509
        %4541 = vmatpush1.bf16.msra.mxu0 %v4508
        %4542 = vmatprep.subr.bf16.mxu0 0
        %4543 = vmatpush1.bf16.msra.mxu0 0
        %4544 = vmatprep.subr.bf16.mxu0 0
        %4545 = vmatpush1.bf16.msra.mxu0 0
        %4546 = vmatprep.subr.bf16.mxu0 0
        %4547 = vmatpush1.bf16.msra.mxu0 0
        %4548 = vmatprep.subr.bf16.mxu0 0
        %4549 = vmatpush1.bf16.msra.mxu0 0
        %4550 = vmatprep.subr.bf16.mxu0 0
        %4551 = vmatpush1.bf16.msra.mxu0 0
        %4552 = vmatprep.subr.bf16.mxu0 0
        %4553 = vmatpush1.bf16.msra.mxu0 0
        %4554 = vmatprep.subr.bf16.mxu0 0
        %4555 = vmatpush1.bf16.msra.mxu0 0
        %4556 = vmatprep.subr.bf16.mxu0 0
        %4557 = vmatpush1.bf16.msra.mxu0 0
        %4558 = vmatprep.mubr.bf16.mxu0 0
        %4559 = vmatmul.mubr.bf16.gmra.mrb[0].mxu0 %v4428
        %v4560 = vpop.f32.mrb[0].mxu0
        %v4561 = vadd.f32 0.0, %v4560
        %v4562 = vpop.f32.mrb[0].mxu0
        %v4563 = vadd.f32 0.0, %v4562
        %v4564 = vpop.f32.mrb[0].mxu0
        %v4565 = vpop.f32.mrb[0].mxu0
        %4566 = vdwg.mxu0
        %v4567 = vadd.f32 %v4377, %v4561
        %v4568 = vadd.f32 %v4379, %v4563
        %s4569 = scalar_lea.vmem %s9, 6
        %v4570 = vld [vmem:[%s4569] sm:$0x3]
        %v4572 = vsel %vm4017, %v4570, 0
        %4574 = vmatprep.subr.bf16.mxu0 0
        %4575 = vmatpush1.bf16.msra.mxu0 %v4015
        %4576 = vmatprep.subr.bf16.mxu0 0
        %4577 = vmatpush1.bf16.msra.mxu0 0
        %4578 = vmatprep.subr.bf16.mxu0 0
        %4579 = vmatpush1.bf16.msra.mxu0 0
        %4580 = vmatprep.subr.bf16.mxu0 0
        %4581 = vmatpush1.bf16.msra.mxu0 0
        %4582 = vmatprep.subr.bf16.mxu0 0
        %4583 = vmatpush1.bf16.msra.mxu0 0
        %4584 = vmatprep.subr.bf16.mxu0 0
        %4585 = vmatpush1.bf16.msra.mxu0 0
        %4586 = vmatprep.subr.bf16.mxu0 0
        %4587 = vmatpush1.bf16.msra.mxu0 0
        %4588 = vmatprep.subr.bf16.mxu0 0
        %4589 = vmatpush1.bf16.msra.mxu0 0
        %4590 = vmatprep.subr.bf16.mxu0 0
        %4591 = vmatpush1.bf16.msra.mxu0 0
        %4592 = vmatprep.subr.bf16.mxu0 0
        %4593 = vmatpush1.bf16.msra.mxu0 0
        %4594 = vmatprep.subr.bf16.mxu0 0
        %4595 = vmatpush1.bf16.msra.mxu0 0
        %4596 = vmatprep.subr.bf16.mxu0 0
        %4597 = vmatpush1.bf16.msra.mxu0 0
        %4598 = vmatprep.subr.bf16.mxu0 0
        %4599 = vmatpush1.bf16.msra.mxu0 0
        %4600 = vmatprep.subr.bf16.mxu0 0
        %4601 = vmatpush1.bf16.msra.mxu0 0
        %4602 = vmatprep.subr.bf16.mxu0 0
        %4603 = vmatpush1.bf16.msra.mxu0 0
        %4604 = vmatprep.subr.bf16.mxu0 0
        %4605 = vmatpush1.bf16.msra.mxu0 0
        %4606 = vmatprep.mubr.bf16.mxu0 0
        %4607 = vmatmul.mubr.bf16.gmra.mrb[0].mxu0 %v4572
        %v4608 = vpop.f32.mrb[0].mxu0
        %v4609 = vadd.f32 0.0, %v4608
        %v4610 = vpop.f32.mrb[0].mxu0
        %v4611 = vpop.f32.mrb[0].mxu0
        %v4612 = vpop.f32.mrb[0].mxu0
        %4613 = vdwg.mxu0
        %v4614 = vpack.c.bf16 %v4609, %v4609
        %s4615 = scalar_lea.vmem %s10, 384
        %v4616 = vld [vmem:[%s4615] sm:$0xff]
        %v4617 = vld [vmem:[%s4615 + $0x8] sm:$0xff]
        %v4618 = vld [vmem:[%s4615 + $0x10] sm:$0xff]
        %v4619 = vld [vmem:[%s4615 + $0x18] sm:$0xff]
        %v4620 = vld [vmem:[%s4615 + $0x20] sm:$0xff]
        %v4621 = vld [vmem:[%s4615 + $0x28] sm:$0xff]
        %v4622 = vld [vmem:[%s4615 + $0x30] sm:$0xff]
        %v4623 = vld [vmem:[%s4615 + $0x38] sm:$0xff]
        %v4624 = vld [vmem:[%s4615 + $0x40] sm:$0xff]
        %v4625 = vld [vmem:[%s4615 + $0x48] sm:$0xff]
        %v4626 = vld [vmem:[%s4615 + $0x50] sm:$0xff]
        %v4627 = vld [vmem:[%s4615 + $0x58] sm:$0xff]
        %v4628 = vld [vmem:[%s4615 + $0x60] sm:$0xff]
        %v4629 = vld [vmem:[%s4615 + $0x68] sm:$0xff]
        %v4630 = vld [vmem:[%s4615 + $0x70] sm:$0xff]
        %v4631 = vld [vmem:[%s4615 + $0x78] sm:$0xff]
        %v4648 = vunpack.c.l.b16 %v4616
        %v4649 = vunpack.c.h.b16 %v4616
        %v4650 = vunpack.c.l.b16 %v4617
        %v4651 = vunpack.c.h.b16 %v4617
        %v4652 = vunpack.c.l.b16 %v4618
        %v4653 = vunpack.c.h.b16 %v4618
        %v4654 = vunpack.c.l.b16 %v4619
        %v4655 = vunpack.c.h.b16 %v4619
        %v4656 = vunpack.c.l.b16 %v4620
        %v4657 = vunpack.c.h.b16 %v4620
        %v4658 = vunpack.c.l.b16 %v4621
        %v4659 = vunpack.c.h.b16 %v4621
        %v4660 = vunpack.c.l.b16 %v4622
        %v4661 = vunpack.c.h.b16 %v4622
        %v4662 = vunpack.c.l.b16 %v4623
        %v4663 = vunpack.c.h.b16 %v4623
        %v4664 = vunpack.c.l.b16 %v4624
        %v4665 = vunpack.c.h.b16 %v4624
        %v4666 = vunpack.c.l.b16 %v4625
        %v4667 = vunpack.c.h.b16 %v4625
        %v4668 = vunpack.c.l.b16 %v4626
        %v4669 = vunpack.c.h.b16 %v4626
        %v4670 = vunpack.c.l.b16 %v4627
        %v4671 = vunpack.c.h.b16 %v4627
        %v4672 = vunpack.c.l.b16 %v4628
        %v4673 = vunpack.c.h.b16 %v4628
        %v4674 = vunpack.c.l.b16 %v4629
        %v4675 = vunpack.c.h.b16 %v4629
        %v4676 = vunpack.c.l.b16 %v4630
        %v4677 = vunpack.c.h.b16 %v4630
        %v4678 = vunpack.c.l.b16 %v4631
        %v4679 = vunpack.c.h.b16 %v4631
        %v4680 = vpack.c.b16 %v4650, %v4648
        %v4681 = vpack.c.b16 %v4651, %v4649
        %v4682 = vpack.c.b16 %v4654, %v4652
        %v4683 = vpack.c.b16 %v4655, %v4653
        %v4684 = vpack.c.b16 %v4658, %v4656
        %v4685 = vpack.c.b16 %v4659, %v4657
        %v4686 = vpack.c.b16 %v4662, %v4660
        %v4687 = vpack.c.b16 %v4663, %v4661
        %v4688 = vpack.c.b16 %v4666, %v4664
        %v4689 = vpack.c.b16 %v4667, %v4665
        %v4690 = vpack.c.b16 %v4670, %v4668
        %v4691 = vpack.c.b16 %v4671, %v4669
        %v4692 = vpack.c.b16 %v4674, %v4672
        %v4693 = vpack.c.b16 %v4675, %v4673
        %v4694 = vpack.c.b16 %v4678, %v4676
        %v4695 = vpack.c.b16 %v4679, %v4677
        %4712 = vmatprep.subr.bf16.mxu0 %v4681
        %4713 = vmatpush1.bf16.msra.mxu0 %v4680
        %4714 = vmatprep.subr.bf16.mxu0 %v4683
        %4715 = vmatpush1.bf16.msra.mxu0 %v4682
        %4716 = vmatprep.subr.bf16.mxu0 %v4685
        %4717 = vmatpush1.bf16.msra.mxu0 %v4684
        %4718 = vmatprep.subr.bf16.mxu0 %v4687
        %4719 = vmatpush1.bf16.msra.mxu0 %v4686
        %4720 = vmatprep.subr.bf16.mxu0 %v4689
        %4721 = vmatpush1.bf16.msra.mxu0 %v4688
        %4722 = vmatprep.subr.bf16.mxu0 %v4691
        %4723 = vmatpush1.bf16.msra.mxu0 %v4690
        %4724 = vmatprep.subr.bf16.mxu0 %v4693
        %4725 = vmatpush1.bf16.msra.mxu0 %v4692
        %4726 = vmatprep.subr.bf16.mxu0 %v4695
        %4727 = vmatpush1.bf16.msra.mxu0 %v4694
        %4728 = vmatprep.subr.bf16.mxu0 0
        %4729 = vmatpush1.bf16.msra.mxu0 0
        %4730 = vmatprep.subr.bf16.mxu0 0
        %4731 = vmatpush1.bf16.msra.mxu0 0
        %4732 = vmatprep.subr.bf16.mxu0 0
        %4733 = vmatpush1.bf16.msra.mxu0 0
        %4734 = vmatprep.subr.bf16.mxu0 0
        %4735 = vmatpush1.bf16.msra.mxu0 0
        %4736 = vmatprep.subr.bf16.mxu0 0
        %4737 = vmatpush1.bf16.msra.mxu0 0
        %4738 = vmatprep.subr.bf16.mxu0 0
        %4739 = vmatpush1.bf16.msra.mxu0 0
        %4740 = vmatprep.subr.bf16.mxu0 0
        %4741 = vmatpush1.bf16.msra.mxu0 0
        %4742 = vmatprep.subr.bf16.mxu0 0
        %4743 = vmatpush1.bf16.msra.mxu0 0
        %4744 = vmatprep.mubr.bf16.mxu0 0
        %4745 = vmatmul.mubr.bf16.gmra.mrb[0].mxu0 %v4614
        %v4746 = vpop.f32.mrb[0].mxu0
        %v4747 = vadd.f32 0.0, %v4746
        %v4748 = vpop.f32.mrb[0].mxu0
        %v4749 = vadd.f32 0.0, %v4748
        %v4750 = vpop.f32.mrb[0].mxu0
        %v4751 = vpop.f32.mrb[0].mxu0
        %4752 = vdwg.mxu0
        %v4753 = vadd.f32 %v4567, %v4747
        %v4754 = vadd.f32 %v4568, %v4749
        %s4755 = scalar_lea.vmem %s9, 8
        %v4756 = vld [vmem:[%s4755] sm:$0x3]
        %v4758 = vsel %vm4017, %v4756, 0
        %4760 = vmatprep.subr.bf16.mxu0 0
        %4761 = vmatpush1.bf16.msra.mxu0 %v4015
        %4762 = vmatprep.subr.bf16.mxu0 0
        %4763 = vmatpush1.bf16.msra.mxu0 0
        %4764 = vmatprep.subr.bf16.mxu0 0
        %4765 = vmatpush1.bf16.msra.mxu0 0
        %4766 = vmatprep.subr.bf16.mxu0 0
        %4767 = vmatpush1.bf16.msra.mxu0 0
        %4768 = vmatprep.subr.bf16.mxu0 0
        %4769 = vmatpush1.bf16.msra.mxu0 0
        %4770 = vmatprep.subr.bf16.mxu0 0
        %4771 = vmatpush1.bf16.msra.mxu0 0
        %4772 = vmatprep.subr.bf16.mxu0 0
        %4773 = vmatpush1.bf16.msra.mxu0 0
        %4774 = vmatprep.subr.bf16.mxu0 0
        %4775 = vmatpush1.bf16.msra.mxu0 0
        %4776 = vmatprep.subr.bf16.mxu0 0
        %4777 = vmatpush1.bf16.msra.mxu0 0
        %4778 = vmatprep.subr.bf16.mxu0 0
        %4779 = vmatpush1.bf16.msra.mxu0 0
        %4780 = vmatprep.subr.bf16.mxu0 0
        %4781 = vmatpush1.bf16.msra.mxu0 0
        %4782 = vmatprep.subr.bf16.mxu0 0
        %4783 = vmatpush1.bf16.msra.mxu0 0
        %4784 = vmatprep.subr.bf16.mxu0 0
        %4785 = vmatpush1.bf16.msra.mxu0 0
        %4786 = vmatprep.subr.bf16.mxu0 0
        %4787 = vmatpush1.bf16.msra.mxu0 0
        %4788 = vmatprep.subr.bf16.mxu0 0
        %4789 = vmatpush1.bf16.msra.mxu0 0
        %4790 = vmatprep.subr.bf16.mxu0 0
        %4791 = vmatpush1.bf16.msra.mxu0 0
        %4792 = vmatprep.mubr.bf16.mxu0 0
        %4793 = vmatmul.mubr.bf16.gmra.mrb[0].mxu0 %v4758
        %v4794 = vpop.f32.mrb[0].mxu0
        %v4795 = vadd.f32 0.0, %v4794
        %v4796 = vpop.f32.mrb[0].mxu0
        %v4797 = vpop.f32.mrb[0].mxu0
        %v4798 = vpop.f32.mrb[0].mxu0
        %4799 = vdwg.mxu0
        %v4800 = vpack.c.bf16 %v4795, %v4795
        %s4801 = scalar_lea.vmem %s10, 512
        %v4802 = vld [vmem:[%s4801] sm:$0xff]
        %v4803 = vld [vmem:[%s4801 + $0x8] sm:$0xff]
        %v4804 = vld [vmem:[%s4801 + $0x10] sm:$0xff]
        %v4805 = vld [vmem:[%s4801 + $0x18] sm:$0xff]
        %v4806 = vld [vmem:[%s4801 + $0x20] sm:$0xff]
        %v4807 = vld [vmem:[%s4801 + $0x28] sm:$0xff]
        %v4808 = vld [vmem:[%s4801 + $0x30] sm:$0xff]
        %v4809 = vld [vmem:[%s4801 + $0x38] sm:$0xff]
        %v4810 = vld [vmem:[%s4801 + $0x40] sm:$0xff]
        %v4811 = vld [vmem:[%s4801 + $0x48] sm:$0xff]
        %v4812 = vld [vmem:[%s4801 + $0x50] sm:$0xff]
        %v4813 = vld [vmem:[%s4801 + $0x58] sm:$0xff]
        %v4814 = vld [vmem:[%s4801 + $0x60] sm:$0xff]
        %v4815 = vld [vmem:[%s4801 + $0x68] sm:$0xff]
        %v4816 = vld [vmem:[%s4801 + $0x70] sm:$0xff]
        %v4817 = vld [vmem:[%s4801 + $0x78] sm:$0xff]
        %v4834 = vunpack.c.l.b16 %v4802
        %v4835 = vunpack.c.h.b16 %v4802
        %v4836 = vunpack.c.l.b16 %v4803
        %v4837 = vunpack.c.h.b16 %v4803
        %v4838 = vunpack.c.l.b16 %v4804
        %v4839 = vunpack.c.h.b16 %v4804
        %v4840 = vunpack.c.l.b16 %v4805
        %v4841 = vunpack.c.h.b16 %v4805
        %v4842 = vunpack.c.l.b16 %v4806
        %v4843 = vunpack.c.h.b16 %v4806
        %v4844 = vunpack.c.l.b16 %v4807
        %v4845 = vunpack.c.h.b16 %v4807
        %v4846 = vunpack.c.l.b16 %v4808
        %v4847 = vunpack.c.h.b16 %v4808
        %v4848 = vunpack.c.l.b16 %v4809
        %v4849 = vunpack.c.h.b16 %v4809
        %v4850 = vunpack.c.l.b16 %v4810
        %v4851 = vunpack.c.h.b16 %v4810
        %v4852 = vunpack.c.l.b16 %v4811
        %v4853 = vunpack.c.h.b16 %v4811
        %v4854 = vunpack.c.l.b16 %v4812
        %v4855 = vunpack.c.h.b16 %v4812
        %v4856 = vunpack.c.l.b16 %v4813
        %v4857 = vunpack.c.h.b16 %v4813
        %v4858 = vunpack.c.l.b16 %v4814
        %v4859 = vunpack.c.h.b16 %v4814
        %v4860 = vunpack.c.l.b16 %v4815
        %v4861 = vunpack.c.h.b16 %v4815
        %v4862 = vunpack.c.l.b16 %v4816
        %v4863 = vunpack.c.h.b16 %v4816
        %v4864 = vunpack.c.l.b16 %v4817
        %v4865 = vunpack.c.h.b16 %v4817
        %v4866 = vpack.c.b16 %v4836, %v4834
        %v4867 = vpack.c.b16 %v4837, %v4835
        %v4868 = vpack.c.b16 %v4840, %v4838
        %v4869 = vpack.c.b16 %v4841, %v4839
        %v4870 = vpack.c.b16 %v4844, %v4842
        %v4871 = vpack.c.b16 %v4845, %v4843
        %v4872 = vpack.c.b16 %v4848, %v4846
        %v4873 = vpack.c.b16 %v4849, %v4847
        %v4874 = vpack.c.b16 %v4852, %v4850
        %v4875 = vpack.c.b16 %v4853, %v4851
        %v4876 = vpack.c.b16 %v4856, %v4854
        %v4877 = vpack.c.b16 %v4857, %v4855
        %v4878 = vpack.c.b16 %v4860, %v4858
        %v4879 = vpack.c.b16 %v4861, %v4859
        %v4880 = vpack.c.b16 %v4864, %v4862
        %v4881 = vpack.c.b16 %v4865, %v4863
        %4898 = vmatprep.subr.bf16.mxu0 %v4867
        %4899 = vmatpush1.bf16.msra.mxu0 %v4866
        %4900 = vmatprep.subr.bf16.mxu0 %v4869
        %4901 = vmatpush1.bf16.msra.mxu0 %v4868
        %4902 = vmatprep.subr.bf16.mxu0 %v4871
        %4903 = vmatpush1.bf16.msra.mxu0 %v4870
        %4904 = vmatprep.subr.bf16.mxu0 %v4873
        %4905 = vmatpush1.bf16.msra.mxu0 %v4872
        %4906 = vmatprep.subr.bf16.mxu0 %v4875
        %4907 = vmatpush1.bf16.msra.mxu0 %v4874
        %4908 = vmatprep.subr.bf16.mxu0 %v4877
        %4909 = vmatpush1.bf16.msra.mxu0 %v4876
        %4910 = vmatprep.subr.bf16.mxu0 %v4879
        %4911 = vmatpush1.bf16.msra.mxu0 %v4878
        %4912 = vmatprep.subr.bf16.mxu0 %v4881
        %4913 = vmatpush1.bf16.msra.mxu0 %v4880
        %4914 = vmatprep.subr.bf16.mxu0 0
        %4915 = vmatpush1.bf16.msra.mxu0 0
        %4916 = vmatprep.subr.bf16.mxu0 0
        %4917 = vmatpush1.bf16.msra.mxu0 0
        %4918 = vmatprep.subr.bf16.mxu0 0
        %4919 = vmatpush1.bf16.msra.mxu0 0
        %4920 = vmatprep.subr.bf16.mxu0 0
        %4921 = vmatpush1.bf16.msra.mxu0 0
        %4922 = vmatprep.subr.bf16.mxu0 0
        %4923 = vmatpush1.bf16.msra.mxu0 0
        %4924 = vmatprep.subr.bf16.mxu0 0
        %4925 = vmatpush1.bf16.msra.mxu0 0
        %4926 = vmatprep.subr.bf16.mxu0 0
        %4927 = vmatpush1.bf16.msra.mxu0 0
        %4928 = vmatprep.subr.bf16.mxu0 0
        %4929 = vmatpush1.bf16.msra.mxu0 0
        %4930 = vmatprep.mubr.bf16.mxu0 0
        %4931 = vmatmul.mubr.bf16.gmra.mrb[0].mxu0 %v4800
        %v4932 = vpop.f32.mrb[0].mxu0
        %v4933 = vadd.f32 0.0, %v4932
        %v4934 = vpop.f32.mrb[0].mxu0
        %v4935 = vadd.f32 0.0, %v4934
        %v4936 = vpop.f32.mrb[0].mxu0
        %v4937 = vpop.f32.mrb[0].mxu0
        %4938 = vdwg.mxu0
        %v4939 = vadd.f32 %v4753, %v4933
        %v4940 = vadd.f32 %v4754, %v4935
        %s4941 = scalar_lea.vmem %s9, 10
        %v4942 = vld [vmem:[%s4941] sm:$0x3]
        %v4944 = vsel %vm4017, %v4942, 0
        %4946 = vmatprep.subr.bf16.mxu0 0
        %4947 = vmatpush1.bf16.msra.mxu0 %v4015
        %4948 = vmatprep.subr.bf16.mxu0 0
        %4949 = vmatpush1.bf16.msra.mxu0 0
        %4950 = vmatprep.subr.bf16.mxu0 0
        %4951 = vmatpush1.bf16.msra.mxu0 0
        %4952 = vmatprep.subr.bf16.mxu0 0
        %4953 = vmatpush1.bf16.msra.mxu0 0
        %4954 = vmatprep.subr.bf16.mxu0 0
        %4955 = vmatpush1.bf16.msra.mxu0 0
        %4956 = vmatprep.subr.bf16.mxu0 0
        %4957 = vmatpush1.bf16.msra.mxu0 0
        %4958 = vmatprep.subr.bf16.mxu0 0
        %4959 = vmatpush1.bf16.msra.mxu0 0
        %4960 = vmatprep.subr.bf16.mxu0 0
        %4961 = vmatpush1.bf16.msra.mxu0 0
        %4962 = vmatprep.subr.bf16.mxu0 0
        %4963 = vmatpush1.bf16.msra.mxu0 0
        %4964 = vmatprep.subr.bf16.mxu0 0
        %4965 = vmatpush1.bf16.msra.mxu0 0
        %4966 = vmatprep.subr.bf16.mxu0 0
        %4967 = vmatpush1.bf16.msra.mxu0 0
        %4968 = vmatprep.subr.bf16.mxu0 0
        %4969 = vmatpush1.bf16.msra.mxu0 0
        %4970 = vmatprep.subr.bf16.mxu0 0
        %4971 = vmatpush1.bf16.msra.mxu0 0
        %4972 = vmatprep.subr.bf16.mxu0 0
        %4973 = vmatpush1.bf16.msra.mxu0 0
        %4974 = vmatprep.subr.bf16.mxu0 0
        %4975 = vmatpush1.bf16.msra.mxu0 0
        %4976 = vmatprep.subr.bf16.mxu0 0
        %4977 = vmatpush1.bf16.msra.mxu0 0
        %4978 = vmatprep.mubr.bf16.mxu0 0
        %4979 = vmatmul.mubr.bf16.gmra.mrb[0].mxu0 %v4944
        %v4980 = vpop.f32.mrb[0].mxu0
        %v4981 = vadd.f32 0.0, %v4980
        %v4982 = vpop.f32.mrb[0].mxu0
        %v4983 = vpop.f32.mrb[0].mxu0
        %v4984 = vpop.f32.mrb[0].mxu0
        %4985 = vdwg.mxu0
        %v4986 = vpack.c.bf16 %v4981, %v4981
        %s4987 = scalar_lea.vmem %s10, 640
        %v4988 = vld [vmem:[%s4987] sm:$0xff]
        %v4989 = vld [vmem:[%s4987 + $0x8] sm:$0xff]
        %v4990 = vld [vmem:[%s4987 + $0x10] sm:$0xff]
        %v4991 = vld [vmem:[%s4987 + $0x18] sm:$0xff]
        %v4992 = vld [vmem:[%s4987 + $0x20] sm:$0xff]
        %v4993 = vld [vmem:[%s4987 + $0x28] sm:$0xff]
        %v4994 = vld [vmem:[%s4987 + $0x30] sm:$0xff]
        %v4995 = vld [vmem:[%s4987 + $0x38] sm:$0xff]
        %v4996 = vld [vmem:[%s4987 + $0x40] sm:$0xff]
        %v4997 = vld [vmem:[%s4987 + $0x48] sm:$0xff]
        %v4998 = vld [vmem:[%s4987 + $0x50] sm:$0xff]
        %v4999 = vld [vmem:[%s4987 + $0x58] sm:$0xff]
        %v5000 = vld [vmem:[%s4987 + $0x60] sm:$0xff]
        %v5001 = vld [vmem:[%s4987 + $0x68] sm:$0xff]
        %v5002 = vld [vmem:[%s4987 + $0x70] sm:$0xff]
        %v5003 = vld [vmem:[%s4987 + $0x78] sm:$0xff]
        %v5020 = vunpack.c.l.b16 %v4988
        %v5021 = vunpack.c.h.b16 %v4988
        %v5022 = vunpack.c.l.b16 %v4989
        %v5023 = vunpack.c.h.b16 %v4989
        %v5024 = vunpack.c.l.b16 %v4990
        %v5025 = vunpack.c.h.b16 %v4990
        %v5026 = vunpack.c.l.b16 %v4991
        %v5027 = vunpack.c.h.b16 %v4991
        %v5028 = vunpack.c.l.b16 %v4992
        %v5029 = vunpack.c.h.b16 %v4992
        %v5030 = vunpack.c.l.b16 %v4993
        %v5031 = vunpack.c.h.b16 %v4993
        %v5032 = vunpack.c.l.b16 %v4994
        %v5033 = vunpack.c.h.b16 %v4994
        %v5034 = vunpack.c.l.b16 %v4995
        %v5035 = vunpack.c.h.b16 %v4995
        %v5036 = vunpack.c.l.b16 %v4996
        %v5037 = vunpack.c.h.b16 %v4996
        %v5038 = vunpack.c.l.b16 %v4997
        %v5039 = vunpack.c.h.b16 %v4997
        %v5040 = vunpack.c.l.b16 %v4998
        %v5041 = vunpack.c.h.b16 %v4998
        %v5042 = vunpack.c.l.b16 %v4999
        %v5043 = vunpack.c.h.b16 %v4999
        %v5044 = vunpack.c.l.b16 %v5000
        %v5045 = vunpack.c.h.b16 %v5000
        %v5046 = vunpack.c.l.b16 %v5001
        %v5047 = vunpack.c.h.b16 %v5001
        %v5048 = vunpack.c.l.b16 %v5002
        %v5049 = vunpack.c.h.b16 %v5002
        %v5050 = vunpack.c.l.b16 %v5003
        %v5051 = vunpack.c.h.b16 %v5003
        %v5052 = vpack.c.b16 %v5022, %v5020
        %v5053 = vpack.c.b16 %v5023, %v5021
        %v5054 = vpack.c.b16 %v5026, %v5024
        %v5055 = vpack.c.b16 %v5027, %v5025
        %v5056 = vpack.c.b16 %v5030, %v5028
        %v5057 = vpack.c.b16 %v5031, %v5029
        %v5058 = vpack.c.b16 %v5034, %v5032
        %v5059 = vpack.c.b16 %v5035, %v5033
        %v5060 = vpack.c.b16 %v5038, %v5036
        %v5061 = vpack.c.b16 %v5039, %v5037
        %v5062 = vpack.c.b16 %v5042, %v5040
        %v5063 = vpack.c.b16 %v5043, %v5041
        %v5064 = vpack.c.b16 %v5046, %v5044
        %v5065 = vpack.c.b16 %v5047, %v5045
        %v5066 = vpack.c.b16 %v5050, %v5048
        %v5067 = vpack.c.b16 %v5051, %v5049
        %5084 = vmatprep.subr.bf16.mxu0 %v5053
        %5085 = vmatpush1.bf16.msra.mxu0 %v5052
        %5086 = vmatprep.subr.bf16.mxu0 %v5055
        %5087 = vmatpush1.bf16.msra.mxu0 %v5054
        %5088 = vmatprep.subr.bf16.mxu0 %v5057
        %5089 = vmatpush1.bf16.msra.mxu0 %v5056
        %5090 = vmatprep.subr.bf16.mxu0 %v5059
        %5091 = vmatpush1.bf16.msra.mxu0 %v5058
        %5092 = vmatprep.subr.bf16.mxu0 %v5061
        %5093 = vmatpush1.bf16.msra.mxu0 %v5060
        %5094 = vmatprep.subr.bf16.mxu0 %v5063
        %5095 = vmatpush1.bf16.msra.mxu0 %v5062
        %5096 = vmatprep.subr.bf16.mxu0 %v5065
        %5097 = vmatpush1.bf16.msra.mxu0 %v5064
        %5098 = vmatprep.subr.bf16.mxu0 %v5067
        %5099 = vmatpush1.bf16.msra.mxu0 %v5066
        %5100 = vmatprep.subr.bf16.mxu0 0
        %5101 = vmatpush1.bf16.msra.mxu0 0
        %5102 = vmatprep.subr.bf16.mxu0 0
        %5103 = vmatpush1.bf16.msra.mxu0 0
        %5104 = vmatprep.subr.bf16.mxu0 0
        %5105 = vmatpush1.bf16.msra.mxu0 0
        %5106 = vmatprep.subr.bf16.mxu0 0
        %5107 = vmatpush1.bf16.msra.mxu0 0
        %5108 = vmatprep.subr.bf16.mxu0 0
        %5109 = vmatpush1.bf16.msra.mxu0 0
        %5110 = vmatprep.subr.bf16.mxu0 0
        %5111 = vmatpush1.bf16.msra.mxu0 0
        %5112 = vmatprep.subr.bf16.mxu0 0
        %5113 = vmatpush1.bf16.msra.mxu0 0
        %5114 = vmatprep.subr.bf16.mxu0 0
        %5115 = vmatpush1.bf16.msra.mxu0 0
        %5116 = vmatprep.mubr.bf16.mxu0 0
        %5117 = vmatmul.mubr.bf16.gmra.mrb[0].mxu0 %v4986
        %v5118 = vpop.f32.mrb[0].mxu0
        %v5119 = vadd.f32 0.0, %v5118
        %v5120 = vpop.f32.mrb[0].mxu0
        %v5121 = vadd.f32 0.0, %v5120
        %v5122 = vpop.f32.mrb[0].mxu0
        %v5123 = vpop.f32.mrb[0].mxu0
        %5124 = vdwg.mxu0
        %v5125 = vadd.f32 %v4939, %v5119
        %v5126 = vadd.f32 %v4940, %v5121
        %s5127 = scalar_lea.vmem %s9, 12
        %v5128 = vld [vmem:[%s5127] sm:$0x3]
        %v5130 = vsel %vm4017, %v5128, 0
        %5132 = vmatprep.subr.bf16.mxu0 0
        %5133 = vmatpush1.bf16.msra.mxu0 %v4015
        %5134 = vmatprep.subr.bf16.mxu0 0
        %5135 = vmatpush1.bf16.msra.mxu0 0
        %5136 = vmatprep.subr.bf16.mxu0 0
        %5137 = vmatpush1.bf16.msra.mxu0 0
        %5138 = vmatprep.subr.bf16.mxu0 0
        %5139 = vmatpush1.bf16.msra.mxu0 0
        %5140 = vmatprep.subr.bf16.mxu0 0
        %5141 = vmatpush1.bf16.msra.mxu0 0
        %5142 = vmatprep.subr.bf16.mxu0 0
        %5143 = vmatpush1.bf16.msra.mxu0 0
        %5144 = vmatprep.subr.bf16.mxu0 0
        %5145 = vmatpush1.bf16.msra.mxu0 0
        %5146 = vmatprep.subr.bf16.mxu0 0
        %5147 = vmatpush1.bf16.msra.mxu0 0
        %5148 = vmatprep.subr.bf16.mxu0 0
        %5149 = vmatpush1.bf16.msra.mxu0 0
        %5150 = vmatprep.subr.bf16.mxu0 0
        %5151 = vmatpush1.bf16.msra.mxu0 0
        %5152 = vmatprep.subr.bf16.mxu0 0
        %5153 = vmatpush1.bf16.msra.mxu0 0
        %5154 = vmatprep.subr.bf16.mxu0 0
        %5155 = vmatpush1.bf16.msra.mxu0 0
        %5156 = vmatprep.subr.bf16.mxu0 0
        %5157 = vmatpush1.bf16.msra.mxu0 0
        %5158 = vmatprep.subr.bf16.mxu0 0
        %5159 = vmatpush1.bf16.msra.mxu0 0
        %5160 = vmatprep.subr.bf16.mxu0 0
        %5161 = vmatpush1.bf16.msra.mxu0 0
        %5162 = vmatprep.subr.bf16.mxu0 0
        %5163 = vmatpush1.bf16.msra.mxu0 0
        %5164 = vmatprep.mubr.bf16.mxu0 0
        %5165 = vmatmul.mubr.bf16.gmra.mrb[0].mxu0 %v5130
        %v5166 = vpop.f32.mrb[0].mxu0
        %v5167 = vadd.f32 0.0, %v5166
        %v5168 = vpop.f32.mrb[0].mxu0
        %v5169 = vpop.f32.mrb[0].mxu0
        %v5170 = vpop.f32.mrb[0].mxu0
        %5171 = vdwg.mxu0
        %v5172 = vpack.c.bf16 %v5167, %v5167
        %s5173 = scalar_lea.vmem %s10, 768
        %v5174 = vld [vmem:[%s5173] sm:$0xff]
        %v5175 = vld [vmem:[%s5173 + $0x8] sm:$0xff]
        %v5176 = vld [vmem:[%s5173 + $0x10] sm:$0xff]
        %v5177 = vld [vmem:[%s5173 + $0x18] sm:$0xff]
        %v5178 = vld [vmem:[%s5173 + $0x20] sm:$0xff]
        %v5179 = vld [vmem:[%s5173 + $0x28] sm:$0xff]
        %v5180 = vld [vmem:[%s5173 + $0x30] sm:$0xff]
        %v5181 = vld [vmem:[%s5173 + $0x38] sm:$0xff]
        %v5182 = vld [vmem:[%s5173 + $0x40] sm:$0xff]
        %v5183 = vld [vmem:[%s5173 + $0x48] sm:$0xff]
        %v5184 = vld [vmem:[%s5173 + $0x50] sm:$0xff]
        %v5185 = vld [vmem:[%s5173 + $0x58] sm:$0xff]
        %v5186 = vld [vmem:[%s5173 + $0x60] sm:$0xff]
        %v5187 = vld [vmem:[%s5173 + $0x68] sm:$0xff]
        %v5188 = vld [vmem:[%s5173 + $0x70] sm:$0xff]
        %v5189 = vld [vmem:[%s5173 + $0x78] sm:$0xff]
        %v5206 = vunpack.c.l.b16 %v5174
        %v5207 = vunpack.c.h.b16 %v5174
        %v5208 = vunpack.c.l.b16 %v5175
        %v5209 = vunpack.c.h.b16 %v5175
        %v5210 = vunpack.c.l.b16 %v5176
        %v5211 = vunpack.c.h.b16 %v5176
        %v5212 = vunpack.c.l.b16 %v5177
        %v5213 = vunpack.c.h.b16 %v5177
        %v5214 = vunpack.c.l.b16 %v5178
        %v5215 = vunpack.c.h.b16 %v5178
        %v5216 = vunpack.c.l.b16 %v5179
        %v5217 = vunpack.c.h.b16 %v5179
        %v5218 = vunpack.c.l.b16 %v5180
        %v5219 = vunpack.c.h.b16 %v5180
        %v5220 = vunpack.c.l.b16 %v5181
        %v5221 = vunpack.c.h.b16 %v5181
        %v5222 = vunpack.c.l.b16 %v5182
        %v5223 = vunpack.c.h.b16 %v5182
        %v5224 = vunpack.c.l.b16 %v5183
        %v5225 = vunpack.c.h.b16 %v5183
        %v5226 = vunpack.c.l.b16 %v5184
        %v5227 = vunpack.c.h.b16 %v5184
        %v5228 = vunpack.c.l.b16 %v5185
        %v5229 = vunpack.c.h.b16 %v5185
        %v5230 = vunpack.c.l.b16 %v5186
        %v5231 = vunpack.c.h.b16 %v5186
        %v5232 = vunpack.c.l.b16 %v5187
        %v5233 = vunpack.c.h.b16 %v5187
        %v5234 = vunpack.c.l.b16 %v5188
        %v5235 = vunpack.c.h.b16 %v5188
        %v5236 = vunpack.c.l.b16 %v5189
        %v5237 = vunpack.c.h.b16 %v5189
        %v5238 = vpack.c.b16 %v5208, %v5206
        %v5239 = vpack.c.b16 %v5209, %v5207
        %v5240 = vpack.c.b16 %v5212, %v5210
        %v5241 = vpack.c.b16 %v5213, %v5211
        %v5242 = vpack.c.b16 %v5216, %v5214
        %v5243 = vpack.c.b16 %v5217, %v5215
        %v5244 = vpack.c.b16 %v5220, %v5218
        %v5245 = vpack.c.b16 %v5221, %v5219
        %v5246 = vpack.c.b16 %v5224, %v5222
        %v5247 = vpack.c.b16 %v5225, %v5223
        %v5248 = vpack.c.b16 %v5228, %v5226
        %v5249 = vpack.c.b16 %v5229, %v5227
        %v5250 = vpack.c.b16 %v5232, %v5230
        %v5251 = vpack.c.b16 %v5233, %v5231
        %v5252 = vpack.c.b16 %v5236, %v5234
        %v5253 = vpack.c.b16 %v5237, %v5235
        %5270 = vmatprep.subr.bf16.mxu0 %v5239
        %5271 = vmatpush1.bf16.msra.mxu0 %v5238
        %5272 = vmatprep.subr.bf16.mxu0 %v5241
        %5273 = vmatpush1.bf16.msra.mxu0 %v5240
        %5274 = vmatprep.subr.bf16.mxu0 %v5243
        %5275 = vmatpush1.bf16.msra.mxu0 %v5242
        %5276 = vmatprep.subr.bf16.mxu0 %v5245
        %5277 = vmatpush1.bf16.msra.mxu0 %v5244
        %5278 = vmatprep.subr.bf16.mxu0 %v5247
        %5279 = vmatpush1.bf16.msra.mxu0 %v5246
        %5280 = vmatprep.subr.bf16.mxu0 %v5249
        %5281 = vmatpush1.bf16.msra.mxu0 %v5248
        %5282 = vmatprep.subr.bf16.mxu0 %v5251
        %5283 = vmatpush1.bf16.msra.mxu0 %v5250
        %5284 = vmatprep.subr.bf16.mxu0 %v5253
        %5285 = vmatpush1.bf16.msra.mxu0 %v5252
        %5286 = vmatprep.subr.bf16.mxu0 0
        %5287 = vmatpush1.bf16.msra.mxu0 0
        %5288 = vmatprep.subr.bf16.mxu0 0
        %5289 = vmatpush1.bf16.msra.mxu0 0
        %5290 = vmatprep.subr.bf16.mxu0 0
        %5291 = vmatpush1.bf16.msra.mxu0 0
        %5292 = vmatprep.subr.bf16.mxu0 0
        %5293 = vmatpush1.bf16.msra.mxu0 0
        %5294 = vmatprep.subr.bf16.mxu0 0
        %5295 = vmatpush1.bf16.msra.mxu0 0
        %5296 = vmatprep.subr.bf16.mxu0 0
        %5297 = vmatpush1.bf16.msra.mxu0 0
        %5298 = vmatprep.subr.bf16.mxu0 0
        %5299 = vmatpush1.bf16.msra.mxu0 0
        %5300 = vmatprep.subr.bf16.mxu0 0
        %5301 = vmatpush1.bf16.msra.mxu0 0
        %5302 = vmatprep.mubr.bf16.mxu0 0
        %5303 = vmatmul.mubr.bf16.gmra.mrb[0].mxu0 %v5172
        %v5304 = vpop.f32.mrb[0].mxu0
        %v5305 = vadd.f32 0.0, %v5304
        %v5306 = vpop.f32.mrb[0].mxu0
        %v5307 = vadd.f32 0.0, %v5306
        %v5308 = vpop.f32.mrb[0].mxu0
        %v5309 = vpop.f32.mrb[0].mxu0
        %5310 = vdwg.mxu0
        %v5311 = vadd.f32 %v5125, %v5305
        %v5312 = vadd.f32 %v5126, %v5307
        %s5313 = scalar_lea.vmem %s9, 14
        %v5314 = vld [vmem:[%s5313] sm:$0x3]
        %v5316 = vsel %vm4017, %v5314, 0
        %5318 = vmatprep.subr.bf16.mxu0 0
        %5319 = vmatpush1.bf16.msra.mxu0 %v4015
        %5320 = vmatprep.subr.bf16.mxu0 0
        %5321 = vmatpush1.bf16.msra.mxu0 0
        %5322 = vmatprep.subr.bf16.mxu0 0
        %5323 = vmatpush1.bf16.msra.mxu0 0
        %5324 = vmatprep.subr.bf16.mxu0 0
        %5325 = vmatpush1.bf16.msra.mxu0 0
        %5326 = vmatprep.subr.bf16.mxu0 0
        %5327 = vmatpush1.bf16.msra.mxu0 0
        %5328 = vmatprep.subr.bf16.mxu0 0
        %5329 = vmatpush1.bf16.msra.mxu0 0
        %5330 = vmatprep.subr.bf16.mxu0 0
        %5331 = vmatpush1.bf16.msra.mxu0 0
        %5332 = vmatprep.subr.bf16.mxu0 0
        %5333 = vmatpush1.bf16.msra.mxu0 0
        %5334 = vmatprep.subr.bf16.mxu0 0
        %5335 = vmatpush1.bf16.msra.mxu0 0
        %5336 = vmatprep.subr.bf16.mxu0 0
        %5337 = vmatpush1.bf16.msra.mxu0 0
        %5338 = vmatprep.subr.bf16.mxu0 0
        %5339 = vmatpush1.bf16.msra.mxu0 0
        %5340 = vmatprep.subr.bf16.mxu0 0
        %5341 = vmatpush1.bf16.msra.mxu0 0
        %5342 = vmatprep.subr.bf16.mxu0 0
        %5343 = vmatpush1.bf16.msra.mxu0 0
        %5344 = vmatprep.subr.bf16.mxu0 0
        %5345 = vmatpush1.bf16.msra.mxu0 0
        %5346 = vmatprep.subr.bf16.mxu0 0
        %5347 = vmatpush1.bf16.msra.mxu0 0
        %5348 = vmatprep.subr.bf16.mxu0 0
        %5349 = vmatpush1.bf16.msra.mxu0 0
        %5350 = vmatprep.mubr.bf16.mxu0 0
        %5351 = vmatmul.mubr.bf16.gmra.mrb[0].mxu0 %v5316
        %v5352 = vpop.f32.mrb[0].mxu0
        %v5353 = vadd.f32 0.0, %v5352
        %v5354 = vpop.f32.mrb[0].mxu0
        %v5355 = vpop.f32.mrb[0].mxu0
        %v5356 = vpop.f32.mrb[0].mxu0
        %5357 = vdwg.mxu0
        %v5358 = vpack.c.bf16 %v5353, %v5353
        %s5359 = scalar_lea.vmem %s10, 896
        %v5360 = vld [vmem:[%s5359] sm:$0xff]
        %v5361 = vld [vmem:[%s5359 + $0x8] sm:$0xff]
        %v5362 = vld [vmem:[%s5359 + $0x10] sm:$0xff]
        %v5363 = vld [vmem:[%s5359 + $0x18] sm:$0xff]
        %v5364 = vld [vmem:[%s5359 + $0x20] sm:$0xff]
        %v5365 = vld [vmem:[%s5359 + $0x28] sm:$0xff]
        %v5366 = vld [vmem:[%s5359 + $0x30] sm:$0xff]
        %v5367 = vld [vmem:[%s5359 + $0x38] sm:$0xff]
        %v5368 = vld [vmem:[%s5359 + $0x40] sm:$0xff]
        %v5369 = vld [vmem:[%s5359 + $0x48] sm:$0xff]
        %v5370 = vld [vmem:[%s5359 + $0x50] sm:$0xff]
        %v5371 = vld [vmem:[%s5359 + $0x58] sm:$0xff]
        %v5372 = vld [vmem:[%s5359 + $0x60] sm:$0xff]
        %v5373 = vld [vmem:[%s5359 + $0x68] sm:$0xff]
        %v5374 = vld [vmem:[%s5359 + $0x70] sm:$0xff]
        %v5375 = vld [vmem:[%s5359 + $0x78] sm:$0xff]
        %v5392 = vunpack.c.l.b16 %v5360
        %v5393 = vunpack.c.h.b16 %v5360
        %v5394 = vunpack.c.l.b16 %v5361
        %v5395 = vunpack.c.h.b16 %v5361
        %v5396 = vunpack.c.l.b16 %v5362
        %v5397 = vunpack.c.h.b16 %v5362
        %v5398 = vunpack.c.l.b16 %v5363
        %v5399 = vunpack.c.h.b16 %v5363
        %v5400 = vunpack.c.l.b16 %v5364
        %v5401 = vunpack.c.h.b16 %v5364
        %v5402 = vunpack.c.l.b16 %v5365
        %v5403 = vunpack.c.h.b16 %v5365
        %v5404 = vunpack.c.l.b16 %v5366
        %v5405 = vunpack.c.h.b16 %v5366
        %v5406 = vunpack.c.l.b16 %v5367
        %v5407 = vunpack.c.h.b16 %v5367
        %v5408 = vunpack.c.l.b16 %v5368
        %v5409 = vunpack.c.h.b16 %v5368
        %v5410 = vunpack.c.l.b16 %v5369
        %v5411 = vunpack.c.h.b16 %v5369
        %v5412 = vunpack.c.l.b16 %v5370
        %v5413 = vunpack.c.h.b16 %v5370
        %v5414 = vunpack.c.l.b16 %v5371
        %v5415 = vunpack.c.h.b16 %v5371
        %v5416 = vunpack.c.l.b16 %v5372
        %v5417 = vunpack.c.h.b16 %v5372
        %v5418 = vunpack.c.l.b16 %v5373
        %v5419 = vunpack.c.h.b16 %v5373
        %v5420 = vunpack.c.l.b16 %v5374
        %v5421 = vunpack.c.h.b16 %v5374
        %v5422 = vunpack.c.l.b16 %v5375
        %v5423 = vunpack.c.h.b16 %v5375
        %v5424 = vpack.c.b16 %v5394, %v5392
        %v5425 = vpack.c.b16 %v5395, %v5393
        %v5426 = vpack.c.b16 %v5398, %v5396
        %v5427 = vpack.c.b16 %v5399, %v5397
        %v5428 = vpack.c.b16 %v5402, %v5400
        %v5429 = vpack.c.b16 %v5403, %v5401
        %v5430 = vpack.c.b16 %v5406, %v5404
        %v5431 = vpack.c.b16 %v5407, %v5405
        %v5432 = vpack.c.b16 %v5410, %v5408
        %v5433 = vpack.c.b16 %v5411, %v5409
        %v5434 = vpack.c.b16 %v5414, %v5412
        %v5435 = vpack.c.b16 %v5415, %v5413
        %v5436 = vpack.c.b16 %v5418, %v5416
        %v5437 = vpack.c.b16 %v5419, %v5417
        %v5438 = vpack.c.b16 %v5422, %v5420
        %v5439 = vpack.c.b16 %v5423, %v5421
        %5456 = vmatprep.subr.bf16.mxu0 %v5425
        %5457 = vmatpush1.bf16.msra.mxu0 %v5424
        %5458 = vmatprep.subr.bf16.mxu0 %v5427
        %5459 = vmatpush1.bf16.msra.mxu0 %v5426
        %5460 = vmatprep.subr.bf16.mxu0 %v5429
        %5461 = vmatpush1.bf16.msra.mxu0 %v5428
        %5462 = vmatprep.subr.bf16.mxu0 %v5431
        %5463 = vmatpush1.bf16.msra.mxu0 %v5430
        %5464 = vmatprep.subr.bf16.mxu0 %v5433
        %5465 = vmatpush1.bf16.msra.mxu0 %v5432
        %5466 = vmatprep.subr.bf16.mxu0 %v5435
        %5467 = vmatpush1.bf16.msra.mxu0 %v5434
        %5468 = vmatprep.subr.bf16.mxu0 %v5437
        %5469 = vmatpush1.bf16.msra.mxu0 %v5436
        %5470 = vmatprep.subr.bf16.mxu0 %v5439
        %5471 = vmatpush1.bf16.msra.mxu0 %v5438
        %5472 = vmatprep.subr.bf16.mxu0 0
        %5473 = vmatpush1.bf16.msra.mxu0 0
        %5474 = vmatprep.subr.bf16.mxu0 0
        %5475 = vmatpush1.bf16.msra.mxu0 0
        %5476 = vmatprep.subr.bf16.mxu0 0
        %5477 = vmatpush1.bf16.msra.mxu0 0
        %5478 = vmatprep.subr.bf16.mxu0 0
        %5479 = vmatpush1.bf16.msra.mxu0 0
        %5480 = vmatprep.subr.bf16.mxu0 0
        %5481 = vmatpush1.bf16.msra.mxu0 0
        %5482 = vmatprep.subr.bf16.mxu0 0
        %5483 = vmatpush1.bf16.msra.mxu0 0
        %5484 = vmatprep.subr.bf16.mxu0 0
        %5485 = vmatpush1.bf16.msra.mxu0 0
        %5486 = vmatprep.subr.bf16.mxu0 0
        %5487 = vmatpush1.bf16.msra.mxu0 0
        %5488 = vmatprep.mubr.bf16.mxu0 0
        %5489 = vmatmul.mubr.bf16.gmra.mrb[0].mxu0 %v5358
        %v5490 = vpop.f32.mrb[0].mxu0
        %v5491 = vadd.f32 0.0, %v5490
        %v5492 = vpop.f32.mrb[0].mxu0
        %v5493 = vadd.f32 0.0, %v5492
        %v5494 = vpop.f32.mrb[0].mxu0
        %v5495 = vpop.f32.mrb[0].mxu0
        %5496 = vdwg.mxu0
        %v5497 = vadd.f32 %v5311, %v5491
        %v5498 = vadd.f32 %v5312, %v5493
        %s5499 = scalar_lea.vmem %s9, 16
        %v5500 = vld [vmem:[%s5499] sm:$0x3]
        %v5502 = vsel %vm4017, %v5500, 0
        %5504 = vmatprep.subr.bf16.mxu0 0
        %5505 = vmatpush1.bf16.msra.mxu0 %v4015
        %5506 = vmatprep.subr.bf16.mxu0 0
        %5507 = vmatpush1.bf16.msra.mxu0 0
        %5508 = vmatprep.subr.bf16.mxu0 0
        %5509 = vmatpush1.bf16.msra.mxu0 0
        %5510 = vmatprep.subr.bf16.mxu0 0
        %5511 = vmatpush1.bf16.msra.mxu0 0
        %5512 = vmatprep.subr.bf16.mxu0 0
        %5513 = vmatpush1.bf16.msra.mxu0 0
        %5514 = vmatprep.subr.bf16.mxu0 0
        %5515 = vmatpush1.bf16.msra.mxu0 0
        %5516 = vmatprep.subr.bf16.mxu0 0
        %5517 = vmatpush1.bf16.msra.mxu0 0
        %5518 = vmatprep.subr.bf16.mxu0 0
        %5519 = vmatpush1.bf16.msra.mxu0 0
        %5520 = vmatprep.subr.bf16.mxu0 0
        %5521 = vmatpush1.bf16.msra.mxu0 0
        %5522 = vmatprep.subr.bf16.mxu0 0
        %5523 = vmatpush1.bf16.msra.mxu0 0
        %5524 = vmatprep.subr.bf16.mxu0 0
        %5525 = vmatpush1.bf16.msra.mxu0 0
        %5526 = vmatprep.subr.bf16.mxu0 0
        %5527 = vmatpush1.bf16.msra.mxu0 0
        %5528 = vmatprep.subr.bf16.mxu0 0
        %5529 = vmatpush1.bf16.msra.mxu0 0
        %5530 = vmatprep.subr.bf16.mxu0 0
        %5531 = vmatpush1.bf16.msra.mxu0 0
        %5532 = vmatprep.subr.bf16.mxu0 0
        %5533 = vmatpush1.bf16.msra.mxu0 0
        %5534 = vmatprep.subr.bf16.mxu0 0
        %5535 = vmatpush1.bf16.msra.mxu0 0
        %5536 = vmatprep.mubr.bf16.mxu0 0
        %5537 = vmatmul.mubr.bf16.gmra.mrb[0].mxu0 %v5502
        %v5538 = vpop.f32.mrb[0].mxu0
        %v5539 = vadd.f32 0.0, %v5538
        %v5540 = vpop.f32.mrb[0].mxu0
        %v5541 = vpop.f32.mrb[0].mxu0
        %v5542 = vpop.f32.mrb[0].mxu0
        %5543 = vdwg.mxu0
        %v5544 = vpack.c.bf16 %v5539, %v5539
        %s5545 = scalar_lea.vmem %s10, 1024
        %v5546 = vld [vmem:[%s5545] sm:$0xff]
        %v5547 = vld [vmem:[%s5545 + $0x8] sm:$0xff]
        %v5548 = vld [vmem:[%s5545 + $0x10] sm:$0xff]
        %v5549 = vld [vmem:[%s5545 + $0x18] sm:$0xff]
        %v5550 = vld [vmem:[%s5545 + $0x20] sm:$0xff]
        %v5551 = vld [vmem:[%s5545 + $0x28] sm:$0xff]
        %v5552 = vld [vmem:[%s5545 + $0x30] sm:$0xff]
        %v5553 = vld [vmem:[%s5545 + $0x38] sm:$0xff]
        %v5554 = vld [vmem:[%s5545 + $0x40] sm:$0xff]
        %v5555 = vld [vmem:[%s5545 + $0x48] sm:$0xff]
        %v5556 = vld [vmem:[%s5545 + $0x50] sm:$0xff]
        %v5557 = vld [vmem:[%s5545 + $0x58] sm:$0xff]
        %v5558 = vld [vmem:[%s5545 + $0x60] sm:$0xff]
        %v5559 = vld [vmem:[%s5545 + $0x68] sm:$0xff]
        %v5560 = vld [vmem:[%s5545 + $0x70] sm:$0xff]
        %v5561 = vld [vmem:[%s5545 + $0x78] sm:$0xff]
        %v5578 = vunpack.c.l.b16 %v5546
        %v5579 = vunpack.c.h.b16 %v5546
        %v5580 = vunpack.c.l.b16 %v5547
        %v5581 = vunpack.c.h.b16 %v5547
        %v5582 = vunpack.c.l.b16 %v5548
        %v5583 = vunpack.c.h.b16 %v5548
        %v5584 = vunpack.c.l.b16 %v5549
        %v5585 = vunpack.c.h.b16 %v5549
        %v5586 = vunpack.c.l.b16 %v5550
        %v5587 = vunpack.c.h.b16 %v5550
        %v5588 = vunpack.c.l.b16 %v5551
        %v5589 = vunpack.c.h.b16 %v5551
        %v5590 = vunpack.c.l.b16 %v5552
        %v5591 = vunpack.c.h.b16 %v5552
        %v5592 = vunpack.c.l.b16 %v5553
        %v5593 = vunpack.c.h.b16 %v5553
        %v5594 = vunpack.c.l.b16 %v5554
        %v5595 = vunpack.c.h.b16 %v5554
        %v5596 = vunpack.c.l.b16 %v5555
        %v5597 = vunpack.c.h.b16 %v5555
        %v5598 = vunpack.c.l.b16 %v5556
        %v5599 = vunpack.c.h.b16 %v5556
        %v5600 = vunpack.c.l.b16 %v5557
        %v5601 = vunpack.c.h.b16 %v5557
        %v5602 = vunpack.c.l.b16 %v5558
        %v5603 = vunpack.c.h.b16 %v5558
        %v5604 = vunpack.c.l.b16 %v5559
        %v5605 = vunpack.c.h.b16 %v5559
        %v5606 = vunpack.c.l.b16 %v5560
        %v5607 = vunpack.c.h.b16 %v5560
        %v5608 = vunpack.c.l.b16 %v5561
        %v5609 = vunpack.c.h.b16 %v5561
        %v5610 = vpack.c.b16 %v5580, %v5578
        %v5611 = vpack.c.b16 %v5581, %v5579
        %v5612 = vpack.c.b16 %v5584, %v5582
        %v5613 = vpack.c.b16 %v5585, %v5583
        %v5614 = vpack.c.b16 %v5588, %v5586
        %v5615 = vpack.c.b16 %v5589, %v5587
        %v5616 = vpack.c.b16 %v5592, %v5590
        %v5617 = vpack.c.b16 %v5593, %v5591
        %v5618 = vpack.c.b16 %v5596, %v5594
        %v5619 = vpack.c.b16 %v5597, %v5595
        %v5620 = vpack.c.b16 %v5600, %v5598
        %v5621 = vpack.c.b16 %v5601, %v5599
        %v5622 = vpack.c.b16 %v5604, %v5602
        %v5623 = vpack.c.b16 %v5605, %v5603
        %v5624 = vpack.c.b16 %v5608, %v5606
        %v5625 = vpack.c.b16 %v5609, %v5607
        %5642 = vmatprep.subr.bf16.mxu0 %v5611
        %5643 = vmatpush1.bf16.msra.mxu0 %v5610
        %5644 = vmatprep.subr.bf16.mxu0 %v5613
        %5645 = vmatpush1.bf16.msra.mxu0 %v5612
        %5646 = vmatprep.subr.bf16.mxu0 %v5615
        %5647 = vmatpush1.bf16.msra.mxu0 %v5614
        %5648 = vmatprep.subr.bf16.mxu0 %v5617
        %5649 = vmatpush1.bf16.msra.mxu0 %v5616
        %5650 = vmatprep.subr.bf16.mxu0 %v5619
        %5651 = vmatpush1.bf16.msra.mxu0 %v5618
        %5652 = vmatprep.subr.bf16.mxu0 %v5621
        %5653 = vmatpush1.bf16.msra.mxu0 %v5620
        %5654 = vmatprep.subr.bf16.mxu0 %v5623
        %5655 = vmatpush1.bf16.msra.mxu0 %v5622
        %5656 = vmatprep.subr.bf16.mxu0 %v5625
        %5657 = vmatpush1.bf16.msra.mxu0 %v5624
        %5658 = vmatprep.subr.bf16.mxu0 0
        %5659 = vmatpush1.bf16.msra.mxu0 0
        %5660 = vmatprep.subr.bf16.mxu0 0
        %5661 = vmatpush1.bf16.msra.mxu0 0
        %5662 = vmatprep.subr.bf16.mxu0 0
        %5663 = vmatpush1.bf16.msra.mxu0 0
        %5664 = vmatprep.subr.bf16.mxu0 0
        %5665 = vmatpush1.bf16.msra.mxu0 0
        %5666 = vmatprep.subr.bf16.mxu0 0
        %5667 = vmatpush1.bf16.msra.mxu0 0
        %5668 = vmatprep.subr.bf16.mxu0 0
        %5669 = vmatpush1.bf16.msra.mxu0 0
        %5670 = vmatprep.subr.bf16.mxu0 0
        %5671 = vmatpush1.bf16.msra.mxu0 0
        %5672 = vmatprep.subr.bf16.mxu0 0
        %5673 = vmatpush1.bf16.msra.mxu0 0
        %5674 = vmatprep.mubr.bf16.mxu0 0
        %5675 = vmatmul.mubr.bf16.gmra.mrb[0].mxu0 %v5544
        %v5676 = vpop.f32.mrb[0].mxu0
        %v5677 = vadd.f32 0.0, %v5676
        %v5678 = vpop.f32.mrb[0].mxu0
        %v5679 = vadd.f32 0.0, %v5678
        %v5680 = vpop.f32.mrb[0].mxu0
        %v5681 = vpop.f32.mrb[0].mxu0
        %5682 = vdwg.mxu0
        %v5683 = vadd.f32 %v5497, %v5677
        %v5684 = vadd.f32 %v5498, %v5679
        %v5685 = vld [vmem:[%s11] sm:$0x3]
        %v5687 = vlaneseq
        %v5688 = vshrl.u32 %v5687, 7
        %v5689 = vsub.s32 0, %v5688
        %v5690 = vrot.slane %v5685, %v5689
        %v5691 = vlaneseq
        %v5692 = vshrl.u32 %v5691, 7
        %v5693 = vsub.s32 1, %v5692
        %v5694 = vrot.slane %v5685, %v5693
        %v5697 = vadd.f32 %v5683, %v5690
        %v5698 = vadd.f32 %v5684, %v5694
        %v5699 = vmax.f32 %v5697, 0.0
        %v5700 = vmax.f32 %v5698, 0.0
        %v5701 = vpack.c.bf16 %v5699, %v5699
        %v5702 = vpack.c.bf16 %v5700, %v5700
        %v5703 = vld [vmem:[%s13] sm:$0x1]
        %v5704 = vld [vmem:[%s12] sm:$0xf]
        %v5705 = vld [vmem:[%s12 + $0x4] sm:$0xf]
        %v5706 = vld [vmem:[%s12 + $0x8] sm:$0xf]
        %v5707 = vld [vmem:[%s12 + $0xc] sm:$0xf]
        %v5708 = vld [vmem:[%s12 + $0x10] sm:$0xf]
        %v5709 = vld [vmem:[%s12 + $0x14] sm:$0xf]
        %v5710 = vld [vmem:[%s12 + $0x18] sm:$0xf]
        %v5711 = vld [vmem:[%s12 + $0x1c] sm:$0xf]
        %v5712 = vld [vmem:[%s12 + $0x20] sm:$0xf]
        %v5713 = vld [vmem:[%s12 + $0x24] sm:$0xf]
        %v5714 = vld [vmem:[%s12 + $0x28] sm:$0xf]
        %v5715 = vld [vmem:[%s12 + $0x2c] sm:$0xf]
        %v5716 = vld [vmem:[%s12 + $0x30] sm:$0xf]
        %v5717 = vld [vmem:[%s12 + $0x34] sm:$0xf]
        %v5718 = vld [vmem:[%s12 + $0x38] sm:$0xf]
        %v5719 = vld [vmem:[%s12 + $0x3c] sm:$0xf]
        %v5720 = vld [vmem:[%s12 + $0x40] sm:$0xf]
        %v5721 = vld [vmem:[%s12 + $0x44] sm:$0xf]
        %v5722 = vld [vmem:[%s12 + $0x48] sm:$0xf]
        %v5723 = vld [vmem:[%s12 + $0x4c] sm:$0xf]
        %v5724 = vld [vmem:[%s12 + $0x50] sm:$0xf]
        %v5725 = vld [vmem:[%s12 + $0x54] sm:$0xf]
        %v5726 = vld [vmem:[%s12 + $0x58] sm:$0xf]
        %v5727 = vld [vmem:[%s12 + $0x5c] sm:$0xf]
        %v5728 = vld [vmem:[%s12 + $0x60] sm:$0xf]
        %v5729 = vld [vmem:[%s12 + $0x64] sm:$0xf]
        %v5730 = vld [vmem:[%s12 + $0x68] sm:$0xf]
        %v5731 = vld [vmem:[%s12 + $0x6c] sm:$0xf]
        %v5732 = vld [vmem:[%s12 + $0x70] sm:$0xf]
        %v5733 = vld [vmem:[%s12 + $0x74] sm:$0xf]
        %v5734 = vld [vmem:[%s12 + $0x78] sm:$0xf]
        %v5735 = vld [vmem:[%s12 + $0x7c] sm:$0xf]
        %v5768 = vunpack.c.l.b16 %v5704
        %v5769 = vunpack.c.l.b16 %v5705
        %v5770 = vunpack.c.l.b16 %v5706
        %v5771 = vunpack.c.l.b16 %v5707
        %v5772 = vunpack.c.l.b16 %v5708
        %v5773 = vunpack.c.l.b16 %v5709
        %v5774 = vunpack.c.l.b16 %v5710
        %v5775 = vunpack.c.l.b16 %v5711
        %v5776 = vunpack.c.l.b16 %v5712
        %v5777 = vunpack.c.l.b16 %v5713
        %v5778 = vunpack.c.l.b16 %v5714
        %v5779 = vunpack.c.l.b16 %v5715
        %v5780 = vunpack.c.l.b16 %v5716
        %v5781 = vunpack.c.l.b16 %v5717
        %v5782 = vunpack.c.l.b16 %v5718
        %v5783 = vunpack.c.l.b16 %v5719
        %v5784 = vunpack.c.l.b16 %v5720
        %v5785 = vunpack.c.l.b16 %v5721
        %v5786 = vunpack.c.l.b16 %v5722
        %v5787 = vunpack.c.l.b16 %v5723
        %v5788 = vunpack.c.l.b16 %v5724
        %v5789 = vunpack.c.l.b16 %v5725
        %v5790 = vunpack.c.l.b16 %v5726
        %v5791 = vunpack.c.l.b16 %v5727
        %v5792 = vunpack.c.l.b16 %v5728
        %v5793 = vunpack.c.l.b16 %v5729
        %v5794 = vunpack.c.l.b16 %v5730
        %v5795 = vunpack.c.l.b16 %v5731
        %v5796 = vunpack.c.l.b16 %v5732
        %v5797 = vunpack.c.l.b16 %v5733
        %v5798 = vunpack.c.l.b16 %v5734
        %v5799 = vunpack.c.l.b16 %v5735
        %v5800 = vpack.c.b16 %v5769, %v5768
        %v5801 = vpack.c.b16 %v5771, %v5770
        %v5802 = vpack.c.b16 %v5773, %v5772
        %v5803 = vpack.c.b16 %v5775, %v5774
        %v5804 = vpack.c.b16 %v5777, %v5776
        %v5805 = vpack.c.b16 %v5779, %v5778
        %v5806 = vpack.c.b16 %v5781, %v5780
        %v5807 = vpack.c.b16 %v5783, %v5782
        %v5808 = vpack.c.b16 %v5785, %v5784
        %v5809 = vpack.c.b16 %v5787, %v5786
        %v5810 = vpack.c.b16 %v5789, %v5788
        %v5811 = vpack.c.b16 %v5791, %v5790
        %v5812 = vpack.c.b16 %v5793, %v5792
        %v5813 = vpack.c.b16 %v5795, %v5794
        %v5814 = vpack.c.b16 %v5797, %v5796
        %v5815 = vpack.c.b16 %v5799, %v5798
        %5832 = vmatprep.subr.bf16.mxu0 0
        %5833 = vmatpush1.bf16.msra.mxu0 %v5800
        %5834 = vmatprep.subr.bf16.mxu0 0
        %5835 = vmatpush1.bf16.msra.mxu0 %v5801
        %5836 = vmatprep.subr.bf16.mxu0 0
        %5837 = vmatpush1.bf16.msra.mxu0 %v5802
        %5838 = vmatprep.subr.bf16.mxu0 0
        %5839 = vmatpush1.bf16.msra.mxu0 %v5803
        %5840 = vmatprep.subr.bf16.mxu0 0
        %5841 = vmatpush1.bf16.msra.mxu0 %v5804
        %5842 = vmatprep.subr.bf16.mxu0 0
        %5843 = vmatpush1.bf16.msra.mxu0 %v5805
        %5844 = vmatprep.subr.bf16.mxu0 0
        %5845 = vmatpush1.bf16.msra.mxu0 %v5806
        %5846 = vmatprep.subr.bf16.mxu0 0
        %5847 = vmatpush1.bf16.msra.mxu0 %v5807
        %5848 = vmatprep.subr.bf16.mxu0 0
        %5849 = vmatpush1.bf16.msra.mxu0 %v5808
        %5850 = vmatprep.subr.bf16.mxu0 0
        %5851 = vmatpush1.bf16.msra.mxu0 %v5809
        %5852 = vmatprep.subr.bf16.mxu0 0
        %5853 = vmatpush1.bf16.msra.mxu0 %v5810
        %5854 = vmatprep.subr.bf16.mxu0 0
        %5855 = vmatpush1.bf16.msra.mxu0 %v5811
        %5856 = vmatprep.subr.bf16.mxu0 0
        %5857 = vmatpush1.bf16.msra.mxu0 %v5812
        %5858 = vmatprep.subr.bf16.mxu0 0
        %5859 = vmatpush1.bf16.msra.mxu0 %v5813
        %5860 = vmatprep.subr.bf16.mxu0 0
        %5861 = vmatpush1.bf16.msra.mxu0 %v5814
        %5862 = vmatprep.subr.bf16.mxu0 0
        %5863 = vmatpush1.bf16.msra.mxu0 %v5815
        %5864 = vmatprep.mubr.bf16.mxu0 %v5702
        %5865 = vmatmul.mubr.bf16.gmra.mrb[0].mxu0 %v5701
        %v5866 = vpop.f32.mrb[0].mxu0
        %v5867 = vadd.f32 0.0, %v5866
        %v5868 = vpop.f32.mrb[0].mxu0
        %v5869 = vpop.f32.mrb[0].mxu0
        %v5870 = vpop.f32.mrb[0].mxu0
        %5871 = vdwg.mxu0
        %v5872 = vadd.f32 %v5703, %v5867
        %s5873 = scalar_lea.vmem %s12, 128
        %v5874 = vld [vmem:[%s5873] sm:$0xf]
        %v5875 = vld [vmem:[%s5873 + $0x4] sm:$0xf]
        %v5876 = vld [vmem:[%s5873 + $0x8] sm:$0xf]
        %v5877 = vld [vmem:[%s5873 + $0xc] sm:$0xf]
        %v5878 = vld [vmem:[%s5873 + $0x10] sm:$0xf]
        %v5879 = vld [vmem:[%s5873 + $0x14] sm:$0xf]
        %v5880 = vld [vmem:[%s5873 + $0x18] sm:$0xf]
        %v5881 = vld [vmem:[%s5873 + $0x1c] sm:$0xf]
        %v5882 = vld [vmem:[%s5873 + $0x20] sm:$0xf]
        %v5883 = vld [vmem:[%s5873 + $0x24] sm:$0xf]
        %v5884 = vld [vmem:[%s5873 + $0x28] sm:$0xf]
        %v5885 = vld [vmem:[%s5873 + $0x2c] sm:$0xf]
        %v5886 = vld [vmem:[%s5873 + $0x30] sm:$0xf]
        %v5887 = vld [vmem:[%s5873 + $0x34] sm:$0xf]
        %v5888 = vld [vmem:[%s5873 + $0x38] sm:$0xf]
        %v5889 = vld [vmem:[%s5873 + $0x3c] sm:$0xf]
        %v5890 = vld [vmem:[%s5873 + $0x40] sm:$0xf]
        %v5891 = vld [vmem:[%s5873 + $0x44] sm:$0xf]
        %v5892 = vld [vmem:[%s5873 + $0x48] sm:$0xf]
        %v5893 = vld [vmem:[%s5873 + $0x4c] sm:$0xf]
        %v5894 = vld [vmem:[%s5873 + $0x50] sm:$0xf]
        %v5895 = vld [vmem:[%s5873 + $0x54] sm:$0xf]
        %v5896 = vld [vmem:[%s5873 + $0x58] sm:$0xf]
        %v5897 = vld [vmem:[%s5873 + $0x5c] sm:$0xf]
        %v5898 = vld [vmem:[%s5873 + $0x60] sm:$0xf]
        %v5899 = vld [vmem:[%s5873 + $0x64] sm:$0xf]
        %v5900 = vld [vmem:[%s5873 + $0x68] sm:$0xf]
        %v5901 = vld [vmem:[%s5873 + $0x6c] sm:$0xf]
        %v5902 = vld [vmem:[%s5873 + $0x70] sm:$0xf]
        %v5903 = vld [vmem:[%s5873 + $0x74] sm:$0xf]
        %v5904 = vld [vmem:[%s5873 + $0x78] sm:$0xf]
        %v5905 = vld [vmem:[%s5873 + $0x7c] sm:$0xf]
        %v5907 = vshrl.u32 %v5701, 16
        %v5910 = vshrl.u32 %v5702, 16
        %v5946 = vunpack.c.l.b16 %v5874
        %v5947 = vunpack.c.l.b16 %v5875
        %v5948 = vunpack.c.l.b16 %v5876
        %v5949 = vunpack.c.l.b16 %v5877
        %v5950 = vunpack.c.l.b16 %v5878
        %v5951 = vunpack.c.l.b16 %v5879
        %v5952 = vunpack.c.l.b16 %v5880
        %v5953 = vunpack.c.l.b16 %v5881
        %v5954 = vunpack.c.l.b16 %v5882
        %v5955 = vunpack.c.l.b16 %v5883
        %v5956 = vunpack.c.l.b16 %v5884
        %v5957 = vunpack.c.l.b16 %v5885
        %v5958 = vunpack.c.l.b16 %v5886
        %v5959 = vunpack.c.l.b16 %v5887
        %v5960 = vunpack.c.l.b16 %v5888
        %v5961 = vunpack.c.l.b16 %v5889
        %v5962 = vunpack.c.l.b16 %v5890
        %v5963 = vunpack.c.l.b16 %v5891
        %v5964 = vunpack.c.l.b16 %v5892
        %v5965 = vunpack.c.l.b16 %v5893
        %v5966 = vunpack.c.l.b16 %v5894
        %v5967 = vunpack.c.l.b16 %v5895
        %v5968 = vunpack.c.l.b16 %v5896
        %v5969 = vunpack.c.l.b16 %v5897
        %v5970 = vunpack.c.l.b16 %v5898
        %v5971 = vunpack.c.l.b16 %v5899
        %v5972 = vunpack.c.l.b16 %v5900
        %v5973 = vunpack.c.l.b16 %v5901
        %v5974 = vunpack.c.l.b16 %v5902
        %v5975 = vunpack.c.l.b16 %v5903
        %v5976 = vunpack.c.l.b16 %v5904
        %v5977 = vunpack.c.l.b16 %v5905
        %v5978 = vpack.c.b16 %v5947, %v5946
        %v5979 = vpack.c.b16 %v5949, %v5948
        %v5980 = vpack.c.b16 %v5951, %v5950
        %v5981 = vpack.c.b16 %v5953, %v5952
        %v5982 = vpack.c.b16 %v5955, %v5954
        %v5983 = vpack.c.b16 %v5957, %v5956
        %v5984 = vpack.c.b16 %v5959, %v5958
        %v5985 = vpack.c.b16 %v5961, %v5960
        %v5986 = vpack.c.b16 %v5963, %v5962
        %v5987 = vpack.c.b16 %v5965, %v5964
        %v5988 = vpack.c.b16 %v5967, %v5966
        %v5989 = vpack.c.b16 %v5969, %v5968
        %v5990 = vpack.c.b16 %v5971, %v5970
        %v5991 = vpack.c.b16 %v5973, %v5972
        %v5992 = vpack.c.b16 %v5975, %v5974
        %v5993 = vpack.c.b16 %v5977, %v5976
        %6010 = vmatprep.subr.bf16.mxu0 0
        %6011 = vmatpush1.bf16.msra.mxu0 %v5978
        %6012 = vmatprep.subr.bf16.mxu0 0
        %6013 = vmatpush1.bf16.msra.mxu0 %v5979
        %6014 = vmatprep.subr.bf16.mxu0 0
        %6015 = vmatpush1.bf16.msra.mxu0 %v5980
        %6016 = vmatprep.subr.bf16.mxu0 0
        %6017 = vmatpush1.bf16.msra.mxu0 %v5981
        %6018 = vmatprep.subr.bf16.mxu0 0
        %6019 = vmatpush1.bf16.msra.mxu0 %v5982
        %6020 = vmatprep.subr.bf16.mxu0 0
        %6021 = vmatpush1.bf16.msra.mxu0 %v5983
        %6022 = vmatprep.subr.bf16.mxu0 0
        %6023 = vmatpush1.bf16.msra.mxu0 %v5984
        %6024 = vmatprep.subr.bf16.mxu0 0
        %6025 = vmatpush1.bf16.msra.mxu0 %v5985
        %6026 = vmatprep.subr.bf16.mxu0 0
        %6027 = vmatpush1.bf16.msra.mxu0 %v5986
        %6028 = vmatprep.subr.bf16.mxu0 0
        %6029 = vmatpush1.bf16.msra.mxu0 %v5987
        %6030 = vmatprep.subr.bf16.mxu0 0
        %6031 = vmatpush1.bf16.msra.mxu0 %v5988
        %6032 = vmatprep.subr.bf16.mxu0 0
        %6033 = vmatpush1.bf16.msra.mxu0 %v5989
        %6034 = vmatprep.subr.bf16.mxu0 0
        %6035 = vmatpush1.bf16.msra.mxu0 %v5990
        %6036 = vmatprep.subr.bf16.mxu0 0
        %6037 = vmatpush1.bf16.msra.mxu0 %v5991
        %6038 = vmatprep.subr.bf16.mxu0 0
        %6039 = vmatpush1.bf16.msra.mxu0 %v5992
        %6040 = vmatprep.subr.bf16.mxu0 0
        %6041 = vmatpush1.bf16.msra.mxu0 %v5993
        %6042 = vmatprep.mubr.bf16.mxu0 %v5910
        %6043 = vmatmul.mubr.bf16.gmra.mrb[0].mxu0 %v5907
        %v6044 = vpop.f32.mrb[0].mxu0
        %v6045 = vadd.f32 0.0, %v6044
        %v6046 = vpop.f32.mrb[0].mxu0
        %v6047 = vpop.f32.mrb[0].mxu0
        %v6048 = vpop.f32.mrb[0].mxu0
        %6049 = vdwg.mxu0
        %v6050 = vadd.f32 %v5872, %v6045
        %s6051 = scalar_lea.vmem %s12, 256
        %v6052 = vld [vmem:[%s6051] sm:$0xf]
        %v6053 = vld [vmem:[%s6051 + $0x4] sm:$0xf]
        %v6054 = vld [vmem:[%s6051 + $0x8] sm:$0xf]
        %v6055 = vld [vmem:[%s6051 + $0xc] sm:$0xf]
        %v6056 = vld [vmem:[%s6051 + $0x10] sm:$0xf]
        %v6057 = vld [vmem:[%s6051 + $0x14] sm:$0xf]
        %v6058 = vld [vmem:[%s6051 + $0x18] sm:$0xf]
        %v6059 = vld [vmem:[%s6051 + $0x1c] sm:$0xf]
        %v6060 = vld [vmem:[%s6051 + $0x20] sm:$0xf]
        %v6061 = vld [vmem:[%s6051 + $0x24] sm:$0xf]
        %v6062 = vld [vmem:[%s6051 + $0x28] sm:$0xf]
        %v6063 = vld [vmem:[%s6051 + $0x2c] sm:$0xf]
        %v6064 = vld [vmem:[%s6051 + $0x30] sm:$0xf]
        %v6065 = vld [vmem:[%s6051 + $0x34] sm:$0xf]
        %v6066 = vld [vmem:[%s6051 + $0x38] sm:$0xf]
        %v6067 = vld [vmem:[%s6051 + $0x3c] sm:$0xf]
        %v6068 = vld [vmem:[%s6051 + $0x40] sm:$0xf]
        %v6069 = vld [vmem:[%s6051 + $0x44] sm:$0xf]
        %v6070 = vld [vmem:[%s6051 + $0x48] sm:$0xf]
        %v6071 = vld [vmem:[%s6051 + $0x4c] sm:$0xf]
        %v6072 = vld [vmem:[%s6051 + $0x50] sm:$0xf]
        %v6073 = vld [vmem:[%s6051 + $0x54] sm:$0xf]
        %v6074 = vld [vmem:[%s6051 + $0x58] sm:$0xf]
        %v6075 = vld [vmem:[%s6051 + $0x5c] sm:$0xf]
        %v6076 = vld [vmem:[%s6051 + $0x60] sm:$0xf]
        %v6077 = vld [vmem:[%s6051 + $0x64] sm:$0xf]
        %v6078 = vld [vmem:[%s6051 + $0x68] sm:$0xf]
        %v6079 = vld [vmem:[%s6051 + $0x6c] sm:$0xf]
        %v6080 = vld [vmem:[%s6051 + $0x70] sm:$0xf]
        %v6081 = vld [vmem:[%s6051 + $0x74] sm:$0xf]
        %v6082 = vld [vmem:[%s6051 + $0x78] sm:$0xf]
        %v6083 = vld [vmem:[%s6051 + $0x7c] sm:$0xf]
        %v6086 = vrot.slane %v5701, 1
        %v6087 = vrot.slane %v5702, 1
        %v6122 = vunpack.c.l.b16 %v6052
        %v6123 = vunpack.c.l.b16 %v6053
        %v6124 = vunpack.c.l.b16 %v6054
        %v6125 = vunpack.c.l.b16 %v6055
        %v6126 = vunpack.c.l.b16 %v6056
        %v6127 = vunpack.c.l.b16 %v6057
        %v6128 = vunpack.c.l.b16 %v6058
        %v6129 = vunpack.c.l.b16 %v6059
        %v6130 = vunpack.c.l.b16 %v6060
        %v6131 = vunpack.c.l.b16 %v6061
        %v6132 = vunpack.c.l.b16 %v6062
        %v6133 = vunpack.c.l.b16 %v6063
        %v6134 = vunpack.c.l.b16 %v6064
        %v6135 = vunpack.c.l.b16 %v6065
        %v6136 = vunpack.c.l.b16 %v6066
        %v6137 = vunpack.c.l.b16 %v6067
        %v6138 = vunpack.c.l.b16 %v6068
        %v6139 = vunpack.c.l.b16 %v6069
        %v6140 = vunpack.c.l.b16 %v6070
        %v6141 = vunpack.c.l.b16 %v6071
        %v6142 = vunpack.c.l.b16 %v6072
        %v6143 = vunpack.c.l.b16 %v6073
        %v6144 = vunpack.c.l.b16 %v6074
        %v6145 = vunpack.c.l.b16 %v6075
        %v6146 = vunpack.c.l.b16 %v6076
        %v6147 = vunpack.c.l.b16 %v6077
        %v6148 = vunpack.c.l.b16 %v6078
        %v6149 = vunpack.c.l.b16 %v6079
        %v6150 = vunpack.c.l.b16 %v6080
        %v6151 = vunpack.c.l.b16 %v6081
        %v6152 = vunpack.c.l.b16 %v6082
        %v6153 = vunpack.c.l.b16 %v6083
        %v6154 = vpack.c.b16 %v6123, %v6122
        %v6155 = vpack.c.b16 %v6125, %v6124
        %v6156 = vpack.c.b16 %v6127, %v6126
        %v6157 = vpack.c.b16 %v6129, %v6128
        %v6158 = vpack.c.b16 %v6131, %v6130
        %v6159 = vpack.c.b16 %v6133, %v6132
        %v6160 = vpack.c.b16 %v6135, %v6134
        %v6161 = vpack.c.b16 %v6137, %v6136
        %v6162 = vpack.c.b16 %v6139, %v6138
        %v6163 = vpack.c.b16 %v6141, %v6140
        %v6164 = vpack.c.b16 %v6143, %v6142
        %v6165 = vpack.c.b16 %v6145, %v6144
        %v6166 = vpack.c.b16 %v6147, %v6146
        %v6167 = vpack.c.b16 %v6149, %v6148
        %v6168 = vpack.c.b16 %v6151, %v6150
        %v6169 = vpack.c.b16 %v6153, %v6152
        %6186 = vmatprep.subr.bf16.mxu0 0
        %6187 = vmatpush1.bf16.msra.mxu0 %v6154
        %6188 = vmatprep.subr.bf16.mxu0 0
        %6189 = vmatpush1.bf16.msra.mxu0 %v6155
        %6190 = vmatprep.subr.bf16.mxu0 0
        %6191 = vmatpush1.bf16.msra.mxu0 %v6156
        %6192 = vmatprep.subr.bf16.mxu0 0
        %6193 = vmatpush1.bf16.msra.mxu0 %v6157
        %6194 = vmatprep.subr.bf16.mxu0 0
        %6195 = vmatpush1.bf16.msra.mxu0 %v6158
        %6196 = vmatprep.subr.bf16.mxu0 0
        %6197 = vmatpush1.bf16.msra.mxu0 %v6159
        %6198 = vmatprep.subr.bf16.mxu0 0
        %6199 = vmatpush1.bf16.msra.mxu0 %v6160
        %6200 = vmatprep.subr.bf16.mxu0 0
        %6201 = vmatpush1.bf16.msra.mxu0 %v6161
        %6202 = vmatprep.subr.bf16.mxu0 0
        %6203 = vmatpush1.bf16.msra.mxu0 %v6162
        %6204 = vmatprep.subr.bf16.mxu0 0
        %6205 = vmatpush1.bf16.msra.mxu0 %v6163
        %6206 = vmatprep.subr.bf16.mxu0 0
        %6207 = vmatpush1.bf16.msra.mxu0 %v6164
        %6208 = vmatprep.subr.bf16.mxu0 0
        %6209 = vmatpush1.bf16.msra.mxu0 %v6165
        %6210 = vmatprep.subr.bf16.mxu0 0
        %6211 = vmatpush1.bf16.msra.mxu0 %v6166
        %6212 = vmatprep.subr.bf16.mxu0 0
        %6213 = vmatpush1.bf16.msra.mxu0 %v6167
        %6214 = vmatprep.subr.bf16.mxu0 0
        %6215 = vmatpush1.bf16.msra.mxu0 %v6168
        %6216 = vmatprep.subr.bf16.mxu0 0
        %6217 = vmatpush1.bf16.msra.mxu0 %v6169
        %6218 = vmatprep.mubr.bf16.mxu0 %v6087
        %6219 = vmatmul.mubr.bf16.gmra.mrb[0].mxu0 %v6086
        %v6220 = vpop.f32.mrb[0].mxu0
        %v6221 = vadd.f32 0.0, %v6220
        %v6222 = vpop.f32.mrb[0].mxu0
        %v6223 = vpop.f32.mrb[0].mxu0
        %v6224 = vpop.f32.mrb[0].mxu0
        %6225 = vdwg.mxu0
        %v6226 = vadd.f32 %v6050, %v6221
        %s6227 = scalar_lea.vmem %s12, 384
        %v6228 = vld [vmem:[%s6227] sm:$0xf]
        %v6229 = vld [vmem:[%s6227 + $0x4] sm:$0xf]
        %v6230 = vld [vmem:[%s6227 + $0x8] sm:$0xf]
        %v6231 = vld [vmem:[%s6227 + $0xc] sm:$0xf]
        %v6232 = vld [vmem:[%s6227 + $0x10] sm:$0xf]
        %v6233 = vld [vmem:[%s6227 + $0x14] sm:$0xf]
        %v6234 = vld [vmem:[%s6227 + $0x18] sm:$0xf]
        %v6235 = vld [vmem:[%s6227 + $0x1c] sm:$0xf]
        %v6236 = vld [vmem:[%s6227 + $0x20] sm:$0xf]
        %v6237 = vld [vmem:[%s6227 + $0x24] sm:$0xf]
        %v6238 = vld [vmem:[%s6227 + $0x28] sm:$0xf]
        %v6239 = vld [vmem:[%s6227 + $0x2c] sm:$0xf]
        %v6240 = vld [vmem:[%s6227 + $0x30] sm:$0xf]
        %v6241 = vld [vmem:[%s6227 + $0x34] sm:$0xf]
        %v6242 = vld [vmem:[%s6227 + $0x38] sm:$0xf]
        %v6243 = vld [vmem:[%s6227 + $0x3c] sm:$0xf]
        %v6244 = vld [vmem:[%s6227 + $0x40] sm:$0xf]
        %v6245 = vld [vmem:[%s6227 + $0x44] sm:$0xf]
        %v6246 = vld [vmem:[%s6227 + $0x48] sm:$0xf]
        %v6247 = vld [vmem:[%s6227 + $0x4c] sm:$0xf]
        %v6248 = vld [vmem:[%s6227 + $0x50] sm:$0xf]
        %v6249 = vld [vmem:[%s6227 + $0x54] sm:$0xf]
        %v6250 = vld [vmem:[%s6227 + $0x58] sm:$0xf]
        %v6251 = vld [vmem:[%s6227 + $0x5c] sm:$0xf]
        %v6252 = vld [vmem:[%s6227 + $0x60] sm:$0xf]
        %v6253 = vld [vmem:[%s6227 + $0x64] sm:$0xf]
        %v6254 = vld [vmem:[%s6227 + $0x68] sm:$0xf]
        %v6255 = vld [vmem:[%s6227 + $0x6c] sm:$0xf]
        %v6256 = vld [vmem:[%s6227 + $0x70] sm:$0xf]
        %v6257 = vld [vmem:[%s6227 + $0x74] sm:$0xf]
        %v6258 = vld [vmem:[%s6227 + $0x78] sm:$0xf]
        %v6259 = vld [vmem:[%s6227 + $0x7c] sm:$0xf]
        %v6260 = vrot.slane %v5907, 1
        %v6261 = vrot.slane %v5910, 1
        %v6296 = vunpack.c.l.b16 %v6228
        %v6297 = vunpack.c.l.b16 %v6229
        %v6298 = vunpack.c.l.b16 %v6230
        %v6299 = vunpack.c.l.b16 %v6231
        %v6300 = vunpack.c.l.b16 %v6232
        %v6301 = vunpack.c.l.b16 %v6233
        %v6302 = vunpack.c.l.b16 %v6234
        %v6303 = vunpack.c.l.b16 %v6235
        %v6304 = vunpack.c.l.b16 %v6236
        %v6305 = vunpack.c.l.b16 %v6237
        %v6306 = vunpack.c.l.b16 %v6238
        %v6307 = vunpack.c.l.b16 %v6239
        %v6308 = vunpack.c.l.b16 %v6240
        %v6309 = vunpack.c.l.b16 %v6241
        %v6310 = vunpack.c.l.b16 %v6242
        %v6311 = vunpack.c.l.b16 %v6243
        %v6312 = vunpack.c.l.b16 %v6244
        %v6313 = vunpack.c.l.b16 %v6245
        %v6314 = vunpack.c.l.b16 %v6246
        %v6315 = vunpack.c.l.b16 %v6247
        %v6316 = vunpack.c.l.b16 %v6248
        %v6317 = vunpack.c.l.b16 %v6249
        %v6318 = vunpack.c.l.b16 %v6250
        %v6319 = vunpack.c.l.b16 %v6251
        %v6320 = vunpack.c.l.b16 %v6252
        %v6321 = vunpack.c.l.b16 %v6253
        %v6322 = vunpack.c.l.b16 %v6254
        %v6323 = vunpack.c.l.b16 %v6255
        %v6324 = vunpack.c.l.b16 %v6256
        %v6325 = vunpack.c.l.b16 %v6257
        %v6326 = vunpack.c.l.b16 %v6258
        %v6327 = vunpack.c.l.b16 %v6259
        %v6328 = vpack.c.b16 %v6297, %v6296
        %v6329 = vpack.c.b16 %v6299, %v6298
        %v6330 = vpack.c.b16 %v6301, %v6300
        %v6331 = vpack.c.b16 %v6303, %v6302
        %v6332 = vpack.c.b16 %v6305, %v6304
        %v6333 = vpack.c.b16 %v6307, %v6306
        %v6334 = vpack.c.b16 %v6309, %v6308
        %v6335 = vpack.c.b16 %v6311, %v6310
        %v6336 = vpack.c.b16 %v6313, %v6312
        %v6337 = vpack.c.b16 %v6315, %v6314
        %v6338 = vpack.c.b16 %v6317, %v6316
        %v6339 = vpack.c.b16 %v6319, %v6318
        %v6340 = vpack.c.b16 %v6321, %v6320
        %v6341 = vpack.c.b16 %v6323, %v6322
        %v6342 = vpack.c.b16 %v6325, %v6324
        %v6343 = vpack.c.b16 %v6327, %v6326
        %6360 = vmatprep.subr.bf16.mxu0 0
        %6361 = vmatpush1.bf16.msra.mxu0 %v6328
        %6362 = vmatprep.subr.bf16.mxu0 0
        %6363 = vmatpush1.bf16.msra.mxu0 %v6329
        %6364 = vmatprep.subr.bf16.mxu0 0
        %6365 = vmatpush1.bf16.msra.mxu0 %v6330
        %6366 = vmatprep.subr.bf16.mxu0 0
        %6367 = vmatpush1.bf16.msra.mxu0 %v6331
        %6368 = vmatprep.subr.bf16.mxu0 0
        %6369 = vmatpush1.bf16.msra.mxu0 %v6332
        %6370 = vmatprep.subr.bf16.mxu0 0
        %6371 = vmatpush1.bf16.msra.mxu0 %v6333
        %6372 = vmatprep.subr.bf16.mxu0 0
        %6373 = vmatpush1.bf16.msra.mxu0 %v6334
        %6374 = vmatprep.subr.bf16.mxu0 0
        %6375 = vmatpush1.bf16.msra.mxu0 %v6335
        %6376 = vmatprep.subr.bf16.mxu0 0
        %6377 = vmatpush1.bf16.msra.mxu0 %v6336
        %6378 = vmatprep.subr.bf16.mxu0 0
        %6379 = vmatpush1.bf16.msra.mxu0 %v6337
        %6380 = vmatprep.subr.bf16.mxu0 0
        %6381 = vmatpush1.bf16.msra.mxu0 %v6338
        %6382 = vmatprep.subr.bf16.mxu0 0
        %6383 = vmatpush1.bf16.msra.mxu0 %v6339
        %6384 = vmatprep.subr.bf16.mxu0 0
        %6385 = vmatpush1.bf16.msra.mxu0 %v6340
        %6386 = vmatprep.subr.bf16.mxu0 0
        %6387 = vmatpush1.bf16.msra.mxu0 %v6341
        %6388 = vmatprep.subr.bf16.mxu0 0
        %6389 = vmatpush1.bf16.msra.mxu0 %v6342
        %6390 = vmatprep.subr.bf16.mxu0 0
        %6391 = vmatpush1.bf16.msra.mxu0 %v6343
        %6392 = vmatprep.mubr.bf16.mxu0 %v6261
        %6393 = vmatmul.mubr.bf16.gmra.mrb[0].mxu0 %v6260
        %v6394 = vpop.f32.mrb[0].mxu0
        %v6395 = vadd.f32 0.0, %v6394
        %v6396 = vpop.f32.mrb[0].mxu0
        %v6397 = vpop.f32.mrb[0].mxu0
        %v6398 = vpop.f32.mrb[0].mxu0
        %6399 = vdwg.mxu0
        %v6400 = vadd.f32 %v6226, %v6395
        %vm6401 = vcmask 73728
        %v6402 = vsel %vm6401, %v6400, -inf
        %6403 = vmax.xlane.f32.xlu0 %v6402
        %v6404 = vpop.xlane.xlu0 %6403
        %v6405 = vsub.f32 %v6400, %v6404
        %v6406 = vmul.f32 %v6405, 1.442695
        %v6407 = vpow.pop %v6406
        %v6408 = vsel %vm6401, %v6407, 0.0
        %6409 = vadd.xlane.f32.xlu0 %v6408
        %v6410 = vpop.xlane.xlu0 %6409
        %v6411 = vrcp.pop %v6410
        %v6412 = vmul.f32 %v6407, %v6411
        %6413 = vst.msk [vmem:[%s497] sm:$0x1] %vm6401, %v6412
        %s6414 = sand.u32 %s337, 1
        %s6415 = scalar_lea.sflag [#allocation4], %s6414
        %s6416 = sand.u32 %s337, 1
        %s6417 = scalar_lea.vmem [#allocation8], %s6416
        // Predicated region
        $region89: #{forward.1} parent=75 // pred_check
          %p6418 = pneg %p347
        $region90: #{forward.1} parent=75 // pred_check_branch
          %6420 = sbr.rel (%p6418) target = $region92
        $region91: #{forward.1} parent=75 // pred_region
          %s6422 = ssub.s32 16, 16
          %6423 = vsyncadd %s6415, %s6422
          %s6424 = smul.addr %s30, 16
          %s6425 = scalar_lea.hbm %s14, %s6424
          %s6427 = sshll.u32 %s6417, 4
          %s6428 = int_to_ptr.vmem [resolvable:$true] %s6427
          %6430 = dma.vmem_to_hbm [thread:$0]  %s6428, 16, %s6425, %s6415
        $region92: #{forward.1} parent=75 // pred_fallthru
          _
      $region76: #{forward.1} parent=5 // pred_fallthru
        _
      %p6431 = scmp.le.s32.totalorder 2, %s25
      // Predicated region
      $region93: #{forward.1} parent=5 // pred_check
        %p6432 = pneg %p6431
      $region94: #{forward.1} parent=5 // pred_check_branch
        %6434 = sbr.rel (%p6432) target = $region96
      $region95: #{forward.1} parent=5 // pred_region
        %s6435 = ssub.s32 %s25, 2
        // Predicated region
        $region97: #{forward.1} parent=95 // pred_check
          %p6436 = pneg %p353
        $region98: #{forward.1} parent=95 // pred_check_branch
          %6438 = sbr.rel (%p6436) target = $region100
        $region99: #{forward.1} parent=95 // pred_region
          %s6439 = sand.u32 %s338, 1
          %s6440 = scalar_lea.sflag [#allocation4], %s6439
          %s6441 = sand.u32 %s338, 1
          %s6442 = scalar_lea.vmem [#allocation8], %s6441
          %6443 = dma.done %s6440, 16
        $region100: #{forward.1} parent=95 // pred_fallthru
          _
      $region96: #{forward.1} parent=5 // pred_fallthru
        _
    $region6: #{forward.1} parent=1 // loop_footer
      %s29 = sadd.s32 1, %s25
    $region7: #{forward.1} parent=1 // loop_footer_branch
      %24 = sbr.rel target = $region3
    $region8: #{forward.1} parent=1 // loop_exit
      _
    %6444 = vsyncpa [#allocation3], 1
    %s6445 = scalar_lea.sflag [#allocation3], 1
    %6446 = vsyncpa %s6445, 1
    %6447 = vsyncpa [#allocation6], 1
    %6448 = vsyncpa [#allocation4], 1
    %s6449 = scalar_lea.sflag [#allocation4], 1
    %6450 = vsyncpa %s6449, 1

</llo_original>
